<compile_context>
chip_gen: v6e
topology: v6e:2x2x1
jax: 0.10.0
libtpu: 0.0.40
codegen_flags: <defaults>
</compile_context>

<pallas_src>
import functools

import numpy as np
import jax
import jax.numpy as jnp
from jax.experimental import pallas as pl

# ----------------------------------------------------------------------------
# Small-shape config consistent with BSEVoxnet's constructor contract.
# ----------------------------------------------------------------------------
BATCH = 2
IN_CH = 4
IMG = 16
PATCH = [4, 2]
D_MODEL = [32, 64]
DEPTH = [1, 1]
EXP = [2, 2]
UPS = 2
BN_EPS = 1e-5
LN_EPS = 1e-5


def _round_up(x, m):
    return ((x + m - 1) // m) * m


def _pad2(x, rows, cols):
    r, c = x.shape
    if (r, c) == (rows, cols):
        return x
    return jnp.pad(x, ((0, rows - r), (0, cols - c)))


# ----------------------------------------------------------------------------
# In-kernel exact GELU.
# nn.GELU() default is the exact erf form.  erf is evaluated with the
# Abramowitz & Stegun 7.1.26 approximation (|err| < 1.5e-7, below f32 matmul
# rounding noise) so the kernel only uses exp / mul / select.
# TODO(synk): switch to jax.lax.erf once Mosaic guarantees an erf lowering.
# ----------------------------------------------------------------------------
def _erf_poly(x):
    t = 1.0 / (1.0 + 0.3275911 * jnp.abs(x))
    poly = ((((1.061405429 * t - 1.453152027) * t + 1.421413741) * t
             - 0.284496736) * t + 0.254829592) * t
    y = 1.0 - poly * jnp.exp(-x * x)
    return jnp.where(x >= 0.0, y, -y)


def _gelu_k(x):
    return 0.5 * x * (1.0 + _erf_poly(x * 0.7071067811865476))


def gelu_xla(x):
    # exact (erf) GELU for the tiny XLA-side ops.
    return jax.nn.gelu(x, approximate=False)


# ----------------------------------------------------------------------------
# Pallas kernels.  Every kernel is a single whole-array invocation (no grid):
# all matmuls in this model have K <= 384, M <= 640, N <= 640, so one
# VMEM-resident block per operand is legal and fastest.
# ----------------------------------------------------------------------------
def _mm_kernel(a_ref, w_ref, b_ref, o_ref, *, act_gelu):
    y = jnp.dot(a_ref[...], w_ref[...],
                preferred_element_type=jnp.float32) + b_ref[...]
    if act_gelu:
        y = _gelu_k(y)
    o_ref[...] = y


def _mm_res_kernel(a_ref, w_ref, b_ref, r_ref, o_ref, *, act_gelu):
    y = jnp.dot(a_ref[...], w_ref[...],
                preferred_element_type=jnp.float32) + b_ref[...]
    if act_gelu:
        y = _gelu_k(y)
    o_ref[...] = y + r_ref[...]


def fused_matmul(a, w, bias=None, residual=None, act_gelu=False):
    """o = [gelu](a @ w + bias) [+ residual], one grid-free pallas_call.

    Operands are zero-padded to (8,128)-aligned MXU shapes; weight/bias pads
    constant-fold under jit, activation pads are small lane-only pads.
    """
    a = a.astype(jnp.float32)
    w = w.astype(jnp.float32)
    M, K = a.shape
    K2, N = w.shape
    assert K == K2
    Mp, Kp, Np = _round_up(M, 8), _round_up(K, 128), _round_up(N, 128)
    ap = _pad2(a, Mp, Kp)
    wp = _pad2(w, Kp, Np)
    if bias is None:
        bp = jnp.zeros((1, Np), jnp.float32)
    else:
        bp = _pad2(bias.astype(jnp.float32).reshape(1, N), 1, Np)
    if residual is None:
        out = pl.pallas_call(
            functools.partial(_mm_kernel, act_gelu=act_gelu),
            out_shape=jax.ShapeDtypeStruct((Mp, Np), jnp.float32),
        )(ap, wp, bp)
    else:
        rp = _pad2(residual.astype(jnp.float32), Mp, Np)
        out = pl.pallas_call(
            functools.partial(_mm_res_kernel, act_gelu=act_gelu),
            out_shape=jax.ShapeDtypeStruct((Mp, Np), jnp.float32),
        )(ap, wp, bp, rp)
    if (Mp, Np) != (M, N):
        out = out[:M, :N]
    return out


def _ln_kernel(x_ref, g_ref, b_ref, o_ref, *, n_valid, eps):
    x = x_ref[...]
    mean = jnp.sum(x, axis=-1, keepdims=True) / n_valid
    var = jnp.sum(x * x, axis=-1, keepdims=True) / n_valid - mean * mean
    o_ref[...] = (x - mean) * jax.lax.rsqrt(var + eps) * g_ref[...] + b_ref[...]


def _ln_mm_kernel(x_ref, g_ref, b_ref, w_ref, wb_ref, o_ref, *, n_valid, eps):
    x = x_ref[...]
    mean = jnp.sum(x, axis=-1, keepdims=True) / n_valid
    var = jnp.sum(x * x, axis=-1, keepdims=True) / n_valid - mean * mean
    y = (x - mean) * jax.lax.rsqrt(var + eps) * g_ref[...] + b_ref[...]
    o_ref[...] = jnp.dot(y, w_ref[...],
                         preferred_element_type=jnp.float32) + wb_ref[...]


def pallas_layernorm(x2d, gamma, beta, eps=LN_EPS):
    """LayerNorm over channels, one full-array kernel (no 8-row tiling)."""
    M, C = x2d.shape
    Mp, Cp = _round_up(M, 8), _round_up(C, 128)
    out = pl.pallas_call(
        functools.partial(_ln_kernel, n_valid=float(C), eps=eps),
        out_shape=jax.ShapeDtypeStruct((Mp, Cp), jnp.float32),
    )(_pad2(x2d.astype(jnp.float32), Mp, Cp),
      _pad2(gamma.astype(jnp.float32).reshape(1, C), 1, Cp),
      _pad2(beta.astype(jnp.float32).reshape(1, C), 1, Cp))
    return out[:M, :C] if (Mp, Cp) != (M, C) else out


def pallas_ln_matmul(x2d, gamma, beta, w, bias, eps=LN_EPS):
    """Fused LayerNorm -> Linear (used for LN1 + S2Attention.mlp1)."""
    M, C = x2d.shape
    C2, N = w.shape
    assert C == C2
    Mp, Cp, Np = _round_up(M, 8), _round_up(C, 128), _round_up(N, 128)
    out = pl.pallas_call(
        functools.partial(_ln_mm_kernel, n_valid=float(C), eps=eps),
        out_shape=jax.ShapeDtypeStruct((Mp, Np), jnp.float32),
    )(_pad2(x2d.astype(jnp.float32), Mp, Cp),
      _pad2(gamma.astype(jnp.float32).reshape(1, C), 1, Cp),
      _pad2(beta.astype(jnp.float32).reshape(1, C), 1, Cp),
      _pad2(w.astype(jnp.float32), Cp, Np),
      _pad2(bias.astype(jnp.float32).reshape(1, N), 1, Np))
    return out[:M, :N] if (Mp, Np) != (M, N) else out


def _convffn_kernel(taps_ref, dww_ref, dwb_ref, w1_ref, b1_ref, w2_ref, b2_ref,
                    r_ref, o_ref):
    # depthwise 3x3 (taps pre-gathered) with BN folded into (dww, dwb)
    z = taps_ref[0] * dww_ref[0]
    for t in range(1, taps_ref.shape[0]):
        z = z + taps_ref[t] * dww_ref[t]
    z = z + dwb_ref[...]
    # fc1 -> GELU -> fc2 -> + residual, hidden activation stays in VMEM.
    h = _gelu_k(jnp.dot(z, w1_ref[...],
                        preferred_element_type=jnp.float32) + b1_ref[...])
    o_ref[...] = (jnp.dot(h, w2_ref[...],
                          preferred_element_type=jnp.float32)
                  + b2_ref[...] + r_ref[...])


def pallas_convffn(y_nhwc, residual_nhwc, p, ks=3):
    """Whole ConvFFN (dwconv+BN -> fc1 -> GELU -> fc2) fused into ONE kernel,
    with the surrounding residual add fused in as well."""
    B, H, W, C = y_nhwc.shape
    M = B * H * W
    Hd = p['fc1']['w'].shape[1]
    T = ks * ks
    Mp, Cp, Hp = _round_up(M, 8), _round_up(C, 128), _round_up(Hd, 128)
    pad = (ks - 1) // 2
    xp = jnp.pad(y_nhwc.astype(jnp.float32),
                 ((0, 0), (pad, pad), (pad, pad), (0, 0)))
    taps = jnp.stack([xp[:, i:i + H, j:j + W, :].reshape(M, C)
                      for i in range(ks) for j in range(ks)], axis=0)  # (T,M,C)
    taps = jnp.pad(taps, ((0, 0), (0, Mp - M), (0, Cp - C)))
    out = pl.pallas_call(
        _convffn_kernel,
        out_shape=jax.ShapeDtypeStruct((Mp, Cp), jnp.float32),
    )(taps,
      _pad2(p['dw_w'].astype(jnp.float32), T, Cp).reshape(T, 1, Cp),
      _pad2(p['dw_b'].astype(jnp.float32).reshape(1, C), 1, Cp),
      _pad2(p['fc1']['w'].astype(jnp.float32), Cp, Hp),
      _pad2(p['fc1']['b'].astype(jnp.float32).reshape(1, Hd), 1, Hp),
      _pad2(p['fc2']['w'].astype(jnp.float32), Hp, Cp),
      _pad2(p['fc2']['b'].astype(jnp.float32).reshape(1, C), 1, Cp),
      _pad2(residual_nhwc.astype(jnp.float32).reshape(M, C), Mp, Cp))
    return out[:M, :C].reshape(B, H, W, C)


# ----------------------------------------------------------------------------
# JAX glue (data movement only) around the kernels
# ----------------------------------------------------------------------------
def conv2d_s2(x, w_hwio, bias, act_gelu):
    """3x3 / stride 2 / pad 1 conv (BN folded) via im2col + fused matmul,
    with the following GELU fused into the kernel epilogue."""
    B, H, W, Cin = x.shape
    kh, kw, _, Cout = w_hwio.shape
    xp = jnp.pad(x, ((0, 0), (1, 1), (1, 1), (0, 0)))
    Ho, Wo = H // 2, W // 2
    cols = [xp[:, ki:ki + 2 * Ho:2, kj:kj + 2 * Wo:2, :]
            for ki in range(kh) for kj in range(kw)]
    patches = jnp.concatenate(cols, axis=-1).reshape(B * Ho * Wo, kh * kw * Cin)
    y = fused_matmul(patches, w_hwio.reshape(kh * kw * Cin, Cout), bias,
                     act_gelu=act_gelu)
    return y.reshape(B, Ho, Wo, Cout)


def patch_embed(x, p):
    x = x * p['pre_alpha'] + p['pre_beta']          # Affine (per-channel FMA, XLA)
    for (w, b), g in zip(p['convs'], p['gelu_after']):
        x = conv2d_s2(x, w, b, act_gelu=g)
    return x * p['post_alpha'] + p['post_beta']     # Affine (XLA)


def spatial_shift1(x):
    b, w, h, c = x.shape
    q = c // 4
    a0 = jnp.concatenate([x[:, :1, :, :q], x[:, :w - 1, :, :q]], axis=1)
    a1 = jnp.concatenate([x[:, 1:, :, q:2 * q], x[:, w - 1:, :, q:2 * q]], axis=1)
    a2 = jnp.concatenate([x[:, :, :1, 2 * q:3 * q], x[:, :, :h - 1, 2 * q:3 * q]], axis=2)
    a3 = jnp.concatenate([x[:, :, 1:, 3 * q:], x[:, :, h - 1:, 3 * q:]], axis=2)
    return jnp.concatenate([a0, a1, a2, a3], axis=-1)


def spatial_shift2(x):
    b, w, h, c = x.shape
    q = c // 4
    a0 = jnp.concatenate([x[:, :, :1, :q], x[:, :, :h - 1, :q]], axis=2)
    a1 = jnp.concatenate([x[:, :, 1:, q:2 * q], x[:, :, h - 1:, q:2 * q]], axis=2)
    a2 = jnp.concatenate([x[:, :1, :, 2 * q:3 * q], x[:, :w - 1, :, 2 * q:3 * q]], axis=1)
    a3 = jnp.concatenate([x[:, 1:, :, 3 * q:], x[:, w - 1:, :, 3 * q:]], axis=1)
    return jnp.concatenate([a0, a1, a2, a3], axis=-1)


def s2_attention_block(x, blk):
    """PreNormResidual(S2Attention): LN1 fused into mlp1; the 2-row
    SplitAttention matmuls stay in XLA; mlp2 fused with the skip connection."""
    B, H, W, C = x.shape
    M = B * H * W
    p = blk['attn']
    y3 = pallas_ln_matmul(x.reshape(M, C), blk['ln1_g'], blk['ln1_b'],
                          p['mlp1']['w'], p['mlp1']['b']).reshape(B, H, W, 3 * C)
    x1 = spatial_shift1(y3[..., :C])
    x2 = spatial_shift2(y3[..., C:2 * C])
    x3 = y3[..., 2 * C:]
    xf = jnp.stack([x1, x2, x3], axis=1).reshape(B, 3, H * W, C)
    # SplitAttention (B=2 rows -> left to XLA per perf review)
    a = jnp.sum(xf, axis=(1, 2))                                     # (B, C)
    hat = jnp.dot(gelu_xla(jnp.dot(a, p['sa_mlp1']['w'])), p['sa_mlp2']['w'])
    bar = jax.nn.softmax(hat.reshape(B, 3, C), axis=1)
    att = jnp.sum(bar[:, :, None, :] * xf, axis=1).reshape(M, C)
    # mlp2 + residual (PreNormResidual skip) fused into one kernel.
    out = fused_matmul(att, p['mlp2']['w'], p['mlp2']['b'],
                       residual=x.reshape(M, C))
    return out.reshape(B, H, W, C)


def s2_block(x, blocks):
    for blk in blocks:
        x = s2_attention_block(x, blk)
        B, H, W, C = x.shape
        y = pallas_layernorm(x.reshape(-1, C), blk['ln2_g'], blk['ln2_b'])
        x = pallas_convffn(y.reshape(B, H, W, C), x, blk['ffn'], ks=3)
    return x


def _cubic_w(d, a=-0.75):
    d = abs(d)
    if d <= 1.0:
        return (a + 2.0) * d ** 3 - (a + 3.0) * d ** 2 + 1.0
    if d < 2.0:
        return a * d ** 3 - 5.0 * a * d ** 2 + 8.0 * a * d - 4.0 * a
    return 0.0


def _bicubic_matrix(n_in, n_out):
    R = np.zeros((n_out, n_in), dtype=np.float32)
    if n_in == 1:
        R[:, 0] = 1.0
        return R
    scale = (n_in - 1) / (n_out - 1)
    for i in range(n_out):
        x = i * scale
        x0 = int(np.floor(x))
        t = x - x0
        for k in range(-1, 3):
            idx = min(max(x0 + k, 0), n_in - 1)
            R[i, idx] += _cubic_w(t - k)
    return R


@functools.lru_cache(maxsize=None)
def _upsample_kron(B, H, W):
    """kron(I_B, kron(Rh, Rw)): one matmul replaces the two separable resizes
    and all four transposes (channels stay on the lane axis throughout)."""
    R = np.kron(_bicubic_matrix(H, 2 * H), _bicubic_matrix(W, 2 * W))
    return np.kron(np.eye(B, dtype=np.float32), R).astype(np.float32)


def upsample2x_bicubic(x):
    """nn.Upsample(scale_factor=2, mode='bicubic', align_corners=True), NHWC."""
    B, H, W, C = x.shape
    R = jnp.asarray(_upsample_kron(B, H, W))        # (B*4HW, B*HW), constant
    y = fused_matmul(R, x.reshape(B * H * W, C))
    return y.reshape(B, 2 * H, 2 * W, C)


def conv3d_valid(vol, w_km):
    """Conv3d(1, 2, k=5, no bias, valid).  Oriented lane-dense:
    out(2, B*Do*Ho*Wo) = W^T(2,125) @ patches(125, B*Do*Ho*Wo)."""
    B, D, H, W = vol.shape
    k = 5
    Do, Ho, Wo = D - k + 1, H - k + 1, W - k + 1
    taps = [vol[:, kd:kd + Do, ki:ki + Ho, kj:kj + Wo].reshape(-1)
            for kd in range(k) for ki in range(k) for kj in range(k)]
    patches = jnp.stack(taps, axis=0)                      # (125, B*Do*Ho*Wo)
    y = fused_matmul(w_km.T, patches)                      # (2, B*Do*Ho*Wo)
    return jnp.transpose(y.reshape(w_km.shape[1], B, Do, Ho, Wo),
                         (1, 0, 2, 3, 4))                  # NCDHW


def bse_voxnet_forward(x_nchw, params):
    x = jnp.transpose(x_nchw, (0, 2, 3, 1)).astype(jnp.float32)   # NCHW -> NHWC
    for st in params['stages']:
        x = patch_embed(x, st['embed'])
        x = s2_block(x, st['s2'])
    for p in params['upcfn']:
        xu = upsample2x_bicubic(x)
        x = pallas_convffn(xu, xu, p, ks=3)      # ConvFFN(change_chan=False): +short_cut
    B, H, W, C = x.shape
    dep = fused_matmul(x.reshape(-1, C), params['emb2dep']['w'],
                       params['emb2dep']['b'])
    vol = jnp.transpose(dep.reshape(B, H, W, 24), (0, 3, 1, 2))   # (B,24,H,W)
    return conv3d_valid(vol, params['out_w'])                     # (B,2,20,H-4,W-4)


# ----------------------------------------------------------------------------
# Deterministic parameter initialization (BatchNorm folded into convs)
# ----------------------------------------------------------------------------
class KeyGen:
    def __init__(self, seed):
        self.key = jax.random.PRNGKey(seed)

    def __call__(self):
        self.key, sub = jax.random.split(self.key)
        return sub


def init_params(kg):
    def rnd(shape, scale=0.1):
        return scale * jax.random.normal(kg(), shape, jnp.float32)

    def init_bn(c):
        return dict(gamma=1.0 + rnd((c,), 0.05), beta=rnd((c,), 0.05),
                    mean=rnd((c,), 0.05), var=1.0 + jnp.abs(rnd((c,), 0.05)))

    def fold_conv_bn(w, bn):
        s = bn['gamma'] / jnp.sqrt(bn['var'] + BN_EPS)
        return w * s, bn['beta'] - bn['mean'] * s

    def init_linear(cin, cout, bias=True):
        return dict(w=rnd((cin, cout)), b=rnd((cout,)) if bias else None)

    def init_patch_embed(cin, cout, ps):
        p = dict(pre_alpha=1.0 + rnd((cin,), 0.05), pre_beta=rnd((cin,), 0.05),
                 post_alpha=1.0 + rnd((cout,), 0.05), post_beta=rnd((cout,), 0.05))
        if ps == 4:
            chans, gelu_after = [(cin, cout // 2), (cout // 2, cout)], [True, False]
        elif ps == 2:
            chans, gelu_after = [(cin, cout)], [True]
        else:
            raise ValueError('patch size must be 2 or 4 in this config')
        p['convs'] = [fold_conv_bn(rnd((3, 3, ci, co)), init_bn(co))
                      for ci, co in chans]
        p['gelu_after'] = gelu_after
        return p

    def init_convffn(cin, hidden, ks=3):
        w, b = fold_conv_bn(rnd((ks * ks, cin)), init_bn(cin))
        return dict(dw_w=w, dw_b=b,
                    fc1=init_linear(cin, hidden), fc2=init_linear(hidden, cin))

    def init_s2_attn(c):
        return dict(mlp1=init_linear(c, 3 * c), mlp2=init_linear(c, c),
                    sa_mlp1=init_linear(c, c, bias=False),
                    sa_mlp2=init_linear(c, 3 * c, bias=False))

    def init_s2_block(d, depth, exp):
        return [dict(ln1_g=1.0 + rnd((d,), 0.05), ln1_b=rnd((d,), 0.05),
                     attn=init_s2_attn(d),
                     ln2_g=1.0 + rnd((d,), 0.05), ln2_b=rnd((d,), 0.05),
                     ffn=init_convffn(d, d * exp, 3))
                for _ in range(depth)]

    stages = []
    cin = IN_CH
    for i in range(len(PATCH)):
        stages.append(dict(embed=init_patch_embed(cin, D_MODEL[i], PATCH[i]),
                           s2=init_s2_block(D_MODEL[i], DEPTH[i], EXP[i])))
        cin = D_MODEL[i]
    return dict(
        stages=stages,
        upcfn=[init_convffn(D_MODEL[-1], D_MODEL[-1] * 4, 3) for _ in range(UPS)],
        emb2dep=init_linear(D_MODEL[-1], 24),
        out_w=rnd((5 * 5 * 5, 2)),
    )


if __name__ == "__main__":
    # divisibility checks mirroring BSEVoxnet.__init__
    oldps = 1
    for ps in PATCH:
        assert IMG % (ps * oldps) == 0
        oldps *= ps

    params = init_params(KeyGen(1))
    x = jax.random.normal(jax.random.PRNGKey(0), (BATCH, IN_CH, IMG, IMG),
                          jnp.float32)

    fwd = jax.jit(lambda inp: bse_voxnet_forward(inp, params))
    out = jax.block_until_ready(fwd(x))

    final_hw = IMG // (PATCH[0] * PATCH[1]) * (2 ** UPS)        # 8
    expected = (BATCH, 2, 24 - 4, final_hw - 4, final_hw - 4)   # (2, 2, 20, 4, 4)
    assert out.shape == expected, (out.shape, expected)
    assert bool(jnp.all(jnp.isfinite(out)))
    print("KERNEL_OK")
</pallas_src>

<mosaic_0001>
module attributes {stable_mosaic.version = 11 : i64} {
  func.func @_mm_kernel(%arg0: memref<128x128xf32, #tpu.memory_space<vmem>>, %arg1: memref<128x128xf32, #tpu.memory_space<vmem>>, %arg2: memref<1x128xf32, #tpu.memory_space<vmem>>, %arg3: memref<128x128xf32, #tpu.memory_space<vmem>>) attributes {dimension_semantics = [], scalar_prefetch = 0 : i64, scratch_operands = 0 : i64, tpu.core_type = #tpu.core_type<tc>} {
    %c0 = arith.constant 0 : index
    %c0_0 = arith.constant 0 : index
    %0 = vector.load %arg0[%c0, %c0_0] : memref<128x128xf32, #tpu.memory_space<vmem>>, vector<128x128xf32>
    %c0_1 = arith.constant 0 : index
    %c0_2 = arith.constant 0 : index
    %1 = vector.load %arg1[%c0_1, %c0_2] : memref<128x128xf32, #tpu.memory_space<vmem>>, vector<128x128xf32>
    %cst = arith.constant dense<0.000000e+00> : vector<128x128xf32>
    %2 = tpu.matmul %0, %1, %cst {dimension_numbers = #tpu.dot_dimension_numbers<[1], [0], [0], [1], [0, 0, 1, 1], [], []>} : vector<128x128xf32>, vector<128x128xf32>, vector<128x128xf32> -> vector<128x128xf32>
    %c0_3 = arith.constant 0 : index
    %c0_4 = arith.constant 0 : index
    %3 = vector.load %arg2[%c0_3, %c0_4] : memref<1x128xf32, #tpu.memory_space<vmem>>, vector<1x128xf32>
    %4 = vector.broadcast %3 : vector<1x128xf32> to vector<128x128xf32>
    %5 = arith.addf %2, %4 : vector<128x128xf32>
    %cst_5 = arith.constant 5.000000e-01 : f32
    %6 = vector.broadcast %cst_5 : f32 to vector<128x128xf32>
    %7 = arith.mulf %6, %5 : vector<128x128xf32>
    %cst_6 = arith.constant 0.707106769 : f32
    %8 = vector.broadcast %cst_6 : f32 to vector<128x128xf32>
    %9 = arith.mulf %5, %8 : vector<128x128xf32>
    %10 = math.absf %9 : vector<128x128xf32>
    %cst_7 = arith.constant 0.327591091 : f32
    %11 = vector.broadcast %cst_7 : f32 to vector<128x128xf32>
    %12 = arith.mulf %11, %10 : vector<128x128xf32>
    %cst_8 = arith.constant 1.000000e+00 : f32
    %13 = vector.broadcast %cst_8 : f32 to vector<128x128xf32>
    %14 = arith.addf %13, %12 : vector<128x128xf32>
    %cst_9 = arith.constant 1.000000e+00 : f32
    %15 = vector.broadcast %cst_9 : f32 to vector<128x128xf32>
    %16 = arith.divf %15, %14 : vector<128x128xf32>
    %cst_10 = arith.constant 1.06140542 : f32
    %17 = vector.broadcast %cst_10 : f32 to vector<128x128xf32>
    %18 = arith.mulf %17, %16 : vector<128x128xf32>
    %cst_11 = arith.constant 1.45315206 : f32
    %19 = vector.broadcast %cst_11 : f32 to vector<128x128xf32>
    %20 = arith.subf %18, %19 : vector<128x128xf32>
    %21 = arith.mulf %20, %16 : vector<128x128xf32>
    %cst_12 = arith.constant 1.42141378 : f32
    %22 = vector.broadcast %cst_12 : f32 to vector<128x128xf32>
    %23 = arith.addf %21, %22 : vector<128x128xf32>
    %24 = arith.mulf %23, %16 : vector<128x128xf32>
    %cst_13 = arith.constant 0.284496725 : f32
    %25 = vector.broadcast %cst_13 : f32 to vector<128x128xf32>
    %26 = arith.subf %24, %25 : vector<128x128xf32>
    %27 = arith.mulf %26, %16 : vector<128x128xf32>
    %cst_14 = arith.constant 0.254829586 : f32
    %28 = vector.broadcast %cst_14 : f32 to vector<128x128xf32>
    %29 = arith.addf %27, %28 : vector<128x128xf32>
    %30 = arith.mulf %29, %16 : vector<128x128xf32>
    %cst_15 = arith.constant 0.000000e+00 : f32
    %31 = vector.broadcast %cst_15 : f32 to vector<128x128xf32>
    %32 = arith.subf %31, %9 : vector<128x128xf32>
    %33 = arith.mulf %32, %9 : vector<128x128xf32>
    %34 = math.exp %33 : vector<128x128xf32>
    %35 = arith.mulf %30, %34 : vector<128x128xf32>
    %cst_16 = arith.constant 1.000000e+00 : f32
    %36 = vector.broadcast %cst_16 : f32 to vector<128x128xf32>
    %37 = arith.subf %36, %35 : vector<128x128xf32>
    %cst_17 = arith.constant 0.000000e+00 : f32
    %38 = vector.broadcast %cst_17 : f32 to vector<128x128xf32>
    %39 = arith.cmpf oge, %9, %38 : vector<128x128xf32>
    %cst_18 = arith.constant 0.000000e+00 : f32
    %40 = vector.broadcast %cst_18 : f32 to vector<128x128xf32>
    %41 = arith.subf %40, %37 : vector<128x128xf32>
    %42 = arith.select %39, %37, %41 : vector<128x128xi1>, vector<128x128xf32>
    %cst_19 = arith.constant 1.000000e+00 : f32
    %43 = vector.broadcast %cst_19 : f32 to vector<128x128xf32>
    %44 = arith.addf %43, %42 : vector<128x128xf32>
    %45 = arith.mulf %7, %44 : vector<128x128xf32>
    %c0_20 = arith.constant 0 : index
    %c0_21 = arith.constant 0 : index
    %46 = vector.load %arg3[%c0_20, %c0_21] : memref<128x128xf32, #tpu.memory_space<vmem>>, vector<128x128xf32>
    tpu.vector_store %arg3[%c0_20, %c0_21], %45 {strides = array<i32>} : memref<128x128xf32, #tpu.memory_space<vmem>>, vector<128x128xf32>,
    return
  }
}

module attributes {stable_mosaic.version = 11 : i64} {
  func.func @_mm_kernel(%arg0: memref<32x256xf32, #tpu.memory_space<vmem>>, %arg1: memref<256x128xf32, #tpu.memory_space<vmem>>, %arg2: memref<1x128xf32, #tpu.memory_space<vmem>>, %arg3: memref<32x128xf32, #tpu.memory_space<vmem>>) attributes {dimension_semantics = [], scalar_prefetch = 0 : i64, scratch_operands = 0 : i64, tpu.core_type = #tpu.core_type<tc>} {
    %c0 = arith.constant 0 : index
    %c0_0 = arith.constant 0 : index
    %0 = vector.load %arg0[%c0, %c0_0] : memref<32x256xf32, #tpu.memory_space<vmem>>, vector<32x256xf32>
    %c0_1 = arith.constant 0 : index
    %c0_2 = arith.constant 0 : index
    %1 = vector.load %arg1[%c0_1, %c0_2] : memref<256x128xf32, #tpu.memory_space<vmem>>, vector<256x128xf32>
    %cst = arith.constant dense<0.000000e+00> : vector<32x128xf32>
    %2 = tpu.matmul %0, %1, %cst {dimension_numbers = #tpu.dot_dimension_numbers<[1], [0], [0], [1], [0, 0, 1, 1], [], []>} : vector<32x256xf32>, vector<256x128xf32>, vector<32x128xf32> -> vector<32x128xf32>
    %c0_3 = arith.constant 0 : index
    %c0_4 = arith.constant 0 : index
    %3 = vector.load %arg2[%c0_3, %c0_4] : memref<1x128xf32, #tpu.memory_space<vmem>>, vector<1x128xf32>
    %4 = vector.broadcast %3 : vector<1x128xf32> to vector<32x128xf32>
    %5 = arith.addf %2, %4 : vector<32x128xf32>
    %c0_5 = arith.constant 0 : index
    %c0_6 = arith.constant 0 : index
    %6 = vector.load %arg3[%c0_5, %c0_6] : memref<32x128xf32, #tpu.memory_space<vmem>>, vector<32x128xf32>
    tpu.vector_store %arg3[%c0_5, %c0_6], %5 {strides = array<i32>} : memref<32x128xf32, #tpu.memory_space<vmem>>, vector<32x128xf32>,
    return
  }
}

module attributes {stable_mosaic.version = 11 : i64} {
  func.func @_ln_mm_kernel(%arg0: memref<32x128xf32, #tpu.memory_space<vmem>>, %arg1: memref<1x128xf32, #tpu.memory_space<vmem>>, %arg2: memref<1x128xf32, #tpu.memory_space<vmem>>, %arg3: memref<128x128xf32, #tpu.memory_space<vmem>>, %arg4: memref<1x128xf32, #tpu.memory_space<vmem>>, %arg5: memref<32x128xf32, #tpu.memory_space<vmem>>) attributes {dimension_semantics = [], scalar_prefetch = 0 : i64, scratch_operands = 0 : i64, tpu.core_type = #tpu.core_type<tc>} {
    %c0 = arith.constant 0 : index
    %c0_0 = arith.constant 0 : index
    %0 = vector.load %arg0[%c0, %c0_0] : memref<32x128xf32, #tpu.memory_space<vmem>>, vector<32x128xf32>
    %cst = arith.constant dense<0.000000e+00> : vector<32xf32>
    %1 = vector.multi_reduction <add>, %0, %cst [1] : vector<32x128xf32> to vector<32xf32>
    %2 = vector.shape_cast %1 : vector<32xf32> to vector<32x1xf32>
    %cst_1 = arith.constant 3.200000e+01 : f32
    %3 = vector.broadcast %cst_1 : f32 to vector<32x1xf32>
    %4 = arith.divf %2, %3 : vector<32x1xf32>
    %5 = arith.mulf %0, %0 : vector<32x128xf32>
    %cst_2 = arith.constant dense<0.000000e+00> : vector<32xf32>
    %6 = vector.multi_reduction <add>, %5, %cst_2 [1] : vector<32x128xf32> to vector<32xf32>
    %7 = vector.shape_cast %6 : vector<32xf32> to vector<32x1xf32>
    %cst_3 = arith.constant 3.200000e+01 : f32
    %8 = vector.broadcast %cst_3 : f32 to vector<32x1xf32>
    %9 = arith.divf %7, %8 : vector<32x1xf32>
    %10 = arith.mulf %4, %4 : vector<32x1xf32>
    %11 = arith.subf %9, %10 : vector<32x1xf32>
    %12 = vector.broadcast %4 : vector<32x1xf32> to vector<32x128xf32>
    %13 = arith.subf %0, %12 : vector<32x128xf32>
    %cst_4 = arith.constant 9.99999974E-6 : f32
    %14 = vector.broadcast %cst_4 : f32 to vector<32x1xf32>
    %15 = arith.addf %11, %14 : vector<32x1xf32>
    %16 = math.rsqrt %15 : vector<32x1xf32>
    %17 = vector.broadcast %16 : vector<32x1xf32> to vector<32x128xf32>
    %18 = arith.mulf %13, %17 : vector<32x128xf32>
    %c0_5 = arith.constant 0 : index
    %c0_6 = arith.constant 0 : index
    %19 = vector.load %arg1[%c0_5, %c0_6] : memref<1x128xf32, #tpu.memory_space<vmem>>, vector<1x128xf32>
    %20 = vector.broadcast %19 : vector<1x128xf32> to vector<32x128xf32>
    %21 = arith.mulf %18, %20 : vector<32x128xf32>
    %c0_7 = arith.constant 0 : index
    %c0_8 = arith.constant 0 : index
    %22 = vector.load %arg2[%c0_7, %c0_8] : memref<1x128xf32, #tpu.memory_space<vmem>>, vector<1x128xf32>
    %23 = vector.broadcast %22 : vector<1x128xf32> to vector<32x128xf32>
    %24 = arith.addf %21, %23 : vector<32x128xf32>
    %c0_9 = arith.constant 0 : index
    %c0_10 = arith.constant 0 : index
    %25 = vector.load %arg3[%c0_9, %c0_10] : memref<128x128xf32, #tpu.memory_space<vmem>>, vector<128x128xf32>
    %cst_11 = arith.constant dense<0.000000e+00> : vector<32x128xf32>
    %26 = tpu.matmul %24, %25, %cst_11 {dimension_numbers = #tpu.dot_dimension_numbers<[1], [0], [0], [1], [0, 0, 1, 1], [], []>} : vector<32x128xf32>, vector<128x128xf32>, vector<32x128xf32> -> vector<32x128xf32>
    %c0_12 = arith.constant 0 : index
    %c0_13 = arith.constant 0 : index
    %27 = vector.load %arg4[%c0_12, %c0_13] : memref<1x128xf32, #tpu.memory_space<vmem>>, vector<1x128xf32>
    %28 = vector.broadcast %27 : vector<1x128xf32> to vector<32x128xf32>
    %29 = arith.addf %26, %28 : vector<32x128xf32>
    %c0_14 = arith.constant 0 : index
    %c0_15 = arith.constant 0 : index
    %30 = vector.load %arg5[%c0_14, %c0_15] : memref<32x128xf32, #tpu.memory_space<vmem>>, vector<32x128xf32>
    tpu.vector_store %arg5[%c0_14, %c0_15], %29 {strides = array<i32>} : memref<32x128xf32, #tpu.memory_space<vmem>>, vector<32x128xf32>,
    return
  }
}

module attributes {stable_mosaic.version = 11 : i64} {
  func.func @_mm_res_kernel(%arg0: memref<32x128xf32, #tpu.memory_space<vmem>>, %arg1: memref<128x128xf32, #tpu.memory_space<vmem>>, %arg2: memref<1x128xf32, #tpu.memory_space<vmem>>, %arg3: memref<32x128xf32, #tpu.memory_space<vmem>>, %arg4: memref<32x128xf32, #tpu.memory_space<vmem>>) attributes {dimension_semantics = [], scalar_prefetch = 0 : i64, scratch_operands = 0 : i64, tpu.core_type = #tpu.core_type<tc>} {
    %c0 = arith.constant 0 : index
    %c0_0 = arith.constant 0 : index
    %0 = vector.load %arg0[%c0, %c0_0] : memref<32x128xf32, #tpu.memory_space<vmem>>, vector<32x128xf32>
    %c0_1 = arith.constant 0 : index
    %c0_2 = arith.constant 0 : index
    %1 = vector.load %arg1[%c0_1, %c0_2] : memref<128x128xf32, #tpu.memory_space<vmem>>, vector<128x128xf32>
    %cst = arith.constant dense<0.000000e+00> : vector<32x128xf32>
    %2 = tpu.matmul %0, %1, %cst {dimension_numbers = #tpu.dot_dimension_numbers<[1], [0], [0], [1], [0, 0, 1, 1], [], []>} : vector<32x128xf32>, vector<128x128xf32>, vector<32x128xf32> -> vector<32x128xf32>
    %c0_3 = arith.constant 0 : index
    %c0_4 = arith.constant 0 : index
    %3 = vector.load %arg2[%c0_3, %c0_4] : memref<1x128xf32, #tpu.memory_space<vmem>>, vector<1x128xf32>
    %4 = vector.broadcast %3 : vector<1x128xf32> to vector<32x128xf32>
    %5 = arith.addf %2, %4 : vector<32x128xf32>
    %c0_5 = arith.constant 0 : index
    %c0_6 = arith.constant 0 : index
    %6 = vector.load %arg3[%c0_5, %c0_6] : memref<32x128xf32, #tpu.memory_space<vmem>>, vector<32x128xf32>
    %7 = arith.addf %5, %6 : vector<32x128xf32>
    %c0_7 = arith.constant 0 : index
    %c0_8 = arith.constant 0 : index
    %8 = vector.load %arg4[%c0_7, %c0_8] : memref<32x128xf32, #tpu.memory_space<vmem>>, vector<32x128xf32>
    tpu.vector_store %arg4[%c0_7, %c0_8], %7 {strides = array<i32>} : memref<32x128xf32, #tpu.memory_space<vmem>>, vector<32x128xf32>,
    return
  }
}

module attributes {stable_mosaic.version = 11 : i64} {
  func.func @_ln_kernel(%arg0: memref<32x128xf32, #tpu.memory_space<vmem>>, %arg1: memref<1x128xf32, #tpu.memory_space<vmem>>, %arg2: memref<1x128xf32, #tpu.memory_space<vmem>>, %arg3: memref<32x128xf32, #tpu.memory_space<vmem>>) attributes {dimension_semantics = [], scalar_prefetch = 0 : i64, scratch_operands = 0 : i64, tpu.core_type = #tpu.core_type<tc>} {
    %c0 = arith.constant 0 : index
    %c0_0 = arith.constant 0 : index
    %0 = vector.load %arg0[%c0, %c0_0] : memref<32x128xf32, #tpu.memory_space<vmem>>, vector<32x128xf32>
    %cst = arith.constant dense<0.000000e+00> : vector<32xf32>
    %1 = vector.multi_reduction <add>, %0, %cst [1] : vector<32x128xf32> to vector<32xf32>
    %2 = vector.shape_cast %1 : vector<32xf32> to vector<32x1xf32>
    %cst_1 = arith.constant 3.200000e+01 : f32
    %3 = vector.broadcast %cst_1 : f32 to vector<32x1xf32>
    %4 = arith.divf %2, %3 : vector<32x1xf32>
    %5 = arith.mulf %0, %0 : vector<32x128xf32>
    %cst_2 = arith.constant dense<0.000000e+00> : vector<32xf32>
    %6 = vector.multi_reduction <add>, %5, %cst_2 [1] : vector<32x128xf32> to vector<32xf32>
    %7 = vector.shape_cast %6 : vector<32xf32> to vector<32x1xf32>
    %cst_3 = arith.constant 3.200000e+01 : f32
    %8 = vector.broadcast %cst_3 : f32 to vector<32x1xf32>
    %9 = arith.divf %7, %8 : vector<32x1xf32>
    %10 = arith.mulf %4, %4 : vector<32x1xf32>
    %11 = arith.subf %9, %10 : vector<32x1xf32>
    %12 = vector.broadcast %4 : vector<32x1xf32> to vector<32x128xf32>
    %13 = arith.subf %0, %12 : vector<32x128xf32>
    %cst_4 = arith.constant 9.99999974E-6 : f32
    %14 = vector.broadcast %cst_4 : f32 to vector<32x1xf32>
    %15 = arith.addf %11, %14 : vector<32x1xf32>
    %16 = math.rsqrt %15 : vector<32x1xf32>
    %17 = vector.broadcast %16 : vector<32x1xf32> to vector<32x128xf32>
    %18 = arith.mulf %13, %17 : vector<32x128xf32>
    %c0_5 = arith.constant 0 : index
    %c0_6 = arith.constant 0 : index
    %19 = vector.load %arg1[%c0_5, %c0_6] : memref<1x128xf32, #tpu.memory_space<vmem>>, vector<1x128xf32>
    %20 = vector.broadcast %19 : vector<1x128xf32> to vector<32x128xf32>
    %21 = arith.mulf %18, %20 : vector<32x128xf32>
    %c0_7 = arith.constant 0 : index
    %c0_8 = arith.constant 0 : index
    %22 = vector.load %arg2[%c0_7, %c0_8] : memref<1x128xf32, #tpu.memory_space<vmem>>, vector<1x128xf32>
    %23 = vector.broadcast %22 : vector<1x128xf32> to vector<32x128xf32>
    %24 = arith.addf %21, %23 : vector<32x128xf32>
    %c0_9 = arith.constant 0 : index
    %c0_10 = arith.constant 0 : index
    %25 = vector.load %arg3[%c0_9, %c0_10] : memref<32x128xf32, #tpu.memory_space<vmem>>, vector<32x128xf32>
    tpu.vector_store %arg3[%c0_9, %c0_10], %24 {strides = array<i32>} : memref<32x128xf32, #tpu.memory_space<vmem>>, vector<32x128xf32>,
    return
  }
}

module attributes {stable_mosaic.version = 11 : i64} {
  func.func @_convffn_kernel(%arg0: memref<9x32x128xf32, #tpu.memory_space<vmem>>, %arg1: memref<9x1x128xf32, #tpu.memory_space<vmem>>, %arg2: memref<1x128xf32, #tpu.memory_space<vmem>>, %arg3: memref<128x128xf32, #tpu.memory_space<vmem>>, %arg4: memref<1x128xf32, #tpu.memory_space<vmem>>, %arg5: memref<128x128xf32, #tpu.memory_space<vmem>>, %arg6: memref<1x128xf32, #tpu.memory_space<vmem>>, %arg7: memref<32x128xf32, #tpu.memory_space<vmem>>, %arg8: memref<32x128xf32, #tpu.memory_space<vmem>>) attributes {dimension_semantics = [], scalar_prefetch = 0 : i64, scratch_operands = 0 : i64, tpu.core_type = #tpu.core_type<tc>} {
    %c0 = arith.constant 0 : index
    %c0_0 = arith.constant 0 : index
    %c0_1 = arith.constant 0 : index
    %0 = vector.load %arg0[%c0, %c0_0, %c0_1] : memref<9x32x128xf32, #tpu.memory_space<vmem>>, vector<1x32x128xf32>
    %1 = vector.shape_cast %0 : vector<1x32x128xf32> to vector<32x128xf32>
    %c0_2 = arith.constant 0 : index
    %c0_3 = arith.constant 0 : index
    %c0_4 = arith.constant 0 : index
    %2 = vector.load %arg1[%c0_2, %c0_3, %c0_4] : memref<9x1x128xf32, #tpu.memory_space<vmem>>, vector<1x1x128xf32>
    %3 = vector.shape_cast %2 : vector<1x1x128xf32> to vector<1x128xf32>
    %4 = vector.broadcast %3 : vector<1x128xf32> to vector<32x128xf32>
    %5 = arith.mulf %1, %4 : vector<32x128xf32>
    %c1 = arith.constant 1 : index
    %c0_5 = arith.constant 0 : index
    %c0_6 = arith.constant 0 : index
    %6 = vector.load %arg0[%c1, %c0_5, %c0_6] : memref<9x32x128xf32, #tpu.memory_space<vmem>>, vector<1x32x128xf32>
    %7 = vector.shape_cast %6 : vector<1x32x128xf32> to vector<32x128xf32>
    %c1_7 = arith.constant 1 : index
    %c0_8 = arith.constant 0 : index
    %c0_9 = arith.constant 0 : index
    %8 = vector.load %arg1[%c1_7, %c0_8, %c0_9] : memref<9x1x128xf32, #tpu.memory_space<vmem>>, vector<1x1x128xf32>
    %9 = vector.shape_cast %8 : vector<1x1x128xf32> to vector<1x128xf32>
    %10 = vector.broadcast %9 : vector<1x128xf32> to vector<32x128xf32>
    %11 = arith.mulf %7, %10 : vector<32x128xf32>
    %12 = arith.addf %5, %11 : vector<32x128xf32>
    %c2 = arith.constant 2 : index
    %c0_10 = arith.constant 0 : index
    %c0_11 = arith.constant 0 : index
    %13 = vector.load %arg0[%c2, %c0_10, %c0_11] : memref<9x32x128xf32, #tpu.memory_space<vmem>>, vector<1x32x128xf32>
    %14 = vector.shape_cast %13 : vector<1x32x128xf32> to vector<32x128xf32>
    %c2_12 = arith.constant 2 : index
    %c0_13 = arith.constant 0 : index
    %c0_14 = arith.constant 0 : index
    %15 = vector.load %arg1[%c2_12, %c0_13, %c0_14] : memref<9x1x128xf32, #tpu.memory_space<vmem>>, vector<1x1x128xf32>
    %16 = vector.shape_cast %15 : vector<1x1x128xf32> to vector<1x128xf32>
    %17 = vector.broadcast %16 : vector<1x128xf32> to vector<32x128xf32>
    %18 = arith.mulf %14, %17 : vector<32x128xf32>
    %19 = arith.addf %12, %18 : vector<32x128xf32>
    %c3 = arith.constant 3 : index
    %c0_15 = arith.constant 0 : index
    %c0_16 = arith.constant 0 : index
    %20 = vector.load %arg0[%c3, %c0_15, %c0_16] : memref<9x32x128xf32, #tpu.memory_space<vmem>>, vector<1x32x128xf32>
    %21 = vector.shape_cast %20 : vector<1x32x128xf32> to vector<32x128xf32>
    %c3_17 = arith.constant 3 : index
    %c0_18 = arith.constant 0 : index
    %c0_19 = arith.constant 0 : index
    %22 = vector.load %arg1[%c3_17, %c0_18, %c0_19] : memref<9x1x128xf32, #tpu.memory_space<vmem>>, vector<1x1x128xf32>
    %23 = vector.shape_cast %22 : vector<1x1x128xf32> to vector<1x128xf32>
    %24 = vector.broadcast %23 : vector<1x128xf32> to vector<32x128xf32>
    %25 = arith.mulf %21, %24 : vector<32x128xf32>
    %26 = arith.addf %19, %25 : vector<32x128xf32>
    %c4 = arith.constant 4 : index
    %c0_20 = arith.constant 0 : index
    %c0_21 = arith.constant 0 : index
    %27 = vector.load %arg0[%c4, %c0_20, %c0_21] : memref<9x32x128xf32, #tpu.memory_space<vmem>>, vector<1x32x128xf32>
    %28 = vector.shape_cast %27 : vector<1x32x128xf32> to vector<32x128xf32>
    %c4_22 = arith.constant 4 : index
    %c0_23 = arith.constant 0 : index
    %c0_24 = arith.constant 0 : index
    %29 = vector.load %arg1[%c4_22, %c0_23, %c0_24] : memref<9x1x128xf32, #tpu.memory_space<vmem>>, vector<1x1x128xf32>
    %30 = vector.shape_cast %29 : vector<1x1x128xf32> to vector<1x128xf32>
    %31 = vector.broadcast %30 : vector<1x128xf32> to vector<32x128xf32>
    %32 = arith.mulf %28, %31 : vector<32x128xf32>
    %33 = arith.addf %26, %32 : vector<32x128xf32>
    %c5 = arith.constant 5 : index
    %c0_25 = arith.constant 0 : index
    %c0_26 = arith.constant 0 : index
    %34 = vector.load %arg0[%c5, %c0_25, %c0_26] : memref<9x32x128xf32, #tpu.memory_space<vmem>>, vector<1x32x128xf32>
    %35 = vector.shape_cast %34 : vector<1x32x128xf32> to vector<32x128xf32>
    %c5_27 = arith.constant 5 : index
    %c0_28 = arith.constant 0 : index
    %c0_29 = arith.constant 0 : index
    %36 = vector.load %arg1[%c5_27, %c0_28, %c0_29] : memref<9x1x128xf32, #tpu.memory_space<vmem>>, vector<1x1x128xf32>
    %37 = vector.shape_cast %36 : vector<1x1x128xf32> to vector<1x128xf32>
    %38 = vector.broadcast %37 : vector<1x128xf32> to vector<32x128xf32>
    %39 = arith.mulf %35, %38 : vector<32x128xf32>
    %40 = arith.addf %33, %39 : vector<32x128xf32>
    %c6 = arith.constant 6 : index
    %c0_30 = arith.constant 0 : index
    %c0_31 = arith.constant 0 : index
    %41 = vector.load %arg0[%c6, %c0_30, %c0_31] : memref<9x32x128xf32, #tpu.memory_space<vmem>>, vector<1x32x128xf32>
    %42 = vector.shape_cast %41 : vector<1x32x128xf32> to vector<32x128xf32>
    %c6_32 = arith.constant 6 : index
    %c0_33 = arith.constant 0 : index
    %c0_34 = arith.constant 0 : index
    %43 = vector.load %arg1[%c6_32, %c0_33, %c0_34] : memref<9x1x128xf32, #tpu.memory_space<vmem>>, vector<1x1x128xf32>
    %44 = vector.shape_cast %43 : vector<1x1x128xf32> to vector<1x128xf32>
    %45 = vector.broadcast %44 : vector<1x128xf32> to vector<32x128xf32>
    %46 = arith.mulf %42, %45 : vector<32x128xf32>
    %47 = arith.addf %40, %46 : vector<32x128xf32>
    %c7 = arith.constant 7 : index
    %c0_35 = arith.constant 0 : index
    %c0_36 = arith.constant 0 : index
    %48 = vector.load %arg0[%c7, %c0_35, %c0_36] : memref<9x32x128xf32, #tpu.memory_space<vmem>>, vector<1x32x128xf32>
    %49 = vector.shape_cast %48 : vector<1x32x128xf32> to vector<32x128xf32>
    %c7_37 = arith.constant 7 : index
    %c0_38 = arith.constant 0 : index
    %c0_39 = arith.constant 0 : index
    %50 = vector.load %arg1[%c7_37, %c0_38, %c0_39] : memref<9x1x128xf32, #tpu.memory_space<vmem>>, vector<1x1x128xf32>
    %51 = vector.shape_cast %50 : vector<1x1x128xf32> to vector<1x128xf32>
    %52 = vector.broadcast %51 : vector<1x128xf32> to vector<32x128xf32>
    %53 = arith.mulf %49, %52 : vector<32x128xf32>
    %54 = arith.addf %47, %53 : vector<32x128xf32>
    %c8 = arith.constant 8 : index
    %c0_40 = arith.constant 0 : index
    %c0_41 = arith.constant 0 : index
    %55 = vector.load %arg0[%c8, %c0_40, %c0_41] : memref<9x32x128xf32, #tpu.memory_space<vmem>>, vector<1x32x128xf32>
    %56 = vector.shape_cast %55 : vector<1x32x128xf32> to vector<32x128xf32>
    %c8_42 = arith.constant 8 : index
    %c0_43 = arith.constant 0 : index
    %c0_44 = arith.constant 0 : index
    %57 = vector.load %arg1[%c8_42, %c0_43, %c0_44] : memref<9x1x128xf32, #tpu.memory_space<vmem>>, vector<1x1x128xf32>
    %58 = vector.shape_cast %57 : vector<1x1x128xf32> to vector<1x128xf32>
    %59 = vector.broadcast %58 : vector<1x128xf32> to vector<32x128xf32>
    %60 = arith.mulf %56, %59 : vector<32x128xf32>
    %61 = arith.addf %54, %60 : vector<32x128xf32>
    %c0_45 = arith.constant 0 : index
    %c0_46 = arith.constant 0 : index
    %62 = vector.load %arg2[%c0_45, %c0_46] : memref<1x128xf32, #tpu.memory_space<vmem>>, vector<1x128xf32>
    %63 = vector.broadcast %62 : vector<1x128xf32> to vector<32x128xf32>
    %64 = arith.addf %61, %63 : vector<32x128xf32>
    %c0_47 = arith.constant 0 : index
    %c0_48 = arith.constant 0 : index
    %65 = vector.load %arg3[%c0_47, %c0_48] : memref<128x128xf32, #tpu.memory_space<vmem>>, vector<128x128xf32>
    %cst = arith.constant dense<0.000000e+00> : vector<32x128xf32>
    %66 = tpu.matmul %64, %65, %cst {dimension_numbers = #tpu.dot_dimension_numbers<[1], [0], [0], [1], [0, 0, 1, 1], [], []>} : vector<32x128xf32>, vector<128x128xf32>, vector<32x128xf32> -> vector<32x128xf32>
    %c0_49 = arith.constant 0 : index
    %c0_50 = arith.constant 0 : index
    %67 = vector.load %arg4[%c0_49, %c0_50] : memref<1x128xf32, #tpu.memory_space<vmem>>, vector<1x128xf32>
    %68 = vector.broadcast %67 : vector<1x128xf32> to vector<32x128xf32>
    %69 = arith.addf %66, %68 : vector<32x128xf32>
    %cst_51 = arith.constant 5.000000e-01 : f32
    %70 = vector.broadcast %cst_51 : f32 to vector<32x128xf32>
    %71 = arith.mulf %70, %69 : vector<32x128xf32>
    %cst_52 = arith.constant 0.707106769 : f32
    %72 = vector.broadcast %cst_52 : f32 to vector<32x128xf32>
    %73 = arith.mulf %69, %72 : vector<32x128xf32>
    %74 = math.absf %73 : vector<32x128xf32>
    %cst_53 = arith.constant 0.327591091 : f32
    %75 = vector.broadcast %cst_53 : f32 to vector<32x128xf32>
    %76 = arith.mulf %75, %74 : vector<32x128xf32>
    %cst_54 = arith.constant 1.000000e+00 : f32
    %77 = vector.broadcast %cst_54 : f32 to vector<32x128xf32>
    %78 = arith.addf %77, %76 : vector<32x128xf32>
    %cst_55 = arith.constant 1.000000e+00 : f32
    %79 = vector.broadcast %cst_55 : f32 to vector<32x128xf32>
    %80 = arith.divf %79, %78 : vector<32x128xf32>
    %cst_56 = arith.constant 1.06140542 : f32
    %81 = vector.broadcast %cst_56 : f32 to vector<32x128xf32>
    %82 = arith.mulf %81, %80 : vector<32x128xf32>
    %cst_57 = arith.constant 1.45315206 : f32
    %83 = vector.broadcast %cst_57 : f32 to vector<32x128xf32>
    %84 = arith.subf %82, %83 : vector<32x128xf32>
    %85 = arith.mulf %84, %80 : vector<32x128xf32>
    %cst_58 = arith.constant 1.42141378 : f32
    %86 = vector.broadcast %cst_58 : f32 to vector<32x128xf32>
    %87 = arith.addf %85, %86 : vector<32x128xf32>
    %88 = arith.mulf %87, %80 : vector<32x128xf32>
    %cst_59 = arith.constant 0.284496725 : f32
    %89 = vector.broadcast %cst_59 : f32 to vector<32x128xf32>
    %90 = arith.subf %88, %89 : vector<32x128xf32>
    %91 = arith.mulf %90, %80 : vector<32x128xf32>
    %cst_60 = arith.constant 0.254829586 : f32
    %92 = vector.broadcast %cst_60 : f32 to vector<32x128xf32>
    %93 = arith.addf %91, %92 : vector<32x128xf32>
    %94 = arith.mulf %93, %80 : vector<32x128xf32>
    %cst_61 = arith.constant 0.000000e+00 : f32
    %95 = vector.broadcast %cst_61 : f32 to vector<32x128xf32>
    %96 = arith.subf %95, %73 : vector<32x128xf32>
    %97 = arith.mulf %96, %73 : vector<32x128xf32>
    %98 = math.exp %97 : vector<32x128xf32>
    %99 = arith.mulf %94, %98 : vector<32x128xf32>
    %cst_62 = arith.constant 1.000000e+00 : f32
    %100 = vector.broadcast %cst_62 : f32 to vector<32x128xf32>
    %101 = arith.subf %100, %99 : vector<32x128xf32>
    %cst_63 = arith.constant 0.000000e+00 : f32
    %102 = vector.broadcast %cst_63 : f32 to vector<32x128xf32>
    %103 = arith.cmpf oge, %73, %102 : vector<32x128xf32>
    %cst_64 = arith.constant 0.000000e+00 : f32
    %104 = vector.broadcast %cst_64 : f32 to vector<32x128xf32>
    %105 = arith.subf %104, %101 : vector<32x128xf32>
    %106 = arith.select %103, %101, %105 : vector<32x128xi1>, vector<32x128xf32>
    %cst_65 = arith.constant 1.000000e+00 : f32
    %107 = vector.broadcast %cst_65 : f32 to vector<32x128xf32>
    %108 = arith.addf %107, %106 : vector<32x128xf32>
    %109 = arith.mulf %71, %108 : vector<32x128xf32>
    %c0_66 = arith.constant 0 : index
    %c0_67 = arith.constant 0 : index
    %110 = vector.load %arg5[%c0_66, %c0_67] : memref<128x128xf32, #tpu.memory_space<vmem>>, vector<128x128xf32>
    %cst_68 = arith.constant dense<0.000000e+00> : vector<32x128xf32>
    %111 = tpu.matmul %109, %110, %cst_68 {dimension_numbers = #tpu.dot_dimension_numbers<[1], [0], [0], [1], [0, 0, 1, 1], [], []>} : vector<32x128xf32>, vector<128x128xf32>, vector<32x128xf32> -> vector<32x128xf32>
    %c0_69 = arith.constant 0 : index
    %c0_70 = arith.constant 0 : index
    %112 = vector.load %arg6[%c0_69, %c0_70] : memref<1x128xf32, #tpu.memory_space<vmem>>, vector<1x128xf32>
    %113 = vector.broadcast %112 : vector<1x128xf32> to vector<32x128xf32>
    %114 = arith.addf %111, %113 : vector<32x128xf32>
    %c0_71 = arith.constant 0 : index
    %c0_72 = arith.constant 0 : index
    %115 = vector.load %arg7[%c0_71, %c0_72] : memref<32x128xf32, #tpu.memory_space<vmem>>, vector<32x128xf32>
    %116 = arith.addf %114, %115 : vector<32x128xf32>
    %c0_73 = arith.constant 0 : index
    %c0_74 = arith.constant 0 : index
    %117 = vector.load %arg8[%c0_73, %c0_74] : memref<32x128xf32, #tpu.memory_space<vmem>>, vector<32x128xf32>
    tpu.vector_store %arg8[%c0_73, %c0_74], %116 {strides = array<i32>} : memref<32x128xf32, #tpu.memory_space<vmem>>, vector<32x128xf32>,
    return
  }
}

module attributes {stable_mosaic.version = 11 : i64} {
  func.func @_mm_kernel(%arg0: memref<8x384xf32, #tpu.memory_space<vmem>>, %arg1: memref<384x128xf32, #tpu.memory_space<vmem>>, %arg2: memref<1x128xf32, #tpu.memory_space<vmem>>, %arg3: memref<8x128xf32, #tpu.memory_space<vmem>>) attributes {dimension_semantics = [], scalar_prefetch = 0 : i64, scratch_operands = 0 : i64, tpu.core_type = #tpu.core_type<tc>} {
    %c0 = arith.constant 0 : index
    %c0_0 = arith.constant 0 : index
    %0 = vector.load %arg0[%c0, %c0_0] : memref<8x384xf32, #tpu.memory_space<vmem>>, vector<8x384xf32>
    %c0_1 = arith.constant 0 : index
    %c0_2 = arith.constant 0 : index
    %1 = vector.load %arg1[%c0_1, %c0_2] : memref<384x128xf32, #tpu.memory_space<vmem>>, vector<384x128xf32>
    %cst = arith.constant dense<0.000000e+00> : vector<8x128xf32>
    %2 = tpu.matmul %0, %1, %cst {dimension_numbers = #tpu.dot_dimension_numbers<[1], [0], [0], [1], [0, 0, 1, 1], [], []>} : vector<8x384xf32>, vector<384x128xf32>, vector<8x128xf32> -> vector<8x128xf32>
    %c0_3 = arith.constant 0 : index
    %c0_4 = arith.constant 0 : index
    %3 = vector.load %arg2[%c0_3, %c0_4] : memref<1x128xf32, #tpu.memory_space<vmem>>, vector<1x128xf32>
    %4 = vector.broadcast %3 : vector<1x128xf32> to vector<8x128xf32>
    %5 = arith.addf %2, %4 : vector<8x128xf32>
    %cst_5 = arith.constant 5.000000e-01 : f32
    %6 = vector.broadcast %cst_5 : f32 to vector<8x128xf32>
    %7 = arith.mulf %6, %5 : vector<8x128xf32>
    %cst_6 = arith.constant 0.707106769 : f32
    %8 = vector.broadcast %cst_6 : f32 to vector<8x128xf32>
    %9 = arith.mulf %5, %8 : vector<8x128xf32>
    %10 = math.absf %9 : vector<8x128xf32>
    %cst_7 = arith.constant 0.327591091 : f32
    %11 = vector.broadcast %cst_7 : f32 to vector<8x128xf32>
    %12 = arith.mulf %11, %10 : vector<8x128xf32>
    %cst_8 = arith.constant 1.000000e+00 : f32
    %13 = vector.broadcast %cst_8 : f32 to vector<8x128xf32>
    %14 = arith.addf %13, %12 : vector<8x128xf32>
    %cst_9 = arith.constant 1.000000e+00 : f32
    %15 = vector.broadcast %cst_9 : f32 to vector<8x128xf32>
    %16 = arith.divf %15, %14 : vector<8x128xf32>
    %cst_10 = arith.constant 1.06140542 : f32
    %17 = vector.broadcast %cst_10 : f32 to vector<8x128xf32>
    %18 = arith.mulf %17, %16 : vector<8x128xf32>
    %cst_11 = arith.constant 1.45315206 : f32
    %19 = vector.broadcast %cst_11 : f32 to vector<8x128xf32>
    %20 = arith.subf %18, %19 : vector<8x128xf32>
    %21 = arith.mulf %20, %16 : vector<8x128xf32>
    %cst_12 = arith.constant 1.42141378 : f32
    %22 = vector.broadcast %cst_12 : f32 to vector<8x128xf32>
    %23 = arith.addf %21, %22 : vector<8x128xf32>
    %24 = arith.mulf %23, %16 : vector<8x128xf32>
    %cst_13 = arith.constant 0.284496725 : f32
    %25 = vector.broadcast %cst_13 : f32 to vector<8x128xf32>
    %26 = arith.subf %24, %25 : vector<8x128xf32>
    %27 = arith.mulf %26, %16 : vector<8x128xf32>
    %cst_14 = arith.constant 0.254829586 : f32
    %28 = vector.broadcast %cst_14 : f32 to vector<8x128xf32>
    %29 = arith.addf %27, %28 : vector<8x128xf32>
    %30 = arith.mulf %29, %16 : vector<8x128xf32>
    %cst_15 = arith.constant 0.000000e+00 : f32
    %31 = vector.broadcast %cst_15 : f32 to vector<8x128xf32>
    %32 = arith.subf %31, %9 : vector<8x128xf32>
    %33 = arith.mulf %32, %9 : vector<8x128xf32>
    %34 = math.exp %33 : vector<8x128xf32>
    %35 = arith.mulf %30, %34 : vector<8x128xf32>
    %cst_16 = arith.constant 1.000000e+00 : f32
    %36 = vector.broadcast %cst_16 : f32 to vector<8x128xf32>
    %37 = arith.subf %36, %35 : vector<8x128xf32>
    %cst_17 = arith.constant 0.000000e+00 : f32
    %38 = vector.broadcast %cst_17 : f32 to vector<8x128xf32>
    %39 = arith.cmpf oge, %9, %38 : vector<8x128xf32>
    %cst_18 = arith.constant 0.000000e+00 : f32
    %40 = vector.broadcast %cst_18 : f32 to vector<8x128xf32>
    %41 = arith.subf %40, %37 : vector<8x128xf32>
    %42 = arith.select %39, %37, %41 : vector<8x128xi1>, vector<8x128xf32>
    %cst_19 = arith.constant 1.000000e+00 : f32
    %43 = vector.broadcast %cst_19 : f32 to vector<8x128xf32>
    %44 = arith.addf %43, %42 : vector<8x128xf32>
    %45 = arith.mulf %7, %44 : vector<8x128xf32>
    %c0_20 = arith.constant 0 : index
    %c0_21 = arith.constant 0 : index
    %46 = vector.load %arg3[%c0_20, %c0_21] : memref<8x128xf32, #tpu.memory_space<vmem>>, vector<8x128xf32>
    tpu.vector_store %arg3[%c0_20, %c0_21], %45 {strides = array<i32>} : memref<8x128xf32, #tpu.memory_space<vmem>>, vector<8x128xf32>,
    return
  }
}

module attributes {stable_mosaic.version = 11 : i64} {
  func.func @_ln_mm_kernel(%arg0: memref<8x128xf32, #tpu.memory_space<vmem>>, %arg1: memref<1x128xf32, #tpu.memory_space<vmem>>, %arg2: memref<1x128xf32, #tpu.memory_space<vmem>>, %arg3: memref<128x256xf32, #tpu.memory_space<vmem>>, %arg4: memref<1x256xf32, #tpu.memory_space<vmem>>, %arg5: memref<8x256xf32, #tpu.memory_space<vmem>>) attributes {dimension_semantics = [], scalar_prefetch = 0 : i64, scratch_operands = 0 : i64, tpu.core_type = #tpu.core_type<tc>} {
    %c0 = arith.constant 0 : index
    %c0_0 = arith.constant 0 : index
    %0 = vector.load %arg0[%c0, %c0_0] : memref<8x128xf32, #tpu.memory_space<vmem>>, vector<8x128xf32>
    %cst = arith.constant dense<0.000000e+00> : vector<8xf32>
    %1 = vector.multi_reduction <add>, %0, %cst [1] : vector<8x128xf32> to vector<8xf32>
    %2 = vector.shape_cast %1 : vector<8xf32> to vector<8x1xf32>
    %cst_1 = arith.constant 6.400000e+01 : f32
    %3 = vector.broadcast %cst_1 : f32 to vector<8x1xf32>
    %4 = arith.divf %2, %3 : vector<8x1xf32>
    %5 = arith.mulf %0, %0 : vector<8x128xf32>
    %cst_2 = arith.constant dense<0.000000e+00> : vector<8xf32>
    %6 = vector.multi_reduction <add>, %5, %cst_2 [1] : vector<8x128xf32> to vector<8xf32>
    %7 = vector.shape_cast %6 : vector<8xf32> to vector<8x1xf32>
    %cst_3 = arith.constant 6.400000e+01 : f32
    %8 = vector.broadcast %cst_3 : f32 to vector<8x1xf32>
    %9 = arith.divf %7, %8 : vector<8x1xf32>
    %10 = arith.mulf %4, %4 : vector<8x1xf32>
    %11 = arith.subf %9, %10 : vector<8x1xf32>
    %12 = vector.broadcast %4 : vector<8x1xf32> to vector<8x128xf32>
    %13 = arith.subf %0, %12 : vector<8x128xf32>
    %cst_4 = arith.constant 9.99999974E-6 : f32
    %14 = vector.broadcast %cst_4 : f32 to vector<8x1xf32>
    %15 = arith.addf %11, %14 : vector<8x1xf32>
    %16 = math.rsqrt %15 : vector<8x1xf32>
    %17 = vector.broadcast %16 : vector<8x1xf32> to vector<8x128xf32>
    %18 = arith.mulf %13, %17 : vector<8x128xf32>
    %c0_5 = arith.constant 0 : index
    %c0_6 = arith.constant 0 : index
    %19 = vector.load %arg1[%c0_5, %c0_6] : memref<1x128xf32, #tpu.memory_space<vmem>>, vector<1x128xf32>
    %20 = vector.broadcast %19 : vector<1x128xf32> to vector<8x128xf32>
    %21 = arith.mulf %18, %20 : vector<8x128xf32>
    %c0_7 = arith.constant 0 : index
    %c0_8 = arith.constant 0 : index
    %22 = vector.load %arg2[%c0_7, %c0_8] : memref<1x128xf32, #tpu.memory_space<vmem>>, vector<1x128xf32>
    %23 = vector.broadcast %22 : vector<1x128xf32> to vector<8x128xf32>
    %24 = arith.addf %21, %23 : vector<8x128xf32>
    %c0_9 = arith.constant 0 : index
    %c0_10 = arith.constant 0 : index
    %25 = vector.load %arg3[%c0_9, %c0_10] : memref<128x256xf32, #tpu.memory_space<vmem>>, vector<128x256xf32>
    %cst_11 = arith.constant dense<0.000000e+00> : vector<8x256xf32>
    %26 = tpu.matmul %24, %25, %cst_11 {dimension_numbers = #tpu.dot_dimension_numbers<[1], [0], [0], [1], [0, 0, 1, 1], [], []>} : vector<8x128xf32>, vector<128x256xf32>, vector<8x256xf32> -> vector<8x256xf32>
    %c0_12 = arith.constant 0 : index
    %c0_13 = arith.constant 0 : index
    %27 = vector.load %arg4[%c0_12, %c0_13] : memref<1x256xf32, #tpu.memory_space<vmem>>, vector<1x256xf32>
    %28 = vector.broadcast %27 : vector<1x256xf32> to vector<8x256xf32>
    %29 = arith.addf %26, %28 : vector<8x256xf32>
    %c0_14 = arith.constant 0 : index
    %c0_15 = arith.constant 0 : index
    %30 = vector.load %arg5[%c0_14, %c0_15] : memref<8x256xf32, #tpu.memory_space<vmem>>, vector<8x256xf32>
    tpu.vector_store %arg5[%c0_14, %c0_15], %29 {strides = array<i32>} : memref<8x256xf32, #tpu.memory_space<vmem>>, vector<8x256xf32>,
    return
  }
}

module attributes {stable_mosaic.version = 11 : i64} {
  func.func @_mm_res_kernel(%arg0: memref<8x128xf32, #tpu.memory_space<vmem>>, %arg1: memref<128x128xf32, #tpu.memory_space<vmem>>, %arg2: memref<1x128xf32, #tpu.memory_space<vmem>>, %arg3: memref<8x128xf32, #tpu.memory_space<vmem>>, %arg4: memref<8x128xf32, #tpu.memory_space<vmem>>) attributes {dimension_semantics = [], scalar_prefetch = 0 : i64, scratch_operands = 0 : i64, tpu.core_type = #tpu.core_type<tc>} {
    %c0 = arith.constant 0 : index
    %c0_0 = arith.constant 0 : index
    %0 = vector.load %arg0[%c0, %c0_0] : memref<8x128xf32, #tpu.memory_space<vmem>>, vector<8x128xf32>
    %c0_1 = arith.constant 0 : index
    %c0_2 = arith.constant 0 : index
    %1 = vector.load %arg1[%c0_1, %c0_2] : memref<128x128xf32, #tpu.memory_space<vmem>>, vector<128x128xf32>
    %cst = arith.constant dense<0.000000e+00> : vector<8x128xf32>
    %2 = tpu.matmul %0, %1, %cst {dimension_numbers = #tpu.dot_dimension_numbers<[1], [0], [0], [1], [0, 0, 1, 1], [], []>} : vector<8x128xf32>, vector<128x128xf32>, vector<8x128xf32> -> vector<8x128xf32>
    %c0_3 = arith.constant 0 : index
    %c0_4 = arith.constant 0 : index
    %3 = vector.load %arg2[%c0_3, %c0_4] : memref<1x128xf32, #tpu.memory_space<vmem>>, vector<1x128xf32>
    %4 = vector.broadcast %3 : vector<1x128xf32> to vector<8x128xf32>
    %5 = arith.addf %2, %4 : vector<8x128xf32>
    %c0_5 = arith.constant 0 : index
    %c0_6 = arith.constant 0 : index
    %6 = vector.load %arg3[%c0_5, %c0_6] : memref<8x128xf32, #tpu.memory_space<vmem>>, vector<8x128xf32>
    %7 = arith.addf %5, %6 : vector<8x128xf32>
    %c0_7 = arith.constant 0 : index
    %c0_8 = arith.constant 0 : index
    %8 = vector.load %arg4[%c0_7, %c0_8] : memref<8x128xf32, #tpu.memory_space<vmem>>, vector<8x128xf32>
    tpu.vector_store %arg4[%c0_7, %c0_8], %7 {strides = array<i32>} : memref<8x128xf32, #tpu.memory_space<vmem>>, vector<8x128xf32>,
    return
  }
}

module attributes {stable_mosaic.version = 11 : i64} {
  func.func @_ln_kernel(%arg0: memref<8x128xf32, #tpu.memory_space<vmem>>, %arg1: memref<1x128xf32, #tpu.memory_space<vmem>>, %arg2: memref<1x128xf32, #tpu.memory_space<vmem>>, %arg3: memref<8x128xf32, #tpu.memory_space<vmem>>) attributes {dimension_semantics = [], scalar_prefetch = 0 : i64, scratch_operands = 0 : i64, tpu.core_type = #tpu.core_type<tc>} {
    %c0 = arith.constant 0 : index
    %c0_0 = arith.constant 0 : index
    %0 = vector.load %arg0[%c0, %c0_0] : memref<8x128xf32, #tpu.memory_space<vmem>>, vector<8x128xf32>
    %cst = arith.constant dense<0.000000e+00> : vector<8xf32>
    %1 = vector.multi_reduction <add>, %0, %cst [1] : vector<8x128xf32> to vector<8xf32>
    %2 = vector.shape_cast %1 : vector<8xf32> to vector<8x1xf32>
    %cst_1 = arith.constant 6.400000e+01 : f32
    %3 = vector.broadcast %cst_1 : f32 to vector<8x1xf32>
    %4 = arith.divf %2, %3 : vector<8x1xf32>
    %5 = arith.mulf %0, %0 : vector<8x128xf32>
    %cst_2 = arith.constant dense<0.000000e+00> : vector<8xf32>
    %6 = vector.multi_reduction <add>, %5, %cst_2 [1] : vector<8x128xf32> to vector<8xf32>
    %7 = vector.shape_cast %6 : vector<8xf32> to vector<8x1xf32>
    %cst_3 = arith.constant 6.400000e+01 : f32
    %8 = vector.broadcast %cst_3 : f32 to vector<8x1xf32>
    %9 = arith.divf %7, %8 : vector<8x1xf32>
    %10 = arith.mulf %4, %4 : vector<8x1xf32>
    %11 = arith.subf %9, %10 : vector<8x1xf32>
    %12 = vector.broadcast %4 : vector<8x1xf32> to vector<8x128xf32>
    %13 = arith.subf %0, %12 : vector<8x128xf32>
    %cst_4 = arith.constant 9.99999974E-6 : f32
    %14 = vector.broadcast %cst_4 : f32 to vector<8x1xf32>
    %15 = arith.addf %11, %14 : vector<8x1xf32>
    %16 = math.rsqrt %15 : vector<8x1xf32>
    %17 = vector.broadcast %16 : vector<8x1xf32> to vector<8x128xf32>
    %18 = arith.mulf %13, %17 : vector<8x128xf32>
    %c0_5 = arith.constant 0 : index
    %c0_6 = arith.constant 0 : index
    %19 = vector.load %arg1[%c0_5, %c0_6] : memref<1x128xf32, #tpu.memory_space<vmem>>, vector<1x128xf32>
    %20 = vector.broadcast %19 : vector<1x128xf32> to vector<8x128xf32>
    %21 = arith.mulf %18, %20 : vector<8x128xf32>
    %c0_7 = arith.constant 0 : index
    %c0_8 = arith.constant 0 : index
    %22 = vector.load %arg2[%c0_7, %c0_8] : memref<1x128xf32, #tpu.memory_space<vmem>>, vector<1x128xf32>
    %23 = vector.broadcast %22 : vector<1x128xf32> to vector<8x128xf32>
    %24 = arith.addf %21, %23 : vector<8x128xf32>
    %c0_9 = arith.constant 0 : index
    %c0_10 = arith.constant 0 : index
    %25 = vector.load %arg3[%c0_9, %c0_10] : memref<8x128xf32, #tpu.memory_space<vmem>>, vector<8x128xf32>
    tpu.vector_store %arg3[%c0_9, %c0_10], %24 {strides = array<i32>} : memref<8x128xf32, #tpu.memory_space<vmem>>, vector<8x128xf32>,
    return
  }
}

module attributes {stable_mosaic.version = 11 : i64} {
  func.func @_convffn_kernel(%arg0: memref<9x8x128xf32, #tpu.memory_space<vmem>>, %arg1: memref<9x1x128xf32, #tpu.memory_space<vmem>>, %arg2: memref<1x128xf32, #tpu.memory_space<vmem>>, %arg3: memref<128x128xf32, #tpu.memory_space<vmem>>, %arg4: memref<1x128xf32, #tpu.memory_space<vmem>>, %arg5: memref<128x128xf32, #tpu.memory_space<vmem>>, %arg6: memref<1x128xf32, #tpu.memory_space<vmem>>, %arg7: memref<8x128xf32, #tpu.memory_space<vmem>>, %arg8: memref<8x128xf32, #tpu.memory_space<vmem>>) attributes {dimension_semantics = [], scalar_prefetch = 0 : i64, scratch_operands = 0 : i64, tpu.core_type = #tpu.core_type<tc>} {
    %c0 = arith.constant 0 : index
    %c0_0 = arith.constant 0 : index
    %c0_1 = arith.constant 0 : index
    %0 = vector.load %arg0[%c0, %c0_0, %c0_1] : memref<9x8x128xf32, #tpu.memory_space<vmem>>, vector<1x8x128xf32>
    %1 = vector.shape_cast %0 : vector<1x8x128xf32> to vector<8x128xf32>
    %c0_2 = arith.constant 0 : index
    %c0_3 = arith.constant 0 : index
    %c0_4 = arith.constant 0 : index
    %2 = vector.load %arg1[%c0_2, %c0_3, %c0_4] : memref<9x1x128xf32, #tpu.memory_space<vmem>>, vector<1x1x128xf32>
    %3 = vector.shape_cast %2 : vector<1x1x128xf32> to vector<1x128xf32>
    %4 = vector.broadcast %3 : vector<1x128xf32> to vector<8x128xf32>
    %5 = arith.mulf %1, %4 : vector<8x128xf32>
    %c1 = arith.constant 1 : index
    %c0_5 = arith.constant 0 : index
    %c0_6 = arith.constant 0 : index
    %6 = vector.load %arg0[%c1, %c0_5, %c0_6] : memref<9x8x128xf32, #tpu.memory_space<vmem>>, vector<1x8x128xf32>
    %7 = vector.shape_cast %6 : vector<1x8x128xf32> to vector<8x128xf32>
    %c1_7 = arith.constant 1 : index
    %c0_8 = arith.constant 0 : index
    %c0_9 = arith.constant 0 : index
    %8 = vector.load %arg1[%c1_7, %c0_8, %c0_9] : memref<9x1x128xf32, #tpu.memory_space<vmem>>, vector<1x1x128xf32>
    %9 = vector.shape_cast %8 : vector<1x1x128xf32> to vector<1x128xf32>
    %10 = vector.broadcast %9 : vector<1x128xf32> to vector<8x128xf32>
    %11 = arith.mulf %7, %10 : vector<8x128xf32>
    %12 = arith.addf %5, %11 : vector<8x128xf32>
    %c2 = arith.constant 2 : index
    %c0_10 = arith.constant 0 : index
    %c0_11 = arith.constant 0 : index
    %13 = vector.load %arg0[%c2, %c0_10, %c0_11] : memref<9x8x128xf32, #tpu.memory_space<vmem>>, vector<1x8x128xf32>
    %14 = vector.shape_cast %13 : vector<1x8x128xf32> to vector<8x128xf32>
    %c2_12 = arith.constant 2 : index
    %c0_13 = arith.constant 0 : index
    %c0_14 = arith.constant 0 : index
    %15 = vector.load %arg1[%c2_12, %c0_13, %c0_14] : memref<9x1x128xf32, #tpu.memory_space<vmem>>, vector<1x1x128xf32>
    %16 = vector.shape_cast %15 : vector<1x1x128xf32> to vector<1x128xf32>
    %17 = vector.broadcast %16 : vector<1x128xf32> to vector<8x128xf32>
    %18 = arith.mulf %14, %17 : vector<8x128xf32>
    %19 = arith.addf %12, %18 : vector<8x128xf32>
    %c3 = arith.constant 3 : index
    %c0_15 = arith.constant 0 : index
    %c0_16 = arith.constant 0 : index
    %20 = vector.load %arg0[%c3, %c0_15, %c0_16] : memref<9x8x128xf32, #tpu.memory_space<vmem>>, vector<1x8x128xf32>
    %21 = vector.shape_cast %20 : vector<1x8x128xf32> to vector<8x128xf32>
    %c3_17 = arith.constant 3 : index
    %c0_18 = arith.constant 0 : index
    %c0_19 = arith.constant 0 : index
    %22 = vector.load %arg1[%c3_17, %c0_18, %c0_19] : memref<9x1x128xf32, #tpu.memory_space<vmem>>, vector<1x1x128xf32>
    %23 = vector.shape_cast %22 : vector<1x1x128xf32> to vector<1x128xf32>
    %24 = vector.broadcast %23 : vector<1x128xf32> to vector<8x128xf32>
    %25 = arith.mulf %21, %24 : vector<8x128xf32>
    %26 = arith.addf %19, %25 : vector<8x128xf32>
    %c4 = arith.constant 4 : index
    %c0_20 = arith.constant 0 : index
    %c0_21 = arith.constant 0 : index
    %27 = vector.load %arg0[%c4, %c0_20, %c0_21] : memref<9x8x128xf32, #tpu.memory_space<vmem>>, vector<1x8x128xf32>
    %28 = vector.shape_cast %27 : vector<1x8x128xf32> to vector<8x128xf32>
    %c4_22 = arith.constant 4 : index
    %c0_23 = arith.constant 0 : index
    %c0_24 = arith.constant 0 : index
    %29 = vector.load %arg1[%c4_22, %c0_23, %c0_24] : memref<9x1x128xf32, #tpu.memory_space<vmem>>, vector<1x1x128xf32>
    %30 = vector.shape_cast %29 : vector<1x1x128xf32> to vector<1x128xf32>
    %31 = vector.broadcast %30 : vector<1x128xf32> to vector<8x128xf32>
    %32 = arith.mulf %28, %31 : vector<8x128xf32>
    %33 = arith.addf %26, %32 : vector<8x128xf32>
    %c5 = arith.constant 5 : index
    %c0_25 = arith.constant 0 : index
    %c0_26 = arith.constant 0 : index
    %34 = vector.load %arg0[%c5, %c0_25, %c0_26] : memref<9x8x128xf32, #tpu.memory_space<vmem>>, vector<1x8x128xf32>
    %35 = vector.shape_cast %34 : vector<1x8x128xf32> to vector<8x128xf32>
    %c5_27 = arith.constant 5 : index
    %c0_28 = arith.constant 0 : index
    %c0_29 = arith.constant 0 : index
    %36 = vector.load %arg1[%c5_27, %c0_28, %c0_29] : memref<9x1x128xf32, #tpu.memory_space<vmem>>, vector<1x1x128xf32>
    %37 = vector.shape_cast %36 : vector<1x1x128xf32> to vector<1x128xf32>
    %38 = vector.broadcast %37 : vector<1x128xf32> to vector<8x128xf32>
    %39 = arith.mulf %35, %38 : vector<8x128xf32>
    %40 = arith.addf %33, %39 : vector<8x128xf32>
    %c6 = arith.constant 6 : index
    %c0_30 = arith.constant 0 : index
    %c0_31 = arith.constant 0 : index
    %41 = vector.load %arg0[%c6, %c0_30, %c0_31] : memref<9x8x128xf32, #tpu.memory_space<vmem>>, vector<1x8x128xf32>
    %42 = vector.shape_cast %41 : vector<1x8x128xf32> to vector<8x128xf32>
    %c6_32 = arith.constant 6 : index
    %c0_33 = arith.constant 0 : index
    %c0_34 = arith.constant 0 : index
    %43 = vector.load %arg1[%c6_32, %c0_33, %c0_34] : memref<9x1x128xf32, #tpu.memory_space<vmem>>, vector<1x1x128xf32>
    %44 = vector.shape_cast %43 : vector<1x1x128xf32> to vector<1x128xf32>
    %45 = vector.broadcast %44 : vector<1x128xf32> to vector<8x128xf32>
    %46 = arith.mulf %42, %45 : vector<8x128xf32>
    %47 = arith.addf %40, %46 : vector<8x128xf32>
    %c7 = arith.constant 7 : index
    %c0_35 = arith.constant 0 : index
    %c0_36 = arith.constant 0 : index
    %48 = vector.load %arg0[%c7, %c0_35, %c0_36] : memref<9x8x128xf32, #tpu.memory_space<vmem>>, vector<1x8x128xf32>
    %49 = vector.shape_cast %48 : vector<1x8x128xf32> to vector<8x128xf32>
    %c7_37 = arith.constant 7 : index
    %c0_38 = arith.constant 0 : index
    %c0_39 = arith.constant 0 : index
    %50 = vector.load %arg1[%c7_37, %c0_38, %c0_39] : memref<9x1x128xf32, #tpu.memory_space<vmem>>, vector<1x1x128xf32>
    %51 = vector.shape_cast %50 : vector<1x1x128xf32> to vector<1x128xf32>
    %52 = vector.broadcast %51 : vector<1x128xf32> to vector<8x128xf32>
    %53 = arith.mulf %49, %52 : vector<8x128xf32>
    %54 = arith.addf %47, %53 : vector<8x128xf32>
    %c8 = arith.constant 8 : index
    %c0_40 = arith.constant 0 : index
    %c0_41 = arith.constant 0 : index
    %55 = vector.load %arg0[%c8, %c0_40, %c0_41] : memref<9x8x128xf32, #tpu.memory_space<vmem>>, vector<1x8x128xf32>
    %56 = vector.shape_cast %55 : vector<1x8x128xf32> to vector<8x128xf32>
    %c8_42 = arith.constant 8 : index
    %c0_43 = arith.constant 0 : index
    %c0_44 = arith.constant 0 : index
    %57 = vector.load %arg1[%c8_42, %c0_43, %c0_44] : memref<9x1x128xf32, #tpu.memory_space<vmem>>, vector<1x1x128xf32>
    %58 = vector.shape_cast %57 : vector<1x1x128xf32> to vector<1x128xf32>
    %59 = vector.broadcast %58 : vector<1x128xf32> to vector<8x128xf32>
    %60 = arith.mulf %56, %59 : vector<8x128xf32>
    %61 = arith.addf %54, %60 : vector<8x128xf32>
    %c0_45 = arith.constant 0 : index
    %c0_46 = arith.constant 0 : index
    %62 = vector.load %arg2[%c0_45, %c0_46] : memref<1x128xf32, #tpu.memory_space<vmem>>, vector<1x128xf32>
    %63 = vector.broadcast %62 : vector<1x128xf32> to vector<8x128xf32>
    %64 = arith.addf %61, %63 : vector<8x128xf32>
    %c0_47 = arith.constant 0 : index
    %c0_48 = arith.constant 0 : index
    %65 = vector.load %arg3[%c0_47, %c0_48] : memref<128x128xf32, #tpu.memory_space<vmem>>, vector<128x128xf32>
    %cst = arith.constant dense<0.000000e+00> : vector<8x128xf32>
    %66 = tpu.matmul %64, %65, %cst {dimension_numbers = #tpu.dot_dimension_numbers<[1], [0], [0], [1], [0, 0, 1, 1], [], []>} : vector<8x128xf32>, vector<128x128xf32>, vector<8x128xf32> -> vector<8x128xf32>
    %c0_49 = arith.constant 0 : index
    %c0_50 = arith.constant 0 : index
    %67 = vector.load %arg4[%c0_49, %c0_50] : memref<1x128xf32, #tpu.memory_space<vmem>>, vector<1x128xf32>
    %68 = vector.broadcast %67 : vector<1x128xf32> to vector<8x128xf32>
    %69 = arith.addf %66, %68 : vector<8x128xf32>
    %cst_51 = arith.constant 5.000000e-01 : f32
    %70 = vector.broadcast %cst_51 : f32 to vector<8x128xf32>
    %71 = arith.mulf %70, %69 : vector<8x128xf32>
    %cst_52 = arith.constant 0.707106769 : f32
    %72 = vector.broadcast %cst_52 : f32 to vector<8x128xf32>
    %73 = arith.mulf %69, %72 : vector<8x128xf32>
    %74 = math.absf %73 : vector<8x128xf32>
    %cst_53 = arith.constant 0.327591091 : f32
    %75 = vector.broadcast %cst_53 : f32 to vector<8x128xf32>
    %76 = arith.mulf %75, %74 : vector<8x128xf32>
    %cst_54 = arith.constant 1.000000e+00 : f32
    %77 = vector.broadcast %cst_54 : f32 to vector<8x128xf32>
    %78 = arith.addf %77, %76 : vector<8x128xf32>
    %cst_55 = arith.constant 1.000000e+00 : f32
    %79 = vector.broadcast %cst_55 : f32 to vector<8x128xf32>
    %80 = arith.divf %79, %78 : vector<8x128xf32>
    %cst_56 = arith.constant 1.06140542 : f32
    %81 = vector.broadcast %cst_56 : f32 to vector<8x128xf32>
    %82 = arith.mulf %81, %80 : vector<8x128xf32>
    %cst_57 = arith.constant 1.45315206 : f32
    %83 = vector.broadcast %cst_57 : f32 to vector<8x128xf32>
    %84 = arith.subf %82, %83 : vector<8x128xf32>
    %85 = arith.mulf %84, %80 : vector<8x128xf32>
    %cst_58 = arith.constant 1.42141378 : f32
    %86 = vector.broadcast %cst_58 : f32 to vector<8x128xf32>
    %87 = arith.addf %85, %86 : vector<8x128xf32>
    %88 = arith.mulf %87, %80 : vector<8x128xf32>
    %cst_59 = arith.constant 0.284496725 : f32
    %89 = vector.broadcast %cst_59 : f32 to vector<8x128xf32>
    %90 = arith.subf %88, %89 : vector<8x128xf32>
    %91 = arith.mulf %90, %80 : vector<8x128xf32>
    %cst_60 = arith.constant 0.254829586 : f32
    %92 = vector.broadcast %cst_60 : f32 to vector<8x128xf32>
    %93 = arith.addf %91, %92 : vector<8x128xf32>
    %94 = arith.mulf %93, %80 : vector<8x128xf32>
    %cst_61 = arith.constant 0.000000e+00 : f32
    %95 = vector.broadcast %cst_61 : f32 to vector<8x128xf32>
    %96 = arith.subf %95, %73 : vector<8x128xf32>
    %97 = arith.mulf %96, %73 : vector<8x128xf32>
    %98 = math.exp %97 : vector<8x128xf32>
    %99 = arith.mulf %94, %98 : vector<8x128xf32>
    %cst_62 = arith.constant 1.000000e+00 : f32
    %100 = vector.broadcast %cst_62 : f32 to vector<8x128xf32>
    %101 = arith.subf %100, %99 : vector<8x128xf32>
    %cst_63 = arith.constant 0.000000e+00 : f32
    %102 = vector.broadcast %cst_63 : f32 to vector<8x128xf32>
    %103 = arith.cmpf oge, %73, %102 : vector<8x128xf32>
    %cst_64 = arith.constant 0.000000e+00 : f32
    %104 = vector.broadcast %cst_64 : f32 to vector<8x128xf32>
    %105 = arith.subf %104, %101 : vector<8x128xf32>
    %106 = arith.select %103, %101, %105 : vector<8x128xi1>, vector<8x128xf32>
    %cst_65 = arith.constant 1.000000e+00 : f32
    %107 = vector.broadcast %cst_65 : f32 to vector<8x128xf32>
    %108 = arith.addf %107, %106 : vector<8x128xf32>
    %109 = arith.mulf %71, %108 : vector<8x128xf32>
    %c0_66 = arith.constant 0 : index
    %c0_67 = arith.constant 0 : index
    %110 = vector.load %arg5[%c0_66, %c0_67] : memref<128x128xf32, #tpu.memory_space<vmem>>, vector<128x128xf32>
    %cst_68 = arith.constant dense<0.000000e+00> : vector<8x128xf32>
    %111 = tpu.matmul %109, %110, %cst_68 {dimension_numbers = #tpu.dot_dimension_numbers<[1], [0], [0], [1], [0, 0, 1, 1], [], []>} : vector<8x128xf32>, vector<128x128xf32>, vector<8x128xf32> -> vector<8x128xf32>
    %c0_69 = arith.constant 0 : index
    %c0_70 = arith.constant 0 : index
    %112 = vector.load %arg6[%c0_69, %c0_70] : memref<1x128xf32, #tpu.memory_space<vmem>>, vector<1x128xf32>
    %113 = vector.broadcast %112 : vector<1x128xf32> to vector<8x128xf32>
    %114 = arith.addf %111, %113 : vector<8x128xf32>
    %c0_71 = arith.constant 0 : index
    %c0_72 = arith.constant 0 : index
    %115 = vector.load %arg7[%c0_71, %c0_72] : memref<8x128xf32, #tpu.memory_space<vmem>>, vector<8x128xf32>
    %116 = arith.addf %114, %115 : vector<8x128xf32>
    %c0_73 = arith.constant 0 : index
    %c0_74 = arith.constant 0 : index
    %117 = vector.load %arg8[%c0_73, %c0_74] : memref<8x128xf32, #tpu.memory_space<vmem>>, vector<8x128xf32>
    tpu.vector_store %arg8[%c0_73, %c0_74], %116 {strides = array<i32>} : memref<8x128xf32, #tpu.memory_space<vmem>>, vector<8x128xf32>,
    return
  }
}

module attributes {stable_mosaic.version = 11 : i64} {
  func.func @_mm_kernel(%arg0: memref<32x128xf32, #tpu.memory_space<vmem>>, %arg1: memref<128x128xf32, #tpu.memory_space<vmem>>, %arg2: memref<1x128xf32, #tpu.memory_space<vmem>>, %arg3: memref<32x128xf32, #tpu.memory_space<vmem>>) attributes {dimension_semantics = [], scalar_prefetch = 0 : i64, scratch_operands = 0 : i64, tpu.core_type = #tpu.core_type<tc>} {
    %c0 = arith.constant 0 : index
    %c0_0 = arith.constant 0 : index
    %0 = vector.load %arg0[%c0, %c0_0] : memref<32x128xf32, #tpu.memory_space<vmem>>, vector<32x128xf32>
    %c0_1 = arith.constant 0 : index
    %c0_2 = arith.constant 0 : index
    %1 = vector.load %arg1[%c0_1, %c0_2] : memref<128x128xf32, #tpu.memory_space<vmem>>, vector<128x128xf32>
    %cst = arith.constant dense<0.000000e+00> : vector<32x128xf32>
    %2 = tpu.matmul %0, %1, %cst {dimension_numbers = #tpu.dot_dimension_numbers<[1], [0], [0], [1], [0, 0, 1, 1], [], []>} : vector<32x128xf32>, vector<128x128xf32>, vector<32x128xf32> -> vector<32x128xf32>
    %c0_3 = arith.constant 0 : index
    %c0_4 = arith.constant 0 : index
    %3 = vector.load %arg2[%c0_3, %c0_4] : memref<1x128xf32, #tpu.memory_space<vmem>>, vector<1x128xf32>
    %4 = vector.broadcast %3 : vector<1x128xf32> to vector<32x128xf32>
    %5 = arith.addf %2, %4 : vector<32x128xf32>
    %c0_5 = arith.constant 0 : index
    %c0_6 = arith.constant 0 : index
    %6 = vector.load %arg3[%c0_5, %c0_6] : memref<32x128xf32, #tpu.memory_space<vmem>>, vector<32x128xf32>
    tpu.vector_store %arg3[%c0_5, %c0_6], %5 {strides = array<i32>} : memref<32x128xf32, #tpu.memory_space<vmem>>, vector<32x128xf32>,
    return
  }
}

module attributes {stable_mosaic.version = 11 : i64} {
  func.func @_convffn_kernel(%arg0: memref<9x32x128xf32, #tpu.memory_space<vmem>>, %arg1: memref<9x1x128xf32, #tpu.memory_space<vmem>>, %arg2: memref<1x128xf32, #tpu.memory_space<vmem>>, %arg3: memref<128x256xf32, #tpu.memory_space<vmem>>, %arg4: memref<1x256xf32, #tpu.memory_space<vmem>>, %arg5: memref<256x128xf32, #tpu.memory_space<vmem>>, %arg6: memref<1x128xf32, #tpu.memory_space<vmem>>, %arg7: memref<32x128xf32, #tpu.memory_space<vmem>>, %arg8: memref<32x128xf32, #tpu.memory_space<vmem>>) attributes {dimension_semantics = [], scalar_prefetch = 0 : i64, scratch_operands = 0 : i64, tpu.core_type = #tpu.core_type<tc>} {
    %c0 = arith.constant 0 : index
    %c0_0 = arith.constant 0 : index
    %c0_1 = arith.constant 0 : index
    %0 = vector.load %arg0[%c0, %c0_0, %c0_1] : memref<9x32x128xf32, #tpu.memory_space<vmem>>, vector<1x32x128xf32>
    %1 = vector.shape_cast %0 : vector<1x32x128xf32> to vector<32x128xf32>
    %c0_2 = arith.constant 0 : index
    %c0_3 = arith.constant 0 : index
    %c0_4 = arith.constant 0 : index
    %2 = vector.load %arg1[%c0_2, %c0_3, %c0_4] : memref<9x1x128xf32, #tpu.memory_space<vmem>>, vector<1x1x128xf32>
    %3 = vector.shape_cast %2 : vector<1x1x128xf32> to vector<1x128xf32>
    %4 = vector.broadcast %3 : vector<1x128xf32> to vector<32x128xf32>
    %5 = arith.mulf %1, %4 : vector<32x128xf32>
    %c1 = arith.constant 1 : index
    %c0_5 = arith.constant 0 : index
    %c0_6 = arith.constant 0 : index
    %6 = vector.load %arg0[%c1, %c0_5, %c0_6] : memref<9x32x128xf32, #tpu.memory_space<vmem>>, vector<1x32x128xf32>
    %7 = vector.shape_cast %6 : vector<1x32x128xf32> to vector<32x128xf32>
    %c1_7 = arith.constant 1 : index
    %c0_8 = arith.constant 0 : index
    %c0_9 = arith.constant 0 : index
    %8 = vector.load %arg1[%c1_7, %c0_8, %c0_9] : memref<9x1x128xf32, #tpu.memory_space<vmem>>, vector<1x1x128xf32>
    %9 = vector.shape_cast %8 : vector<1x1x128xf32> to vector<1x128xf32>
    %10 = vector.broadcast %9 : vector<1x128xf32> to vector<32x128xf32>
    %11 = arith.mulf %7, %10 : vector<32x128xf32>
    %12 = arith.addf %5, %11 : vector<32x128xf32>
    %c2 = arith.constant 2 : index
    %c0_10 = arith.constant 0 : index
    %c0_11 = arith.constant 0 : index
    %13 = vector.load %arg0[%c2, %c0_10, %c0_11] : memref<9x32x128xf32, #tpu.memory_space<vmem>>, vector<1x32x128xf32>
    %14 = vector.shape_cast %13 : vector<1x32x128xf32> to vector<32x128xf32>
    %c2_12 = arith.constant 2 : index
    %c0_13 = arith.constant 0 : index
    %c0_14 = arith.constant 0 : index
    %15 = vector.load %arg1[%c2_12, %c0_13, %c0_14] : memref<9x1x128xf32, #tpu.memory_space<vmem>>, vector<1x1x128xf32>
    %16 = vector.shape_cast %15 : vector<1x1x128xf32> to vector<1x128xf32>
    %17 = vector.broadcast %16 : vector<1x128xf32> to vector<32x128xf32>
    %18 = arith.mulf %14, %17 : vector<32x128xf32>
    %19 = arith.addf %12, %18 : vector<32x128xf32>
    %c3 = arith.constant 3 : index
    %c0_15 = arith.constant 0 : index
    %c0_16 = arith.constant 0 : index
    %20 = vector.load %arg0[%c3, %c0_15, %c0_16] : memref<9x32x128xf32, #tpu.memory_space<vmem>>, vector<1x32x128xf32>
    %21 = vector.shape_cast %20 : vector<1x32x128xf32> to vector<32x128xf32>
    %c3_17 = arith.constant 3 : index
    %c0_18 = arith.constant 0 : index
    %c0_19 = arith.constant 0 : index
    %22 = vector.load %arg1[%c3_17, %c0_18, %c0_19] : memref<9x1x128xf32, #tpu.memory_space<vmem>>, vector<1x1x128xf32>
    %23 = vector.shape_cast %22 : vector<1x1x128xf32> to vector<1x128xf32>
    %24 = vector.broadcast %23 : vector<1x128xf32> to vector<32x128xf32>
    %25 = arith.mulf %21, %24 : vector<32x128xf32>
    %26 = arith.addf %19, %25 : vector<32x128xf32>
    %c4 = arith.constant 4 : index
    %c0_20 = arith.constant 0 : index
    %c0_21 = arith.constant 0 : index
    %27 = vector.load %arg0[%c4, %c0_20, %c0_21] : memref<9x32x128xf32, #tpu.memory_space<vmem>>, vector<1x32x128xf32>
    %28 = vector.shape_cast %27 : vector<1x32x128xf32> to vector<32x128xf32>
    %c4_22 = arith.constant 4 : index
    %c0_23 = arith.constant 0 : index
    %c0_24 = arith.constant 0 : index
    %29 = vector.load %arg1[%c4_22, %c0_23, %c0_24] : memref<9x1x128xf32, #tpu.memory_space<vmem>>, vector<1x1x128xf32>
    %30 = vector.shape_cast %29 : vector<1x1x128xf32> to vector<1x128xf32>
    %31 = vector.broadcast %30 : vector<1x128xf32> to vector<32x128xf32>
    %32 = arith.mulf %28, %31 : vector<32x128xf32>
    %33 = arith.addf %26, %32 : vector<32x128xf32>
    %c5 = arith.constant 5 : index
    %c0_25 = arith.constant 0 : index
    %c0_26 = arith.constant 0 : index
    %34 = vector.load %arg0[%c5, %c0_25, %c0_26] : memref<9x32x128xf32, #tpu.memory_space<vmem>>, vector<1x32x128xf32>
    %35 = vector.shape_cast %34 : vector<1x32x128xf32> to vector<32x128xf32>
    %c5_27 = arith.constant 5 : index
    %c0_28 = arith.constant 0 : index
    %c0_29 = arith.constant 0 : index
    %36 = vector.load %arg1[%c5_27, %c0_28, %c0_29] : memref<9x1x128xf32, #tpu.memory_space<vmem>>, vector<1x1x128xf32>
    %37 = vector.shape_cast %36 : vector<1x1x128xf32> to vector<1x128xf32>
    %38 = vector.broadcast %37 : vector<1x128xf32> to vector<32x128xf32>
    %39 = arith.mulf %35, %38 : vector<32x128xf32>
    %40 = arith.addf %33, %39 : vector<32x128xf32>
    %c6 = arith.constant 6 : index
    %c0_30 = arith.constant 0 : index
    %c0_31 = arith.constant 0 : index
    %41 = vector.load %arg0[%c6, %c0_30, %c0_31] : memref<9x32x128xf32, #tpu.memory_space<vmem>>, vector<1x32x128xf32>
    %42 = vector.shape_cast %41 : vector<1x32x128xf32> to vector<32x128xf32>
    %c6_32 = arith.constant 6 : index
    %c0_33 = arith.constant 0 : index
    %c0_34 = arith.constant 0 : index
    %43 = vector.load %arg1[%c6_32, %c0_33, %c0_34] : memref<9x1x128xf32, #tpu.memory_space<vmem>>, vector<1x1x128xf32>
    %44 = vector.shape_cast %43 : vector<1x1x128xf32> to vector<1x128xf32>
    %45 = vector.broadcast %44 : vector<1x128xf32> to vector<32x128xf32>
    %46 = arith.mulf %42, %45 : vector<32x128xf32>
    %47 = arith.addf %40, %46 : vector<32x128xf32>
    %c7 = arith.constant 7 : index
    %c0_35 = arith.constant 0 : index
    %c0_36 = arith.constant 0 : index
    %48 = vector.load %arg0[%c7, %c0_35, %c0_36] : memref<9x32x128xf32, #tpu.memory_space<vmem>>, vector<1x32x128xf32>
    %49 = vector.shape_cast %48 : vector<1x32x128xf32> to vector<32x128xf32>
    %c7_37 = arith.constant 7 : index
    %c0_38 = arith.constant 0 : index
    %c0_39 = arith.constant 0 : index
    %50 = vector.load %arg1[%c7_37, %c0_38, %c0_39] : memref<9x1x128xf32, #tpu.memory_space<vmem>>, vector<1x1x128xf32>
    %51 = vector.shape_cast %50 : vector<1x1x128xf32> to vector<1x128xf32>
    %52 = vector.broadcast %51 : vector<1x128xf32> to vector<32x128xf32>
    %53 = arith.mulf %49, %52 : vector<32x128xf32>
    %54 = arith.addf %47, %53 : vector<32x128xf32>
    %c8 = arith.constant 8 : index
    %c0_40 = arith.constant 0 : index
    %c0_41 = arith.constant 0 : index
    %55 = vector.load %arg0[%c8, %c0_40, %c0_41] : memref<9x32x128xf32, #tpu.memory_space<vmem>>, vector<1x32x128xf32>
    %56 = vector.shape_cast %55 : vector<1x32x128xf32> to vector<32x128xf32>
    %c8_42 = arith.constant 8 : index
    %c0_43 = arith.constant 0 : index
    %c0_44 = arith.constant 0 : index
    %57 = vector.load %arg1[%c8_42, %c0_43, %c0_44] : memref<9x1x128xf32, #tpu.memory_space<vmem>>, vector<1x1x128xf32>
    %58 = vector.shape_cast %57 : vector<1x1x128xf32> to vector<1x128xf32>
    %59 = vector.broadcast %58 : vector<1x128xf32> to vector<32x128xf32>
    %60 = arith.mulf %56, %59 : vector<32x128xf32>
    %61 = arith.addf %54, %60 : vector<32x128xf32>
    %c0_45 = arith.constant 0 : index
    %c0_46 = arith.constant 0 : index
    %62 = vector.load %arg2[%c0_45, %c0_46] : memref<1x128xf32, #tpu.memory_space<vmem>>, vector<1x128xf32>
    %63 = vector.broadcast %62 : vector<1x128xf32> to vector<32x128xf32>
    %64 = arith.addf %61, %63 : vector<32x128xf32>
    %c0_47 = arith.constant 0 : index
    %c0_48 = arith.constant 0 : index
    %65 = vector.load %arg3[%c0_47, %c0_48] : memref<128x256xf32, #tpu.memory_space<vmem>>, vector<128x256xf32>
    %cst = arith.constant dense<0.000000e+00> : vector<32x256xf32>
    %66 = tpu.matmul %64, %65, %cst {dimension_numbers = #tpu.dot_dimension_numbers<[1], [0], [0], [1], [0, 0, 1, 1], [], []>} : vector<32x128xf32>, vector<128x256xf32>, vector<32x256xf32> -> vector<32x256xf32>
    %c0_49 = arith.constant 0 : index
    %c0_50 = arith.constant 0 : index
    %67 = vector.load %arg4[%c0_49, %c0_50] : memref<1x256xf32, #tpu.memory_space<vmem>>, vector<1x256xf32>
    %68 = vector.broadcast %67 : vector<1x256xf32> to vector<32x256xf32>
    %69 = arith.addf %66, %68 : vector<32x256xf32>
    %cst_51 = arith.constant 5.000000e-01 : f32
    %70 = vector.broadcast %cst_51 : f32 to vector<32x256xf32>
    %71 = arith.mulf %70, %69 : vector<32x256xf32>
    %cst_52 = arith.constant 0.707106769 : f32
    %72 = vector.broadcast %cst_52 : f32 to vector<32x256xf32>
    %73 = arith.mulf %69, %72 : vector<32x256xf32>
    %74 = math.absf %73 : vector<32x256xf32>
    %cst_53 = arith.constant 0.327591091 : f32
    %75 = vector.broadcast %cst_53 : f32 to vector<32x256xf32>
    %76 = arith.mulf %75, %74 : vector<32x256xf32>
    %cst_54 = arith.constant 1.000000e+00 : f32
    %77 = vector.broadcast %cst_54 : f32 to vector<32x256xf32>
    %78 = arith.addf %77, %76 : vector<32x256xf32>
    %cst_55 = arith.constant 1.000000e+00 : f32
    %79 = vector.broadcast %cst_55 : f32 to vector<32x256xf32>
    %80 = arith.divf %79, %78 : vector<32x256xf32>
    %cst_56 = arith.constant 1.06140542 : f32
    %81 = vector.broadcast %cst_56 : f32 to vector<32x256xf32>
    %82 = arith.mulf %81, %80 : vector<32x256xf32>
    %cst_57 = arith.constant 1.45315206 : f32
    %83 = vector.broadcast %cst_57 : f32 to vector<32x256xf32>
    %84 = arith.subf %82, %83 : vector<32x256xf32>
    %85 = arith.mulf %84, %80 : vector<32x256xf32>
    %cst_58 = arith.constant 1.42141378 : f32
    %86 = vector.broadcast %cst_58 : f32 to vector<32x256xf32>
    %87 = arith.addf %85, %86 : vector<32x256xf32>
    %88 = arith.mulf %87, %80 : vector<32x256xf32>
    %cst_59 = arith.constant 0.284496725 : f32
    %89 = vector.broadcast %cst_59 : f32 to vector<32x256xf32>
    %90 = arith.subf %88, %89 : vector<32x256xf32>
    %91 = arith.mulf %90, %80 : vector<32x256xf32>
    %cst_60 = arith.constant 0.254829586 : f32
    %92 = vector.broadcast %cst_60 : f32 to vector<32x256xf32>
    %93 = arith.addf %91, %92 : vector<32x256xf32>
    %94 = arith.mulf %93, %80 : vector<32x256xf32>
    %cst_61 = arith.constant 0.000000e+00 : f32
    %95 = vector.broadcast %cst_61 : f32 to vector<32x256xf32>
    %96 = arith.subf %95, %73 : vector<32x256xf32>
    %97 = arith.mulf %96, %73 : vector<32x256xf32>
    %98 = math.exp %97 : vector<32x256xf32>
    %99 = arith.mulf %94, %98 : vector<32x256xf32>
    %cst_62 = arith.constant 1.000000e+00 : f32
    %100 = vector.broadcast %cst_62 : f32 to vector<32x256xf32>
    %101 = arith.subf %100, %99 : vector<32x256xf32>
    %cst_63 = arith.constant 0.000000e+00 : f32
    %102 = vector.broadcast %cst_63 : f32 to vector<32x256xf32>
    %103 = arith.cmpf oge, %73, %102 : vector<32x256xf32>
    %cst_64 = arith.constant 0.000000e+00 : f32
    %104 = vector.broadcast %cst_64 : f32 to vector<32x256xf32>
    %105 = arith.subf %104, %101 : vector<32x256xf32>
    %106 = arith.select %103, %101, %105 : vector<32x256xi1>, vector<32x256xf32>
    %cst_65 = arith.constant 1.000000e+00 : f32
    %107 = vector.broadcast %cst_65 : f32 to vector<32x256xf32>
    %108 = arith.addf %107, %106 : vector<32x256xf32>
    %109 = arith.mulf %71, %108 : vector<32x256xf32>
    %c0_66 = arith.constant 0 : index
    %c0_67 = arith.constant 0 : index
    %110 = vector.load %arg5[%c0_66, %c0_67] : memref<256x128xf32, #tpu.memory_space<vmem>>, vector<256x128xf32>
    %cst_68 = arith.constant dense<0.000000e+00> : vector<32x128xf32>
    %111 = tpu.matmul %109, %110, %cst_68 {dimension_numbers = #tpu.dot_dimension_numbers<[1], [0], [0], [1], [0, 0, 1, 1], [], []>} : vector<32x256xf32>, vector<256x128xf32>, vector<32x128xf32> -> vector<32x128xf32>
    %c0_69 = arith.constant 0 : index
    %c0_70 = arith.constant 0 : index
    %112 = vector.load %arg6[%c0_69, %c0_70] : memref<1x128xf32, #tpu.memory_space<vmem>>, vector<1x128xf32>
    %113 = vector.broadcast %112 : vector<1x128xf32> to vector<32x128xf32>
    %114 = arith.addf %111, %113 : vector<32x128xf32>
    %c0_71 = arith.constant 0 : index
    %c0_72 = arith.constant 0 : index
    %115 = vector.load %arg7[%c0_71, %c0_72] : memref<32x128xf32, #tpu.memory_space<vmem>>, vector<32x128xf32>
    %116 = arith.addf %114, %115 : vector<32x128xf32>
    %c0_73 = arith.constant 0 : index
    %c0_74 = arith.constant 0 : index
    %117 = vector.load %arg8[%c0_73, %c0_74] : memref<32x128xf32, #tpu.memory_space<vmem>>, vector<32x128xf32>
    tpu.vector_store %arg8[%c0_73, %c0_74], %116 {strides = array<i32>} : memref<32x128xf32, #tpu.memory_space<vmem>>, vector<32x128xf32>,
    return
  }
}

module attributes {stable_mosaic.version = 11 : i64} {
  func.func @_mm_kernel(%arg0: memref<128x128xf32, #tpu.memory_space<vmem>>, %arg1: memref<128x128xf32, #tpu.memory_space<vmem>>, %arg2: memref<1x128xf32, #tpu.memory_space<vmem>>, %arg3: memref<128x128xf32, #tpu.memory_space<vmem>>) attributes {dimension_semantics = [], scalar_prefetch = 0 : i64, scratch_operands = 0 : i64, tpu.core_type = #tpu.core_type<tc>} {
    %c0 = arith.constant 0 : index
    %c0_0 = arith.constant 0 : index
    %0 = vector.load %arg0[%c0, %c0_0] : memref<128x128xf32, #tpu.memory_space<vmem>>, vector<128x128xf32>
    %c0_1 = arith.constant 0 : index
    %c0_2 = arith.constant 0 : index
    %1 = vector.load %arg1[%c0_1, %c0_2] : memref<128x128xf32, #tpu.memory_space<vmem>>, vector<128x128xf32>
    %cst = arith.constant dense<0.000000e+00> : vector<128x128xf32>
    %2 = tpu.matmul %0, %1, %cst {dimension_numbers = #tpu.dot_dimension_numbers<[1], [0], [0], [1], [0, 0, 1, 1], [], []>} : vector<128x128xf32>, vector<128x128xf32>, vector<128x128xf32> -> vector<128x128xf32>
    %c0_3 = arith.constant 0 : index
    %c0_4 = arith.constant 0 : index
    %3 = vector.load %arg2[%c0_3, %c0_4] : memref<1x128xf32, #tpu.memory_space<vmem>>, vector<1x128xf32>
    %4 = vector.broadcast %3 : vector<1x128xf32> to vector<128x128xf32>
    %5 = arith.addf %2, %4 : vector<128x128xf32>
    %c0_5 = arith.constant 0 : index
    %c0_6 = arith.constant 0 : index
    %6 = vector.load %arg3[%c0_5, %c0_6] : memref<128x128xf32, #tpu.memory_space<vmem>>, vector<128x128xf32>
    tpu.vector_store %arg3[%c0_5, %c0_6], %5 {strides = array<i32>} : memref<128x128xf32, #tpu.memory_space<vmem>>, vector<128x128xf32>,
    return
  }
}

module attributes {stable_mosaic.version = 11 : i64} {
  func.func @_convffn_kernel(%arg0: memref<9x128x128xf32, #tpu.memory_space<vmem>>, %arg1: memref<9x1x128xf32, #tpu.memory_space<vmem>>, %arg2: memref<1x128xf32, #tpu.memory_space<vmem>>, %arg3: memref<128x256xf32, #tpu.memory_space<vmem>>, %arg4: memref<1x256xf32, #tpu.memory_space<vmem>>, %arg5: memref<256x128xf32, #tpu.memory_space<vmem>>, %arg6: memref<1x128xf32, #tpu.memory_space<vmem>>, %arg7: memref<128x128xf32, #tpu.memory_space<vmem>>, %arg8: memref<128x128xf32, #tpu.memory_space<vmem>>) attributes {dimension_semantics = [], scalar_prefetch = 0 : i64, scratch_operands = 0 : i64, tpu.core_type = #tpu.core_type<tc>} {
    %c0 = arith.constant 0 : index
    %c0_0 = arith.constant 0 : index
    %c0_1 = arith.constant 0 : index
    %0 = vector.load %arg0[%c0, %c0_0, %c0_1] : memref<9x128x128xf32, #tpu.memory_space<vmem>>, vector<1x128x128xf32>
    %1 = vector.shape_cast %0 : vector<1x128x128xf32> to vector<128x128xf32>
    %c0_2 = arith.constant 0 : index
    %c0_3 = arith.constant 0 : index
    %c0_4 = arith.constant 0 : index
    %2 = vector.load %arg1[%c0_2, %c0_3, %c0_4] : memref<9x1x128xf32, #tpu.memory_space<vmem>>, vector<1x1x128xf32>
    %3 = vector.shape_cast %2 : vector<1x1x128xf32> to vector<1x128xf32>
    %4 = vector.broadcast %3 : vector<1x128xf32> to vector<128x128xf32>
    %5 = arith.mulf %1, %4 : vector<128x128xf32>
    %c1 = arith.constant 1 : index
    %c0_5 = arith.constant 0 : index
    %c0_6 = arith.constant 0 : index
    %6 = vector.load %arg0[%c1, %c0_5, %c0_6] : memref<9x128x128xf32, #tpu.memory_space<vmem>>, vector<1x128x128xf32>
    %7 = vector.shape_cast %6 : vector<1x128x128xf32> to vector<128x128xf32>
    %c1_7 = arith.constant 1 : index
    %c0_8 = arith.constant 0 : index
    %c0_9 = arith.constant 0 : index
    %8 = vector.load %arg1[%c1_7, %c0_8, %c0_9] : memref<9x1x128xf32, #tpu.memory_space<vmem>>, vector<1x1x128xf32>
    %9 = vector.shape_cast %8 : vector<1x1x128xf32> to vector<1x128xf32>
    %10 = vector.broadcast %9 : vector<1x128xf32> to vector<128x128xf32>
    %11 = arith.mulf %7, %10 : vector<128x128xf32>
    %12 = arith.addf %5, %11 : vector<128x128xf32>
    %c2 = arith.constant 2 : index
    %c0_10 = arith.constant 0 : index
    %c0_11 = arith.constant 0 : index
    %13 = vector.load %arg0[%c2, %c0_10, %c0_11] : memref<9x128x128xf32, #tpu.memory_space<vmem>>, vector<1x128x128xf32>
    %14 = vector.shape_cast %13 : vector<1x128x128xf32> to vector<128x128xf32>
    %c2_12 = arith.constant 2 : index
    %c0_13 = arith.constant 0 : index
    %c0_14 = arith.constant 0 : index
    %15 = vector.load %arg1[%c2_12, %c0_13, %c0_14] : memref<9x1x128xf32, #tpu.memory_space<vmem>>, vector<1x1x128xf32>
    %16 = vector.shape_cast %15 : vector<1x1x128xf32> to vector<1x128xf32>
    %17 = vector.broadcast %16 : vector<1x128xf32> to vector<128x128xf32>
    %18 = arith.mulf %14, %17 : vector<128x128xf32>
    %19 = arith.addf %12, %18 : vector<128x128xf32>
    %c3 = arith.constant 3 : index
    %c0_15 = arith.constant 0 : index
    %c0_16 = arith.constant 0 : index
    %20 = vector.load %arg0[%c3, %c0_15, %c0_16] : memref<9x128x128xf32, #tpu.memory_space<vmem>>, vector<1x128x128xf32>
    %21 = vector.shape_cast %20 : vector<1x128x128xf32> to vector<128x128xf32>
    %c3_17 = arith.constant 3 : index
    %c0_18 = arith.constant 0 : index
    %c0_19 = arith.constant 0 : index
    %22 = vector.load %arg1[%c3_17, %c0_18, %c0_19] : memref<9x1x128xf32, #tpu.memory_space<vmem>>, vector<1x1x128xf32>
    %23 = vector.shape_cast %22 : vector<1x1x128xf32> to vector<1x128xf32>
    %24 = vector.broadcast %23 : vector<1x128xf32> to vector<128x128xf32>
    %25 = arith.mulf %21, %24 : vector<128x128xf32>
    %26 = arith.addf %19, %25 : vector<128x128xf32>
    %c4 = arith.constant 4 : index
    %c0_20 = arith.constant 0 : index
    %c0_21 = arith.constant 0 : index
    %27 = vector.load %arg0[%c4, %c0_20, %c0_21] : memref<9x128x128xf32, #tpu.memory_space<vmem>>, vector<1x128x128xf32>
    %28 = vector.shape_cast %27 : vector<1x128x128xf32> to vector<128x128xf32>
    %c4_22 = arith.constant 4 : index
    %c0_23 = arith.constant 0 : index
    %c0_24 = arith.constant 0 : index
    %29 = vector.load %arg1[%c4_22, %c0_23, %c0_24] : memref<9x1x128xf32, #tpu.memory_space<vmem>>, vector<1x1x128xf32>
    %30 = vector.shape_cast %29 : vector<1x1x128xf32> to vector<1x128xf32>
    %31 = vector.broadcast %30 : vector<1x128xf32> to vector<128x128xf32>
    %32 = arith.mulf %28, %31 : vector<128x128xf32>
    %33 = arith.addf %26, %32 : vector<128x128xf32>
    %c5 = arith.constant 5 : index
    %c0_25 = arith.constant 0 : index
    %c0_26 = arith.constant 0 : index
    %34 = vector.load %arg0[%c5, %c0_25, %c0_26] : memref<9x128x128xf32, #tpu.memory_space<vmem>>, vector<1x128x128xf32>
    %35 = vector.shape_cast %34 : vector<1x128x128xf32> to vector<128x128xf32>
    %c5_27 = arith.constant 5 : index
    %c0_28 = arith.constant 0 : index
    %c0_29 = arith.constant 0 : index
    %36 = vector.load %arg1[%c5_27, %c0_28, %c0_29] : memref<9x1x128xf32, #tpu.memory_space<vmem>>, vector<1x1x128xf32>
    %37 = vector.shape_cast %36 : vector<1x1x128xf32> to vector<1x128xf32>
    %38 = vector.broadcast %37 : vector<1x128xf32> to vector<128x128xf32>
    %39 = arith.mulf %35, %38 : vector<128x128xf32>
    %40 = arith.addf %33, %39 : vector<128x128xf32>
    %c6 = arith.constant 6 : index
    %c0_30 = arith.constant 0 : index
    %c0_31 = arith.constant 0 : index
    %41 = vector.load %arg0[%c6, %c0_30, %c0_31] : memref<9x128x128xf32, #tpu.memory_space<vmem>>, vector<1x128x128xf32>
    %42 = vector.shape_cast %41 : vector<1x128x128xf32> to vector<128x128xf32>
    %c6_32 = arith.constant 6 : index
    %c0_33 = arith.constant 0 : index
    %c0_34 = arith.constant 0 : index
    %43 = vector.load %arg1[%c6_32, %c0_33, %c0_34] : memref<9x1x128xf32, #tpu.memory_space<vmem>>, vector<1x1x128xf32>
    %44 = vector.shape_cast %43 : vector<1x1x128xf32> to vector<1x128xf32>
    %45 = vector.broadcast %44 : vector<1x128xf32> to vector<128x128xf32>
    %46 = arith.mulf %42, %45 : vector<128x128xf32>
    %47 = arith.addf %40, %46 : vector<128x128xf32>
    %c7 = arith.constant 7 : index
    %c0_35 = arith.constant 0 : index
    %c0_36 = arith.constant 0 : index
    %48 = vector.load %arg0[%c7, %c0_35, %c0_36] : memref<9x128x128xf32, #tpu.memory_space<vmem>>, vector<1x128x128xf32>
    %49 = vector.shape_cast %48 : vector<1x128x128xf32> to vector<128x128xf32>
    %c7_37 = arith.constant 7 : index
    %c0_38 = arith.constant 0 : index
    %c0_39 = arith.constant 0 : index
    %50 = vector.load %arg1[%c7_37, %c0_38, %c0_39] : memref<9x1x128xf32, #tpu.memory_space<vmem>>, vector<1x1x128xf32>
    %51 = vector.shape_cast %50 : vector<1x1x128xf32> to vector<1x128xf32>
    %52 = vector.broadcast %51 : vector<1x128xf32> to vector<128x128xf32>
    %53 = arith.mulf %49, %52 : vector<128x128xf32>
    %54 = arith.addf %47, %53 : vector<128x128xf32>
    %c8 = arith.constant 8 : index
    %c0_40 = arith.constant 0 : index
    %c0_41 = arith.constant 0 : index
    %55 = vector.load %arg0[%c8, %c0_40, %c0_41] : memref<9x128x128xf32, #tpu.memory_space<vmem>>, vector<1x128x128xf32>
    %56 = vector.shape_cast %55 : vector<1x128x128xf32> to vector<128x128xf32>
    %c8_42 = arith.constant 8 : index
    %c0_43 = arith.constant 0 : index
    %c0_44 = arith.constant 0 : index
    %57 = vector.load %arg1[%c8_42, %c0_43, %c0_44] : memref<9x1x128xf32, #tpu.memory_space<vmem>>, vector<1x1x128xf32>
    %58 = vector.shape_cast %57 : vector<1x1x128xf32> to vector<1x128xf32>
    %59 = vector.broadcast %58 : vector<1x128xf32> to vector<128x128xf32>
    %60 = arith.mulf %56, %59 : vector<128x128xf32>
    %61 = arith.addf %54, %60 : vector<128x128xf32>
    %c0_45 = arith.constant 0 : index
    %c0_46 = arith.constant 0 : index
    %62 = vector.load %arg2[%c0_45, %c0_46] : memref<1x128xf32, #tpu.memory_space<vmem>>, vector<1x128xf32>
    %63 = vector.broadcast %62 : vector<1x128xf32> to vector<128x128xf32>
    %64 = arith.addf %61, %63 : vector<128x128xf32>
    %c0_47 = arith.constant 0 : index
    %c0_48 = arith.constant 0 : index
    %65 = vector.load %arg3[%c0_47, %c0_48] : memref<128x256xf32, #tpu.memory_space<vmem>>, vector<128x256xf32>
    %cst = arith.constant dense<0.000000e+00> : vector<128x256xf32>
    %66 = tpu.matmul %64, %65, %cst {dimension_numbers = #tpu.dot_dimension_numbers<[1], [0], [0], [1], [0, 0, 1, 1], [], []>} : vector<128x128xf32>, vector<128x256xf32>, vector<128x256xf32> -> vector<128x256xf32>
    %c0_49 = arith.constant 0 : index
    %c0_50 = arith.constant 0 : index
    %67 = vector.load %arg4[%c0_49, %c0_50] : memref<1x256xf32, #tpu.memory_space<vmem>>, vector<1x256xf32>
    %68 = vector.broadcast %67 : vector<1x256xf32> to vector<128x256xf32>
    %69 = arith.addf %66, %68 : vector<128x256xf32>
    %cst_51 = arith.constant 5.000000e-01 : f32
    %70 = vector.broadcast %cst_51 : f32 to vector<128x256xf32>
    %71 = arith.mulf %70, %69 : vector<128x256xf32>
    %cst_52 = arith.constant 0.707106769 : f32
    %72 = vector.broadcast %cst_52 : f32 to vector<128x256xf32>
    %73 = arith.mulf %69, %72 : vector<128x256xf32>
    %74 = math.absf %73 : vector<128x256xf32>
    %cst_53 = arith.constant 0.327591091 : f32
    %75 = vector.broadcast %cst_53 : f32 to vector<128x256xf32>
    %76 = arith.mulf %75, %74 : vector<128x256xf32>
    %cst_54 = arith.constant 1.000000e+00 : f32
    %77 = vector.broadcast %cst_54 : f32 to vector<128x256xf32>
    %78 = arith.addf %77, %76 : vector<128x256xf32>
    %cst_55 = arith.constant 1.000000e+00 : f32
    %79 = vector.broadcast %cst_55 : f32 to vector<128x256xf32>
    %80 = arith.divf %79, %78 : vector<128x256xf32>
    %cst_56 = arith.constant 1.06140542 : f32
    %81 = vector.broadcast %cst_56 : f32 to vector<128x256xf32>
    %82 = arith.mulf %81, %80 : vector<128x256xf32>
    %cst_57 = arith.constant 1.45315206 : f32
    %83 = vector.broadcast %cst_57 : f32 to vector<128x256xf32>
    %84 = arith.subf %82, %83 : vector<128x256xf32>
    %85 = arith.mulf %84, %80 : vector<128x256xf32>
    %cst_58 = arith.constant 1.42141378 : f32
    %86 = vector.broadcast %cst_58 : f32 to vector<128x256xf32>
    %87 = arith.addf %85, %86 : vector<128x256xf32>
    %88 = arith.mulf %87, %80 : vector<128x256xf32>
    %cst_59 = arith.constant 0.284496725 : f32
    %89 = vector.broadcast %cst_59 : f32 to vector<128x256xf32>
    %90 = arith.subf %88, %89 : vector<128x256xf32>
    %91 = arith.mulf %90, %80 : vector<128x256xf32>
    %cst_60 = arith.constant 0.254829586 : f32
    %92 = vector.broadcast %cst_60 : f32 to vector<128x256xf32>
    %93 = arith.addf %91, %92 : vector<128x256xf32>
    %94 = arith.mulf %93, %80 : vector<128x256xf32>
    %cst_61 = arith.constant 0.000000e+00 : f32
    %95 = vector.broadcast %cst_61 : f32 to vector<128x256xf32>
    %96 = arith.subf %95, %73 : vector<128x256xf32>
    %97 = arith.mulf %96, %73 : vector<128x256xf32>
    %98 = math.exp %97 : vector<128x256xf32>
    %99 = arith.mulf %94, %98 : vector<128x256xf32>
    %cst_62 = arith.constant 1.000000e+00 : f32
    %100 = vector.broadcast %cst_62 : f32 to vector<128x256xf32>
    %101 = arith.subf %100, %99 : vector<128x256xf32>
    %cst_63 = arith.constant 0.000000e+00 : f32
    %102 = vector.broadcast %cst_63 : f32 to vector<128x256xf32>
    %103 = arith.cmpf oge, %73, %102 : vector<128x256xf32>
    %cst_64 = arith.constant 0.000000e+00 : f32
    %104 = vector.broadcast %cst_64 : f32 to vector<128x256xf32>
    %105 = arith.subf %104, %101 : vector<128x256xf32>
    %106 = arith.select %103, %101, %105 : vector<128x256xi1>, vector<128x256xf32>
    %cst_65 = arith.constant 1.000000e+00 : f32
    %107 = vector.broadcast %cst_65 : f32 to vector<128x256xf32>
    %108 = arith.addf %107, %106 : vector<128x256xf32>
    %109 = arith.mulf %71, %108 : vector<128x256xf32>
    %c0_66 = arith.constant 0 : index
    %c0_67 = arith.constant 0 : index
    %110 = vector.load %arg5[%c0_66, %c0_67] : memref<256x128xf32, #tpu.memory_space<vmem>>, vector<256x128xf32>
    %cst_68 = arith.constant dense<0.000000e+00> : vector<128x128xf32>
    %111 = tpu.matmul %109, %110, %cst_68 {dimension_numbers = #tpu.dot_dimension_numbers<[1], [0], [0], [1], [0, 0, 1, 1], [], []>} : vector<128x256xf32>, vector<256x128xf32>, vector<128x128xf32> -> vector<128x128xf32>
    %c0_69 = arith.constant 0 : index
    %c0_70 = arith.constant 0 : index
    %112 = vector.load %arg6[%c0_69, %c0_70] : memref<1x128xf32, #tpu.memory_space<vmem>>, vector<1x128xf32>
    %113 = vector.broadcast %112 : vector<1x128xf32> to vector<128x128xf32>
    %114 = arith.addf %111, %113 : vector<128x128xf32>
    %c0_71 = arith.constant 0 : index
    %c0_72 = arith.constant 0 : index
    %115 = vector.load %arg7[%c0_71, %c0_72] : memref<128x128xf32, #tpu.memory_space<vmem>>, vector<128x128xf32>
    %116 = arith.addf %114, %115 : vector<128x128xf32>
    %c0_73 = arith.constant 0 : index
    %c0_74 = arith.constant 0 : index
    %117 = vector.load %arg8[%c0_73, %c0_74] : memref<128x128xf32, #tpu.memory_space<vmem>>, vector<128x128xf32>
    tpu.vector_store %arg8[%c0_73, %c0_74], %116 {strides = array<i32>} : memref<128x128xf32, #tpu.memory_space<vmem>>, vector<128x128xf32>,
    return
  }
}

module attributes {stable_mosaic.version = 11 : i64} {
  func.func @_mm_kernel(%arg0: memref<8x128xf32, #tpu.memory_space<vmem>>, %arg1: memref<128x640xf32, #tpu.memory_space<vmem>>, %arg2: memref<1x640xf32, #tpu.memory_space<vmem>>, %arg3: memref<8x640xf32, #tpu.memory_space<vmem>>) attributes {dimension_semantics = [], scalar_prefetch = 0 : i64, scratch_operands = 0 : i64, tpu.core_type = #tpu.core_type<tc>} {
    %c0 = arith.constant 0 : index
    %c0_0 = arith.constant 0 : index
    %0 = vector.load %arg0[%c0, %c0_0] : memref<8x128xf32, #tpu.memory_space<vmem>>, vector<8x128xf32>
    %c0_1 = arith.constant 0 : index
    %c0_2 = arith.constant 0 : index
    %1 = vector.load %arg1[%c0_1, %c0_2] : memref<128x640xf32, #tpu.memory_space<vmem>>, vector<128x640xf32>
    %cst = arith.constant dense<0.000000e+00> : vector<8x640xf32>
    %2 = tpu.matmul %0, %1, %cst {dimension_numbers = #tpu.dot_dimension_numbers<[1], [0], [0], [1], [0, 0, 1, 1], [], []>} : vector<8x128xf32>, vector<128x640xf32>, vector<8x640xf32> -> vector<8x640xf32>
    %c0_3 = arith.constant 0 : index
    %c0_4 = arith.constant 0 : index
    %3 = vector.load %arg2[%c0_3, %c0_4] : memref<1x640xf32, #tpu.memory_space<vmem>>, vector<1x640xf32>
    %4 = vector.broadcast %3 : vector<1x640xf32> to vector<8x640xf32>
    %5 = arith.addf %2, %4 : vector<8x640xf32>
    %c0_5 = arith.constant 0 : index
    %c0_6 = arith.constant 0 : index
    %6 = vector.load %arg3[%c0_5, %c0_6] : memref<8x640xf32, #tpu.memory_space<vmem>>, vector<8x640xf32>
    tpu.vector_store %arg3[%c0_5, %c0_6], %5 {strides = array<i32>} : memref<8x640xf32, #tpu.memory_space<vmem>>, vector<8x640xf32>,
    return
  }
}

</mosaic_0001>

<llo_original>
// kernel: _lambda_.17
$region0: #{_lambda_.17}
  #allocation0 [shape = 'u32[]', space=smem, size = 0x4, offset = 0x4, fixed_abs, tag = 'smem constant byte address 0x4 - core index']
  #allocation1 [shape = 'u32[144,128]{1,0:T(1,128)}', space=vmem, size = 0x12000, scoped, tag = 'internal scratch']
  %s0 = inlined_call_operand.vmem [shape: f32[128,128], index: 0, kind: input, shape index: {}]
  %s1 = inlined_call_operand.vmem [shape: f32[128,128], index: 1, kind: input, shape index: {}]
  %s2 = inlined_call_operand.vmem [shape: f32[1,128], index: 2, kind: input, shape index: {}]
  %s3 = inlined_call_operand.vmem [shape: f32[128,128], index: 3, kind: output, shape index: {}]
  %s4 = sld [smem:[#allocation0]]
  $region22: #{_lambda_.17} parent=0
    _
  %s6 = ssub.s32 1, %s4
  %s7 = scalar_select 0, %s6, %s4
  // Predicated region
  $region2: #{_lambda_.17} parent=0 // pred_check
    _
  $region3: #{_lambda_.17} parent=0 // pred_check_branch
    %9 = sbr.rel (0) target = $region5
  $region4: #{_lambda_.17} parent=0 // pred_region
    _
  $region5: #{_lambda_.17} parent=0 // pred_fallthru
    _
  // Predicated region
  $region6: #{_lambda_.17} parent=0 // pred_check
    _
  $region7: #{_lambda_.17} parent=0 // pred_check_branch
    %11 = sbr.rel (0) target = $region9
  $region8: #{_lambda_.17} parent=0 // pred_region
    _
  $region9: #{_lambda_.17} parent=0 // pred_fallthru
    _
  // Predicated region
  $region10: #{_lambda_.17} parent=0 // pred_check
    _
  $region11: #{_lambda_.17} parent=0 // pred_check_branch
    %13 = sbr.rel (0) target = $region13
  $region12: #{_lambda_.17} parent=0 // pred_region
    _
  $region13: #{_lambda_.17} parent=0 // pred_fallthru
    _
  %v14 = vld [vmem:[%s0] sm:$0xff]
  %v15 = vld [vmem:[%s0 + $0x8] sm:$0xff]
  %v16 = vld [vmem:[%s0 + $0x10] sm:$0xff]
  %v17 = vld [vmem:[%s0 + $0x18] sm:$0xff]
  %v18 = vld [vmem:[%s0 + $0x20] sm:$0xff]
  %v19 = vld [vmem:[%s0 + $0x28] sm:$0xff]
  %v20 = vld [vmem:[%s0 + $0x30] sm:$0xff]
  %v21 = vld [vmem:[%s0 + $0x38] sm:$0xff]
  %v22 = vld [vmem:[%s0 + $0x40] sm:$0xff]
  %v23 = vld [vmem:[%s0 + $0x48] sm:$0xff]
  %v24 = vld [vmem:[%s0 + $0x50] sm:$0xff]
  %v25 = vld [vmem:[%s0 + $0x58] sm:$0xff]
  %v26 = vld [vmem:[%s0 + $0x60] sm:$0xff]
  %v27 = vld [vmem:[%s0 + $0x68] sm:$0xff]
  %v28 = vld [vmem:[%s0 + $0x70] sm:$0xff]
  %v29 = vld [vmem:[%s0 + $0x78] sm:$0xff]
  %v30 = vld [vmem:[%s1] sm:$0xff]
  %v31 = vld [vmem:[%s1 + $0x8] sm:$0xff]
  %v32 = vld [vmem:[%s1 + $0x10] sm:$0xff]
  %v33 = vld [vmem:[%s1 + $0x18] sm:$0xff]
  %v34 = vld [vmem:[%s1 + $0x20] sm:$0xff]
  %v35 = vld [vmem:[%s1 + $0x28] sm:$0xff]
  %v36 = vld [vmem:[%s1 + $0x30] sm:$0xff]
  %v37 = vld [vmem:[%s1 + $0x38] sm:$0xff]
  %v38 = vld [vmem:[%s1 + $0x40] sm:$0xff]
  %v39 = vld [vmem:[%s1 + $0x48] sm:$0xff]
  %v40 = vld [vmem:[%s1 + $0x50] sm:$0xff]
  %v41 = vld [vmem:[%s1 + $0x58] sm:$0xff]
  %v42 = vld [vmem:[%s1 + $0x60] sm:$0xff]
  %v43 = vld [vmem:[%s1 + $0x68] sm:$0xff]
  %v44 = vld [vmem:[%s1 + $0x70] sm:$0xff]
  %v45 = vld [vmem:[%s1 + $0x78] sm:$0xff]
  %v46 = vld [vmem:[%s2] sm:$0x1]
  %v48 = vlaneseq
  %v49 = vshrl.u32 %v48, 7
  %v50 = vsub.s32 0, %v49
  %v51 = vrot.slane %v46, %v50
  %53 = vmatprep.subr.mxu0 0.0
  %54 = vmatpush1.msra.mxu0 %v45
  %55 = vmatprep.subr.mxu0 0.0
  %56 = vmatpush1.msra.mxu0 %v44
  %57 = vmatprep.subr.mxu0 0.0
  %58 = vmatpush1.msra.mxu0 %v43
  %59 = vmatprep.subr.mxu0 0.0
  %60 = vmatpush1.msra.mxu0 %v42
  %61 = vmatprep.subr.mxu0 0.0
  %62 = vmatpush1.msra.mxu0 %v41
  %63 = vmatprep.subr.mxu0 0.0
  %64 = vmatpush1.msra.mxu0 %v40
  %65 = vmatprep.subr.mxu0 0.0
  %66 = vmatpush1.msra.mxu0 %v39
  %67 = vmatprep.subr.mxu0 0.0
  %68 = vmatpush1.msra.mxu0 %v38
  %69 = vmatprep.subr.mxu0 0.0
  %70 = vmatpush1.msra.mxu0 %v37
  %71 = vmatprep.subr.mxu0 0.0
  %72 = vmatpush1.msra.mxu0 %v36
  %73 = vmatprep.subr.mxu0 0.0
  %74 = vmatpush1.msra.mxu0 %v35
  %75 = vmatprep.subr.mxu0 0.0
  %76 = vmatpush1.msra.mxu0 %v34
  %77 = vmatprep.subr.mxu0 0.0
  %78 = vmatpush1.msra.mxu0 %v33
  %79 = vmatprep.subr.mxu0 0.0
  %80 = vmatpush1.msra.mxu0 %v32
  %81 = vmatprep.subr.mxu0 0.0
  %82 = vmatpush1.msra.mxu0 %v31
  %83 = vmatprep.subr.mxu0 0.0
  %84 = vmatpush1.msra.mxu0 %v30
  %85 = vmatprep.subr.mxu0 0.0
  %86 = vmatpush2.msra.mxu0 0.0
  %87 = vmatprep.subr.mxu0 0.0
  %88 = vmatpush2.msra.mxu0 0.0
  %89 = vmatprep.subr.mxu0 0.0
  %90 = vmatpush2.msra.mxu0 0.0
  %91 = vmatprep.subr.mxu0 0.0
  %92 = vmatpush2.msra.mxu0 0.0
  %93 = vmatprep.subr.mxu0 0.0
  %94 = vmatpush2.msra.mxu0 0.0
  %95 = vmatprep.subr.mxu0 0.0
  %96 = vmatpush2.msra.mxu0 0.0
  %97 = vmatprep.subr.mxu0 0.0
  %98 = vmatpush2.msra.mxu0 0.0
  %99 = vmatprep.subr.mxu0 0.0
  %100 = vmatpush2.msra.mxu0 0.0
  %101 = vmatprep.subr.mxu0 0.0
  %102 = vmatpush2.msra.mxu0 0.0
  %103 = vmatprep.subr.mxu0 0.0
  %104 = vmatpush2.msra.mxu0 0.0
  %105 = vmatprep.subr.mxu0 0.0
  %106 = vmatpush2.msra.mxu0 0.0
  %107 = vmatprep.subr.mxu0 0.0
  %108 = vmatpush2.msra.mxu0 0.0
  %109 = vmatprep.subr.mxu0 0.0
  %110 = vmatpush2.msra.mxu0 0.0
  %111 = vmatprep.subr.mxu0 0.0
  %112 = vmatpush2.msra.mxu0 0.0
  %113 = vmatprep.subr.mxu0 0.0
  %114 = vmatpush2.msra.mxu0 0.0
  %115 = vmatprep.subr.mxu0 0.0
  %116 = vmatpush2.msra.mxu0 0.0
  %117 = vmatprep.mubr.f32.mxu0 0.0
  %118 = vmatmul.mubr.f32.gmra.mxu0 %v14
  %v119 = vpop.f32.mrf.mxu0
  %v120 = vadd.f32 %v51, %v119
  %v121 = vpop.f32.mrf.mxu0
  %122 = vmatprep.mubr.f32.mxu0 0.0
  %123 = vmatmul.mubr.f32.gmra.mxu0 %v15
  %v124 = vpop.f32.mrf.mxu0
  %v125 = vadd.f32 %v51, %v124
  %v126 = vpop.f32.mrf.mxu0
  %127 = vmatprep.mubr.f32.mxu0 0.0
  %128 = vmatmul.mubr.f32.gmra.mxu0 %v16
  %v129 = vpop.f32.mrf.mxu0
  %v130 = vadd.f32 %v51, %v129
  %v131 = vpop.f32.mrf.mxu0
  %132 = vmatprep.mubr.f32.mxu0 0.0
  %133 = vmatmul.mubr.f32.gmra.mxu0 %v17
  %v134 = vpop.f32.mrf.mxu0
  %v135 = vadd.f32 %v51, %v134
  %v136 = vpop.f32.mrf.mxu0
  %137 = vmatprep.mubr.f32.mxu0 0.0
  %138 = vmatmul.mubr.f32.gmra.mxu0 %v18
  %v139 = vpop.f32.mrf.mxu0
  %v140 = vadd.f32 %v51, %v139
  %v141 = vpop.f32.mrf.mxu0
  %142 = vmatprep.mubr.f32.mxu0 0.0
  %143 = vmatmul.mubr.f32.gmra.mxu0 %v19
  %v144 = vpop.f32.mrf.mxu0
  %v145 = vadd.f32 %v51, %v144
  %v146 = vpop.f32.mrf.mxu0
  %147 = vmatprep.mubr.f32.mxu0 0.0
  %148 = vmatmul.mubr.f32.gmra.mxu0 %v20
  %v149 = vpop.f32.mrf.mxu0
  %v150 = vadd.f32 %v51, %v149
  %v151 = vpop.f32.mrf.mxu0
  %152 = vmatprep.mubr.f32.mxu0 0.0
  %153 = vmatmul.mubr.f32.gmra.mxu0 %v21
  %v154 = vpop.f32.mrf.mxu0
  %v155 = vadd.f32 %v51, %v154
  %v156 = vpop.f32.mrf.mxu0
  %157 = vmatprep.mubr.f32.mxu0 0.0
  %158 = vmatmul.mubr.f32.gmra.mxu0 %v22
  %v159 = vpop.f32.mrf.mxu0
  %v160 = vadd.f32 %v51, %v159
  %v161 = vpop.f32.mrf.mxu0
  %162 = vmatprep.mubr.f32.mxu0 0.0
  %163 = vmatmul.mubr.f32.gmra.mxu0 %v23
  %v164 = vpop.f32.mrf.mxu0
  %v165 = vadd.f32 %v51, %v164
  %v166 = vpop.f32.mrf.mxu0
  %167 = vmatprep.mubr.f32.mxu0 0.0
  %168 = vmatmul.mubr.f32.gmra.mxu0 %v24
  %v169 = vpop.f32.mrf.mxu0
  %v170 = vadd.f32 %v51, %v169
  %v171 = vpop.f32.mrf.mxu0
  %172 = vmatprep.mubr.f32.mxu0 0.0
  %173 = vmatmul.mubr.f32.gmra.mxu0 %v25
  %v174 = vpop.f32.mrf.mxu0
  %v175 = vadd.f32 %v51, %v174
  %v176 = vpop.f32.mrf.mxu0
  %177 = vmatprep.mubr.f32.mxu0 0.0
  %178 = vmatmul.mubr.f32.gmra.mxu0 %v26
  %v179 = vpop.f32.mrf.mxu0
  %v180 = vadd.f32 %v51, %v179
  %v181 = vpop.f32.mrf.mxu0
  %182 = vmatprep.mubr.f32.mxu0 0.0
  %183 = vmatmul.mubr.f32.gmra.mxu0 %v27
  %v184 = vpop.f32.mrf.mxu0
  %v185 = vadd.f32 %v51, %v184
  %v186 = vpop.f32.mrf.mxu0
  %187 = vmatprep.mubr.f32.mxu0 0.0
  %188 = vmatmul.mubr.f32.gmra.mxu0 %v28
  %v189 = vpop.f32.mrf.mxu0
  %v190 = vadd.f32 %v51, %v189
  %v191 = vpop.f32.mrf.mxu0
  %192 = vmatprep.mubr.f32.mxu0 0.0
  %193 = vmatmul.mubr.f32.gmra.mxu0 %v29
  %v194 = vpop.f32.mrf.mxu0
  %v195 = vadd.f32 %v51, %v194
  %v196 = vpop.f32.mrf.mxu0
  %197 = vdwg.mxu0
  %v198 = vmul.f32 %v120, 0.5
  %v199 = vmul.f32 %v125, 0.5
  %v200 = vmul.f32 %v130, 0.5
  %v201 = vmul.f32 %v135, 0.5
  %v202 = vmul.f32 %v140, 0.5
  %v203 = vmul.f32 %v145, 0.5
  %v204 = vmul.f32 %v150, 0.5
  %v205 = vmul.f32 %v155, 0.5
  %v206 = vmul.f32 %v160, 0.5
  %v207 = vmul.f32 %v165, 0.5
  %v208 = vmul.f32 %v170, 0.5
  %v209 = vmul.f32 %v175, 0.5
  %v210 = vmul.f32 %v180, 0.5
  %v211 = vmul.f32 %v185, 0.5
  %v212 = vmul.f32 %v190, 0.5
  %v213 = vmul.f32 %v195, 0.5
  %v214 = vmul.f32 %v120, 0.70710677
  %v215 = vmul.f32 %v125, 0.70710677
  %v216 = vmul.f32 %v130, 0.70710677
  %v217 = vmul.f32 %v135, 0.70710677
  %v218 = vmul.f32 %v140, 0.70710677
  %v219 = vmul.f32 %v145, 0.70710677
  %v220 = vmul.f32 %v150, 0.70710677
  %v221 = vmul.f32 %v155, 0.70710677
  %v222 = vmul.f32 %v160, 0.70710677
  %v223 = vmul.f32 %v165, 0.70710677
  %v224 = vmul.f32 %v170, 0.70710677
  %v225 = vmul.f32 %v175, 0.70710677
  %v226 = vmul.f32 %v180, 0.70710677
  %v227 = vmul.f32 %v185, 0.70710677
  %v228 = vmul.f32 %v190, 0.70710677
  %v229 = vmul.f32 %v195, 0.70710677
  %v230 = vand.u32 2147483647, %v214
  %v231 = vand.u32 2147483647, %v215
  %v232 = vand.u32 2147483647, %v216
  %v233 = vand.u32 2147483647, %v217
  %v234 = vand.u32 2147483647, %v218
  %v235 = vand.u32 2147483647, %v219
  %v236 = vand.u32 2147483647, %v220
  %v237 = vand.u32 2147483647, %v221
  %v238 = vand.u32 2147483647, %v222
  %v239 = vand.u32 2147483647, %v223
  %v240 = vand.u32 2147483647, %v224
  %v241 = vand.u32 2147483647, %v225
  %v242 = vand.u32 2147483647, %v226
  %v243 = vand.u32 2147483647, %v227
  %v244 = vand.u32 2147483647, %v228
  %v245 = vand.u32 2147483647, %v229
  %v246 = vmul.f32 %v230, 0.3275911
  %v247 = vmul.f32 %v231, 0.3275911
  %v248 = vmul.f32 %v232, 0.3275911
  %v249 = vmul.f32 %v233, 0.3275911
  %v250 = vmul.f32 %v234, 0.3275911
  %v251 = vmul.f32 %v235, 0.3275911
  %v252 = vmul.f32 %v236, 0.3275911
  %v253 = vmul.f32 %v237, 0.3275911
  %v254 = vmul.f32 %v238, 0.3275911
  %v255 = vmul.f32 %v239, 0.3275911
  %v256 = vmul.f32 %v240, 0.3275911
  %v257 = vmul.f32 %v241, 0.3275911
  %v258 = vmul.f32 %v242, 0.3275911
  %v259 = vmul.f32 %v243, 0.3275911
  %v260 = vmul.f32 %v244, 0.3275911
  %v261 = vmul.f32 %v245, 0.3275911
  %v262 = vadd.f32 %v246, 1.0
  %v263 = vadd.f32 %v247, 1.0
  %v264 = vadd.f32 %v248, 1.0
  %v265 = vadd.f32 %v249, 1.0
  %v266 = vadd.f32 %v250, 1.0
  %v267 = vadd.f32 %v251, 1.0
  %v268 = vadd.f32 %v252, 1.0
  %v269 = vadd.f32 %v253, 1.0
  %v270 = vadd.f32 %v254, 1.0
  %v271 = vadd.f32 %v255, 1.0
  %v272 = vadd.f32 %v256, 1.0
  %v273 = vadd.f32 %v257, 1.0
  %v274 = vadd.f32 %v258, 1.0
  %v275 = vadd.f32 %v259, 1.0
  %v276 = vadd.f32 %v260, 1.0
  %v277 = vadd.f32 %v261, 1.0
  %v278 = vrcp.pop %v262
  %v279 = vmul.f32 1.0, %v278
  %v280 = vrcp.pop %v263
  %v281 = vmul.f32 1.0, %v280
  %v282 = vrcp.pop %v264
  %v283 = vmul.f32 1.0, %v282
  %v284 = vrcp.pop %v265
  %v285 = vmul.f32 1.0, %v284
  %v286 = vrcp.pop %v266
  %v287 = vmul.f32 1.0, %v286
  %v288 = vrcp.pop %v267
  %v289 = vmul.f32 1.0, %v288
  %v290 = vrcp.pop %v268
  %v291 = vmul.f32 1.0, %v290
  %v292 = vrcp.pop %v269
  %v293 = vmul.f32 1.0, %v292
  %v294 = vrcp.pop %v270
  %v295 = vmul.f32 1.0, %v294
  %v296 = vrcp.pop %v271
  %v297 = vmul.f32 1.0, %v296
  %v298 = vrcp.pop %v272
  %v299 = vmul.f32 1.0, %v298
  %v300 = vrcp.pop %v273
  %v301 = vmul.f32 1.0, %v300
  %v302 = vrcp.pop %v274
  %v303 = vmul.f32 1.0, %v302
  %v304 = vrcp.pop %v275
  %v305 = vmul.f32 1.0, %v304
  %v306 = vrcp.pop %v276
  %v307 = vmul.f32 1.0, %v306
  %v308 = vrcp.pop %v277
  %v309 = vmul.f32 1.0, %v308
  %v310 = vmul.f32 %v279, 1.0614054
  %v311 = vmul.f32 %v281, 1.0614054
  %v312 = vmul.f32 %v283, 1.0614054
  %v313 = vmul.f32 %v285, 1.0614054
  %v314 = vmul.f32 %v287, 1.0614054
  %v315 = vmul.f32 %v289, 1.0614054
  %v316 = vmul.f32 %v291, 1.0614054
  %v317 = vmul.f32 %v293, 1.0614054
  %v318 = vmul.f32 %v295, 1.0614054
  %v319 = vmul.f32 %v297, 1.0614054
  %v320 = vmul.f32 %v299, 1.0614054
  %v321 = vmul.f32 %v301, 1.0614054
  %v322 = vmul.f32 %v303, 1.0614054
  %v323 = vmul.f32 %v305, 1.0614054
  %v324 = vmul.f32 %v307, 1.0614054
  %v325 = vmul.f32 %v309, 1.0614054
  %v326 = vsub.f32 %v310, 1.4531521
  %v327 = vsub.f32 %v311, 1.4531521
  %v328 = vsub.f32 %v312, 1.4531521
  %v329 = vsub.f32 %v313, 1.4531521
  %v330 = vsub.f32 %v314, 1.4531521
  %v331 = vsub.f32 %v315, 1.4531521
  %v332 = vsub.f32 %v316, 1.4531521
  %v333 = vsub.f32 %v317, 1.4531521
  %v334 = vsub.f32 %v318, 1.4531521
  %v335 = vsub.f32 %v319, 1.4531521
  %v336 = vsub.f32 %v320, 1.4531521
  %v337 = vsub.f32 %v321, 1.4531521
  %v338 = vsub.f32 %v322, 1.4531521
  %v339 = vsub.f32 %v323, 1.4531521
  %v340 = vsub.f32 %v324, 1.4531521
  %v341 = vsub.f32 %v325, 1.4531521
  %v342 = vmul.f32 %v326, %v279
  %v343 = vmul.f32 %v327, %v281
  %v344 = vmul.f32 %v328, %v283
  %v345 = vmul.f32 %v329, %v285
  %v346 = vmul.f32 %v330, %v287
  %v347 = vmul.f32 %v331, %v289
  %v348 = vmul.f32 %v332, %v291
  %v349 = vmul.f32 %v333, %v293
  %v350 = vmul.f32 %v334, %v295
  %v351 = vmul.f32 %v335, %v297
  %v352 = vmul.f32 %v336, %v299
  %v353 = vmul.f32 %v337, %v301
  %v354 = vmul.f32 %v338, %v303
  %v355 = vmul.f32 %v339, %v305
  %v356 = vmul.f32 %v340, %v307
  %v357 = vmul.f32 %v341, %v309
  %v358 = vadd.f32 %v342, 1.4214138
  %v359 = vadd.f32 %v343, 1.4214138
  %v360 = vadd.f32 %v344, 1.4214138
  %v361 = vadd.f32 %v345, 1.4214138
  %v362 = vadd.f32 %v346, 1.4214138
  %v363 = vadd.f32 %v347, 1.4214138
  %v364 = vadd.f32 %v348, 1.4214138
  %v365 = vadd.f32 %v349, 1.4214138
  %v366 = vadd.f32 %v350, 1.4214138
  %v367 = vadd.f32 %v351, 1.4214138
  %v368 = vadd.f32 %v352, 1.4214138
  %v369 = vadd.f32 %v353, 1.4214138
  %v370 = vadd.f32 %v354, 1.4214138
  %v371 = vadd.f32 %v355, 1.4214138
  %v372 = vadd.f32 %v356, 1.4214138
  %v373 = vadd.f32 %v357, 1.4214138
  %v374 = vmul.f32 %v358, %v279
  %v375 = vmul.f32 %v359, %v281
  %v376 = vmul.f32 %v360, %v283
  %v377 = vmul.f32 %v361, %v285
  %v378 = vmul.f32 %v362, %v287
  %v379 = vmul.f32 %v363, %v289
  %v380 = vmul.f32 %v364, %v291
  %v381 = vmul.f32 %v365, %v293
  %v382 = vmul.f32 %v366, %v295
  %v383 = vmul.f32 %v367, %v297
  %v384 = vmul.f32 %v368, %v299
  %v385 = vmul.f32 %v369, %v301
  %v386 = vmul.f32 %v370, %v303
  %v387 = vmul.f32 %v371, %v305
  %v388 = vmul.f32 %v372, %v307
  %v389 = vmul.f32 %v373, %v309
  %v390 = vsub.f32 %v374, 0.28449672
  %v391 = vsub.f32 %v375, 0.28449672
  %v392 = vsub.f32 %v376, 0.28449672
  %v393 = vsub.f32 %v377, 0.28449672
  %v394 = vsub.f32 %v378, 0.28449672
  %v395 = vsub.f32 %v379, 0.28449672
  %v396 = vsub.f32 %v380, 0.28449672
  %v397 = vsub.f32 %v381, 0.28449672
  %v398 = vsub.f32 %v382, 0.28449672
  %v399 = vsub.f32 %v383, 0.28449672
  %v400 = vsub.f32 %v384, 0.28449672
  %v401 = vsub.f32 %v385, 0.28449672
  %v402 = vsub.f32 %v386, 0.28449672
  %v403 = vsub.f32 %v387, 0.28449672
  %v404 = vsub.f32 %v388, 0.28449672
  %v405 = vsub.f32 %v389, 0.28449672
  %v406 = vmul.f32 %v390, %v279
  %v407 = vmul.f32 %v391, %v281
  %v408 = vmul.f32 %v392, %v283
  %v409 = vmul.f32 %v393, %v285
  %v410 = vmul.f32 %v394, %v287
  %v411 = vmul.f32 %v395, %v289
  %v412 = vmul.f32 %v396, %v291
  %v413 = vmul.f32 %v397, %v293
  %v414 = vmul.f32 %v398, %v295
  %v415 = vmul.f32 %v399, %v297
  %v416 = vmul.f32 %v400, %v299
  %v417 = vmul.f32 %v401, %v301
  %v418 = vmul.f32 %v402, %v303
  %v419 = vmul.f32 %v403, %v305
  %v420 = vmul.f32 %v404, %v307
  %v421 = vmul.f32 %v405, %v309
  %v422 = vadd.f32 %v406, 0.2548296
  %v423 = vadd.f32 %v407, 0.2548296
  %v424 = vadd.f32 %v408, 0.2548296
  %v425 = vadd.f32 %v409, 0.2548296
  %v426 = vadd.f32 %v410, 0.2548296
  %v427 = vadd.f32 %v411, 0.2548296
  %v428 = vadd.f32 %v412, 0.2548296
  %v429 = vadd.f32 %v413, 0.2548296
  %v430 = vadd.f32 %v414, 0.2548296
  %v431 = vadd.f32 %v415, 0.2548296
  %v432 = vadd.f32 %v416, 0.2548296
  %v433 = vadd.f32 %v417, 0.2548296
  %v434 = vadd.f32 %v418, 0.2548296
  %v435 = vadd.f32 %v419, 0.2548296
  %v436 = vadd.f32 %v420, 0.2548296
  %v437 = vadd.f32 %v421, 0.2548296
  %v438 = vmul.f32 %v422, %v279
  %v439 = vmul.f32 %v423, %v281
  %v440 = vmul.f32 %v424, %v283
  %v441 = vmul.f32 %v425, %v285
  %v442 = vmul.f32 %v426, %v287
  %v443 = vmul.f32 %v427, %v289
  %v444 = vmul.f32 %v428, %v291
  %v445 = vmul.f32 %v429, %v293
  %v446 = vmul.f32 %v430, %v295
  %v447 = vmul.f32 %v431, %v297
  %v448 = vmul.f32 %v432, %v299
  %v449 = vmul.f32 %v433, %v301
  %v450 = vmul.f32 %v434, %v303
  %v451 = vmul.f32 %v435, %v305
  %v452 = vmul.f32 %v436, %v307
  %v453 = vmul.f32 %v437, %v309
  %v454 = vsub.f32 0.0, %v214
  %v455 = vsub.f32 0.0, %v215
  %v456 = vsub.f32 0.0, %v216
  %v457 = vsub.f32 0.0, %v217
  %v458 = vsub.f32 0.0, %v218
  %v459 = vsub.f32 0.0, %v219
  %v460 = vsub.f32 0.0, %v220
  %v461 = vsub.f32 0.0, %v221
  %v462 = vsub.f32 0.0, %v222
  %v463 = vsub.f32 0.0, %v223
  %v464 = vsub.f32 0.0, %v224
  %v465 = vsub.f32 0.0, %v225
  %v466 = vsub.f32 0.0, %v226
  %v467 = vsub.f32 0.0, %v227
  %v468 = vsub.f32 0.0, %v228
  %v469 = vsub.f32 0.0, %v229
  %v470 = vmul.f32 %v454, %v214
  %v471 = vmul.f32 %v455, %v215
  %v472 = vmul.f32 %v456, %v216
  %v473 = vmul.f32 %v457, %v217
  %v474 = vmul.f32 %v458, %v218
  %v475 = vmul.f32 %v459, %v219
  %v476 = vmul.f32 %v460, %v220
  %v477 = vmul.f32 %v461, %v221
  %v478 = vmul.f32 %v462, %v222
  %v479 = vmul.f32 %v463, %v223
  %v480 = vmul.f32 %v464, %v224
  %v481 = vmul.f32 %v465, %v225
  %v482 = vmul.f32 %v466, %v226
  %v483 = vmul.f32 %v467, %v227
  %v484 = vmul.f32 %v468, %v228
  %v485 = vmul.f32 %v469, %v229
  %v486 = vmul.f32 %v470, 1.442695
  %v487 = vpow.pop %v486
  %v488 = vmul.f32 %v471, 1.442695
  %v489 = vpow.pop %v488
  %v490 = vmul.f32 %v472, 1.442695
  %v491 = vpow.pop %v490
  %v492 = vmul.f32 %v473, 1.442695
  %v493 = vpow.pop %v492
  %v494 = vmul.f32 %v474, 1.442695
  %v495 = vpow.pop %v494
  %v496 = vmul.f32 %v475, 1.442695
  %v497 = vpow.pop %v496
  %v498 = vmul.f32 %v476, 1.442695
  %v499 = vpow.pop %v498
  %v500 = vmul.f32 %v477, 1.442695
  %v501 = vpow.pop %v500
  %v502 = vmul.f32 %v478, 1.442695
  %v503 = vpow.pop %v502
  %v504 = vmul.f32 %v479, 1.442695
  %v505 = vpow.pop %v504
  %v506 = vmul.f32 %v480, 1.442695
  %v507 = vpow.pop %v506
  %v508 = vmul.f32 %v481, 1.442695
  %v509 = vpow.pop %v508
  %v510 = vmul.f32 %v482, 1.442695
  %v511 = vpow.pop %v510
  %v512 = vmul.f32 %v483, 1.442695
  %v513 = vpow.pop %v512
  %v514 = vmul.f32 %v484, 1.442695
  %v515 = vpow.pop %v514
  %v516 = vmul.f32 %v485, 1.442695
  %v517 = vpow.pop %v516
  %v518 = vmul.f32 %v438, %v487
  %v519 = vmul.f32 %v439, %v489
  %v520 = vmul.f32 %v440, %v491
  %v521 = vmul.f32 %v441, %v493
  %v522 = vmul.f32 %v442, %v495
  %v523 = vmul.f32 %v443, %v497
  %v524 = vmul.f32 %v444, %v499
  %v525 = vmul.f32 %v445, %v501
  %v526 = vmul.f32 %v446, %v503
  %v527 = vmul.f32 %v447, %v505
  %v528 = vmul.f32 %v448, %v507
  %v529 = vmul.f32 %v449, %v509
  %v530 = vmul.f32 %v450, %v511
  %v531 = vmul.f32 %v451, %v513
  %v532 = vmul.f32 %v452, %v515
  %v533 = vmul.f32 %v453, %v517
  %v534 = vsub.f32 1.0, %v518
  %v535 = vsub.f32 1.0, %v519
  %v536 = vsub.f32 1.0, %v520
  %v537 = vsub.f32 1.0, %v521
  %v538 = vsub.f32 1.0, %v522
  %v539 = vsub.f32 1.0, %v523
  %v540 = vsub.f32 1.0, %v524
  %v541 = vsub.f32 1.0, %v525
  %v542 = vsub.f32 1.0, %v526
  %v543 = vsub.f32 1.0, %v527
  %v544 = vsub.f32 1.0, %v528
  %v545 = vsub.f32 1.0, %v529
  %v546 = vsub.f32 1.0, %v530
  %v547 = vsub.f32 1.0, %v531
  %v548 = vsub.f32 1.0, %v532
  %v549 = vsub.f32 1.0, %v533
  %vm550 = vcmp.ge.f32.partialorder %v214, 0.0
  %vm551 = vcmp.ge.f32.partialorder %v215, 0.0
  %vm552 = vcmp.ge.f32.partialorder %v216, 0.0
  %vm553 = vcmp.ge.f32.partialorder %v217, 0.0
  %vm554 = vcmp.ge.f32.partialorder %v218, 0.0
  %vm555 = vcmp.ge.f32.partialorder %v219, 0.0
  %vm556 = vcmp.ge.f32.partialorder %v220, 0.0
  %vm557 = vcmp.ge.f32.partialorder %v221, 0.0
  %vm558 = vcmp.ge.f32.partialorder %v222, 0.0
  %vm559 = vcmp.ge.f32.partialorder %v223, 0.0
  %vm560 = vcmp.ge.f32.partialorder %v224, 0.0
  %vm561 = vcmp.ge.f32.partialorder %v225, 0.0
  %vm562 = vcmp.ge.f32.partialorder %v226, 0.0
  %vm563 = vcmp.ge.f32.partialorder %v227, 0.0
  %vm564 = vcmp.ge.f32.partialorder %v228, 0.0
  %vm565 = vcmp.ge.f32.partialorder %v229, 0.0
  %v566 = vsub.f32 0.0, %v534
  %v567 = vsub.f32 0.0, %v535
  %v568 = vsub.f32 0.0, %v536
  %v569 = vsub.f32 0.0, %v537
  %v570 = vsub.f32 0.0, %v538
  %v571 = vsub.f32 0.0, %v539
  %v572 = vsub.f32 0.0, %v540
  %v573 = vsub.f32 0.0, %v541
  %v574 = vsub.f32 0.0, %v542
  %v575 = vsub.f32 0.0, %v543
  %v576 = vsub.f32 0.0, %v544
  %v577 = vsub.f32 0.0, %v545
  %v578 = vsub.f32 0.0, %v546
  %v579 = vsub.f32 0.0, %v547
  %v580 = vsub.f32 0.0, %v548
  %v581 = vsub.f32 0.0, %v549
  %v582 = vsel %vm550, %v534, %v566
  %v583 = vsel %vm551, %v535, %v567
  %v584 = vsel %vm552, %v536, %v568
  %v585 = vsel %vm553, %v537, %v569
  %v586 = vsel %vm554, %v538, %v570
  %v587 = vsel %vm555, %v539, %v571
  %v588 = vsel %vm556, %v540, %v572
  %v589 = vsel %vm557, %v541, %v573
  %v590 = vsel %vm558, %v542, %v574
  %v591 = vsel %vm559, %v543, %v575
  %v592 = vsel %vm560, %v544, %v576
  %v593 = vsel %vm561, %v545, %v577
  %v594 = vsel %vm562, %v546, %v578
  %v595 = vsel %vm563, %v547, %v579
  %v596 = vsel %vm564, %v548, %v580
  %v597 = vsel %vm565, %v549, %v581
  %v598 = vadd.f32 %v582, 1.0
  %v599 = vadd.f32 %v583, 1.0
  %v600 = vadd.f32 %v584, 1.0
  %v601 = vadd.f32 %v585, 1.0
  %v602 = vadd.f32 %v586, 1.0
  %v603 = vadd.f32 %v587, 1.0
  %v604 = vadd.f32 %v588, 1.0
  %v605 = vadd.f32 %v589, 1.0
  %v606 = vadd.f32 %v590, 1.0
  %v607 = vadd.f32 %v591, 1.0
  %v608 = vadd.f32 %v592, 1.0
  %v609 = vadd.f32 %v593, 1.0
  %v610 = vadd.f32 %v594, 1.0
  %v611 = vadd.f32 %v595, 1.0
  %v612 = vadd.f32 %v596, 1.0
  %v613 = vadd.f32 %v597, 1.0
  %v614 = vmul.f32 %v198, %v598
  %v615 = vmul.f32 %v199, %v599
  %v616 = vmul.f32 %v200, %v600
  %v617 = vmul.f32 %v201, %v601
  %v618 = vmul.f32 %v202, %v602
  %v619 = vmul.f32 %v203, %v603
  %v620 = vmul.f32 %v204, %v604
  %v621 = vmul.f32 %v205, %v605
  %v622 = vmul.f32 %v206, %v606
  %v623 = vmul.f32 %v207, %v607
  %v624 = vmul.f32 %v208, %v608
  %v625 = vmul.f32 %v209, %v609
  %v626 = vmul.f32 %v210, %v610
  %v627 = vmul.f32 %v211, %v611
  %v628 = vmul.f32 %v212, %v612
  %v629 = vmul.f32 %v213, %v613
  %630 = vst [vmem:[%s3] sm:$0xff] %v614
  %631 = vst [vmem:[%s3 + $0x8] sm:$0xff] %v615
  %632 = vst [vmem:[%s3 + $0x10] sm:$0xff] %v616
  %633 = vst [vmem:[%s3 + $0x18] sm:$0xff] %v617
  %634 = vst [vmem:[%s3 + $0x20] sm:$0xff] %v618
  %635 = vst [vmem:[%s3 + $0x28] sm:$0xff] %v619
  %636 = vst [vmem:[%s3 + $0x30] sm:$0xff] %v620
  %637 = vst [vmem:[%s3 + $0x38] sm:$0xff] %v621
  %638 = vst [vmem:[%s3 + $0x40] sm:$0xff] %v622
  %639 = vst [vmem:[%s3 + $0x48] sm:$0xff] %v623
  %640 = vst [vmem:[%s3 + $0x50] sm:$0xff] %v624
  %641 = vst [vmem:[%s3 + $0x58] sm:$0xff] %v625
  %642 = vst [vmem:[%s3 + $0x60] sm:$0xff] %v626
  %643 = vst [vmem:[%s3 + $0x68] sm:$0xff] %v627
  %644 = vst [vmem:[%s3 + $0x70] sm:$0xff] %v628
  %645 = vst [vmem:[%s3 + $0x78] sm:$0xff] %v629
  // Predicated region
  $region14: #{_lambda_.17} parent=0 // pred_check
    _
  $region15: #{_lambda_.17} parent=0 // pred_check_branch
    %647 = sbr.rel (0) target = $region17
  $region16: #{_lambda_.17} parent=0 // pred_region
    _
  $region17: #{_lambda_.17} parent=0 // pred_fallthru
    _
  // Predicated region
  $region18: #{_lambda_.17} parent=0 // pred_check
    _
  $region19: #{_lambda_.17} parent=0 // pred_check_branch
    %649 = sbr.rel (0) target = $region21
  $region20: #{_lambda_.17} parent=0 // pred_region
    _
  $region21: #{_lambda_.17} parent=0 // pred_fallthru
    _

// kernel: _lambda_.18
$region0: #{_lambda_.18}
  #allocation0 [shape = 'u32[]', space=smem, size = 0x4, offset = 0x4, fixed_abs, tag = 'smem constant byte address 0x4 - core index']
  #allocation1 [shape = 'u32[144,128]{1,0:T(1,128)}', space=vmem, size = 0x12000, scoped, tag = 'internal scratch']
  %s0 = inlined_call_operand.vmem [shape: f32[32,256], index: 0, kind: input, shape index: {}]
  %s1 = inlined_call_operand.vmem [shape: f32[256,128], index: 1, kind: input, shape index: {}]
  %s2 = inlined_call_operand.vmem [shape: f32[1,128], index: 2, kind: input, shape index: {}]
  %s3 = inlined_call_operand.vmem [shape: f32[32,128], index: 3, kind: output, shape index: {}]
  %s4 = sld [smem:[#allocation0]]
  $region22: #{_lambda_.18} parent=0
    _
  %s6 = ssub.s32 1, %s4
  %s7 = scalar_select 0, %s6, %s4
  // Predicated region
  $region2: #{_lambda_.18} parent=0 // pred_check
    _
  $region3: #{_lambda_.18} parent=0 // pred_check_branch
    %9 = sbr.rel (0) target = $region5
  $region4: #{_lambda_.18} parent=0 // pred_region
    _
  $region5: #{_lambda_.18} parent=0 // pred_fallthru
    _
  // Predicated region
  $region6: #{_lambda_.18} parent=0 // pred_check
    _
  $region7: #{_lambda_.18} parent=0 // pred_check_branch
    %11 = sbr.rel (0) target = $region9
  $region8: #{_lambda_.18} parent=0 // pred_region
    _
  $region9: #{_lambda_.18} parent=0 // pred_fallthru
    _
  // Predicated region
  $region10: #{_lambda_.18} parent=0 // pred_check
    _
  $region11: #{_lambda_.18} parent=0 // pred_check_branch
    %13 = sbr.rel (0) target = $region13
  $region12: #{_lambda_.18} parent=0 // pred_region
    _
  $region13: #{_lambda_.18} parent=0 // pred_fallthru
    _
  %v14 = vld [vmem:[%s0] sm:$0xff]
  %v15 = vld [vmem:[%s0 + $0x8] sm:$0xff]
  %v16 = vld [vmem:[%s0 + $0x10] sm:$0xff]
  %v17 = vld [vmem:[%s0 + $0x18] sm:$0xff]
  %v18 = vld [vmem:[%s0 + $0x20] sm:$0xff]
  %v19 = vld [vmem:[%s0 + $0x28] sm:$0xff]
  %v20 = vld [vmem:[%s0 + $0x30] sm:$0xff]
  %v21 = vld [vmem:[%s0 + $0x38] sm:$0xff]
  %v22 = vld [vmem:[%s1] sm:$0xff]
  %v23 = vld [vmem:[%s1 + $0x8] sm:$0xff]
  %v24 = vld [vmem:[%s1 + $0x10] sm:$0xff]
  %v25 = vld [vmem:[%s1 + $0x18] sm:$0xff]
  %v26 = vld [vmem:[%s1 + $0x20] sm:$0xff]
  %v27 = vld [vmem:[%s1 + $0x28] sm:$0xff]
  %v28 = vld [vmem:[%s1 + $0x30] sm:$0xff]
  %v29 = vld [vmem:[%s1 + $0x38] sm:$0xff]
  %v30 = vld [vmem:[%s1 + $0x40] sm:$0xff]
  %v31 = vld [vmem:[%s1 + $0x48] sm:$0xff]
  %v32 = vld [vmem:[%s1 + $0x50] sm:$0xff]
  %v33 = vld [vmem:[%s1 + $0x58] sm:$0xff]
  %v34 = vld [vmem:[%s1 + $0x60] sm:$0xff]
  %v35 = vld [vmem:[%s1 + $0x68] sm:$0xff]
  %v36 = vld [vmem:[%s1 + $0x70] sm:$0xff]
  %v37 = vld [vmem:[%s1 + $0x78] sm:$0xff]
  %v38 = vld [vmem:[%s1 + $0x80] sm:$0xff]
  %v39 = vld [vmem:[%s1 + $0x88] sm:$0xff]
  %v40 = vld [vmem:[%s1 + $0x90] sm:$0xff]
  %v41 = vld [vmem:[%s1 + $0x98] sm:$0xff]
  %v42 = vld [vmem:[%s1 + $0xa0] sm:$0xff]
  %v43 = vld [vmem:[%s1 + $0xa8] sm:$0xff]
  %v44 = vld [vmem:[%s1 + $0xb0] sm:$0xff]
  %v45 = vld [vmem:[%s1 + $0xb8] sm:$0xff]
  %v46 = vld [vmem:[%s1 + $0xc0] sm:$0xff]
  %v47 = vld [vmem:[%s1 + $0xc8] sm:$0xff]
  %v48 = vld [vmem:[%s1 + $0xd0] sm:$0xff]
  %v49 = vld [vmem:[%s1 + $0xd8] sm:$0xff]
  %v50 = vld [vmem:[%s1 + $0xe0] sm:$0xff]
  %v51 = vld [vmem:[%s1 + $0xe8] sm:$0xff]
  %v52 = vld [vmem:[%s1 + $0xf0] sm:$0xff]
  %v53 = vld [vmem:[%s1 + $0xf8] sm:$0xff]
  %v54 = vld [vmem:[%s2] sm:$0x1]
  %v56 = vlaneseq
  %v57 = vshrl.u32 %v56, 7
  %v58 = vsub.s32 0, %v57
  %v59 = vrot.slane %v54, %v58
  %61 = vmatprep.subr.mxu0 0.0
  %62 = vmatpush1.msra.mxu0 %v37
  %63 = vmatprep.subr.mxu0 0.0
  %64 = vmatpush1.msra.mxu0 %v36
  %65 = vmatprep.subr.mxu0 0.0
  %66 = vmatpush1.msra.mxu0 %v35
  %67 = vmatprep.subr.mxu0 0.0
  %68 = vmatpush1.msra.mxu0 %v34
  %69 = vmatprep.subr.mxu0 0.0
  %70 = vmatpush1.msra.mxu0 %v33
  %71 = vmatprep.subr.mxu0 0.0
  %72 = vmatpush1.msra.mxu0 %v32
  %73 = vmatprep.subr.mxu0 0.0
  %74 = vmatpush1.msra.mxu0 %v31
  %75 = vmatprep.subr.mxu0 0.0
  %76 = vmatpush1.msra.mxu0 %v30
  %77 = vmatprep.subr.mxu0 0.0
  %78 = vmatpush1.msra.mxu0 %v29
  %79 = vmatprep.subr.mxu0 0.0
  %80 = vmatpush1.msra.mxu0 %v28
  %81 = vmatprep.subr.mxu0 0.0
  %82 = vmatpush1.msra.mxu0 %v27
  %83 = vmatprep.subr.mxu0 0.0
  %84 = vmatpush1.msra.mxu0 %v26
  %85 = vmatprep.subr.mxu0 0.0
  %86 = vmatpush1.msra.mxu0 %v25
  %87 = vmatprep.subr.mxu0 0.0
  %88 = vmatpush1.msra.mxu0 %v24
  %89 = vmatprep.subr.mxu0 0.0
  %90 = vmatpush1.msra.mxu0 %v23
  %91 = vmatprep.subr.mxu0 0.0
  %92 = vmatpush1.msra.mxu0 %v22
  %93 = vmatprep.subr.mxu0 0.0
  %94 = vmatpush2.msra.mxu0 %v53
  %95 = vmatprep.subr.mxu0 0.0
  %96 = vmatpush2.msra.mxu0 %v52
  %97 = vmatprep.subr.mxu0 0.0
  %98 = vmatpush2.msra.mxu0 %v51
  %99 = vmatprep.subr.mxu0 0.0
  %100 = vmatpush2.msra.mxu0 %v50
  %101 = vmatprep.subr.mxu0 0.0
  %102 = vmatpush2.msra.mxu0 %v49
  %103 = vmatprep.subr.mxu0 0.0
  %104 = vmatpush2.msra.mxu0 %v48
  %105 = vmatprep.subr.mxu0 0.0
  %106 = vmatpush2.msra.mxu0 %v47
  %107 = vmatprep.subr.mxu0 0.0
  %108 = vmatpush2.msra.mxu0 %v46
  %109 = vmatprep.subr.mxu0 0.0
  %110 = vmatpush2.msra.mxu0 %v45
  %111 = vmatprep.subr.mxu0 0.0
  %112 = vmatpush2.msra.mxu0 %v44
  %113 = vmatprep.subr.mxu0 0.0
  %114 = vmatpush2.msra.mxu0 %v43
  %115 = vmatprep.subr.mxu0 0.0
  %116 = vmatpush2.msra.mxu0 %v42
  %117 = vmatprep.subr.mxu0 0.0
  %118 = vmatpush2.msra.mxu0 %v41
  %119 = vmatprep.subr.mxu0 0.0
  %120 = vmatpush2.msra.mxu0 %v40
  %121 = vmatprep.subr.mxu0 0.0
  %122 = vmatpush2.msra.mxu0 %v39
  %123 = vmatprep.subr.mxu0 0.0
  %124 = vmatpush2.msra.mxu0 %v38
  %125 = vmatprep.mubr.f32.mxu0 %v15
  %126 = vmatmul.mubr.f32.gmra.mxu0 %v14
  %v127 = vpop.f32.mrf.mxu0
  %v128 = vadd.f32 %v59, %v127
  %v129 = vpop.f32.mrf.mxu0
  %130 = vmatprep.mubr.f32.mxu0 %v17
  %131 = vmatmul.mubr.f32.gmra.mxu0 %v16
  %v132 = vpop.f32.mrf.mxu0
  %v133 = vadd.f32 %v59, %v132
  %v134 = vpop.f32.mrf.mxu0
  %135 = vmatprep.mubr.f32.mxu0 %v19
  %136 = vmatmul.mubr.f32.gmra.mxu0 %v18
  %v137 = vpop.f32.mrf.mxu0
  %v138 = vadd.f32 %v59, %v137
  %v139 = vpop.f32.mrf.mxu0
  %140 = vmatprep.mubr.f32.mxu0 %v21
  %141 = vmatmul.mubr.f32.gmra.mxu0 %v20
  %v142 = vpop.f32.mrf.mxu0
  %v143 = vadd.f32 %v59, %v142
  %v144 = vpop.f32.mrf.mxu0
  %145 = vdwg.mxu0
  %146 = vst [vmem:[%s3] sm:$0xff] %v128
  %147 = vst [vmem:[%s3 + $0x8] sm:$0xff] %v133
  %148 = vst [vmem:[%s3 + $0x10] sm:$0xff] %v138
  %149 = vst [vmem:[%s3 + $0x18] sm:$0xff] %v143
  // Predicated region
  $region14: #{_lambda_.18} parent=0 // pred_check
    _
  $region15: #{_lambda_.18} parent=0 // pred_check_branch
    %151 = sbr.rel (0) target = $region17
  $region16: #{_lambda_.18} parent=0 // pred_region
    _
  $region17: #{_lambda_.18} parent=0 // pred_fallthru
    _
  // Predicated region
  $region18: #{_lambda_.18} parent=0 // pred_check
    _
  $region19: #{_lambda_.18} parent=0 // pred_check_branch
    %153 = sbr.rel (0) target = $region21
  $region20: #{_lambda_.18} parent=0 // pred_region
    _
  $region21: #{_lambda_.18} parent=0 // pred_fallthru
    _

// kernel: _lambda_.19
$region0: #{_lambda_.19}
  #allocation0 [shape = 'u32[]', space=smem, size = 0x4, offset = 0x4, fixed_abs, tag = 'smem constant byte address 0x4 - core index']
  #allocation1 [shape = 'u32[144,128]{1,0:T(1,128)}', space=vmem, size = 0x12000, scoped, tag = 'internal scratch']
  %s0 = inlined_call_operand.vmem [shape: f32[32,128], index: 0, kind: input, shape index: {}]
  %s1 = inlined_call_operand.vmem [shape: f32[1,128], index: 1, kind: input, shape index: {}]
  %s2 = inlined_call_operand.vmem [shape: f32[1,128], index: 2, kind: input, shape index: {}]
  %s3 = inlined_call_operand.vmem [shape: f32[128,128], index: 3, kind: input, shape index: {}]
  %s4 = inlined_call_operand.vmem [shape: f32[1,128], index: 4, kind: input, shape index: {}]
  %s5 = inlined_call_operand.vmem [shape: f32[32,128], index: 5, kind: output, shape index: {}]
  %s6 = sld [smem:[#allocation0]]
  $region30: #{_lambda_.19} parent=0
    _
  %s8 = ssub.s32 1, %s6
  %s9 = scalar_select 0, %s8, %s6
  // Predicated region
  $region2: #{_lambda_.19} parent=0 // pred_check
    _
  $region3: #{_lambda_.19} parent=0 // pred_check_branch
    %11 = sbr.rel (0) target = $region5
  $region4: #{_lambda_.19} parent=0 // pred_region
    _
  $region5: #{_lambda_.19} parent=0 // pred_fallthru
    _
  // Predicated region
  $region6: #{_lambda_.19} parent=0 // pred_check
    _
  $region7: #{_lambda_.19} parent=0 // pred_check_branch
    %13 = sbr.rel (0) target = $region9
  $region8: #{_lambda_.19} parent=0 // pred_region
    _
  $region9: #{_lambda_.19} parent=0 // pred_fallthru
    _
  // Predicated region
  $region10: #{_lambda_.19} parent=0 // pred_check
    _
  $region11: #{_lambda_.19} parent=0 // pred_check_branch
    %15 = sbr.rel (0) target = $region13
  $region12: #{_lambda_.19} parent=0 // pred_region
    _
  $region13: #{_lambda_.19} parent=0 // pred_fallthru
    _
  // Predicated region
  $region14: #{_lambda_.19} parent=0 // pred_check
    _
  $region15: #{_lambda_.19} parent=0 // pred_check_branch
    %17 = sbr.rel (0) target = $region17
  $region16: #{_lambda_.19} parent=0 // pred_region
    _
  $region17: #{_lambda_.19} parent=0 // pred_fallthru
    _
  // Predicated region
  $region18: #{_lambda_.19} parent=0 // pred_check
    _
  $region19: #{_lambda_.19} parent=0 // pred_check_branch
    %19 = sbr.rel (0) target = $region21
  $region20: #{_lambda_.19} parent=0 // pred_region
    _
  $region21: #{_lambda_.19} parent=0 // pred_fallthru
    _
  %v20 = vld [vmem:[%s0] sm:$0xff]
  %v21 = vld [vmem:[%s0 + $0x8] sm:$0xff]
  %v22 = vld [vmem:[%s0 + $0x10] sm:$0xff]
  %v23 = vld [vmem:[%s0 + $0x18] sm:$0xff]
  %24 = vadd.xlane.f32.xlu0 %v20
  %v25 = vpop.xlane.xlu0 %24
  %26 = vadd.xlane.f32.xlu0 %v21
  %v27 = vpop.xlane.xlu0 %26
  %28 = vadd.xlane.f32.xlu0 %v22
  %v29 = vpop.xlane.xlu0 %28
  %30 = vadd.xlane.f32.xlu0 %v23
  %v31 = vpop.xlane.xlu0 %30
  %v32 = vrcp.pop 32.0
  %v33 = vmul.f32 %v25, %v32
  %v34 = vmul.f32 %v27, %v32
  %v35 = vmul.f32 %v29, %v32
  %v36 = vmul.f32 %v31, %v32
  %v37 = vmul.f32 %v20, %v20
  %v38 = vmul.f32 %v21, %v21
  %v39 = vmul.f32 %v22, %v22
  %v40 = vmul.f32 %v23, %v23
  %41 = vadd.xlane.f32.xlu0 %v37
  %v42 = vpop.xlane.xlu0 %41
  %43 = vadd.xlane.f32.xlu0 %v38
  %v44 = vpop.xlane.xlu0 %43
  %45 = vadd.xlane.f32.xlu0 %v39
  %v46 = vpop.xlane.xlu0 %45
  %47 = vadd.xlane.f32.xlu0 %v40
  %v48 = vpop.xlane.xlu0 %47
  %v49 = vmul.f32 %v42, %v32
  %v50 = vmul.f32 %v44, %v32
  %v51 = vmul.f32 %v46, %v32
  %v52 = vmul.f32 %v48, %v32
  %v53 = vmul.f32 %v33, %v33
  %v54 = vmul.f32 %v34, %v34
  %v55 = vmul.f32 %v35, %v35
  %v56 = vmul.f32 %v36, %v36
  %v57 = vsub.f32 %v49, %v53
  %v58 = vsub.f32 %v50, %v54
  %v59 = vsub.f32 %v51, %v55
  %v60 = vsub.f32 %v52, %v56
  %v61 = vsub.f32 %v20, %v33
  %v62 = vsub.f32 %v21, %v34
  %v63 = vsub.f32 %v22, %v35
  %v64 = vsub.f32 %v23, %v36
  %v65 = vadd.f32 %v57, 1e-05
  %v66 = vadd.f32 %v58, 1e-05
  %v67 = vadd.f32 %v59, 1e-05
  %v68 = vadd.f32 %v60, 1e-05
  %v69 = vrsqrt.pop %v65
  %v70 = vrsqrt.pop %v66
  %v71 = vrsqrt.pop %v67
  %v72 = vrsqrt.pop %v68
  %v73 = vmul.f32 %v61, %v69
  %v74 = vmul.f32 %v62, %v70
  %v75 = vmul.f32 %v63, %v71
  %v76 = vmul.f32 %v64, %v72
  %v77 = vld [vmem:[%s1] sm:$0x1]
  %v79 = vlaneseq
  %v80 = vshrl.u32 %v79, 7
  %v81 = vsub.s32 0, %v80
  %v82 = vrot.slane %v77, %v81
  %v84 = vmul.f32 %v73, %v82
  %v85 = vmul.f32 %v74, %v82
  %v86 = vmul.f32 %v75, %v82
  %v87 = vmul.f32 %v76, %v82
  %v88 = vld [vmem:[%s2] sm:$0x1]
  %v90 = vlaneseq
  %v91 = vshrl.u32 %v90, 7
  %v92 = vsub.s32 0, %v91
  %v93 = vrot.slane %v88, %v92
  %v95 = vadd.f32 %v84, %v93
  %v96 = vadd.f32 %v85, %v93
  %v97 = vadd.f32 %v86, %v93
  %v98 = vadd.f32 %v87, %v93
  %v99 = vld [vmem:[%s3] sm:$0xff]
  %v100 = vld [vmem:[%s3 + $0x8] sm:$0xff]
  %v101 = vld [vmem:[%s3 + $0x10] sm:$0xff]
  %v102 = vld [vmem:[%s3 + $0x18] sm:$0xff]
  %v103 = vld [vmem:[%s3 + $0x20] sm:$0xff]
  %v104 = vld [vmem:[%s3 + $0x28] sm:$0xff]
  %v105 = vld [vmem:[%s3 + $0x30] sm:$0xff]
  %v106 = vld [vmem:[%s3 + $0x38] sm:$0xff]
  %v107 = vld [vmem:[%s3 + $0x40] sm:$0xff]
  %v108 = vld [vmem:[%s3 + $0x48] sm:$0xff]
  %v109 = vld [vmem:[%s3 + $0x50] sm:$0xff]
  %v110 = vld [vmem:[%s3 + $0x58] sm:$0xff]
  %v111 = vld [vmem:[%s3 + $0x60] sm:$0xff]
  %v112 = vld [vmem:[%s3 + $0x68] sm:$0xff]
  %v113 = vld [vmem:[%s3 + $0x70] sm:$0xff]
  %v114 = vld [vmem:[%s3 + $0x78] sm:$0xff]
  %v115 = vld [vmem:[%s4] sm:$0x1]
  %v117 = vlaneseq
  %v118 = vshrl.u32 %v117, 7
  %v119 = vsub.s32 0, %v118
  %v120 = vrot.slane %v115, %v119
  %122 = vmatprep.subr.mxu0 0.0
  %123 = vmatpush1.msra.mxu0 %v114
  %124 = vmatprep.subr.mxu0 0.0
  %125 = vmatpush1.msra.mxu0 %v113
  %126 = vmatprep.subr.mxu0 0.0
  %127 = vmatpush1.msra.mxu0 %v112
  %128 = vmatprep.subr.mxu0 0.0
  %129 = vmatpush1.msra.mxu0 %v111
  %130 = vmatprep.subr.mxu0 0.0
  %131 = vmatpush1.msra.mxu0 %v110
  %132 = vmatprep.subr.mxu0 0.0
  %133 = vmatpush1.msra.mxu0 %v109
  %134 = vmatprep.subr.mxu0 0.0
  %135 = vmatpush1.msra.mxu0 %v108
  %136 = vmatprep.subr.mxu0 0.0
  %137 = vmatpush1.msra.mxu0 %v107
  %138 = vmatprep.subr.mxu0 0.0
  %139 = vmatpush1.msra.mxu0 %v106
  %140 = vmatprep.subr.mxu0 0.0
  %141 = vmatpush1.msra.mxu0 %v105
  %142 = vmatprep.subr.mxu0 0.0
  %143 = vmatpush1.msra.mxu0 %v104
  %144 = vmatprep.subr.mxu0 0.0
  %145 = vmatpush1.msra.mxu0 %v103
  %146 = vmatprep.subr.mxu0 0.0
  %147 = vmatpush1.msra.mxu0 %v102
  %148 = vmatprep.subr.mxu0 0.0
  %149 = vmatpush1.msra.mxu0 %v101
  %150 = vmatprep.subr.mxu0 0.0
  %151 = vmatpush1.msra.mxu0 %v100
  %152 = vmatprep.subr.mxu0 0.0
  %153 = vmatpush1.msra.mxu0 %v99
  %154 = vmatprep.subr.mxu0 0.0
  %155 = vmatpush2.msra.mxu0 0.0
  %156 = vmatprep.subr.mxu0 0.0
  %157 = vmatpush2.msra.mxu0 0.0
  %158 = vmatprep.subr.mxu0 0.0
  %159 = vmatpush2.msra.mxu0 0.0
  %160 = vmatprep.subr.mxu0 0.0
  %161 = vmatpush2.msra.mxu0 0.0
  %162 = vmatprep.subr.mxu0 0.0
  %163 = vmatpush2.msra.mxu0 0.0
  %164 = vmatprep.subr.mxu0 0.0
  %165 = vmatpush2.msra.mxu0 0.0
  %166 = vmatprep.subr.mxu0 0.0
  %167 = vmatpush2.msra.mxu0 0.0
  %168 = vmatprep.subr.mxu0 0.0
  %169 = vmatpush2.msra.mxu0 0.0
  %170 = vmatprep.subr.mxu0 0.0
  %171 = vmatpush2.msra.mxu0 0.0
  %172 = vmatprep.subr.mxu0 0.0
  %173 = vmatpush2.msra.mxu0 0.0
  %174 = vmatprep.subr.mxu0 0.0
  %175 = vmatpush2.msra.mxu0 0.0
  %176 = vmatprep.subr.mxu0 0.0
  %177 = vmatpush2.msra.mxu0 0.0
  %178 = vmatprep.subr.mxu0 0.0
  %179 = vmatpush2.msra.mxu0 0.0
  %180 = vmatprep.subr.mxu0 0.0
  %181 = vmatpush2.msra.mxu0 0.0
  %182 = vmatprep.subr.mxu0 0.0
  %183 = vmatpush2.msra.mxu0 0.0
  %184 = vmatprep.subr.mxu0 0.0
  %185 = vmatpush2.msra.mxu0 0.0
  %186 = vmatprep.mubr.f32.mxu0 0.0
  %187 = vmatmul.mubr.f32.gmra.mxu0 %v95
  %v188 = vpop.f32.mrf.mxu0
  %v189 = vadd.f32 %v120, %v188
  %v190 = vpop.f32.mrf.mxu0
  %191 = vmatprep.mubr.f32.mxu0 0.0
  %192 = vmatmul.mubr.f32.gmra.mxu0 %v96
  %v193 = vpop.f32.mrf.mxu0
  %v194 = vadd.f32 %v120, %v193
  %v195 = vpop.f32.mrf.mxu0
  %196 = vmatprep.mubr.f32.mxu0 0.0
  %197 = vmatmul.mubr.f32.gmra.mxu0 %v97
  %v198 = vpop.f32.mrf.mxu0
  %v199 = vadd.f32 %v120, %v198
  %v200 = vpop.f32.mrf.mxu0
  %201 = vmatprep.mubr.f32.mxu0 0.0
  %202 = vmatmul.mubr.f32.gmra.mxu0 %v98
  %v203 = vpop.f32.mrf.mxu0
  %v204 = vadd.f32 %v120, %v203
  %v205 = vpop.f32.mrf.mxu0
  %206 = vdwg.mxu0
  %207 = vst [vmem:[%s5] sm:$0xff] %v189
  %208 = vst [vmem:[%s5 + $0x8] sm:$0xff] %v194
  %209 = vst [vmem:[%s5 + $0x10] sm:$0xff] %v199
  %210 = vst [vmem:[%s5 + $0x18] sm:$0xff] %v204
  // Predicated region
  $region22: #{_lambda_.19} parent=0 // pred_check
    _
  $region23: #{_lambda_.19} parent=0 // pred_check_branch
    %212 = sbr.rel (0) target = $region25
  $region24: #{_lambda_.19} parent=0 // pred_region
    _
  $region25: #{_lambda_.19} parent=0 // pred_fallthru
    _
  // Predicated region
  $region26: #{_lambda_.19} parent=0 // pred_check
    _
  $region27: #{_lambda_.19} parent=0 // pred_check_branch
    %214 = sbr.rel (0) target = $region29
  $region28: #{_lambda_.19} parent=0 // pred_region
    _
  $region29: #{_lambda_.19} parent=0 // pred_fallthru
    _

// kernel: _lambda_.20
$region0: #{_lambda_.20}
  #allocation0 [shape = 'u32[]', space=smem, size = 0x4, offset = 0x4, fixed_abs, tag = 'smem constant byte address 0x4 - core index']
  #allocation1 [shape = 'u32[144,128]{1,0:T(1,128)}', space=vmem, size = 0x12000, scoped, tag = 'internal scratch']
  %s0 = inlined_call_operand.vmem [shape: f32[32,128], index: 0, kind: input, shape index: {}]
  %s1 = inlined_call_operand.vmem [shape: f32[128,128], index: 1, kind: input, shape index: {}]
  %s2 = inlined_call_operand.vmem [shape: f32[1,128], index: 2, kind: input, shape index: {}]
  %s3 = inlined_call_operand.vmem [shape: f32[32,128], index: 3, kind: input, shape index: {}]
  %s4 = inlined_call_operand.vmem [shape: f32[32,128], index: 4, kind: output, shape index: {}]
  %s5 = sld [smem:[#allocation0]]
  $region26: #{_lambda_.20} parent=0
    _
  %s7 = ssub.s32 1, %s5
  %s8 = scalar_select 0, %s7, %s5
  // Predicated region
  $region2: #{_lambda_.20} parent=0 // pred_check
    _
  $region3: #{_lambda_.20} parent=0 // pred_check_branch
    %10 = sbr.rel (0) target = $region5
  $region4: #{_lambda_.20} parent=0 // pred_region
    _
  $region5: #{_lambda_.20} parent=0 // pred_fallthru
    _
  // Predicated region
  $region6: #{_lambda_.20} parent=0 // pred_check
    _
  $region7: #{_lambda_.20} parent=0 // pred_check_branch
    %12 = sbr.rel (0) target = $region9
  $region8: #{_lambda_.20} parent=0 // pred_region
    _
  $region9: #{_lambda_.20} parent=0 // pred_fallthru
    _
  // Predicated region
  $region10: #{_lambda_.20} parent=0 // pred_check
    _
  $region11: #{_lambda_.20} parent=0 // pred_check_branch
    %14 = sbr.rel (0) target = $region13
  $region12: #{_lambda_.20} parent=0 // pred_region
    _
  $region13: #{_lambda_.20} parent=0 // pred_fallthru
    _
  // Predicated region
  $region14: #{_lambda_.20} parent=0 // pred_check
    _
  $region15: #{_lambda_.20} parent=0 // pred_check_branch
    %16 = sbr.rel (0) target = $region17
  $region16: #{_lambda_.20} parent=0 // pred_region
    _
  $region17: #{_lambda_.20} parent=0 // pred_fallthru
    _
  %v17 = vld [vmem:[%s0] sm:$0xff]
  %v18 = vld [vmem:[%s0 + $0x8] sm:$0xff]
  %v19 = vld [vmem:[%s0 + $0x10] sm:$0xff]
  %v20 = vld [vmem:[%s0 + $0x18] sm:$0xff]
  %v21 = vld [vmem:[%s1] sm:$0xff]
  %v22 = vld [vmem:[%s1 + $0x8] sm:$0xff]
  %v23 = vld [vmem:[%s1 + $0x10] sm:$0xff]
  %v24 = vld [vmem:[%s1 + $0x18] sm:$0xff]
  %v25 = vld [vmem:[%s1 + $0x20] sm:$0xff]
  %v26 = vld [vmem:[%s1 + $0x28] sm:$0xff]
  %v27 = vld [vmem:[%s1 + $0x30] sm:$0xff]
  %v28 = vld [vmem:[%s1 + $0x38] sm:$0xff]
  %v29 = vld [vmem:[%s1 + $0x40] sm:$0xff]
  %v30 = vld [vmem:[%s1 + $0x48] sm:$0xff]
  %v31 = vld [vmem:[%s1 + $0x50] sm:$0xff]
  %v32 = vld [vmem:[%s1 + $0x58] sm:$0xff]
  %v33 = vld [vmem:[%s1 + $0x60] sm:$0xff]
  %v34 = vld [vmem:[%s1 + $0x68] sm:$0xff]
  %v35 = vld [vmem:[%s1 + $0x70] sm:$0xff]
  %v36 = vld [vmem:[%s1 + $0x78] sm:$0xff]
  %v37 = vld [vmem:[%s2] sm:$0x1]
  %v39 = vlaneseq
  %v40 = vshrl.u32 %v39, 7
  %v41 = vsub.s32 0, %v40
  %v42 = vrot.slane %v37, %v41
  %44 = vmatprep.subr.mxu0 0.0
  %45 = vmatpush1.msra.mxu0 %v36
  %46 = vmatprep.subr.mxu0 0.0
  %47 = vmatpush1.msra.mxu0 %v35
  %48 = vmatprep.subr.mxu0 0.0
  %49 = vmatpush1.msra.mxu0 %v34
  %50 = vmatprep.subr.mxu0 0.0
  %51 = vmatpush1.msra.mxu0 %v33
  %52 = vmatprep.subr.mxu0 0.0
  %53 = vmatpush1.msra.mxu0 %v32
  %54 = vmatprep.subr.mxu0 0.0
  %55 = vmatpush1.msra.mxu0 %v31
  %56 = vmatprep.subr.mxu0 0.0
  %57 = vmatpush1.msra.mxu0 %v30
  %58 = vmatprep.subr.mxu0 0.0
  %59 = vmatpush1.msra.mxu0 %v29
  %60 = vmatprep.subr.mxu0 0.0
  %61 = vmatpush1.msra.mxu0 %v28
  %62 = vmatprep.subr.mxu0 0.0
  %63 = vmatpush1.msra.mxu0 %v27
  %64 = vmatprep.subr.mxu0 0.0
  %65 = vmatpush1.msra.mxu0 %v26
  %66 = vmatprep.subr.mxu0 0.0
  %67 = vmatpush1.msra.mxu0 %v25
  %68 = vmatprep.subr.mxu0 0.0
  %69 = vmatpush1.msra.mxu0 %v24
  %70 = vmatprep.subr.mxu0 0.0
  %71 = vmatpush1.msra.mxu0 %v23
  %72 = vmatprep.subr.mxu0 0.0
  %73 = vmatpush1.msra.mxu0 %v22
  %74 = vmatprep.subr.mxu0 0.0
  %75 = vmatpush1.msra.mxu0 %v21
  %76 = vmatprep.subr.mxu0 0.0
  %77 = vmatpush2.msra.mxu0 0.0
  %78 = vmatprep.subr.mxu0 0.0
  %79 = vmatpush2.msra.mxu0 0.0
  %80 = vmatprep.subr.mxu0 0.0
  %81 = vmatpush2.msra.mxu0 0.0
  %82 = vmatprep.subr.mxu0 0.0
  %83 = vmatpush2.msra.mxu0 0.0
  %84 = vmatprep.subr.mxu0 0.0
  %85 = vmatpush2.msra.mxu0 0.0
  %86 = vmatprep.subr.mxu0 0.0
  %87 = vmatpush2.msra.mxu0 0.0
  %88 = vmatprep.subr.mxu0 0.0
  %89 = vmatpush2.msra.mxu0 0.0
  %90 = vmatprep.subr.mxu0 0.0
  %91 = vmatpush2.msra.mxu0 0.0
  %92 = vmatprep.subr.mxu0 0.0
  %93 = vmatpush2.msra.mxu0 0.0
  %94 = vmatprep.subr.mxu0 0.0
  %95 = vmatpush2.msra.mxu0 0.0
  %96 = vmatprep.subr.mxu0 0.0
  %97 = vmatpush2.msra.mxu0 0.0
  %98 = vmatprep.subr.mxu0 0.0
  %99 = vmatpush2.msra.mxu0 0.0
  %100 = vmatprep.subr.mxu0 0.0
  %101 = vmatpush2.msra.mxu0 0.0
  %102 = vmatprep.subr.mxu0 0.0
  %103 = vmatpush2.msra.mxu0 0.0
  %104 = vmatprep.subr.mxu0 0.0
  %105 = vmatpush2.msra.mxu0 0.0
  %106 = vmatprep.subr.mxu0 0.0
  %107 = vmatpush2.msra.mxu0 0.0
  %108 = vmatprep.mubr.f32.mxu0 0.0
  %109 = vmatmul.mubr.f32.gmra.mxu0 %v17
  %v110 = vpop.f32.mrf.mxu0
  %v111 = vadd.f32 %v42, %v110
  %v112 = vpop.f32.mrf.mxu0
  %113 = vmatprep.mubr.f32.mxu0 0.0
  %114 = vmatmul.mubr.f32.gmra.mxu0 %v18
  %v115 = vpop.f32.mrf.mxu0
  %v116 = vadd.f32 %v42, %v115
  %v117 = vpop.f32.mrf.mxu0
  %118 = vmatprep.mubr.f32.mxu0 0.0
  %119 = vmatmul.mubr.f32.gmra.mxu0 %v19
  %v120 = vpop.f32.mrf.mxu0
  %v121 = vadd.f32 %v42, %v120
  %v122 = vpop.f32.mrf.mxu0
  %123 = vmatprep.mubr.f32.mxu0 0.0
  %124 = vmatmul.mubr.f32.gmra.mxu0 %v20
  %v125 = vpop.f32.mrf.mxu0
  %v126 = vadd.f32 %v42, %v125
  %v127 = vpop.f32.mrf.mxu0
  %128 = vdwg.mxu0
  %v129 = vld [vmem:[%s3] sm:$0xff]
  %v130 = vld [vmem:[%s3 + $0x8] sm:$0xff]
  %v131 = vld [vmem:[%s3 + $0x10] sm:$0xff]
  %v132 = vld [vmem:[%s3 + $0x18] sm:$0xff]
  %v133 = vadd.f32 %v111, %v129
  %v134 = vadd.f32 %v116, %v130
  %v135 = vadd.f32 %v121, %v131
  %v136 = vadd.f32 %v126, %v132
  %137 = vst [vmem:[%s4] sm:$0xff] %v133
  %138 = vst [vmem:[%s4 + $0x8] sm:$0xff] %v134
  %139 = vst [vmem:[%s4 + $0x10] sm:$0xff] %v135
  %140 = vst [vmem:[%s4 + $0x18] sm:$0xff] %v136
  // Predicated region
  $region18: #{_lambda_.20} parent=0 // pred_check
    _
  $region19: #{_lambda_.20} parent=0 // pred_check_branch
    %142 = sbr.rel (0) target = $region21
  $region20: #{_lambda_.20} parent=0 // pred_region
    _
  $region21: #{_lambda_.20} parent=0 // pred_fallthru
    _
  // Predicated region
  $region22: #{_lambda_.20} parent=0 // pred_check
    _
  $region23: #{_lambda_.20} parent=0 // pred_check_branch
    %144 = sbr.rel (0) target = $region25
  $region24: #{_lambda_.20} parent=0 // pred_region
    _
  $region25: #{_lambda_.20} parent=0 // pred_fallthru
    _

// kernel: _lambda_.21
$region0: #{_lambda_.21}
  #allocation0 [shape = 'u32[]', space=smem, size = 0x4, offset = 0x4, fixed_abs, tag = 'smem constant byte address 0x4 - core index']
  #allocation1 [shape = 'u32[144,128]{1,0:T(1,128)}', space=vmem, size = 0x12000, scoped, tag = 'internal scratch']
  %s0 = inlined_call_operand.vmem [shape: f32[32,128], index: 0, kind: input, shape index: {}]
  %s1 = inlined_call_operand.vmem [shape: f32[1,128], index: 1, kind: input, shape index: {}]
  %s2 = inlined_call_operand.vmem [shape: f32[1,128], index: 2, kind: input, shape index: {}]
  %s3 = inlined_call_operand.vmem [shape: f32[32,128], index: 3, kind: output, shape index: {}]
  %s4 = sld [smem:[#allocation0]]
  $region22: #{_lambda_.21} parent=0
    _
  %s6 = ssub.s32 1, %s4
  %s7 = scalar_select 0, %s6, %s4
  // Predicated region
  $region2: #{_lambda_.21} parent=0 // pred_check
    _
  $region3: #{_lambda_.21} parent=0 // pred_check_branch
    %9 = sbr.rel (0) target = $region5
  $region4: #{_lambda_.21} parent=0 // pred_region
    _
  $region5: #{_lambda_.21} parent=0 // pred_fallthru
    _
  // Predicated region
  $region6: #{_lambda_.21} parent=0 // pred_check
    _
  $region7: #{_lambda_.21} parent=0 // pred_check_branch
    %11 = sbr.rel (0) target = $region9
  $region8: #{_lambda_.21} parent=0 // pred_region
    _
  $region9: #{_lambda_.21} parent=0 // pred_fallthru
    _
  // Predicated region
  $region10: #{_lambda_.21} parent=0 // pred_check
    _
  $region11: #{_lambda_.21} parent=0 // pred_check_branch
    %13 = sbr.rel (0) target = $region13
  $region12: #{_lambda_.21} parent=0 // pred_region
    _
  $region13: #{_lambda_.21} parent=0 // pred_fallthru
    _
  %v14 = vld [vmem:[%s0] sm:$0xff]
  %v15 = vld [vmem:[%s0 + $0x8] sm:$0xff]
  %v16 = vld [vmem:[%s0 + $0x10] sm:$0xff]
  %v17 = vld [vmem:[%s0 + $0x18] sm:$0xff]
  %18 = vadd.xlane.f32.xlu0 %v14
  %v19 = vpop.xlane.xlu0 %18
  %20 = vadd.xlane.f32.xlu0 %v15
  %v21 = vpop.xlane.xlu0 %20
  %22 = vadd.xlane.f32.xlu0 %v16
  %v23 = vpop.xlane.xlu0 %22
  %24 = vadd.xlane.f32.xlu0 %v17
  %v25 = vpop.xlane.xlu0 %24
  %v26 = vrcp.pop 32.0
  %v27 = vmul.f32 %v19, %v26
  %v28 = vmul.f32 %v21, %v26
  %v29 = vmul.f32 %v23, %v26
  %v30 = vmul.f32 %v25, %v26
  %v31 = vmul.f32 %v14, %v14
  %v32 = vmul.f32 %v15, %v15
  %v33 = vmul.f32 %v16, %v16
  %v34 = vmul.f32 %v17, %v17
  %35 = vadd.xlane.f32.xlu0 %v31
  %v36 = vpop.xlane.xlu0 %35
  %37 = vadd.xlane.f32.xlu0 %v32
  %v38 = vpop.xlane.xlu0 %37
  %39 = vadd.xlane.f32.xlu0 %v33
  %v40 = vpop.xlane.xlu0 %39
  %41 = vadd.xlane.f32.xlu0 %v34
  %v42 = vpop.xlane.xlu0 %41
  %v43 = vmul.f32 %v36, %v26
  %v44 = vmul.f32 %v38, %v26
  %v45 = vmul.f32 %v40, %v26
  %v46 = vmul.f32 %v42, %v26
  %v47 = vmul.f32 %v27, %v27
  %v48 = vmul.f32 %v28, %v28
  %v49 = vmul.f32 %v29, %v29
  %v50 = vmul.f32 %v30, %v30
  %v51 = vsub.f32 %v43, %v47
  %v52 = vsub.f32 %v44, %v48
  %v53 = vsub.f32 %v45, %v49
  %v54 = vsub.f32 %v46, %v50
  %v55 = vsub.f32 %v14, %v27
  %v56 = vsub.f32 %v15, %v28
  %v57 = vsub.f32 %v16, %v29
  %v58 = vsub.f32 %v17, %v30
  %v59 = vadd.f32 %v51, 1e-05
  %v60 = vadd.f32 %v52, 1e-05
  %v61 = vadd.f32 %v53, 1e-05
  %v62 = vadd.f32 %v54, 1e-05
  %v63 = vrsqrt.pop %v59
  %v64 = vrsqrt.pop %v60
  %v65 = vrsqrt.pop %v61
  %v66 = vrsqrt.pop %v62
  %v67 = vmul.f32 %v55, %v63
  %v68 = vmul.f32 %v56, %v64
  %v69 = vmul.f32 %v57, %v65
  %v70 = vmul.f32 %v58, %v66
  %v71 = vld [vmem:[%s1] sm:$0x1]
  %v73 = vlaneseq
  %v74 = vshrl.u32 %v73, 7
  %v75 = vsub.s32 0, %v74
  %v76 = vrot.slane %v71, %v75
  %v78 = vmul.f32 %v67, %v76
  %v79 = vmul.f32 %v68, %v76
  %v80 = vmul.f32 %v69, %v76
  %v81 = vmul.f32 %v70, %v76
  %v82 = vld [vmem:[%s2] sm:$0x1]
  %v84 = vlaneseq
  %v85 = vshrl.u32 %v84, 7
  %v86 = vsub.s32 0, %v85
  %v87 = vrot.slane %v82, %v86
  %v89 = vadd.f32 %v78, %v87
  %v90 = vadd.f32 %v79, %v87
  %v91 = vadd.f32 %v80, %v87
  %v92 = vadd.f32 %v81, %v87
  %93 = vst [vmem:[%s3] sm:$0xff] %v89
  %94 = vst [vmem:[%s3 + $0x8] sm:$0xff] %v90
  %95 = vst [vmem:[%s3 + $0x10] sm:$0xff] %v91
  %96 = vst [vmem:[%s3 + $0x18] sm:$0xff] %v92
  // Predicated region
  $region14: #{_lambda_.21} parent=0 // pred_check
    _
  $region15: #{_lambda_.21} parent=0 // pred_check_branch
    %98 = sbr.rel (0) target = $region17
  $region16: #{_lambda_.21} parent=0 // pred_region
    _
  $region17: #{_lambda_.21} parent=0 // pred_fallthru
    _
  // Predicated region
  $region18: #{_lambda_.21} parent=0 // pred_check
    _
  $region19: #{_lambda_.21} parent=0 // pred_check_branch
    %100 = sbr.rel (0) target = $region21
  $region20: #{_lambda_.21} parent=0 // pred_region
    _
  $region21: #{_lambda_.21} parent=0 // pred_fallthru
    _

// kernel: _lambda_.22
$region0: #{_lambda_.22}
  #allocation0 [shape = 'u32[]', space=smem, size = 0x4, offset = 0x4, fixed_abs, tag = 'smem constant byte address 0x4 - core index']
  #allocation1 [shape = 'u32[144,128]{1,0:T(1,128)}', space=vmem, size = 0x12000, scoped, tag = 'internal scratch']
  %s0 = inlined_call_operand.vmem [shape: f32[9,32,128], index: 0, kind: input, shape index: {}]
  %s1 = inlined_call_operand.vmem [shape: f32[9,1,128], index: 1, kind: input, shape index: {}]
  %s2 = inlined_call_operand.vmem [shape: f32[1,128], index: 2, kind: input, shape index: {}]
  %s3 = inlined_call_operand.vmem [shape: f32[128,128], index: 3, kind: input, shape index: {}]
  %s4 = inlined_call_operand.vmem [shape: f32[1,128], index: 4, kind: input, shape index: {}]
  %s5 = inlined_call_operand.vmem [shape: f32[128,128], index: 5, kind: input, shape index: {}]
  %s6 = inlined_call_operand.vmem [shape: f32[1,128], index: 6, kind: input, shape index: {}]
  %s7 = inlined_call_operand.vmem [shape: f32[32,128], index: 7, kind: input, shape index: {}]
  %s8 = inlined_call_operand.vmem [shape: f32[32,128], index: 8, kind: output, shape index: {}]
  %s9 = sld [smem:[#allocation0]]
  $region42: #{_lambda_.22} parent=0
    _
  %s11 = ssub.s32 1, %s9
  %s12 = scalar_select 0, %s11, %s9
  // Predicated region
  $region2: #{_lambda_.22} parent=0 // pred_check
    _
  $region3: #{_lambda_.22} parent=0 // pred_check_branch
    %14 = sbr.rel (0) target = $region5
  $region4: #{_lambda_.22} parent=0 // pred_region
    _
  $region5: #{_lambda_.22} parent=0 // pred_fallthru
    _
  // Predicated region
  $region6: #{_lambda_.22} parent=0 // pred_check
    _
  $region7: #{_lambda_.22} parent=0 // pred_check_branch
    %16 = sbr.rel (0) target = $region9
  $region8: #{_lambda_.22} parent=0 // pred_region
    _
  $region9: #{_lambda_.22} parent=0 // pred_fallthru
    _
  // Predicated region
  $region10: #{_lambda_.22} parent=0 // pred_check
    _
  $region11: #{_lambda_.22} parent=0 // pred_check_branch
    %18 = sbr.rel (0) target = $region13
  $region12: #{_lambda_.22} parent=0 // pred_region
    _
  $region13: #{_lambda_.22} parent=0 // pred_fallthru
    _
  // Predicated region
  $region14: #{_lambda_.22} parent=0 // pred_check
    _
  $region15: #{_lambda_.22} parent=0 // pred_check_branch
    %20 = sbr.rel (0) target = $region17
  $region16: #{_lambda_.22} parent=0 // pred_region
    _
  $region17: #{_lambda_.22} parent=0 // pred_fallthru
    _
  // Predicated region
  $region18: #{_lambda_.22} parent=0 // pred_check
    _
  $region19: #{_lambda_.22} parent=0 // pred_check_branch
    %22 = sbr.rel (0) target = $region21
  $region20: #{_lambda_.22} parent=0 // pred_region
    _
  $region21: #{_lambda_.22} parent=0 // pred_fallthru
    _
  // Predicated region
  $region22: #{_lambda_.22} parent=0 // pred_check
    _
  $region23: #{_lambda_.22} parent=0 // pred_check_branch
    %24 = sbr.rel (0) target = $region25
  $region24: #{_lambda_.22} parent=0 // pred_region
    _
  $region25: #{_lambda_.22} parent=0 // pred_fallthru
    _
  // Predicated region
  $region26: #{_lambda_.22} parent=0 // pred_check
    _
  $region27: #{_lambda_.22} parent=0 // pred_check_branch
    %26 = sbr.rel (0) target = $region29
  $region28: #{_lambda_.22} parent=0 // pred_region
    _
  $region29: #{_lambda_.22} parent=0 // pred_fallthru
    _
  // Predicated region
  $region30: #{_lambda_.22} parent=0 // pred_check
    _
  $region31: #{_lambda_.22} parent=0 // pred_check_branch
    %28 = sbr.rel (0) target = $region33
  $region32: #{_lambda_.22} parent=0 // pred_region
    _
  $region33: #{_lambda_.22} parent=0 // pred_fallthru
    _
  %v29 = vld [vmem:[%s0] sm:$0xff]
  %v30 = vld [vmem:[%s0 + $0x8] sm:$0xff]
  %v31 = vld [vmem:[%s0 + $0x10] sm:$0xff]
  %v32 = vld [vmem:[%s0 + $0x18] sm:$0xff]
  %v33 = vld [vmem:[%s1] sm:$0x1]
  %v35 = vlaneseq
  %v36 = vshrl.u32 %v35, 7
  %v37 = vsub.s32 0, %v36
  %v38 = vrot.slane %v33, %v37
  %v40 = vmul.f32 %v29, %v38
  %v41 = vmul.f32 %v30, %v38
  %v42 = vmul.f32 %v31, %v38
  %v43 = vmul.f32 %v32, %v38
  %s44 = scalar_lea.vmem %s0, 32
  %v45 = vld [vmem:[%s44] sm:$0xff]
  %v46 = vld [vmem:[%s44 + $0x8] sm:$0xff]
  %v47 = vld [vmem:[%s44 + $0x10] sm:$0xff]
  %v48 = vld [vmem:[%s44 + $0x18] sm:$0xff]
  %s49 = scalar_lea.vmem %s1, 1
  %v50 = vld [vmem:[%s49] sm:$0x1]
  %v52 = vlaneseq
  %v53 = vshrl.u32 %v52, 7
  %v54 = vsub.s32 0, %v53
  %v55 = vrot.slane %v50, %v54
  %v57 = vmul.f32 %v45, %v55
  %v58 = vmul.f32 %v46, %v55
  %v59 = vmul.f32 %v47, %v55
  %v60 = vmul.f32 %v48, %v55
  %v61 = vadd.f32 %v40, %v57
  %v62 = vadd.f32 %v41, %v58
  %v63 = vadd.f32 %v42, %v59
  %v64 = vadd.f32 %v43, %v60
  %s65 = scalar_lea.vmem %s0, 64
  %v66 = vld [vmem:[%s65] sm:$0xff]
  %v67 = vld [vmem:[%s65 + $0x8] sm:$0xff]
  %v68 = vld [vmem:[%s65 + $0x10] sm:$0xff]
  %v69 = vld [vmem:[%s65 + $0x18] sm:$0xff]
  %s70 = scalar_lea.vmem %s1, 2
  %v71 = vld [vmem:[%s70] sm:$0x1]
  %v73 = vlaneseq
  %v74 = vshrl.u32 %v73, 7
  %v75 = vsub.s32 0, %v74
  %v76 = vrot.slane %v71, %v75
  %v78 = vmul.f32 %v66, %v76
  %v79 = vmul.f32 %v67, %v76
  %v80 = vmul.f32 %v68, %v76
  %v81 = vmul.f32 %v69, %v76
  %v82 = vadd.f32 %v61, %v78
  %v83 = vadd.f32 %v62, %v79
  %v84 = vadd.f32 %v63, %v80
  %v85 = vadd.f32 %v64, %v81
  %s86 = scalar_lea.vmem %s0, 96
  %v87 = vld [vmem:[%s86] sm:$0xff]
  %v88 = vld [vmem:[%s86 + $0x8] sm:$0xff]
  %v89 = vld [vmem:[%s86 + $0x10] sm:$0xff]
  %v90 = vld [vmem:[%s86 + $0x18] sm:$0xff]
  %s91 = scalar_lea.vmem %s1, 3
  %v92 = vld [vmem:[%s91] sm:$0x1]
  %v94 = vlaneseq
  %v95 = vshrl.u32 %v94, 7
  %v96 = vsub.s32 0, %v95
  %v97 = vrot.slane %v92, %v96
  %v99 = vmul.f32 %v87, %v97
  %v100 = vmul.f32 %v88, %v97
  %v101 = vmul.f32 %v89, %v97
  %v102 = vmul.f32 %v90, %v97
  %v103 = vadd.f32 %v82, %v99
  %v104 = vadd.f32 %v83, %v100
  %v105 = vadd.f32 %v84, %v101
  %v106 = vadd.f32 %v85, %v102
  %s107 = scalar_lea.vmem %s0, 128
  %v108 = vld [vmem:[%s107] sm:$0xff]
  %v109 = vld [vmem:[%s107 + $0x8] sm:$0xff]
  %v110 = vld [vmem:[%s107 + $0x10] sm:$0xff]
  %v111 = vld [vmem:[%s107 + $0x18] sm:$0xff]
  %s112 = scalar_lea.vmem %s1, 4
  %v113 = vld [vmem:[%s112] sm:$0x1]
  %v115 = vlaneseq
  %v116 = vshrl.u32 %v115, 7
  %v117 = vsub.s32 0, %v116
  %v118 = vrot.slane %v113, %v117
  %v120 = vmul.f32 %v108, %v118
  %v121 = vmul.f32 %v109, %v118
  %v122 = vmul.f32 %v110, %v118
  %v123 = vmul.f32 %v111, %v118
  %v124 = vadd.f32 %v103, %v120
  %v125 = vadd.f32 %v104, %v121
  %v126 = vadd.f32 %v105, %v122
  %v127 = vadd.f32 %v106, %v123
  %s128 = scalar_lea.vmem %s0, 160
  %v129 = vld [vmem:[%s128] sm:$0xff]
  %v130 = vld [vmem:[%s128 + $0x8] sm:$0xff]
  %v131 = vld [vmem:[%s128 + $0x10] sm:$0xff]
  %v132 = vld [vmem:[%s128 + $0x18] sm:$0xff]
  %s133 = scalar_lea.vmem %s1, 5
  %v134 = vld [vmem:[%s133] sm:$0x1]
  %v136 = vlaneseq
  %v137 = vshrl.u32 %v136, 7
  %v138 = vsub.s32 0, %v137
  %v139 = vrot.slane %v134, %v138
  %v141 = vmul.f32 %v129, %v139
  %v142 = vmul.f32 %v130, %v139
  %v143 = vmul.f32 %v131, %v139
  %v144 = vmul.f32 %v132, %v139
  %v145 = vadd.f32 %v124, %v141
  %v146 = vadd.f32 %v125, %v142
  %v147 = vadd.f32 %v126, %v143
  %v148 = vadd.f32 %v127, %v144
  %s149 = scalar_lea.vmem %s0, 192
  %v150 = vld [vmem:[%s149] sm:$0xff]
  %v151 = vld [vmem:[%s149 + $0x8] sm:$0xff]
  %v152 = vld [vmem:[%s149 + $0x10] sm:$0xff]
  %v153 = vld [vmem:[%s149 + $0x18] sm:$0xff]
  %s154 = scalar_lea.vmem %s1, 6
  %v155 = vld [vmem:[%s154] sm:$0x1]
  %v157 = vlaneseq
  %v158 = vshrl.u32 %v157, 7
  %v159 = vsub.s32 0, %v158
  %v160 = vrot.slane %v155, %v159
  %v162 = vmul.f32 %v150, %v160
  %v163 = vmul.f32 %v151, %v160
  %v164 = vmul.f32 %v152, %v160
  %v165 = vmul.f32 %v153, %v160
  %v166 = vadd.f32 %v145, %v162
  %v167 = vadd.f32 %v146, %v163
  %v168 = vadd.f32 %v147, %v164
  %v169 = vadd.f32 %v148, %v165
  %s170 = scalar_lea.vmem %s0, 224
  %v171 = vld [vmem:[%s170] sm:$0xff]
  %v172 = vld [vmem:[%s170 + $0x8] sm:$0xff]
  %v173 = vld [vmem:[%s170 + $0x10] sm:$0xff]
  %v174 = vld [vmem:[%s170 + $0x18] sm:$0xff]
  %s175 = scalar_lea.vmem %s1, 7
  %v176 = vld [vmem:[%s175] sm:$0x1]
  %v178 = vlaneseq
  %v179 = vshrl.u32 %v178, 7
  %v180 = vsub.s32 0, %v179
  %v181 = vrot.slane %v176, %v180
  %v183 = vmul.f32 %v171, %v181
  %v184 = vmul.f32 %v172, %v181
  %v185 = vmul.f32 %v173, %v181
  %v186 = vmul.f32 %v174, %v181
  %v187 = vadd.f32 %v166, %v183
  %v188 = vadd.f32 %v167, %v184
  %v189 = vadd.f32 %v168, %v185
  %v190 = vadd.f32 %v169, %v186
  %s191 = scalar_lea.vmem %s0, 256
  %v192 = vld [vmem:[%s191] sm:$0xff]
  %v193 = vld [vmem:[%s191 + $0x8] sm:$0xff]
  %v194 = vld [vmem:[%s191 + $0x10] sm:$0xff]
  %v195 = vld [vmem:[%s191 + $0x18] sm:$0xff]
  %s196 = scalar_lea.vmem %s1, 8
  %v197 = vld [vmem:[%s196] sm:$0x1]
  %v199 = vlaneseq
  %v200 = vshrl.u32 %v199, 7
  %v201 = vsub.s32 0, %v200
  %v202 = vrot.slane %v197, %v201
  %v204 = vmul.f32 %v192, %v202
  %v205 = vmul.f32 %v193, %v202
  %v206 = vmul.f32 %v194, %v202
  %v207 = vmul.f32 %v195, %v202
  %v208 = vadd.f32 %v187, %v204
  %v209 = vadd.f32 %v188, %v205
  %v210 = vadd.f32 %v189, %v206
  %v211 = vadd.f32 %v190, %v207
  %v212 = vld [vmem:[%s2] sm:$0x1]
  %v214 = vlaneseq
  %v215 = vshrl.u32 %v214, 7
  %v216 = vsub.s32 0, %v215
  %v217 = vrot.slane %v212, %v216
  %v219 = vadd.f32 %v208, %v217
  %v220 = vadd.f32 %v209, %v217
  %v221 = vadd.f32 %v210, %v217
  %v222 = vadd.f32 %v211, %v217
  %v223 = vld [vmem:[%s3] sm:$0xff]
  %v224 = vld [vmem:[%s3 + $0x8] sm:$0xff]
  %v225 = vld [vmem:[%s3 + $0x10] sm:$0xff]
  %v226 = vld [vmem:[%s3 + $0x18] sm:$0xff]
  %v227 = vld [vmem:[%s3 + $0x20] sm:$0xff]
  %v228 = vld [vmem:[%s3 + $0x28] sm:$0xff]
  %v229 = vld [vmem:[%s3 + $0x30] sm:$0xff]
  %v230 = vld [vmem:[%s3 + $0x38] sm:$0xff]
  %v231 = vld [vmem:[%s3 + $0x40] sm:$0xff]
  %v232 = vld [vmem:[%s3 + $0x48] sm:$0xff]
  %v233 = vld [vmem:[%s3 + $0x50] sm:$0xff]
  %v234 = vld [vmem:[%s3 + $0x58] sm:$0xff]
  %v235 = vld [vmem:[%s3 + $0x60] sm:$0xff]
  %v236 = vld [vmem:[%s3 + $0x68] sm:$0xff]
  %v237 = vld [vmem:[%s3 + $0x70] sm:$0xff]
  %v238 = vld [vmem:[%s3 + $0x78] sm:$0xff]
  %v239 = vld [vmem:[%s4] sm:$0x1]
  %v241 = vlaneseq
  %v242 = vshrl.u32 %v241, 7
  %v243 = vsub.s32 0, %v242
  %v244 = vrot.slane %v239, %v243
  %246 = vmatprep.subr.mxu0 0.0
  %247 = vmatpush1.msra.mxu0 %v238
  %248 = vmatprep.subr.mxu0 0.0
  %249 = vmatpush1.msra.mxu0 %v237
  %250 = vmatprep.subr.mxu0 0.0
  %251 = vmatpush1.msra.mxu0 %v236
  %252 = vmatprep.subr.mxu0 0.0
  %253 = vmatpush1.msra.mxu0 %v235
  %254 = vmatprep.subr.mxu0 0.0
  %255 = vmatpush1.msra.mxu0 %v234
  %256 = vmatprep.subr.mxu0 0.0
  %257 = vmatpush1.msra.mxu0 %v233
  %258 = vmatprep.subr.mxu0 0.0
  %259 = vmatpush1.msra.mxu0 %v232
  %260 = vmatprep.subr.mxu0 0.0
  %261 = vmatpush1.msra.mxu0 %v231
  %262 = vmatprep.subr.mxu0 0.0
  %263 = vmatpush1.msra.mxu0 %v230
  %264 = vmatprep.subr.mxu0 0.0
  %265 = vmatpush1.msra.mxu0 %v229
  %266 = vmatprep.subr.mxu0 0.0
  %267 = vmatpush1.msra.mxu0 %v228
  %268 = vmatprep.subr.mxu0 0.0
  %269 = vmatpush1.msra.mxu0 %v227
  %270 = vmatprep.subr.mxu0 0.0
  %271 = vmatpush1.msra.mxu0 %v226
  %272 = vmatprep.subr.mxu0 0.0
  %273 = vmatpush1.msra.mxu0 %v225
  %274 = vmatprep.subr.mxu0 0.0
  %275 = vmatpush1.msra.mxu0 %v224
  %276 = vmatprep.subr.mxu0 0.0
  %277 = vmatpush1.msra.mxu0 %v223
  %278 = vmatprep.subr.mxu0 0.0
  %279 = vmatpush2.msra.mxu0 0.0
  %280 = vmatprep.subr.mxu0 0.0
  %281 = vmatpush2.msra.mxu0 0.0
  %282 = vmatprep.subr.mxu0 0.0
  %283 = vmatpush2.msra.mxu0 0.0
  %284 = vmatprep.subr.mxu0 0.0
  %285 = vmatpush2.msra.mxu0 0.0
  %286 = vmatprep.subr.mxu0 0.0
  %287 = vmatpush2.msra.mxu0 0.0
  %288 = vmatprep.subr.mxu0 0.0
  %289 = vmatpush2.msra.mxu0 0.0
  %290 = vmatprep.subr.mxu0 0.0
  %291 = vmatpush2.msra.mxu0 0.0
  %292 = vmatprep.subr.mxu0 0.0
  %293 = vmatpush2.msra.mxu0 0.0
  %294 = vmatprep.subr.mxu0 0.0
  %295 = vmatpush2.msra.mxu0 0.0
  %296 = vmatprep.subr.mxu0 0.0
  %297 = vmatpush2.msra.mxu0 0.0
  %298 = vmatprep.subr.mxu0 0.0
  %299 = vmatpush2.msra.mxu0 0.0
  %300 = vmatprep.subr.mxu0 0.0
  %301 = vmatpush2.msra.mxu0 0.0
  %302 = vmatprep.subr.mxu0 0.0
  %303 = vmatpush2.msra.mxu0 0.0
  %304 = vmatprep.subr.mxu0 0.0
  %305 = vmatpush2.msra.mxu0 0.0
  %306 = vmatprep.subr.mxu0 0.0
  %307 = vmatpush2.msra.mxu0 0.0
  %308 = vmatprep.subr.mxu0 0.0
  %309 = vmatpush2.msra.mxu0 0.0
  %310 = vmatprep.mubr.f32.mxu0 0.0
  %311 = vmatmul.mubr.f32.gmra.mxu0 %v219
  %v312 = vpop.f32.mrf.mxu0
  %v313 = vadd.f32 %v244, %v312
  %v314 = vpop.f32.mrf.mxu0
  %315 = vmatprep.mubr.f32.mxu0 0.0
  %316 = vmatmul.mubr.f32.gmra.mxu0 %v220
  %v317 = vpop.f32.mrf.mxu0
  %v318 = vadd.f32 %v244, %v317
  %v319 = vpop.f32.mrf.mxu0
  %320 = vmatprep.mubr.f32.mxu0 0.0
  %321 = vmatmul.mubr.f32.gmra.mxu0 %v221
  %v322 = vpop.f32.mrf.mxu0
  %v323 = vadd.f32 %v244, %v322
  %v324 = vpop.f32.mrf.mxu0
  %325 = vmatprep.mubr.f32.mxu0 0.0
  %326 = vmatmul.mubr.f32.gmra.mxu0 %v222
  %v327 = vpop.f32.mrf.mxu0
  %v328 = vadd.f32 %v244, %v327
  %v329 = vpop.f32.mrf.mxu0
  %330 = vdwg.mxu0
  %v331 = vmul.f32 %v313, 0.5
  %v332 = vmul.f32 %v318, 0.5
  %v333 = vmul.f32 %v323, 0.5
  %v334 = vmul.f32 %v328, 0.5
  %v335 = vmul.f32 %v313, 0.70710677
  %v336 = vmul.f32 %v318, 0.70710677
  %v337 = vmul.f32 %v323, 0.70710677
  %v338 = vmul.f32 %v328, 0.70710677
  %v339 = vand.u32 2147483647, %v335
  %v340 = vand.u32 2147483647, %v336
  %v341 = vand.u32 2147483647, %v337
  %v342 = vand.u32 2147483647, %v338
  %v343 = vmul.f32 %v339, 0.3275911
  %v344 = vmul.f32 %v340, 0.3275911
  %v345 = vmul.f32 %v341, 0.3275911
  %v346 = vmul.f32 %v342, 0.3275911
  %v347 = vadd.f32 %v343, 1.0
  %v348 = vadd.f32 %v344, 1.0
  %v349 = vadd.f32 %v345, 1.0
  %v350 = vadd.f32 %v346, 1.0
  %v351 = vrcp.pop %v347
  %v352 = vmul.f32 1.0, %v351
  %v353 = vrcp.pop %v348
  %v354 = vmul.f32 1.0, %v353
  %v355 = vrcp.pop %v349
  %v356 = vmul.f32 1.0, %v355
  %v357 = vrcp.pop %v350
  %v358 = vmul.f32 1.0, %v357
  %v359 = vmul.f32 %v352, 1.0614054
  %v360 = vmul.f32 %v354, 1.0614054
  %v361 = vmul.f32 %v356, 1.0614054
  %v362 = vmul.f32 %v358, 1.0614054
  %v363 = vsub.f32 %v359, 1.4531521
  %v364 = vsub.f32 %v360, 1.4531521
  %v365 = vsub.f32 %v361, 1.4531521
  %v366 = vsub.f32 %v362, 1.4531521
  %v367 = vmul.f32 %v363, %v352
  %v368 = vmul.f32 %v364, %v354
  %v369 = vmul.f32 %v365, %v356
  %v370 = vmul.f32 %v366, %v358
  %v371 = vadd.f32 %v367, 1.4214138
  %v372 = vadd.f32 %v368, 1.4214138
  %v373 = vadd.f32 %v369, 1.4214138
  %v374 = vadd.f32 %v370, 1.4214138
  %v375 = vmul.f32 %v371, %v352
  %v376 = vmul.f32 %v372, %v354
  %v377 = vmul.f32 %v373, %v356
  %v378 = vmul.f32 %v374, %v358
  %v379 = vsub.f32 %v375, 0.28449672
  %v380 = vsub.f32 %v376, 0.28449672
  %v381 = vsub.f32 %v377, 0.28449672
  %v382 = vsub.f32 %v378, 0.28449672
  %v383 = vmul.f32 %v379, %v352
  %v384 = vmul.f32 %v380, %v354
  %v385 = vmul.f32 %v381, %v356
  %v386 = vmul.f32 %v382, %v358
  %v387 = vadd.f32 %v383, 0.2548296
  %v388 = vadd.f32 %v384, 0.2548296
  %v389 = vadd.f32 %v385, 0.2548296
  %v390 = vadd.f32 %v386, 0.2548296
  %v391 = vmul.f32 %v387, %v352
  %v392 = vmul.f32 %v388, %v354
  %v393 = vmul.f32 %v389, %v356
  %v394 = vmul.f32 %v390, %v358
  %v395 = vsub.f32 0.0, %v335
  %v396 = vsub.f32 0.0, %v336
  %v397 = vsub.f32 0.0, %v337
  %v398 = vsub.f32 0.0, %v338
  %v399 = vmul.f32 %v395, %v335
  %v400 = vmul.f32 %v396, %v336
  %v401 = vmul.f32 %v397, %v337
  %v402 = vmul.f32 %v398, %v338
  %v403 = vmul.f32 %v399, 1.442695
  %v404 = vpow.pop %v403
  %v405 = vmul.f32 %v400, 1.442695
  %v406 = vpow.pop %v405
  %v407 = vmul.f32 %v401, 1.442695
  %v408 = vpow.pop %v407
  %v409 = vmul.f32 %v402, 1.442695
  %v410 = vpow.pop %v409
  %v411 = vmul.f32 %v391, %v404
  %v412 = vmul.f32 %v392, %v406
  %v413 = vmul.f32 %v393, %v408
  %v414 = vmul.f32 %v394, %v410
  %v415 = vsub.f32 1.0, %v411
  %v416 = vsub.f32 1.0, %v412
  %v417 = vsub.f32 1.0, %v413
  %v418 = vsub.f32 1.0, %v414
  %vm419 = vcmp.ge.f32.partialorder %v335, 0.0
  %vm420 = vcmp.ge.f32.partialorder %v336, 0.0
  %vm421 = vcmp.ge.f32.partialorder %v337, 0.0
  %vm422 = vcmp.ge.f32.partialorder %v338, 0.0
  %v423 = vsub.f32 0.0, %v415
  %v424 = vsub.f32 0.0, %v416
  %v425 = vsub.f32 0.0, %v417
  %v426 = vsub.f32 0.0, %v418
  %v427 = vsel %vm419, %v415, %v423
  %v428 = vsel %vm420, %v416, %v424
  %v429 = vsel %vm421, %v417, %v425
  %v430 = vsel %vm422, %v418, %v426
  %v431 = vadd.f32 %v427, 1.0
  %v432 = vadd.f32 %v428, 1.0
  %v433 = vadd.f32 %v429, 1.0
  %v434 = vadd.f32 %v430, 1.0
  %v435 = vmul.f32 %v331, %v431
  %v436 = vmul.f32 %v332, %v432
  %v437 = vmul.f32 %v333, %v433
  %v438 = vmul.f32 %v334, %v434
  %v439 = vld [vmem:[%s5] sm:$0xff]
  %v440 = vld [vmem:[%s5 + $0x8] sm:$0xff]
  %v441 = vld [vmem:[%s5 + $0x10] sm:$0xff]
  %v442 = vld [vmem:[%s5 + $0x18] sm:$0xff]
  %v443 = vld [vmem:[%s5 + $0x20] sm:$0xff]
  %v444 = vld [vmem:[%s5 + $0x28] sm:$0xff]
  %v445 = vld [vmem:[%s5 + $0x30] sm:$0xff]
  %v446 = vld [vmem:[%s5 + $0x38] sm:$0xff]
  %v447 = vld [vmem:[%s5 + $0x40] sm:$0xff]
  %v448 = vld [vmem:[%s5 + $0x48] sm:$0xff]
  %v449 = vld [vmem:[%s5 + $0x50] sm:$0xff]
  %v450 = vld [vmem:[%s5 + $0x58] sm:$0xff]
  %v451 = vld [vmem:[%s5 + $0x60] sm:$0xff]
  %v452 = vld [vmem:[%s5 + $0x68] sm:$0xff]
  %v453 = vld [vmem:[%s5 + $0x70] sm:$0xff]
  %v454 = vld [vmem:[%s5 + $0x78] sm:$0xff]
  %v455 = vld [vmem:[%s6] sm:$0x1]
  %v457 = vlaneseq
  %v458 = vshrl.u32 %v457, 7
  %v459 = vsub.s32 0, %v458
  %v460 = vrot.slane %v455, %v459
  %462 = vmatprep.subr.mxu0 0.0
  %463 = vmatpush1.msra.mxu0 %v454
  %464 = vmatprep.subr.mxu0 0.0
  %465 = vmatpush1.msra.mxu0 %v453
  %466 = vmatprep.subr.mxu0 0.0
  %467 = vmatpush1.msra.mxu0 %v452
  %468 = vmatprep.subr.mxu0 0.0
  %469 = vmatpush1.msra.mxu0 %v451
  %470 = vmatprep.subr.mxu0 0.0
  %471 = vmatpush1.msra.mxu0 %v450
  %472 = vmatprep.subr.mxu0 0.0
  %473 = vmatpush1.msra.mxu0 %v449
  %474 = vmatprep.subr.mxu0 0.0
  %475 = vmatpush1.msra.mxu0 %v448
  %476 = vmatprep.subr.mxu0 0.0
  %477 = vmatpush1.msra.mxu0 %v447
  %478 = vmatprep.subr.mxu0 0.0
  %479 = vmatpush1.msra.mxu0 %v446
  %480 = vmatprep.subr.mxu0 0.0
  %481 = vmatpush1.msra.mxu0 %v445
  %482 = vmatprep.subr.mxu0 0.0
  %483 = vmatpush1.msra.mxu0 %v444
  %484 = vmatprep.subr.mxu0 0.0
  %485 = vmatpush1.msra.mxu0 %v443
  %486 = vmatprep.subr.mxu0 0.0
  %487 = vmatpush1.msra.mxu0 %v442
  %488 = vmatprep.subr.mxu0 0.0
  %489 = vmatpush1.msra.mxu0 %v441
  %490 = vmatprep.subr.mxu0 0.0
  %491 = vmatpush1.msra.mxu0 %v440
  %492 = vmatprep.subr.mxu0 0.0
  %493 = vmatpush1.msra.mxu0 %v439
  %494 = vmatprep.subr.mxu0 0.0
  %495 = vmatpush2.msra.mxu0 0.0
  %496 = vmatprep.subr.mxu0 0.0
  %497 = vmatpush2.msra.mxu0 0.0
  %498 = vmatprep.subr.mxu0 0.0
  %499 = vmatpush2.msra.mxu0 0.0
  %500 = vmatprep.subr.mxu0 0.0
  %501 = vmatpush2.msra.mxu0 0.0
  %502 = vmatprep.subr.mxu0 0.0
  %503 = vmatpush2.msra.mxu0 0.0
  %504 = vmatprep.subr.mxu0 0.0
  %505 = vmatpush2.msra.mxu0 0.0
  %506 = vmatprep.subr.mxu0 0.0
  %507 = vmatpush2.msra.mxu0 0.0
  %508 = vmatprep.subr.mxu0 0.0
  %509 = vmatpush2.msra.mxu0 0.0
  %510 = vmatprep.subr.mxu0 0.0
  %511 = vmatpush2.msra.mxu0 0.0
  %512 = vmatprep.subr.mxu0 0.0
  %513 = vmatpush2.msra.mxu0 0.0
  %514 = vmatprep.subr.mxu0 0.0
  %515 = vmatpush2.msra.mxu0 0.0
  %516 = vmatprep.subr.mxu0 0.0
  %517 = vmatpush2.msra.mxu0 0.0
  %518 = vmatprep.subr.mxu0 0.0
  %519 = vmatpush2.msra.mxu0 0.0
  %520 = vmatprep.subr.mxu0 0.0
  %521 = vmatpush2.msra.mxu0 0.0
  %522 = vmatprep.subr.mxu0 0.0
  %523 = vmatpush2.msra.mxu0 0.0
  %524 = vmatprep.subr.mxu0 0.0
  %525 = vmatpush2.msra.mxu0 0.0
  %526 = vmatprep.mubr.f32.mxu0 0.0
  %527 = vmatmul.mubr.f32.gmra.mxu0 %v435
  %v528 = vpop.f32.mrf.mxu0
  %v529 = vadd.f32 %v460, %v528
  %v530 = vpop.f32.mrf.mxu0
  %531 = vmatprep.mubr.f32.mxu0 0.0
  %532 = vmatmul.mubr.f32.gmra.mxu0 %v436
  %v533 = vpop.f32.mrf.mxu0
  %v534 = vadd.f32 %v460, %v533
  %v535 = vpop.f32.mrf.mxu0
  %536 = vmatprep.mubr.f32.mxu0 0.0
  %537 = vmatmul.mubr.f32.gmra.mxu0 %v437
  %v538 = vpop.f32.mrf.mxu0
  %v539 = vadd.f32 %v460, %v538
  %v540 = vpop.f32.mrf.mxu0
  %541 = vmatprep.mubr.f32.mxu0 0.0
  %542 = vmatmul.mubr.f32.gmra.mxu0 %v438
  %v543 = vpop.f32.mrf.mxu0
  %v544 = vadd.f32 %v460, %v543
  %v545 = vpop.f32.mrf.mxu0
  %546 = vdwg.mxu0
  %v547 = vld [vmem:[%s7] sm:$0xff]
  %v548 = vld [vmem:[%s7 + $0x8] sm:$0xff]
  %v549 = vld [vmem:[%s7 + $0x10] sm:$0xff]
  %v550 = vld [vmem:[%s7 + $0x18] sm:$0xff]
  %v551 = vadd.f32 %v529, %v547
  %v552 = vadd.f32 %v534, %v548
  %v553 = vadd.f32 %v539, %v549
  %v554 = vadd.f32 %v544, %v550
  %555 = vst [vmem:[%s8] sm:$0xff] %v551
  %556 = vst [vmem:[%s8 + $0x8] sm:$0xff] %v552
  %557 = vst [vmem:[%s8 + $0x10] sm:$0xff] %v553
  %558 = vst [vmem:[%s8 + $0x18] sm:$0xff] %v554
  // Predicated region
  $region34: #{_lambda_.22} parent=0 // pred_check
    _
  $region35: #{_lambda_.22} parent=0 // pred_check_branch
    %560 = sbr.rel (0) target = $region37
  $region36: #{_lambda_.22} parent=0 // pred_region
    _
  $region37: #{_lambda_.22} parent=0 // pred_fallthru
    _
  // Predicated region
  $region38: #{_lambda_.22} parent=0 // pred_check
    _
  $region39: #{_lambda_.22} parent=0 // pred_check_branch
    %562 = sbr.rel (0) target = $region41
  $region40: #{_lambda_.22} parent=0 // pred_region
    _
  $region41: #{_lambda_.22} parent=0 // pred_fallthru
    _

// kernel: _lambda_.23
$region0: #{_lambda_.23}
  #allocation0 [shape = 'u32[]', space=smem, size = 0x4, offset = 0x4, fixed_abs, tag = 'smem constant byte address 0x4 - core index']
  #allocation1 [shape = 'u32[144,128]{1,0:T(1,128)}', space=vmem, size = 0x12000, scoped, tag = 'internal scratch']
  %s0 = inlined_call_operand.vmem [shape: f32[8,384], index: 0, kind: input, shape index: {}]
  %s1 = inlined_call_operand.vmem [shape: f32[384,128], index: 1, kind: input, shape index: {}]
  %s2 = inlined_call_operand.vmem [shape: f32[1,128], index: 2, kind: input, shape index: {}]
  %s3 = inlined_call_operand.vmem [shape: f32[8,128], index: 3, kind: output, shape index: {}]
  %s4 = sld [smem:[#allocation0]]
  $region22: #{_lambda_.23} parent=0
    _
  %s6 = ssub.s32 1, %s4
  %s7 = scalar_select 0, %s6, %s4
  // Predicated region
  $region2: #{_lambda_.23} parent=0 // pred_check
    _
  $region3: #{_lambda_.23} parent=0 // pred_check_branch
    %9 = sbr.rel (0) target = $region5
  $region4: #{_lambda_.23} parent=0 // pred_region
    _
  $region5: #{_lambda_.23} parent=0 // pred_fallthru
    _
  // Predicated region
  $region6: #{_lambda_.23} parent=0 // pred_check
    _
  $region7: #{_lambda_.23} parent=0 // pred_check_branch
    %11 = sbr.rel (0) target = $region9
  $region8: #{_lambda_.23} parent=0 // pred_region
    _
  $region9: #{_lambda_.23} parent=0 // pred_fallthru
    _
  // Predicated region
  $region10: #{_lambda_.23} parent=0 // pred_check
    _
  $region11: #{_lambda_.23} parent=0 // pred_check_branch
    %13 = sbr.rel (0) target = $region13
  $region12: #{_lambda_.23} parent=0 // pred_region
    _
  $region13: #{_lambda_.23} parent=0 // pred_fallthru
    _
  %v14 = vld [vmem:[%s0] sm:$0xff]
  %v15 = vld [vmem:[%s0 + $0x8] sm:$0xff]
  %v16 = vld [vmem:[%s0 + $0x10] sm:$0xff]
  %v17 = vld [vmem:[%s1] sm:$0xff]
  %v18 = vld [vmem:[%s1 + $0x8] sm:$0xff]
  %v19 = vld [vmem:[%s1 + $0x10] sm:$0xff]
  %v20 = vld [vmem:[%s1 + $0x18] sm:$0xff]
  %v21 = vld [vmem:[%s1 + $0x20] sm:$0xff]
  %v22 = vld [vmem:[%s1 + $0x28] sm:$0xff]
  %v23 = vld [vmem:[%s1 + $0x30] sm:$0xff]
  %v24 = vld [vmem:[%s1 + $0x38] sm:$0xff]
  %v25 = vld [vmem:[%s1 + $0x40] sm:$0xff]
  %v26 = vld [vmem:[%s1 + $0x48] sm:$0xff]
  %v27 = vld [vmem:[%s1 + $0x50] sm:$0xff]
  %v28 = vld [vmem:[%s1 + $0x58] sm:$0xff]
  %v29 = vld [vmem:[%s1 + $0x60] sm:$0xff]
  %v30 = vld [vmem:[%s1 + $0x68] sm:$0xff]
  %v31 = vld [vmem:[%s1 + $0x70] sm:$0xff]
  %v32 = vld [vmem:[%s1 + $0x78] sm:$0xff]
  %v33 = vld [vmem:[%s1 + $0x80] sm:$0xff]
  %v34 = vld [vmem:[%s1 + $0x88] sm:$0xff]
  %v35 = vld [vmem:[%s1 + $0x90] sm:$0xff]
  %v36 = vld [vmem:[%s1 + $0x98] sm:$0xff]
  %v37 = vld [vmem:[%s1 + $0xa0] sm:$0xff]
  %v38 = vld [vmem:[%s1 + $0xa8] sm:$0xff]
  %v39 = vld [vmem:[%s1 + $0xb0] sm:$0xff]
  %v40 = vld [vmem:[%s1 + $0xb8] sm:$0xff]
  %v41 = vld [vmem:[%s1 + $0xc0] sm:$0xff]
  %v42 = vld [vmem:[%s1 + $0xc8] sm:$0xff]
  %v43 = vld [vmem:[%s1 + $0xd0] sm:$0xff]
  %v44 = vld [vmem:[%s1 + $0xd8] sm:$0xff]
  %v45 = vld [vmem:[%s1 + $0xe0] sm:$0xff]
  %v46 = vld [vmem:[%s1 + $0xe8] sm:$0xff]
  %v47 = vld [vmem:[%s1 + $0xf0] sm:$0xff]
  %v48 = vld [vmem:[%s1 + $0xf8] sm:$0xff]
  %v49 = vld [vmem:[%s1 + $0x100] sm:$0xff]
  %v50 = vld [vmem:[%s1 + $0x108] sm:$0xff]
  %v51 = vld [vmem:[%s1 + $0x110] sm:$0xff]
  %v52 = vld [vmem:[%s1 + $0x118] sm:$0xff]
  %v53 = vld [vmem:[%s1 + $0x120] sm:$0xff]
  %v54 = vld [vmem:[%s1 + $0x128] sm:$0xff]
  %v55 = vld [vmem:[%s1 + $0x130] sm:$0xff]
  %v56 = vld [vmem:[%s1 + $0x138] sm:$0xff]
  %v57 = vld [vmem:[%s1 + $0x140] sm:$0xff]
  %v58 = vld [vmem:[%s1 + $0x148] sm:$0xff]
  %v59 = vld [vmem:[%s1 + $0x150] sm:$0xff]
  %v60 = vld [vmem:[%s1 + $0x158] sm:$0xff]
  %v61 = vld [vmem:[%s1 + $0x160] sm:$0xff]
  %v62 = vld [vmem:[%s1 + $0x168] sm:$0xff]
  %v63 = vld [vmem:[%s1 + $0x170] sm:$0xff]
  %v64 = vld [vmem:[%s1 + $0x178] sm:$0xff]
  %v65 = vld [vmem:[%s2] sm:$0x1]
  %v67 = vlaneseq
  %v68 = vshrl.u32 %v67, 7
  %v69 = vsub.s32 0, %v68
  %v70 = vrot.slane %v65, %v69
  %72 = vmatprep.subr.mxu0 0.0
  %73 = vmatpush1.msra.mxu0 %v32
  %74 = vmatprep.subr.mxu0 0.0
  %75 = vmatpush1.msra.mxu0 %v31
  %76 = vmatprep.subr.mxu0 0.0
  %77 = vmatpush1.msra.mxu0 %v30
  %78 = vmatprep.subr.mxu0 0.0
  %79 = vmatpush1.msra.mxu0 %v29
  %80 = vmatprep.subr.mxu0 0.0
  %81 = vmatpush1.msra.mxu0 %v28
  %82 = vmatprep.subr.mxu0 0.0
  %83 = vmatpush1.msra.mxu0 %v27
  %84 = vmatprep.subr.mxu0 0.0
  %85 = vmatpush1.msra.mxu0 %v26
  %86 = vmatprep.subr.mxu0 0.0
  %87 = vmatpush1.msra.mxu0 %v25
  %88 = vmatprep.subr.mxu0 0.0
  %89 = vmatpush1.msra.mxu0 %v24
  %90 = vmatprep.subr.mxu0 0.0
  %91 = vmatpush1.msra.mxu0 %v23
  %92 = vmatprep.subr.mxu0 0.0
  %93 = vmatpush1.msra.mxu0 %v22
  %94 = vmatprep.subr.mxu0 0.0
  %95 = vmatpush1.msra.mxu0 %v21
  %96 = vmatprep.subr.mxu0 0.0
  %97 = vmatpush1.msra.mxu0 %v20
  %98 = vmatprep.subr.mxu0 0.0
  %99 = vmatpush1.msra.mxu0 %v19
  %100 = vmatprep.subr.mxu0 0.0
  %101 = vmatpush1.msra.mxu0 %v18
  %102 = vmatprep.subr.mxu0 0.0
  %103 = vmatpush1.msra.mxu0 %v17
  %104 = vmatprep.subr.mxu0 0.0
  %105 = vmatpush2.msra.mxu0 %v48
  %106 = vmatprep.subr.mxu0 0.0
  %107 = vmatpush2.msra.mxu0 %v47
  %108 = vmatprep.subr.mxu0 0.0
  %109 = vmatpush2.msra.mxu0 %v46
  %110 = vmatprep.subr.mxu0 0.0
  %111 = vmatpush2.msra.mxu0 %v45
  %112 = vmatprep.subr.mxu0 0.0
  %113 = vmatpush2.msra.mxu0 %v44
  %114 = vmatprep.subr.mxu0 0.0
  %115 = vmatpush2.msra.mxu0 %v43
  %116 = vmatprep.subr.mxu0 0.0
  %117 = vmatpush2.msra.mxu0 %v42
  %118 = vmatprep.subr.mxu0 0.0
  %119 = vmatpush2.msra.mxu0 %v41
  %120 = vmatprep.subr.mxu0 0.0
  %121 = vmatpush2.msra.mxu0 %v40
  %122 = vmatprep.subr.mxu0 0.0
  %123 = vmatpush2.msra.mxu0 %v39
  %124 = vmatprep.subr.mxu0 0.0
  %125 = vmatpush2.msra.mxu0 %v38
  %126 = vmatprep.subr.mxu0 0.0
  %127 = vmatpush2.msra.mxu0 %v37
  %128 = vmatprep.subr.mxu0 0.0
  %129 = vmatpush2.msra.mxu0 %v36
  %130 = vmatprep.subr.mxu0 0.0
  %131 = vmatpush2.msra.mxu0 %v35
  %132 = vmatprep.subr.mxu0 0.0
  %133 = vmatpush2.msra.mxu0 %v34
  %134 = vmatprep.subr.mxu0 0.0
  %135 = vmatpush2.msra.mxu0 %v33
  %136 = vmatprep.mubr.f32.mxu0 %v15
  %137 = vmatmul.mubr.f32.gmra.mxu0 %v14
  %v138 = vpop.f32.mrf.mxu0
  %v139 = vadd.f32 %v70, %v138
  %v140 = vpop.f32.mrf.mxu0
  %141 = vdwg.mxu0
  %142 = vmatprep.subr.mxu0 0.0
  %143 = vmatpush1.msra.mxu0 %v64
  %144 = vmatprep.subr.mxu0 0.0
  %145 = vmatpush1.msra.mxu0 %v63
  %146 = vmatprep.subr.mxu0 0.0
  %147 = vmatpush1.msra.mxu0 %v62
  %148 = vmatprep.subr.mxu0 0.0
  %149 = vmatpush1.msra.mxu0 %v61
  %150 = vmatprep.subr.mxu0 0.0
  %151 = vmatpush1.msra.mxu0 %v60
  %152 = vmatprep.subr.mxu0 0.0
  %153 = vmatpush1.msra.mxu0 %v59
  %154 = vmatprep.subr.mxu0 0.0
  %155 = vmatpush1.msra.mxu0 %v58
  %156 = vmatprep.subr.mxu0 0.0
  %157 = vmatpush1.msra.mxu0 %v57
  %158 = vmatprep.subr.mxu0 0.0
  %159 = vmatpush1.msra.mxu0 %v56
  %160 = vmatprep.subr.mxu0 0.0
  %161 = vmatpush1.msra.mxu0 %v55
  %162 = vmatprep.subr.mxu0 0.0
  %163 = vmatpush1.msra.mxu0 %v54
  %164 = vmatprep.subr.mxu0 0.0
  %165 = vmatpush1.msra.mxu0 %v53
  %166 = vmatprep.subr.mxu0 0.0
  %167 = vmatpush1.msra.mxu0 %v52
  %168 = vmatprep.subr.mxu0 0.0
  %169 = vmatpush1.msra.mxu0 %v51
  %170 = vmatprep.subr.mxu0 0.0
  %171 = vmatpush1.msra.mxu0 %v50
  %172 = vmatprep.subr.mxu0 0.0
  %173 = vmatpush1.msra.mxu0 %v49
  %174 = vmatprep.subr.mxu0 0.0
  %175 = vmatpush2.msra.mxu0 0.0
  %176 = vmatprep.subr.mxu0 0.0
  %177 = vmatpush2.msra.mxu0 0.0
  %178 = vmatprep.subr.mxu0 0.0
  %179 = vmatpush2.msra.mxu0 0.0
  %180 = vmatprep.subr.mxu0 0.0
  %181 = vmatpush2.msra.mxu0 0.0
  %182 = vmatprep.subr.mxu0 0.0
  %183 = vmatpush2.msra.mxu0 0.0
  %184 = vmatprep.subr.mxu0 0.0
  %185 = vmatpush2.msra.mxu0 0.0
  %186 = vmatprep.subr.mxu0 0.0
  %187 = vmatpush2.msra.mxu0 0.0
  %188 = vmatprep.subr.mxu0 0.0
  %189 = vmatpush2.msra.mxu0 0.0
  %190 = vmatprep.subr.mxu0 0.0
  %191 = vmatpush2.msra.mxu0 0.0
  %192 = vmatprep.subr.mxu0 0.0
  %193 = vmatpush2.msra.mxu0 0.0
  %194 = vmatprep.subr.mxu0 0.0
  %195 = vmatpush2.msra.mxu0 0.0
  %196 = vmatprep.subr.mxu0 0.0
  %197 = vmatpush2.msra.mxu0 0.0
  %198 = vmatprep.subr.mxu0 0.0
  %199 = vmatpush2.msra.mxu0 0.0
  %200 = vmatprep.subr.mxu0 0.0
  %201 = vmatpush2.msra.mxu0 0.0
  %202 = vmatprep.subr.mxu0 0.0
  %203 = vmatpush2.msra.mxu0 0.0
  %204 = vmatprep.subr.mxu0 0.0
  %205 = vmatpush2.msra.mxu0 0.0
  %206 = vmatprep.mubr.f32.mxu0 0.0
  %207 = vmatmul.mubr.f32.gmra.mxu0 %v16
  %v208 = vpop.f32.mrf.mxu0
  %v209 = vadd.f32 %v139, %v208
  %v210 = vpop.f32.mrf.mxu0
  %211 = vdwg.mxu0
  %v212 = vmul.f32 %v209, 0.5
  %v213 = vmul.f32 %v209, 0.70710677
  %v214 = vand.u32 2147483647, %v213
  %v215 = vmul.f32 %v214, 0.3275911
  %v216 = vadd.f32 %v215, 1.0
  %v217 = vrcp.pop %v216
  %v218 = vmul.f32 1.0, %v217
  %v219 = vmul.f32 %v218, 1.0614054
  %v220 = vsub.f32 %v219, 1.4531521
  %v221 = vmul.f32 %v220, %v218
  %v222 = vadd.f32 %v221, 1.4214138
  %v223 = vmul.f32 %v222, %v218
  %v224 = vsub.f32 %v223, 0.28449672
  %v225 = vmul.f32 %v224, %v218
  %v226 = vadd.f32 %v225, 0.2548296
  %v227 = vmul.f32 %v226, %v218
  %v228 = vsub.f32 0.0, %v213
  %v229 = vmul.f32 %v228, %v213
  %v230 = vmul.f32 %v229, 1.442695
  %v231 = vpow.pop %v230
  %v232 = vmul.f32 %v227, %v231
  %v233 = vsub.f32 1.0, %v232
  %vm234 = vcmp.ge.f32.partialorder %v213, 0.0
  %v235 = vsub.f32 0.0, %v233
  %v236 = vsel %vm234, %v233, %v235
  %v237 = vadd.f32 %v236, 1.0
  %v238 = vmul.f32 %v212, %v237
  %239 = vst [vmem:[%s3] sm:$0xff] %v238
  // Predicated region
  $region14: #{_lambda_.23} parent=0 // pred_check
    _
  $region15: #{_lambda_.23} parent=0 // pred_check_branch
    %241 = sbr.rel (0) target = $region17
  $region16: #{_lambda_.23} parent=0 // pred_region
    _
  $region17: #{_lambda_.23} parent=0 // pred_fallthru
    _
  // Predicated region
  $region18: #{_lambda_.23} parent=0 // pred_check
    _
  $region19: #{_lambda_.23} parent=0 // pred_check_branch
    %243 = sbr.rel (0) target = $region21
  $region20: #{_lambda_.23} parent=0 // pred_region
    _
  $region21: #{_lambda_.23} parent=0 // pred_fallthru
    _

// kernel: _lambda_.24
$region0: #{_lambda_.24}
  #allocation0 [shape = 'u32[]', space=smem, size = 0x4, offset = 0x4, fixed_abs, tag = 'smem constant byte address 0x4 - core index']
  #allocation1 [shape = 'u32[144,128]{1,0:T(1,128)}', space=vmem, size = 0x12000, scoped, tag = 'internal scratch']
  %s0 = inlined_call_operand.vmem [shape: f32[8,128], index: 0, kind: input, shape index: {}]
  %s1 = inlined_call_operand.vmem [shape: f32[1,128], index: 1, kind: input, shape index: {}]
  %s2 = inlined_call_operand.vmem [shape: f32[1,128], index: 2, kind: input, shape index: {}]
  %s3 = inlined_call_operand.vmem [shape: f32[128,256], index: 3, kind: input, shape index: {}]
  %s4 = inlined_call_operand.vmem [shape: f32[1,256], index: 4, kind: input, shape index: {}]
  %s5 = inlined_call_operand.vmem [shape: f32[8,256], index: 5, kind: output, shape index: {}]
  %s6 = sld [smem:[#allocation0]]
  $region30: #{_lambda_.24} parent=0
    _
  %s8 = ssub.s32 1, %s6
  %s9 = scalar_select 0, %s8, %s6
  // Predicated region
  $region2: #{_lambda_.24} parent=0 // pred_check
    _
  $region3: #{_lambda_.24} parent=0 // pred_check_branch
    %11 = sbr.rel (0) target = $region5
  $region4: #{_lambda_.24} parent=0 // pred_region
    _
  $region5: #{_lambda_.24} parent=0 // pred_fallthru
    _
  // Predicated region
  $region6: #{_lambda_.24} parent=0 // pred_check
    _
  $region7: #{_lambda_.24} parent=0 // pred_check_branch
    %13 = sbr.rel (0) target = $region9
  $region8: #{_lambda_.24} parent=0 // pred_region
    _
  $region9: #{_lambda_.24} parent=0 // pred_fallthru
    _
  // Predicated region
  $region10: #{_lambda_.24} parent=0 // pred_check
    _
  $region11: #{_lambda_.24} parent=0 // pred_check_branch
    %15 = sbr.rel (0) target = $region13
  $region12: #{_lambda_.24} parent=0 // pred_region
    _
  $region13: #{_lambda_.24} parent=0 // pred_fallthru
    _
  // Predicated region
  $region14: #{_lambda_.24} parent=0 // pred_check
    _
  $region15: #{_lambda_.24} parent=0 // pred_check_branch
    %17 = sbr.rel (0) target = $region17
  $region16: #{_lambda_.24} parent=0 // pred_region
    _
  $region17: #{_lambda_.24} parent=0 // pred_fallthru
    _
  // Predicated region
  $region18: #{_lambda_.24} parent=0 // pred_check
    _
  $region19: #{_lambda_.24} parent=0 // pred_check_branch
    %19 = sbr.rel (0) target = $region21
  $region20: #{_lambda_.24} parent=0 // pred_region
    _
  $region21: #{_lambda_.24} parent=0 // pred_fallthru
    _
  %v20 = vld [vmem:[%s0] sm:$0xff]
  %21 = vadd.xlane.f32.xlu0 %v20
  %v22 = vpop.xlane.xlu0 %21
  %v23 = vrcp.pop 64.0
  %v24 = vmul.f32 %v22, %v23
  %v25 = vmul.f32 %v20, %v20
  %26 = vadd.xlane.f32.xlu0 %v25
  %v27 = vpop.xlane.xlu0 %26
  %v28 = vmul.f32 %v27, %v23
  %v29 = vmul.f32 %v24, %v24
  %v30 = vsub.f32 %v28, %v29
  %v31 = vsub.f32 %v20, %v24
  %v32 = vadd.f32 %v30, 1e-05
  %v33 = vrsqrt.pop %v32
  %v34 = vmul.f32 %v31, %v33
  %v35 = vld [vmem:[%s1] sm:$0x1]
  %v37 = vlaneseq
  %v38 = vshrl.u32 %v37, 7
  %v39 = vsub.s32 0, %v38
  %v40 = vrot.slane %v35, %v39
  %v42 = vmul.f32 %v34, %v40
  %v43 = vld [vmem:[%s2] sm:$0x1]
  %v45 = vlaneseq
  %v46 = vshrl.u32 %v45, 7
  %v47 = vsub.s32 0, %v46
  %v48 = vrot.slane %v43, %v47
  %v50 = vadd.f32 %v42, %v48
  %v51 = vld [vmem:[%s3] sm:$0xff]
  %v52 = vld [vmem:[%s3 + $0x8] sm:$0xff]
  %v53 = vld [vmem:[%s3 + $0x10] sm:$0xff]
  %v54 = vld [vmem:[%s3 + $0x18] sm:$0xff]
  %v55 = vld [vmem:[%s3 + $0x20] sm:$0xff]
  %v56 = vld [vmem:[%s3 + $0x28] sm:$0xff]
  %v57 = vld [vmem:[%s3 + $0x30] sm:$0xff]
  %v58 = vld [vmem:[%s3 + $0x38] sm:$0xff]
  %v59 = vld [vmem:[%s3 + $0x40] sm:$0xff]
  %v60 = vld [vmem:[%s3 + $0x48] sm:$0xff]
  %v61 = vld [vmem:[%s3 + $0x50] sm:$0xff]
  %v62 = vld [vmem:[%s3 + $0x58] sm:$0xff]
  %v63 = vld [vmem:[%s3 + $0x60] sm:$0xff]
  %v64 = vld [vmem:[%s3 + $0x68] sm:$0xff]
  %v65 = vld [vmem:[%s3 + $0x70] sm:$0xff]
  %v66 = vld [vmem:[%s3 + $0x78] sm:$0xff]
  %v67 = vld [vmem:[%s3 + $0x80] sm:$0xff]
  %v68 = vld [vmem:[%s3 + $0x88] sm:$0xff]
  %v69 = vld [vmem:[%s3 + $0x90] sm:$0xff]
  %v70 = vld [vmem:[%s3 + $0x98] sm:$0xff]
  %v71 = vld [vmem:[%s3 + $0xa0] sm:$0xff]
  %v72 = vld [vmem:[%s3 + $0xa8] sm:$0xff]
  %v73 = vld [vmem:[%s3 + $0xb0] sm:$0xff]
  %v74 = vld [vmem:[%s3 + $0xb8] sm:$0xff]
  %v75 = vld [vmem:[%s3 + $0xc0] sm:$0xff]
  %v76 = vld [vmem:[%s3 + $0xc8] sm:$0xff]
  %v77 = vld [vmem:[%s3 + $0xd0] sm:$0xff]
  %v78 = vld [vmem:[%s3 + $0xd8] sm:$0xff]
  %v79 = vld [vmem:[%s3 + $0xe0] sm:$0xff]
  %v80 = vld [vmem:[%s3 + $0xe8] sm:$0xff]
  %v81 = vld [vmem:[%s3 + $0xf0] sm:$0xff]
  %v82 = vld [vmem:[%s3 + $0xf8] sm:$0xff]
  %v83 = vld [vmem:[%s4] sm:$0x3]
  %v85 = vlaneseq
  %v86 = vshrl.u32 %v85, 7
  %v87 = vsub.s32 0, %v86
  %v88 = vrot.slane %v83, %v87
  %v89 = vlaneseq
  %v90 = vshrl.u32 %v89, 7
  %v91 = vsub.s32 1, %v90
  %v92 = vrot.slane %v83, %v91
  %95 = vmatprep.subr.mxu0 %v82
  %96 = vmatpush1.msra.mxu0 %v81
  %97 = vmatprep.subr.mxu0 %v80
  %98 = vmatpush1.msra.mxu0 %v79
  %99 = vmatprep.subr.mxu0 %v78
  %100 = vmatpush1.msra.mxu0 %v77
  %101 = vmatprep.subr.mxu0 %v76
  %102 = vmatpush1.msra.mxu0 %v75
  %103 = vmatprep.subr.mxu0 %v74
  %104 = vmatpush1.msra.mxu0 %v73
  %105 = vmatprep.subr.mxu0 %v72
  %106 = vmatpush1.msra.mxu0 %v71
  %107 = vmatprep.subr.mxu0 %v70
  %108 = vmatpush1.msra.mxu0 %v69
  %109 = vmatprep.subr.mxu0 %v68
  %110 = vmatpush1.msra.mxu0 %v67
  %111 = vmatprep.subr.mxu0 %v66
  %112 = vmatpush1.msra.mxu0 %v65
  %113 = vmatprep.subr.mxu0 %v64
  %114 = vmatpush1.msra.mxu0 %v63
  %115 = vmatprep.subr.mxu0 %v62
  %116 = vmatpush1.msra.mxu0 %v61
  %117 = vmatprep.subr.mxu0 %v60
  %118 = vmatpush1.msra.mxu0 %v59
  %119 = vmatprep.subr.mxu0 %v58
  %120 = vmatpush1.msra.mxu0 %v57
  %121 = vmatprep.subr.mxu0 %v56
  %122 = vmatpush1.msra.mxu0 %v55
  %123 = vmatprep.subr.mxu0 %v54
  %124 = vmatpush1.msra.mxu0 %v53
  %125 = vmatprep.subr.mxu0 %v52
  %126 = vmatpush1.msra.mxu0 %v51
  %127 = vmatprep.subr.mxu0 0.0
  %128 = vmatpush2.msra.mxu0 0.0
  %129 = vmatprep.subr.mxu0 0.0
  %130 = vmatpush2.msra.mxu0 0.0
  %131 = vmatprep.subr.mxu0 0.0
  %132 = vmatpush2.msra.mxu0 0.0
  %133 = vmatprep.subr.mxu0 0.0
  %134 = vmatpush2.msra.mxu0 0.0
  %135 = vmatprep.subr.mxu0 0.0
  %136 = vmatpush2.msra.mxu0 0.0
  %137 = vmatprep.subr.mxu0 0.0
  %138 = vmatpush2.msra.mxu0 0.0
  %139 = vmatprep.subr.mxu0 0.0
  %140 = vmatpush2.msra.mxu0 0.0
  %141 = vmatprep.subr.mxu0 0.0
  %142 = vmatpush2.msra.mxu0 0.0
  %143 = vmatprep.subr.mxu0 0.0
  %144 = vmatpush2.msra.mxu0 0.0
  %145 = vmatprep.subr.mxu0 0.0
  %146 = vmatpush2.msra.mxu0 0.0
  %147 = vmatprep.subr.mxu0 0.0
  %148 = vmatpush2.msra.mxu0 0.0
  %149 = vmatprep.subr.mxu0 0.0
  %150 = vmatpush2.msra.mxu0 0.0
  %151 = vmatprep.subr.mxu0 0.0
  %152 = vmatpush2.msra.mxu0 0.0
  %153 = vmatprep.subr.mxu0 0.0
  %154 = vmatpush2.msra.mxu0 0.0
  %155 = vmatprep.subr.mxu0 0.0
  %156 = vmatpush2.msra.mxu0 0.0
  %157 = vmatprep.subr.mxu0 0.0
  %158 = vmatpush2.msra.mxu0 0.0
  %159 = vmatprep.mubr.f32.mxu0 0.0
  %160 = vmatmul.mubr.f32.gmra.mxu0 %v50
  %v161 = vpop.f32.mrf.mxu0
  %v162 = vadd.f32 %v88, %v161
  %v163 = vpop.f32.mrf.mxu0
  %v164 = vadd.f32 %v92, %v163
  %165 = vdwg.mxu0
  %166 = vst [vmem:[%s5] sm:$0xff] %v162
  %167 = vst [vmem:[%s5 + $0x8] sm:$0xff] %v164
  // Predicated region
  $region22: #{_lambda_.24} parent=0 // pred_check
    _
  $region23: #{_lambda_.24} parent=0 // pred_check_branch
    %169 = sbr.rel (0) target = $region25
  $region24: #{_lambda_.24} parent=0 // pred_region
    _
  $region25: #{_lambda_.24} parent=0 // pred_fallthru
    _
  // Predicated region
  $region26: #{_lambda_.24} parent=0 // pred_check
    _
  $region27: #{_lambda_.24} parent=0 // pred_check_branch
    %171 = sbr.rel (0) target = $region29
  $region28: #{_lambda_.24} parent=0 // pred_region
    _
  $region29: #{_lambda_.24} parent=0 // pred_fallthru
    _

// kernel: _lambda_.25
$region0: #{_lambda_.25}
  #allocation0 [shape = 'u32[]', space=smem, size = 0x4, offset = 0x4, fixed_abs, tag = 'smem constant byte address 0x4 - core index']
  #allocation1 [shape = 'u32[144,128]{1,0:T(1,128)}', space=vmem, size = 0x12000, scoped, tag = 'internal scratch']
  %s0 = inlined_call_operand.vmem [shape: f32[8,128], index: 0, kind: input, shape index: {}]
  %s1 = inlined_call_operand.vmem [shape: f32[128,128], index: 1, kind: input, shape index: {}]
  %s2 = inlined_call_operand.vmem [shape: f32[1,128], index: 2, kind: input, shape index: {}]
  %s3 = inlined_call_operand.vmem [shape: f32[8,128], index: 3, kind: input, shape index: {}]
  %s4 = inlined_call_operand.vmem [shape: f32[8,128], index: 4, kind: output, shape index: {}]
  %s5 = sld [smem:[#allocation0]]
  $region26: #{_lambda_.25} parent=0
    _
  %s7 = ssub.s32 1, %s5
  %s8 = scalar_select 0, %s7, %s5
  // Predicated region
  $region2: #{_lambda_.25} parent=0 // pred_check
    _
  $region3: #{_lambda_.25} parent=0 // pred_check_branch
    %10 = sbr.rel (0) target = $region5
  $region4: #{_lambda_.25} parent=0 // pred_region
    _
  $region5: #{_lambda_.25} parent=0 // pred_fallthru
    _
  // Predicated region
  $region6: #{_lambda_.25} parent=0 // pred_check
    _
  $region7: #{_lambda_.25} parent=0 // pred_check_branch
    %12 = sbr.rel (0) target = $region9
  $region8: #{_lambda_.25} parent=0 // pred_region
    _
  $region9: #{_lambda_.25} parent=0 // pred_fallthru
    _
  // Predicated region
  $region10: #{_lambda_.25} parent=0 // pred_check
    _
  $region11: #{_lambda_.25} parent=0 // pred_check_branch
    %14 = sbr.rel (0) target = $region13
  $region12: #{_lambda_.25} parent=0 // pred_region
    _
  $region13: #{_lambda_.25} parent=0 // pred_fallthru
    _
  // Predicated region
  $region14: #{_lambda_.25} parent=0 // pred_check
    _
  $region15: #{_lambda_.25} parent=0 // pred_check_branch
    %16 = sbr.rel (0) target = $region17
  $region16: #{_lambda_.25} parent=0 // pred_region
    _
  $region17: #{_lambda_.25} parent=0 // pred_fallthru
    _
  %v17 = vld [vmem:[%s0] sm:$0xff]
  %v18 = vld [vmem:[%s1] sm:$0xff]
  %v19 = vld [vmem:[%s1 + $0x8] sm:$0xff]
  %v20 = vld [vmem:[%s1 + $0x10] sm:$0xff]
  %v21 = vld [vmem:[%s1 + $0x18] sm:$0xff]
  %v22 = vld [vmem:[%s1 + $0x20] sm:$0xff]
  %v23 = vld [vmem:[%s1 + $0x28] sm:$0xff]
  %v24 = vld [vmem:[%s1 + $0x30] sm:$0xff]
  %v25 = vld [vmem:[%s1 + $0x38] sm:$0xff]
  %v26 = vld [vmem:[%s1 + $0x40] sm:$0xff]
  %v27 = vld [vmem:[%s1 + $0x48] sm:$0xff]
  %v28 = vld [vmem:[%s1 + $0x50] sm:$0xff]
  %v29 = vld [vmem:[%s1 + $0x58] sm:$0xff]
  %v30 = vld [vmem:[%s1 + $0x60] sm:$0xff]
  %v31 = vld [vmem:[%s1 + $0x68] sm:$0xff]
  %v32 = vld [vmem:[%s1 + $0x70] sm:$0xff]
  %v33 = vld [vmem:[%s1 + $0x78] sm:$0xff]
  %v34 = vld [vmem:[%s2] sm:$0x1]
  %v36 = vlaneseq
  %v37 = vshrl.u32 %v36, 7
  %v38 = vsub.s32 0, %v37
  %v39 = vrot.slane %v34, %v38
  %41 = vmatprep.subr.mxu0 0.0
  %42 = vmatpush1.msra.mxu0 %v33
  %43 = vmatprep.subr.mxu0 0.0
  %44 = vmatpush1.msra.mxu0 %v32
  %45 = vmatprep.subr.mxu0 0.0
  %46 = vmatpush1.msra.mxu0 %v31
  %47 = vmatprep.subr.mxu0 0.0
  %48 = vmatpush1.msra.mxu0 %v30
  %49 = vmatprep.subr.mxu0 0.0
  %50 = vmatpush1.msra.mxu0 %v29
  %51 = vmatprep.subr.mxu0 0.0
  %52 = vmatpush1.msra.mxu0 %v28
  %53 = vmatprep.subr.mxu0 0.0
  %54 = vmatpush1.msra.mxu0 %v27
  %55 = vmatprep.subr.mxu0 0.0
  %56 = vmatpush1.msra.mxu0 %v26
  %57 = vmatprep.subr.mxu0 0.0
  %58 = vmatpush1.msra.mxu0 %v25
  %59 = vmatprep.subr.mxu0 0.0
  %60 = vmatpush1.msra.mxu0 %v24
  %61 = vmatprep.subr.mxu0 0.0
  %62 = vmatpush1.msra.mxu0 %v23
  %63 = vmatprep.subr.mxu0 0.0
  %64 = vmatpush1.msra.mxu0 %v22
  %65 = vmatprep.subr.mxu0 0.0
  %66 = vmatpush1.msra.mxu0 %v21
  %67 = vmatprep.subr.mxu0 0.0
  %68 = vmatpush1.msra.mxu0 %v20
  %69 = vmatprep.subr.mxu0 0.0
  %70 = vmatpush1.msra.mxu0 %v19
  %71 = vmatprep.subr.mxu0 0.0
  %72 = vmatpush1.msra.mxu0 %v18
  %73 = vmatprep.subr.mxu0 0.0
  %74 = vmatpush2.msra.mxu0 0.0
  %75 = vmatprep.subr.mxu0 0.0
  %76 = vmatpush2.msra.mxu0 0.0
  %77 = vmatprep.subr.mxu0 0.0
  %78 = vmatpush2.msra.mxu0 0.0
  %79 = vmatprep.subr.mxu0 0.0
  %80 = vmatpush2.msra.mxu0 0.0
  %81 = vmatprep.subr.mxu0 0.0
  %82 = vmatpush2.msra.mxu0 0.0
  %83 = vmatprep.subr.mxu0 0.0
  %84 = vmatpush2.msra.mxu0 0.0
  %85 = vmatprep.subr.mxu0 0.0
  %86 = vmatpush2.msra.mxu0 0.0
  %87 = vmatprep.subr.mxu0 0.0
  %88 = vmatpush2.msra.mxu0 0.0
  %89 = vmatprep.subr.mxu0 0.0
  %90 = vmatpush2.msra.mxu0 0.0
  %91 = vmatprep.subr.mxu0 0.0
  %92 = vmatpush2.msra.mxu0 0.0
  %93 = vmatprep.subr.mxu0 0.0
  %94 = vmatpush2.msra.mxu0 0.0
  %95 = vmatprep.subr.mxu0 0.0
  %96 = vmatpush2.msra.mxu0 0.0
  %97 = vmatprep.subr.mxu0 0.0
  %98 = vmatpush2.msra.mxu0 0.0
  %99 = vmatprep.subr.mxu0 0.0
  %100 = vmatpush2.msra.mxu0 0.0
  %101 = vmatprep.subr.mxu0 0.0
  %102 = vmatpush2.msra.mxu0 0.0
  %103 = vmatprep.subr.mxu0 0.0
  %104 = vmatpush2.msra.mxu0 0.0
  %105 = vmatprep.mubr.f32.mxu0 0.0
  %106 = vmatmul.mubr.f32.gmra.mxu0 %v17
  %v107 = vpop.f32.mrf.mxu0
  %v108 = vadd.f32 %v39, %v107
  %v109 = vpop.f32.mrf.mxu0
  %110 = vdwg.mxu0
  %v111 = vld [vmem:[%s3] sm:$0xff]
  %v112 = vadd.f32 %v108, %v111
  %113 = vst [vmem:[%s4] sm:$0xff] %v112
  // Predicated region
  $region18: #{_lambda_.25} parent=0 // pred_check
    _
  $region19: #{_lambda_.25} parent=0 // pred_check_branch
    %115 = sbr.rel (0) target = $region21
  $region20: #{_lambda_.25} parent=0 // pred_region
    _
  $region21: #{_lambda_.25} parent=0 // pred_fallthru
    _
  // Predicated region
  $region22: #{_lambda_.25} parent=0 // pred_check
    _
  $region23: #{_lambda_.25} parent=0 // pred_check_branch
    %117 = sbr.rel (0) target = $region25
  $region24: #{_lambda_.25} parent=0 // pred_region
    _
  $region25: #{_lambda_.25} parent=0 // pred_fallthru
    _

// kernel: _lambda_.26
$region0: #{_lambda_.26}
  #allocation0 [shape = 'u32[]', space=smem, size = 0x4, offset = 0x4, fixed_abs, tag = 'smem constant byte address 0x4 - core index']
  #allocation1 [shape = 'u32[144,128]{1,0:T(1,128)}', space=vmem, size = 0x12000, scoped, tag = 'internal scratch']
  %s0 = inlined_call_operand.vmem [shape: f32[8,128], index: 0, kind: input, shape index: {}]
  %s1 = inlined_call_operand.vmem [shape: f32[1,128], index: 1, kind: input, shape index: {}]
  %s2 = inlined_call_operand.vmem [shape: f32[1,128], index: 2, kind: input, shape index: {}]
  %s3 = inlined_call_operand.vmem [shape: f32[8,128], index: 3, kind: output, shape index: {}]
  %s4 = sld [smem:[#allocation0]]
  $region22: #{_lambda_.26} parent=0
    _
  %s6 = ssub.s32 1, %s4
  %s7 = scalar_select 0, %s6, %s4
  // Predicated region
  $region2: #{_lambda_.26} parent=0 // pred_check
    _
  $region3: #{_lambda_.26} parent=0 // pred_check_branch
    %9 = sbr.rel (0) target = $region5
  $region4: #{_lambda_.26} parent=0 // pred_region
    _
  $region5: #{_lambda_.26} parent=0 // pred_fallthru
    _
  // Predicated region
  $region6: #{_lambda_.26} parent=0 // pred_check
    _
  $region7: #{_lambda_.26} parent=0 // pred_check_branch
    %11 = sbr.rel (0) target = $region9
  $region8: #{_lambda_.26} parent=0 // pred_region
    _
  $region9: #{_lambda_.26} parent=0 // pred_fallthru
    _
  // Predicated region
  $region10: #{_lambda_.26} parent=0 // pred_check
    _
  $region11: #{_lambda_.26} parent=0 // pred_check_branch
    %13 = sbr.rel (0) target = $region13
  $region12: #{_lambda_.26} parent=0 // pred_region
    _
  $region13: #{_lambda_.26} parent=0 // pred_fallthru
    _
  %v14 = vld [vmem:[%s0] sm:$0xff]
  %15 = vadd.xlane.f32.xlu0 %v14
  %v16 = vpop.xlane.xlu0 %15
  %v17 = vrcp.pop 64.0
  %v18 = vmul.f32 %v16, %v17
  %v19 = vmul.f32 %v14, %v14
  %20 = vadd.xlane.f32.xlu0 %v19
  %v21 = vpop.xlane.xlu0 %20
  %v22 = vmul.f32 %v21, %v17
  %v23 = vmul.f32 %v18, %v18
  %v24 = vsub.f32 %v22, %v23
  %v25 = vsub.f32 %v14, %v18
  %v26 = vadd.f32 %v24, 1e-05
  %v27 = vrsqrt.pop %v26
  %v28 = vmul.f32 %v25, %v27
  %v29 = vld [vmem:[%s1] sm:$0x1]
  %v31 = vlaneseq
  %v32 = vshrl.u32 %v31, 7
  %v33 = vsub.s32 0, %v32
  %v34 = vrot.slane %v29, %v33
  %v36 = vmul.f32 %v28, %v34
  %v37 = vld [vmem:[%s2] sm:$0x1]
  %v39 = vlaneseq
  %v40 = vshrl.u32 %v39, 7
  %v41 = vsub.s32 0, %v40
  %v42 = vrot.slane %v37, %v41
  %v44 = vadd.f32 %v36, %v42
  %45 = vst [vmem:[%s3] sm:$0xff] %v44
  // Predicated region
  $region14: #{_lambda_.26} parent=0 // pred_check
    _
  $region15: #{_lambda_.26} parent=0 // pred_check_branch
    %47 = sbr.rel (0) target = $region17
  $region16: #{_lambda_.26} parent=0 // pred_region
    _
  $region17: #{_lambda_.26} parent=0 // pred_fallthru
    _
  // Predicated region
  $region18: #{_lambda_.26} parent=0 // pred_check
    _
  $region19: #{_lambda_.26} parent=0 // pred_check_branch
    %49 = sbr.rel (0) target = $region21
  $region20: #{_lambda_.26} parent=0 // pred_region
    _
  $region21: #{_lambda_.26} parent=0 // pred_fallthru
    _

// kernel: _lambda_.28
$region0: #{_lambda_.28}
  #allocation0 [shape = 'u32[]', space=smem, size = 0x4, offset = 0x4, fixed_abs, tag = 'smem constant byte address 0x4 - core index']
  #allocation1 [shape = 'u32[144,128]{1,0:T(1,128)}', space=vmem, size = 0x12000, scoped, tag = 'internal scratch']
  %s0 = inlined_call_operand.vmem [shape: f32[32,128], index: 0, kind: input, shape index: {}]
  %s1 = inlined_call_operand.vmem [shape: f32[128,128], index: 1, kind: input, shape index: {}]
  %s2 = inlined_call_operand.vmem [shape: f32[1,128], index: 2, kind: input, shape index: {}]
  %s3 = inlined_call_operand.vmem [shape: f32[32,128], index: 3, kind: output, shape index: {}]
  %s4 = sld [smem:[#allocation0]]
  $region22: #{_lambda_.28} parent=0
    _
  %s6 = ssub.s32 1, %s4
  %s7 = scalar_select 0, %s6, %s4
  // Predicated region
  $region2: #{_lambda_.28} parent=0 // pred_check
    _
  $region3: #{_lambda_.28} parent=0 // pred_check_branch
    %9 = sbr.rel (0) target = $region5
  $region4: #{_lambda_.28} parent=0 // pred_region
    _
  $region5: #{_lambda_.28} parent=0 // pred_fallthru
    _
  // Predicated region
  $region6: #{_lambda_.28} parent=0 // pred_check
    _
  $region7: #{_lambda_.28} parent=0 // pred_check_branch
    %11 = sbr.rel (0) target = $region9
  $region8: #{_lambda_.28} parent=0 // pred_region
    _
  $region9: #{_lambda_.28} parent=0 // pred_fallthru
    _
  // Predicated region
  $region10: #{_lambda_.28} parent=0 // pred_check
    _
  $region11: #{_lambda_.28} parent=0 // pred_check_branch
    %13 = sbr.rel (0) target = $region13
  $region12: #{_lambda_.28} parent=0 // pred_region
    _
  $region13: #{_lambda_.28} parent=0 // pred_fallthru
    _
  %v14 = vld [vmem:[%s0] sm:$0xff]
  %v15 = vld [vmem:[%s0 + $0x8] sm:$0xff]
  %v16 = vld [vmem:[%s0 + $0x10] sm:$0xff]
  %v17 = vld [vmem:[%s0 + $0x18] sm:$0xff]
  %v18 = vld [vmem:[%s1] sm:$0xff]
  %v19 = vld [vmem:[%s1 + $0x8] sm:$0xff]
  %v20 = vld [vmem:[%s1 + $0x10] sm:$0xff]
  %v21 = vld [vmem:[%s1 + $0x18] sm:$0xff]
  %v22 = vld [vmem:[%s1 + $0x20] sm:$0xff]
  %v23 = vld [vmem:[%s1 + $0x28] sm:$0xff]
  %v24 = vld [vmem:[%s1 + $0x30] sm:$0xff]
  %v25 = vld [vmem:[%s1 + $0x38] sm:$0xff]
  %v26 = vld [vmem:[%s1 + $0x40] sm:$0xff]
  %v27 = vld [vmem:[%s1 + $0x48] sm:$0xff]
  %v28 = vld [vmem:[%s1 + $0x50] sm:$0xff]
  %v29 = vld [vmem:[%s1 + $0x58] sm:$0xff]
  %v30 = vld [vmem:[%s1 + $0x60] sm:$0xff]
  %v31 = vld [vmem:[%s1 + $0x68] sm:$0xff]
  %v32 = vld [vmem:[%s1 + $0x70] sm:$0xff]
  %v33 = vld [vmem:[%s1 + $0x78] sm:$0xff]
  %v34 = vld [vmem:[%s2] sm:$0x1]
  %v36 = vlaneseq
  %v37 = vshrl.u32 %v36, 7
  %v38 = vsub.s32 0, %v37
  %v39 = vrot.slane %v34, %v38
  %41 = vmatprep.subr.mxu0 0.0
  %42 = vmatpush1.msra.mxu0 %v33
  %43 = vmatprep.subr.mxu0 0.0
  %44 = vmatpush1.msra.mxu0 %v32
  %45 = vmatprep.subr.mxu0 0.0
  %46 = vmatpush1.msra.mxu0 %v31
  %47 = vmatprep.subr.mxu0 0.0
  %48 = vmatpush1.msra.mxu0 %v30
  %49 = vmatprep.subr.mxu0 0.0
  %50 = vmatpush1.msra.mxu0 %v29
  %51 = vmatprep.subr.mxu0 0.0
  %52 = vmatpush1.msra.mxu0 %v28
  %53 = vmatprep.subr.mxu0 0.0
  %54 = vmatpush1.msra.mxu0 %v27
  %55 = vmatprep.subr.mxu0 0.0
  %56 = vmatpush1.msra.mxu0 %v26
  %57 = vmatprep.subr.mxu0 0.0
  %58 = vmatpush1.msra.mxu0 %v25
  %59 = vmatprep.subr.mxu0 0.0
  %60 = vmatpush1.msra.mxu0 %v24
  %61 = vmatprep.subr.mxu0 0.0
  %62 = vmatpush1.msra.mxu0 %v23
  %63 = vmatprep.subr.mxu0 0.0
  %64 = vmatpush1.msra.mxu0 %v22
  %65 = vmatprep.subr.mxu0 0.0
  %66 = vmatpush1.msra.mxu0 %v21
  %67 = vmatprep.subr.mxu0 0.0
  %68 = vmatpush1.msra.mxu0 %v20
  %69 = vmatprep.subr.mxu0 0.0
  %70 = vmatpush1.msra.mxu0 %v19
  %71 = vmatprep.subr.mxu0 0.0
  %72 = vmatpush1.msra.mxu0 %v18
  %73 = vmatprep.subr.mxu0 0.0
  %74 = vmatpush2.msra.mxu0 0.0
  %75 = vmatprep.subr.mxu0 0.0
  %76 = vmatpush2.msra.mxu0 0.0
  %77 = vmatprep.subr.mxu0 0.0
  %78 = vmatpush2.msra.mxu0 0.0
  %79 = vmatprep.subr.mxu0 0.0
  %80 = vmatpush2.msra.mxu0 0.0
  %81 = vmatprep.subr.mxu0 0.0
  %82 = vmatpush2.msra.mxu0 0.0
  %83 = vmatprep.subr.mxu0 0.0
  %84 = vmatpush2.msra.mxu0 0.0
  %85 = vmatprep.subr.mxu0 0.0
  %86 = vmatpush2.msra.mxu0 0.0
  %87 = vmatprep.subr.mxu0 0.0
  %88 = vmatpush2.msra.mxu0 0.0
  %89 = vmatprep.subr.mxu0 0.0
  %90 = vmatpush2.msra.mxu0 0.0
  %91 = vmatprep.subr.mxu0 0.0
  %92 = vmatpush2.msra.mxu0 0.0
  %93 = vmatprep.subr.mxu0 0.0
  %94 = vmatpush2.msra.mxu0 0.0
  %95 = vmatprep.subr.mxu0 0.0
  %96 = vmatpush2.msra.mxu0 0.0
  %97 = vmatprep.subr.mxu0 0.0
  %98 = vmatpush2.msra.mxu0 0.0
  %99 = vmatprep.subr.mxu0 0.0
  %100 = vmatpush2.msra.mxu0 0.0
  %101 = vmatprep.subr.mxu0 0.0
  %102 = vmatpush2.msra.mxu0 0.0
  %103 = vmatprep.subr.mxu0 0.0
  %104 = vmatpush2.msra.mxu0 0.0
  %105 = vmatprep.mubr.f32.mxu0 0.0
  %106 = vmatmul.mubr.f32.gmra.mxu0 %v14
  %v107 = vpop.f32.mrf.mxu0
  %v108 = vadd.f32 %v39, %v107
  %v109 = vpop.f32.mrf.mxu0
  %110 = vmatprep.mubr.f32.mxu0 0.0
  %111 = vmatmul.mubr.f32.gmra.mxu0 %v15
  %v112 = vpop.f32.mrf.mxu0
  %v113 = vadd.f32 %v39, %v112
  %v114 = vpop.f32.mrf.mxu0
  %115 = vmatprep.mubr.f32.mxu0 0.0
  %116 = vmatmul.mubr.f32.gmra.mxu0 %v16
  %v117 = vpop.f32.mrf.mxu0
  %v118 = vadd.f32 %v39, %v117
  %v119 = vpop.f32.mrf.mxu0
  %120 = vmatprep.mubr.f32.mxu0 0.0
  %121 = vmatmul.mubr.f32.gmra.mxu0 %v17
  %v122 = vpop.f32.mrf.mxu0
  %v123 = vadd.f32 %v39, %v122
  %v124 = vpop.f32.mrf.mxu0
  %125 = vdwg.mxu0
  %126 = vst [vmem:[%s3] sm:$0xff] %v108
  %127 = vst [vmem:[%s3 + $0x8] sm:$0xff] %v113
  %128 = vst [vmem:[%s3 + $0x10] sm:$0xff] %v118
  %129 = vst [vmem:[%s3 + $0x18] sm:$0xff] %v123
  // Predicated region
  $region14: #{_lambda_.28} parent=0 // pred_check
    _
  $region15: #{_lambda_.28} parent=0 // pred_check_branch
    %131 = sbr.rel (0) target = $region17
  $region16: #{_lambda_.28} parent=0 // pred_region
    _
  $region17: #{_lambda_.28} parent=0 // pred_fallthru
    _
  // Predicated region
  $region18: #{_lambda_.28} parent=0 // pred_check
    _
  $region19: #{_lambda_.28} parent=0 // pred_check_branch
    %133 = sbr.rel (0) target = $region21
  $region20: #{_lambda_.28} parent=0 // pred_region
    _
  $region21: #{_lambda_.28} parent=0 // pred_fallthru
    _

// kernel: _lambda_.27
$region0: #{_lambda_.27}
  #allocation0 [shape = 'u32[]', space=smem, size = 0x4, offset = 0x4, fixed_abs, tag = 'smem constant byte address 0x4 - core index']
  #allocation1 [shape = 'u32[144,128]{1,0:T(1,128)}', space=vmem, size = 0x12000, scoped, tag = 'internal scratch']
  %s0 = inlined_call_operand.vmem [shape: f32[9,8,128], index: 0, kind: input, shape index: {}]
  %s1 = inlined_call_operand.vmem [shape: f32[9,1,128], index: 1, kind: input, shape index: {}]
  %s2 = inlined_call_operand.vmem [shape: f32[1,128], index: 2, kind: input, shape index: {}]
  %s3 = inlined_call_operand.vmem [shape: f32[128,128], index: 3, kind: input, shape index: {}]
  %s4 = inlined_call_operand.vmem [shape: f32[1,128], index: 4, kind: input, shape index: {}]
  %s5 = inlined_call_operand.vmem [shape: f32[128,128], index: 5, kind: input, shape index: {}]
  %s6 = inlined_call_operand.vmem [shape: f32[1,128], index: 6, kind: input, shape index: {}]
  %s7 = inlined_call_operand.vmem [shape: f32[8,128], index: 7, kind: input, shape index: {}]
  %s8 = inlined_call_operand.vmem [shape: f32[8,128], index: 8, kind: output, shape index: {}]
  %s9 = sld [smem:[#allocation0]]
  $region42: #{_lambda_.27} parent=0
    _
  %s11 = ssub.s32 1, %s9
  %s12 = scalar_select 0, %s11, %s9
  // Predicated region
  $region2: #{_lambda_.27} parent=0 // pred_check
    _
  $region3: #{_lambda_.27} parent=0 // pred_check_branch
    %14 = sbr.rel (0) target = $region5
  $region4: #{_lambda_.27} parent=0 // pred_region
    _
  $region5: #{_lambda_.27} parent=0 // pred_fallthru
    _
  // Predicated region
  $region6: #{_lambda_.27} parent=0 // pred_check
    _
  $region7: #{_lambda_.27} parent=0 // pred_check_branch
    %16 = sbr.rel (0) target = $region9
  $region8: #{_lambda_.27} parent=0 // pred_region
    _
  $region9: #{_lambda_.27} parent=0 // pred_fallthru
    _
  // Predicated region
  $region10: #{_lambda_.27} parent=0 // pred_check
    _
  $region11: #{_lambda_.27} parent=0 // pred_check_branch
    %18 = sbr.rel (0) target = $region13
  $region12: #{_lambda_.27} parent=0 // pred_region
    _
  $region13: #{_lambda_.27} parent=0 // pred_fallthru
    _
  // Predicated region
  $region14: #{_lambda_.27} parent=0 // pred_check
    _
  $region15: #{_lambda_.27} parent=0 // pred_check_branch
    %20 = sbr.rel (0) target = $region17
  $region16: #{_lambda_.27} parent=0 // pred_region
    _
  $region17: #{_lambda_.27} parent=0 // pred_fallthru
    _
  // Predicated region
  $region18: #{_lambda_.27} parent=0 // pred_check
    _
  $region19: #{_lambda_.27} parent=0 // pred_check_branch
    %22 = sbr.rel (0) target = $region21
  $region20: #{_lambda_.27} parent=0 // pred_region
    _
  $region21: #{_lambda_.27} parent=0 // pred_fallthru
    _
  // Predicated region
  $region22: #{_lambda_.27} parent=0 // pred_check
    _
  $region23: #{_lambda_.27} parent=0 // pred_check_branch
    %24 = sbr.rel (0) target = $region25
  $region24: #{_lambda_.27} parent=0 // pred_region
    _
  $region25: #{_lambda_.27} parent=0 // pred_fallthru
    _
  // Predicated region
  $region26: #{_lambda_.27} parent=0 // pred_check
    _
  $region27: #{_lambda_.27} parent=0 // pred_check_branch
    %26 = sbr.rel (0) target = $region29
  $region28: #{_lambda_.27} parent=0 // pred_region
    _
  $region29: #{_lambda_.27} parent=0 // pred_fallthru
    _
  // Predicated region
  $region30: #{_lambda_.27} parent=0 // pred_check
    _
  $region31: #{_lambda_.27} parent=0 // pred_check_branch
    %28 = sbr.rel (0) target = $region33
  $region32: #{_lambda_.27} parent=0 // pred_region
    _
  $region33: #{_lambda_.27} parent=0 // pred_fallthru
    _
  %v29 = vld [vmem:[%s0] sm:$0xff]
  %v30 = vld [vmem:[%s1] sm:$0x1]
  %v32 = vlaneseq
  %v33 = vshrl.u32 %v32, 7
  %v34 = vsub.s32 0, %v33
  %v35 = vrot.slane %v30, %v34
  %v37 = vmul.f32 %v29, %v35
  %s38 = scalar_lea.vmem %s0, 8
  %v39 = vld [vmem:[%s38] sm:$0xff]
  %s40 = scalar_lea.vmem %s1, 1
  %v41 = vld [vmem:[%s40] sm:$0x1]
  %v43 = vlaneseq
  %v44 = vshrl.u32 %v43, 7
  %v45 = vsub.s32 0, %v44
  %v46 = vrot.slane %v41, %v45
  %v48 = vmul.f32 %v39, %v46
  %v49 = vadd.f32 %v37, %v48
  %s50 = scalar_lea.vmem %s0, 16
  %v51 = vld [vmem:[%s50] sm:$0xff]
  %s52 = scalar_lea.vmem %s1, 2
  %v53 = vld [vmem:[%s52] sm:$0x1]
  %v55 = vlaneseq
  %v56 = vshrl.u32 %v55, 7
  %v57 = vsub.s32 0, %v56
  %v58 = vrot.slane %v53, %v57
  %v60 = vmul.f32 %v51, %v58
  %v61 = vadd.f32 %v49, %v60
  %s62 = scalar_lea.vmem %s0, 24
  %v63 = vld [vmem:[%s62] sm:$0xff]
  %s64 = scalar_lea.vmem %s1, 3
  %v65 = vld [vmem:[%s64] sm:$0x1]
  %v67 = vlaneseq
  %v68 = vshrl.u32 %v67, 7
  %v69 = vsub.s32 0, %v68
  %v70 = vrot.slane %v65, %v69
  %v72 = vmul.f32 %v63, %v70
  %v73 = vadd.f32 %v61, %v72
  %s74 = scalar_lea.vmem %s0, 32
  %v75 = vld [vmem:[%s74] sm:$0xff]
  %s76 = scalar_lea.vmem %s1, 4
  %v77 = vld [vmem:[%s76] sm:$0x1]
  %v79 = vlaneseq
  %v80 = vshrl.u32 %v79, 7
  %v81 = vsub.s32 0, %v80
  %v82 = vrot.slane %v77, %v81
  %v84 = vmul.f32 %v75, %v82
  %v85 = vadd.f32 %v73, %v84
  %s86 = scalar_lea.vmem %s0, 40
  %v87 = vld [vmem:[%s86] sm:$0xff]
  %s88 = scalar_lea.vmem %s1, 5
  %v89 = vld [vmem:[%s88] sm:$0x1]
  %v91 = vlaneseq
  %v92 = vshrl.u32 %v91, 7
  %v93 = vsub.s32 0, %v92
  %v94 = vrot.slane %v89, %v93
  %v96 = vmul.f32 %v87, %v94
  %v97 = vadd.f32 %v85, %v96
  %s98 = scalar_lea.vmem %s0, 48
  %v99 = vld [vmem:[%s98] sm:$0xff]
  %s100 = scalar_lea.vmem %s1, 6
  %v101 = vld [vmem:[%s100] sm:$0x1]
  %v103 = vlaneseq
  %v104 = vshrl.u32 %v103, 7
  %v105 = vsub.s32 0, %v104
  %v106 = vrot.slane %v101, %v105
  %v108 = vmul.f32 %v99, %v106
  %v109 = vadd.f32 %v97, %v108
  %s110 = scalar_lea.vmem %s0, 56
  %v111 = vld [vmem:[%s110] sm:$0xff]
  %s112 = scalar_lea.vmem %s1, 7
  %v113 = vld [vmem:[%s112] sm:$0x1]
  %v115 = vlaneseq
  %v116 = vshrl.u32 %v115, 7
  %v117 = vsub.s32 0, %v116
  %v118 = vrot.slane %v113, %v117
  %v120 = vmul.f32 %v111, %v118
  %v121 = vadd.f32 %v109, %v120
  %s122 = scalar_lea.vmem %s0, 64
  %v123 = vld [vmem:[%s122] sm:$0xff]
  %s124 = scalar_lea.vmem %s1, 8
  %v125 = vld [vmem:[%s124] sm:$0x1]
  %v127 = vlaneseq
  %v128 = vshrl.u32 %v127, 7
  %v129 = vsub.s32 0, %v128
  %v130 = vrot.slane %v125, %v129
  %v132 = vmul.f32 %v123, %v130
  %v133 = vadd.f32 %v121, %v132
  %v134 = vld [vmem:[%s2] sm:$0x1]
  %v136 = vlaneseq
  %v137 = vshrl.u32 %v136, 7
  %v138 = vsub.s32 0, %v137
  %v139 = vrot.slane %v134, %v138
  %v141 = vadd.f32 %v133, %v139
  %v142 = vld [vmem:[%s3] sm:$0xff]
  %v143 = vld [vmem:[%s3 + $0x8] sm:$0xff]
  %v144 = vld [vmem:[%s3 + $0x10] sm:$0xff]
  %v145 = vld [vmem:[%s3 + $0x18] sm:$0xff]
  %v146 = vld [vmem:[%s3 + $0x20] sm:$0xff]
  %v147 = vld [vmem:[%s3 + $0x28] sm:$0xff]
  %v148 = vld [vmem:[%s3 + $0x30] sm:$0xff]
  %v149 = vld [vmem:[%s3 + $0x38] sm:$0xff]
  %v150 = vld [vmem:[%s3 + $0x40] sm:$0xff]
  %v151 = vld [vmem:[%s3 + $0x48] sm:$0xff]
  %v152 = vld [vmem:[%s3 + $0x50] sm:$0xff]
  %v153 = vld [vmem:[%s3 + $0x58] sm:$0xff]
  %v154 = vld [vmem:[%s3 + $0x60] sm:$0xff]
  %v155 = vld [vmem:[%s3 + $0x68] sm:$0xff]
  %v156 = vld [vmem:[%s3 + $0x70] sm:$0xff]
  %v157 = vld [vmem:[%s3 + $0x78] sm:$0xff]
  %v158 = vld [vmem:[%s4] sm:$0x1]
  %v160 = vlaneseq
  %v161 = vshrl.u32 %v160, 7
  %v162 = vsub.s32 0, %v161
  %v163 = vrot.slane %v158, %v162
  %165 = vmatprep.subr.mxu0 0.0
  %166 = vmatpush1.msra.mxu0 %v157
  %167 = vmatprep.subr.mxu0 0.0
  %168 = vmatpush1.msra.mxu0 %v156
  %169 = vmatprep.subr.mxu0 0.0
  %170 = vmatpush1.msra.mxu0 %v155
  %171 = vmatprep.subr.mxu0 0.0
  %172 = vmatpush1.msra.mxu0 %v154
  %173 = vmatprep.subr.mxu0 0.0
  %174 = vmatpush1.msra.mxu0 %v153
  %175 = vmatprep.subr.mxu0 0.0
  %176 = vmatpush1.msra.mxu0 %v152
  %177 = vmatprep.subr.mxu0 0.0
  %178 = vmatpush1.msra.mxu0 %v151
  %179 = vmatprep.subr.mxu0 0.0
  %180 = vmatpush1.msra.mxu0 %v150
  %181 = vmatprep.subr.mxu0 0.0
  %182 = vmatpush1.msra.mxu0 %v149
  %183 = vmatprep.subr.mxu0 0.0
  %184 = vmatpush1.msra.mxu0 %v148
  %185 = vmatprep.subr.mxu0 0.0
  %186 = vmatpush1.msra.mxu0 %v147
  %187 = vmatprep.subr.mxu0 0.0
  %188 = vmatpush1.msra.mxu0 %v146
  %189 = vmatprep.subr.mxu0 0.0
  %190 = vmatpush1.msra.mxu0 %v145
  %191 = vmatprep.subr.mxu0 0.0
  %192 = vmatpush1.msra.mxu0 %v144
  %193 = vmatprep.subr.mxu0 0.0
  %194 = vmatpush1.msra.mxu0 %v143
  %195 = vmatprep.subr.mxu0 0.0
  %196 = vmatpush1.msra.mxu0 %v142
  %197 = vmatprep.subr.mxu0 0.0
  %198 = vmatpush2.msra.mxu0 0.0
  %199 = vmatprep.subr.mxu0 0.0
  %200 = vmatpush2.msra.mxu0 0.0
  %201 = vmatprep.subr.mxu0 0.0
  %202 = vmatpush2.msra.mxu0 0.0
  %203 = vmatprep.subr.mxu0 0.0
  %204 = vmatpush2.msra.mxu0 0.0
  %205 = vmatprep.subr.mxu0 0.0
  %206 = vmatpush2.msra.mxu0 0.0
  %207 = vmatprep.subr.mxu0 0.0
  %208 = vmatpush2.msra.mxu0 0.0
  %209 = vmatprep.subr.mxu0 0.0
  %210 = vmatpush2.msra.mxu0 0.0
  %211 = vmatprep.subr.mxu0 0.0
  %212 = vmatpush2.msra.mxu0 0.0
  %213 = vmatprep.subr.mxu0 0.0
  %214 = vmatpush2.msra.mxu0 0.0
  %215 = vmatprep.subr.mxu0 0.0
  %216 = vmatpush2.msra.mxu0 0.0
  %217 = vmatprep.subr.mxu0 0.0
  %218 = vmatpush2.msra.mxu0 0.0
  %219 = vmatprep.subr.mxu0 0.0
  %220 = vmatpush2.msra.mxu0 0.0
  %221 = vmatprep.subr.mxu0 0.0
  %222 = vmatpush2.msra.mxu0 0.0
  %223 = vmatprep.subr.mxu0 0.0
  %224 = vmatpush2.msra.mxu0 0.0
  %225 = vmatprep.subr.mxu0 0.0
  %226 = vmatpush2.msra.mxu0 0.0
  %227 = vmatprep.subr.mxu0 0.0
  %228 = vmatpush2.msra.mxu0 0.0
  %229 = vmatprep.mubr.f32.mxu0 0.0
  %230 = vmatmul.mubr.f32.gmra.mxu0 %v141
  %v231 = vpop.f32.mrf.mxu0
  %v232 = vadd.f32 %v163, %v231
  %v233 = vpop.f32.mrf.mxu0
  %234 = vdwg.mxu0
  %v235 = vmul.f32 %v232, 0.5
  %v236 = vmul.f32 %v232, 0.70710677
  %v237 = vand.u32 2147483647, %v236
  %v238 = vmul.f32 %v237, 0.3275911
  %v239 = vadd.f32 %v238, 1.0
  %v240 = vrcp.pop %v239
  %v241 = vmul.f32 1.0, %v240
  %v242 = vmul.f32 %v241, 1.0614054
  %v243 = vsub.f32 %v242, 1.4531521
  %v244 = vmul.f32 %v243, %v241
  %v245 = vadd.f32 %v244, 1.4214138
  %v246 = vmul.f32 %v245, %v241
  %v247 = vsub.f32 %v246, 0.28449672
  %v248 = vmul.f32 %v247, %v241
  %v249 = vadd.f32 %v248, 0.2548296
  %v250 = vmul.f32 %v249, %v241
  %v251 = vsub.f32 0.0, %v236
  %v252 = vmul.f32 %v251, %v236
  %v253 = vmul.f32 %v252, 1.442695
  %v254 = vpow.pop %v253
  %v255 = vmul.f32 %v250, %v254
  %v256 = vsub.f32 1.0, %v255
  %vm257 = vcmp.ge.f32.partialorder %v236, 0.0
  %v258 = vsub.f32 0.0, %v256
  %v259 = vsel %vm257, %v256, %v258
  %v260 = vadd.f32 %v259, 1.0
  %v261 = vmul.f32 %v235, %v260
  %v262 = vld [vmem:[%s5] sm:$0xff]
  %v263 = vld [vmem:[%s5 + $0x8] sm:$0xff]
  %v264 = vld [vmem:[%s5 + $0x10] sm:$0xff]
  %v265 = vld [vmem:[%s5 + $0x18] sm:$0xff]
  %v266 = vld [vmem:[%s5 + $0x20] sm:$0xff]
  %v267 = vld [vmem:[%s5 + $0x28] sm:$0xff]
  %v268 = vld [vmem:[%s5 + $0x30] sm:$0xff]
  %v269 = vld [vmem:[%s5 + $0x38] sm:$0xff]
  %v270 = vld [vmem:[%s5 + $0x40] sm:$0xff]
  %v271 = vld [vmem:[%s5 + $0x48] sm:$0xff]
  %v272 = vld [vmem:[%s5 + $0x50] sm:$0xff]
  %v273 = vld [vmem:[%s5 + $0x58] sm:$0xff]
  %v274 = vld [vmem:[%s5 + $0x60] sm:$0xff]
  %v275 = vld [vmem:[%s5 + $0x68] sm:$0xff]
  %v276 = vld [vmem:[%s5 + $0x70] sm:$0xff]
  %v277 = vld [vmem:[%s5 + $0x78] sm:$0xff]
  %v278 = vld [vmem:[%s6] sm:$0x1]
  %v280 = vlaneseq
  %v281 = vshrl.u32 %v280, 7
  %v282 = vsub.s32 0, %v281
  %v283 = vrot.slane %v278, %v282
  %285 = vmatprep.subr.mxu0 0.0
  %286 = vmatpush1.msra.mxu0 %v277
  %287 = vmatprep.subr.mxu0 0.0
  %288 = vmatpush1.msra.mxu0 %v276
  %289 = vmatprep.subr.mxu0 0.0
  %290 = vmatpush1.msra.mxu0 %v275
  %291 = vmatprep.subr.mxu0 0.0
  %292 = vmatpush1.msra.mxu0 %v274
  %293 = vmatprep.subr.mxu0 0.0
  %294 = vmatpush1.msra.mxu0 %v273
  %295 = vmatprep.subr.mxu0 0.0
  %296 = vmatpush1.msra.mxu0 %v272
  %297 = vmatprep.subr.mxu0 0.0
  %298 = vmatpush1.msra.mxu0 %v271
  %299 = vmatprep.subr.mxu0 0.0
  %300 = vmatpush1.msra.mxu0 %v270
  %301 = vmatprep.subr.mxu0 0.0
  %302 = vmatpush1.msra.mxu0 %v269
  %303 = vmatprep.subr.mxu0 0.0
  %304 = vmatpush1.msra.mxu0 %v268
  %305 = vmatprep.subr.mxu0 0.0
  %306 = vmatpush1.msra.mxu0 %v267
  %307 = vmatprep.subr.mxu0 0.0
  %308 = vmatpush1.msra.mxu0 %v266
  %309 = vmatprep.subr.mxu0 0.0
  %310 = vmatpush1.msra.mxu0 %v265
  %311 = vmatprep.subr.mxu0 0.0
  %312 = vmatpush1.msra.mxu0 %v264
  %313 = vmatprep.subr.mxu0 0.0
  %314 = vmatpush1.msra.mxu0 %v263
  %315 = vmatprep.subr.mxu0 0.0
  %316 = vmatpush1.msra.mxu0 %v262
  %317 = vmatprep.subr.mxu0 0.0
  %318 = vmatpush2.msra.mxu0 0.0
  %319 = vmatprep.subr.mxu0 0.0
  %320 = vmatpush2.msra.mxu0 0.0
  %321 = vmatprep.subr.mxu0 0.0
  %322 = vmatpush2.msra.mxu0 0.0
  %323 = vmatprep.subr.mxu0 0.0
  %324 = vmatpush2.msra.mxu0 0.0
  %325 = vmatprep.subr.mxu0 0.0
  %326 = vmatpush2.msra.mxu0 0.0
  %327 = vmatprep.subr.mxu0 0.0
  %328 = vmatpush2.msra.mxu0 0.0
  %329 = vmatprep.subr.mxu0 0.0
  %330 = vmatpush2.msra.mxu0 0.0
  %331 = vmatprep.subr.mxu0 0.0
  %332 = vmatpush2.msra.mxu0 0.0
  %333 = vmatprep.subr.mxu0 0.0
  %334 = vmatpush2.msra.mxu0 0.0
  %335 = vmatprep.subr.mxu0 0.0
  %336 = vmatpush2.msra.mxu0 0.0
  %337 = vmatprep.subr.mxu0 0.0
  %338 = vmatpush2.msra.mxu0 0.0
  %339 = vmatprep.subr.mxu0 0.0
  %340 = vmatpush2.msra.mxu0 0.0
  %341 = vmatprep.subr.mxu0 0.0
  %342 = vmatpush2.msra.mxu0 0.0
  %343 = vmatprep.subr.mxu0 0.0
  %344 = vmatpush2.msra.mxu0 0.0
  %345 = vmatprep.subr.mxu0 0.0
  %346 = vmatpush2.msra.mxu0 0.0
  %347 = vmatprep.subr.mxu0 0.0
  %348 = vmatpush2.msra.mxu0 0.0
  %349 = vmatprep.mubr.f32.mxu0 0.0
  %350 = vmatmul.mubr.f32.gmra.mxu0 %v261
  %v351 = vpop.f32.mrf.mxu0
  %v352 = vadd.f32 %v283, %v351
  %v353 = vpop.f32.mrf.mxu0
  %354 = vdwg.mxu0
  %v355 = vld [vmem:[%s7] sm:$0xff]
  %v356 = vadd.f32 %v352, %v355
  %357 = vst [vmem:[%s8] sm:$0xff] %v356
  // Predicated region
  $region34: #{_lambda_.27} parent=0 // pred_check
    _
  $region35: #{_lambda_.27} parent=0 // pred_check_branch
    %359 = sbr.rel (0) target = $region37
  $region36: #{_lambda_.27} parent=0 // pred_region
    _
  $region37: #{_lambda_.27} parent=0 // pred_fallthru
    _
  // Predicated region
  $region38: #{_lambda_.27} parent=0 // pred_check
    _
  $region39: #{_lambda_.27} parent=0 // pred_check_branch
    %361 = sbr.rel (0) target = $region41
  $region40: #{_lambda_.27} parent=0 // pred_region
    _
  $region41: #{_lambda_.27} parent=0 // pred_fallthru
    _

// kernel: _lambda_.30
$region0: #{_lambda_.30}
  #allocation0 [shape = 'u32[]', space=smem, size = 0x4, offset = 0x4, fixed_abs, tag = 'smem constant byte address 0x4 - core index']
  #allocation1 [shape = 'u32[144,128]{1,0:T(1,128)}', space=vmem, size = 0x12000, scoped, tag = 'internal scratch']
  %s0 = inlined_call_operand.vmem [shape: f32[128,128], index: 0, kind: input, shape index: {}]
  %s1 = inlined_call_operand.vmem [shape: f32[128,128], index: 1, kind: input, shape index: {}]
  %s2 = inlined_call_operand.vmem [shape: f32[1,128], index: 2, kind: input, shape index: {}]
  %s3 = inlined_call_operand.vmem [shape: f32[128,128], index: 3, kind: output, shape index: {}]
  %s4 = sld [smem:[#allocation0]]
  $region22: #{_lambda_.30} parent=0
    _
  %s6 = ssub.s32 1, %s4
  %s7 = scalar_select 0, %s6, %s4
  // Predicated region
  $region2: #{_lambda_.30} parent=0 // pred_check
    _
  $region3: #{_lambda_.30} parent=0 // pred_check_branch
    %9 = sbr.rel (0) target = $region5
  $region4: #{_lambda_.30} parent=0 // pred_region
    _
  $region5: #{_lambda_.30} parent=0 // pred_fallthru
    _
  // Predicated region
  $region6: #{_lambda_.30} parent=0 // pred_check
    _
  $region7: #{_lambda_.30} parent=0 // pred_check_branch
    %11 = sbr.rel (0) target = $region9
  $region8: #{_lambda_.30} parent=0 // pred_region
    _
  $region9: #{_lambda_.30} parent=0 // pred_fallthru
    _
  // Predicated region
  $region10: #{_lambda_.30} parent=0 // pred_check
    _
  $region11: #{_lambda_.30} parent=0 // pred_check_branch
    %13 = sbr.rel (0) target = $region13
  $region12: #{_lambda_.30} parent=0 // pred_region
    _
  $region13: #{_lambda_.30} parent=0 // pred_fallthru
    _
  %v14 = vld [vmem:[%s0] sm:$0xff]
  %v15 = vld [vmem:[%s0 + $0x8] sm:$0xff]
  %v16 = vld [vmem:[%s0 + $0x10] sm:$0xff]
  %v17 = vld [vmem:[%s0 + $0x18] sm:$0xff]
  %v18 = vld [vmem:[%s0 + $0x20] sm:$0xff]
  %v19 = vld [vmem:[%s0 + $0x28] sm:$0xff]
  %v20 = vld [vmem:[%s0 + $0x30] sm:$0xff]
  %v21 = vld [vmem:[%s0 + $0x38] sm:$0xff]
  %v22 = vld [vmem:[%s0 + $0x40] sm:$0xff]
  %v23 = vld [vmem:[%s0 + $0x48] sm:$0xff]
  %v24 = vld [vmem:[%s0 + $0x50] sm:$0xff]
  %v25 = vld [vmem:[%s0 + $0x58] sm:$0xff]
  %v26 = vld [vmem:[%s0 + $0x60] sm:$0xff]
  %v27 = vld [vmem:[%s0 + $0x68] sm:$0xff]
  %v28 = vld [vmem:[%s0 + $0x70] sm:$0xff]
  %v29 = vld [vmem:[%s0 + $0x78] sm:$0xff]
  %v30 = vld [vmem:[%s1] sm:$0xff]
  %v31 = vld [vmem:[%s1 + $0x8] sm:$0xff]
  %v32 = vld [vmem:[%s1 + $0x10] sm:$0xff]
  %v33 = vld [vmem:[%s1 + $0x18] sm:$0xff]
  %v34 = vld [vmem:[%s1 + $0x20] sm:$0xff]
  %v35 = vld [vmem:[%s1 + $0x28] sm:$0xff]
  %v36 = vld [vmem:[%s1 + $0x30] sm:$0xff]
  %v37 = vld [vmem:[%s1 + $0x38] sm:$0xff]
  %v38 = vld [vmem:[%s1 + $0x40] sm:$0xff]
  %v39 = vld [vmem:[%s1 + $0x48] sm:$0xff]
  %v40 = vld [vmem:[%s1 + $0x50] sm:$0xff]
  %v41 = vld [vmem:[%s1 + $0x58] sm:$0xff]
  %v42 = vld [vmem:[%s1 + $0x60] sm:$0xff]
  %v43 = vld [vmem:[%s1 + $0x68] sm:$0xff]
  %v44 = vld [vmem:[%s1 + $0x70] sm:$0xff]
  %v45 = vld [vmem:[%s1 + $0x78] sm:$0xff]
  %v46 = vld [vmem:[%s2] sm:$0x1]
  %v48 = vlaneseq
  %v49 = vshrl.u32 %v48, 7
  %v50 = vsub.s32 0, %v49
  %v51 = vrot.slane %v46, %v50
  %53 = vmatprep.subr.mxu0 0.0
  %54 = vmatpush1.msra.mxu0 %v45
  %55 = vmatprep.subr.mxu0 0.0
  %56 = vmatpush1.msra.mxu0 %v44
  %57 = vmatprep.subr.mxu0 0.0
  %58 = vmatpush1.msra.mxu0 %v43
  %59 = vmatprep.subr.mxu0 0.0
  %60 = vmatpush1.msra.mxu0 %v42
  %61 = vmatprep.subr.mxu0 0.0
  %62 = vmatpush1.msra.mxu0 %v41
  %63 = vmatprep.subr.mxu0 0.0
  %64 = vmatpush1.msra.mxu0 %v40
  %65 = vmatprep.subr.mxu0 0.0
  %66 = vmatpush1.msra.mxu0 %v39
  %67 = vmatprep.subr.mxu0 0.0
  %68 = vmatpush1.msra.mxu0 %v38
  %69 = vmatprep.subr.mxu0 0.0
  %70 = vmatpush1.msra.mxu0 %v37
  %71 = vmatprep.subr.mxu0 0.0
  %72 = vmatpush1.msra.mxu0 %v36
  %73 = vmatprep.subr.mxu0 0.0
  %74 = vmatpush1.msra.mxu0 %v35
  %75 = vmatprep.subr.mxu0 0.0
  %76 = vmatpush1.msra.mxu0 %v34
  %77 = vmatprep.subr.mxu0 0.0
  %78 = vmatpush1.msra.mxu0 %v33
  %79 = vmatprep.subr.mxu0 0.0
  %80 = vmatpush1.msra.mxu0 %v32
  %81 = vmatprep.subr.mxu0 0.0
  %82 = vmatpush1.msra.mxu0 %v31
  %83 = vmatprep.subr.mxu0 0.0
  %84 = vmatpush1.msra.mxu0 %v30
  %85 = vmatprep.subr.mxu0 0.0
  %86 = vmatpush2.msra.mxu0 0.0
  %87 = vmatprep.subr.mxu0 0.0
  %88 = vmatpush2.msra.mxu0 0.0
  %89 = vmatprep.subr.mxu0 0.0
  %90 = vmatpush2.msra.mxu0 0.0
  %91 = vmatprep.subr.mxu0 0.0
  %92 = vmatpush2.msra.mxu0 0.0
  %93 = vmatprep.subr.mxu0 0.0
  %94 = vmatpush2.msra.mxu0 0.0
  %95 = vmatprep.subr.mxu0 0.0
  %96 = vmatpush2.msra.mxu0 0.0
  %97 = vmatprep.subr.mxu0 0.0
  %98 = vmatpush2.msra.mxu0 0.0
  %99 = vmatprep.subr.mxu0 0.0
  %100 = vmatpush2.msra.mxu0 0.0
  %101 = vmatprep.subr.mxu0 0.0
  %102 = vmatpush2.msra.mxu0 0.0
  %103 = vmatprep.subr.mxu0 0.0
  %104 = vmatpush2.msra.mxu0 0.0
  %105 = vmatprep.subr.mxu0 0.0
  %106 = vmatpush2.msra.mxu0 0.0
  %107 = vmatprep.subr.mxu0 0.0
  %108 = vmatpush2.msra.mxu0 0.0
  %109 = vmatprep.subr.mxu0 0.0
  %110 = vmatpush2.msra.mxu0 0.0
  %111 = vmatprep.subr.mxu0 0.0
  %112 = vmatpush2.msra.mxu0 0.0
  %113 = vmatprep.subr.mxu0 0.0
  %114 = vmatpush2.msra.mxu0 0.0
  %115 = vmatprep.subr.mxu0 0.0
  %116 = vmatpush2.msra.mxu0 0.0
  %117 = vmatprep.mubr.f32.mxu0 0.0
  %118 = vmatmul.mubr.f32.gmra.mxu0 %v14
  %v119 = vpop.f32.mrf.mxu0
  %v120 = vadd.f32 %v51, %v119
  %v121 = vpop.f32.mrf.mxu0
  %122 = vmatprep.mubr.f32.mxu0 0.0
  %123 = vmatmul.mubr.f32.gmra.mxu0 %v15
  %v124 = vpop.f32.mrf.mxu0
  %v125 = vadd.f32 %v51, %v124
  %v126 = vpop.f32.mrf.mxu0
  %127 = vmatprep.mubr.f32.mxu0 0.0
  %128 = vmatmul.mubr.f32.gmra.mxu0 %v16
  %v129 = vpop.f32.mrf.mxu0
  %v130 = vadd.f32 %v51, %v129
  %v131 = vpop.f32.mrf.mxu0
  %132 = vmatprep.mubr.f32.mxu0 0.0
  %133 = vmatmul.mubr.f32.gmra.mxu0 %v17
  %v134 = vpop.f32.mrf.mxu0
  %v135 = vadd.f32 %v51, %v134
  %v136 = vpop.f32.mrf.mxu0
  %137 = vmatprep.mubr.f32.mxu0 0.0
  %138 = vmatmul.mubr.f32.gmra.mxu0 %v18
  %v139 = vpop.f32.mrf.mxu0
  %v140 = vadd.f32 %v51, %v139
  %v141 = vpop.f32.mrf.mxu0
  %142 = vmatprep.mubr.f32.mxu0 0.0
  %143 = vmatmul.mubr.f32.gmra.mxu0 %v19
  %v144 = vpop.f32.mrf.mxu0
  %v145 = vadd.f32 %v51, %v144
  %v146 = vpop.f32.mrf.mxu0
  %147 = vmatprep.mubr.f32.mxu0 0.0
  %148 = vmatmul.mubr.f32.gmra.mxu0 %v20
  %v149 = vpop.f32.mrf.mxu0
  %v150 = vadd.f32 %v51, %v149
  %v151 = vpop.f32.mrf.mxu0
  %152 = vmatprep.mubr.f32.mxu0 0.0
  %153 = vmatmul.mubr.f32.gmra.mxu0 %v21
  %v154 = vpop.f32.mrf.mxu0
  %v155 = vadd.f32 %v51, %v154
  %v156 = vpop.f32.mrf.mxu0
  %157 = vmatprep.mubr.f32.mxu0 0.0
  %158 = vmatmul.mubr.f32.gmra.mxu0 %v22
  %v159 = vpop.f32.mrf.mxu0
  %v160 = vadd.f32 %v51, %v159
  %v161 = vpop.f32.mrf.mxu0
  %162 = vmatprep.mubr.f32.mxu0 0.0
  %163 = vmatmul.mubr.f32.gmra.mxu0 %v23
  %v164 = vpop.f32.mrf.mxu0
  %v165 = vadd.f32 %v51, %v164
  %v166 = vpop.f32.mrf.mxu0
  %167 = vmatprep.mubr.f32.mxu0 0.0
  %168 = vmatmul.mubr.f32.gmra.mxu0 %v24
  %v169 = vpop.f32.mrf.mxu0
  %v170 = vadd.f32 %v51, %v169
  %v171 = vpop.f32.mrf.mxu0
  %172 = vmatprep.mubr.f32.mxu0 0.0
  %173 = vmatmul.mubr.f32.gmra.mxu0 %v25
  %v174 = vpop.f32.mrf.mxu0
  %v175 = vadd.f32 %v51, %v174
  %v176 = vpop.f32.mrf.mxu0
  %177 = vmatprep.mubr.f32.mxu0 0.0
  %178 = vmatmul.mubr.f32.gmra.mxu0 %v26
  %v179 = vpop.f32.mrf.mxu0
  %v180 = vadd.f32 %v51, %v179
  %v181 = vpop.f32.mrf.mxu0
  %182 = vmatprep.mubr.f32.mxu0 0.0
  %183 = vmatmul.mubr.f32.gmra.mxu0 %v27
  %v184 = vpop.f32.mrf.mxu0
  %v185 = vadd.f32 %v51, %v184
  %v186 = vpop.f32.mrf.mxu0
  %187 = vmatprep.mubr.f32.mxu0 0.0
  %188 = vmatmul.mubr.f32.gmra.mxu0 %v28
  %v189 = vpop.f32.mrf.mxu0
  %v190 = vadd.f32 %v51, %v189
  %v191 = vpop.f32.mrf.mxu0
  %192 = vmatprep.mubr.f32.mxu0 0.0
  %193 = vmatmul.mubr.f32.gmra.mxu0 %v29
  %v194 = vpop.f32.mrf.mxu0
  %v195 = vadd.f32 %v51, %v194
  %v196 = vpop.f32.mrf.mxu0
  %197 = vdwg.mxu0
  %198 = vst [vmem:[%s3] sm:$0xff] %v120
  %199 = vst [vmem:[%s3 + $0x8] sm:$0xff] %v125
  %200 = vst [vmem:[%s3 + $0x10] sm:$0xff] %v130
  %201 = vst [vmem:[%s3 + $0x18] sm:$0xff] %v135
  %202 = vst [vmem:[%s3 + $0x20] sm:$0xff] %v140
  %203 = vst [vmem:[%s3 + $0x28] sm:$0xff] %v145
  %204 = vst [vmem:[%s3 + $0x30] sm:$0xff] %v150
  %205 = vst [vmem:[%s3 + $0x38] sm:$0xff] %v155
  %206 = vst [vmem:[%s3 + $0x40] sm:$0xff] %v160
  %207 = vst [vmem:[%s3 + $0x48] sm:$0xff] %v165
  %208 = vst [vmem:[%s3 + $0x50] sm:$0xff] %v170
  %209 = vst [vmem:[%s3 + $0x58] sm:$0xff] %v175
  %210 = vst [vmem:[%s3 + $0x60] sm:$0xff] %v180
  %211 = vst [vmem:[%s3 + $0x68] sm:$0xff] %v185
  %212 = vst [vmem:[%s3 + $0x70] sm:$0xff] %v190
  %213 = vst [vmem:[%s3 + $0x78] sm:$0xff] %v195
  // Predicated region
  $region14: #{_lambda_.30} parent=0 // pred_check
    _
  $region15: #{_lambda_.30} parent=0 // pred_check_branch
    %215 = sbr.rel (0) target = $region17
  $region16: #{_lambda_.30} parent=0 // pred_region
    _
  $region17: #{_lambda_.30} parent=0 // pred_fallthru
    _
  // Predicated region
  $region18: #{_lambda_.30} parent=0 // pred_check
    _
  $region19: #{_lambda_.30} parent=0 // pred_check_branch
    %217 = sbr.rel (0) target = $region21
  $region20: #{_lambda_.30} parent=0 // pred_region
    _
  $region21: #{_lambda_.30} parent=0 // pred_fallthru
    _

// kernel: _lambda_.29
$region0: #{_lambda_.29}
  #allocation0 [shape = 'u32[]', space=smem, size = 0x4, offset = 0x4, fixed_abs, tag = 'smem constant byte address 0x4 - core index']
  #allocation1 [shape = 'u32[144,128]{1,0:T(1,128)}', space=vmem, size = 0x12000, scoped, tag = 'internal scratch']
  %s0 = inlined_call_operand.vmem [shape: f32[9,32,128], index: 0, kind: input, shape index: {}]
  %s1 = inlined_call_operand.vmem [shape: f32[9,1,128], index: 1, kind: input, shape index: {}]
  %s2 = inlined_call_operand.vmem [shape: f32[1,128], index: 2, kind: input, shape index: {}]
  %s3 = inlined_call_operand.vmem [shape: f32[128,256], index: 3, kind: input, shape index: {}]
  %s4 = inlined_call_operand.vmem [shape: f32[1,256], index: 4, kind: input, shape index: {}]
  %s5 = inlined_call_operand.vmem [shape: f32[256,128], index: 5, kind: input, shape index: {}]
  %s6 = inlined_call_operand.vmem [shape: f32[1,128], index: 6, kind: input, shape index: {}]
  %s7 = inlined_call_operand.vmem [shape: f32[32,128], index: 7, kind: input, shape index: {}]
  %s8 = inlined_call_operand.vmem [shape: f32[32,128], index: 8, kind: output, shape index: {}]
  %s9 = sld [smem:[#allocation0]]
  $region42: #{_lambda_.29} parent=0
    _
  %s11 = ssub.s32 1, %s9
  %s12 = scalar_select 0, %s11, %s9
  // Predicated region
  $region2: #{_lambda_.29} parent=0 // pred_check
    _
  $region3: #{_lambda_.29} parent=0 // pred_check_branch
    %14 = sbr.rel (0) target = $region5
  $region4: #{_lambda_.29} parent=0 // pred_region
    _
  $region5: #{_lambda_.29} parent=0 // pred_fallthru
    _
  // Predicated region
  $region6: #{_lambda_.29} parent=0 // pred_check
    _
  $region7: #{_lambda_.29} parent=0 // pred_check_branch
    %16 = sbr.rel (0) target = $region9
  $region8: #{_lambda_.29} parent=0 // pred_region
    _
  $region9: #{_lambda_.29} parent=0 // pred_fallthru
    _
  // Predicated region
  $region10: #{_lambda_.29} parent=0 // pred_check
    _
  $region11: #{_lambda_.29} parent=0 // pred_check_branch
    %18 = sbr.rel (0) target = $region13
  $region12: #{_lambda_.29} parent=0 // pred_region
    _
  $region13: #{_lambda_.29} parent=0 // pred_fallthru
    _
  // Predicated region
  $region14: #{_lambda_.29} parent=0 // pred_check
    _
  $region15: #{_lambda_.29} parent=0 // pred_check_branch
    %20 = sbr.rel (0) target = $region17
  $region16: #{_lambda_.29} parent=0 // pred_region
    _
  $region17: #{_lambda_.29} parent=0 // pred_fallthru
    _
  // Predicated region
  $region18: #{_lambda_.29} parent=0 // pred_check
    _
  $region19: #{_lambda_.29} parent=0 // pred_check_branch
    %22 = sbr.rel (0) target = $region21
  $region20: #{_lambda_.29} parent=0 // pred_region
    _
  $region21: #{_lambda_.29} parent=0 // pred_fallthru
    _
  // Predicated region
  $region22: #{_lambda_.29} parent=0 // pred_check
    _
  $region23: #{_lambda_.29} parent=0 // pred_check_branch
    %24 = sbr.rel (0) target = $region25
  $region24: #{_lambda_.29} parent=0 // pred_region
    _
  $region25: #{_lambda_.29} parent=0 // pred_fallthru
    _
  // Predicated region
  $region26: #{_lambda_.29} parent=0 // pred_check
    _
  $region27: #{_lambda_.29} parent=0 // pred_check_branch
    %26 = sbr.rel (0) target = $region29
  $region28: #{_lambda_.29} parent=0 // pred_region
    _
  $region29: #{_lambda_.29} parent=0 // pred_fallthru
    _
  // Predicated region
  $region30: #{_lambda_.29} parent=0 // pred_check
    _
  $region31: #{_lambda_.29} parent=0 // pred_check_branch
    %28 = sbr.rel (0) target = $region33
  $region32: #{_lambda_.29} parent=0 // pred_region
    _
  $region33: #{_lambda_.29} parent=0 // pred_fallthru
    _
  %v29 = vld [vmem:[%s0] sm:$0xff]
  %v30 = vld [vmem:[%s0 + $0x8] sm:$0xff]
  %v31 = vld [vmem:[%s0 + $0x10] sm:$0xff]
  %v32 = vld [vmem:[%s0 + $0x18] sm:$0xff]
  %v33 = vld [vmem:[%s1] sm:$0x1]
  %v35 = vlaneseq
  %v36 = vshrl.u32 %v35, 7
  %v37 = vsub.s32 0, %v36
  %v38 = vrot.slane %v33, %v37
  %v40 = vmul.f32 %v29, %v38
  %v41 = vmul.f32 %v30, %v38
  %v42 = vmul.f32 %v31, %v38
  %v43 = vmul.f32 %v32, %v38
  %s44 = scalar_lea.vmem %s0, 32
  %v45 = vld [vmem:[%s44] sm:$0xff]
  %v46 = vld [vmem:[%s44 + $0x8] sm:$0xff]
  %v47 = vld [vmem:[%s44 + $0x10] sm:$0xff]
  %v48 = vld [vmem:[%s44 + $0x18] sm:$0xff]
  %s49 = scalar_lea.vmem %s1, 1
  %v50 = vld [vmem:[%s49] sm:$0x1]
  %v52 = vlaneseq
  %v53 = vshrl.u32 %v52, 7
  %v54 = vsub.s32 0, %v53
  %v55 = vrot.slane %v50, %v54
  %v57 = vmul.f32 %v45, %v55
  %v58 = vmul.f32 %v46, %v55
  %v59 = vmul.f32 %v47, %v55
  %v60 = vmul.f32 %v48, %v55
  %v61 = vadd.f32 %v40, %v57
  %v62 = vadd.f32 %v41, %v58
  %v63 = vadd.f32 %v42, %v59
  %v64 = vadd.f32 %v43, %v60
  %s65 = scalar_lea.vmem %s0, 64
  %v66 = vld [vmem:[%s65] sm:$0xff]
  %v67 = vld [vmem:[%s65 + $0x8] sm:$0xff]
  %v68 = vld [vmem:[%s65 + $0x10] sm:$0xff]
  %v69 = vld [vmem:[%s65 + $0x18] sm:$0xff]
  %s70 = scalar_lea.vmem %s1, 2
  %v71 = vld [vmem:[%s70] sm:$0x1]
  %v73 = vlaneseq
  %v74 = vshrl.u32 %v73, 7
  %v75 = vsub.s32 0, %v74
  %v76 = vrot.slane %v71, %v75
  %v78 = vmul.f32 %v66, %v76
  %v79 = vmul.f32 %v67, %v76
  %v80 = vmul.f32 %v68, %v76
  %v81 = vmul.f32 %v69, %v76
  %v82 = vadd.f32 %v61, %v78
  %v83 = vadd.f32 %v62, %v79
  %v84 = vadd.f32 %v63, %v80
  %v85 = vadd.f32 %v64, %v81
  %s86 = scalar_lea.vmem %s0, 96
  %v87 = vld [vmem:[%s86] sm:$0xff]
  %v88 = vld [vmem:[%s86 + $0x8] sm:$0xff]
  %v89 = vld [vmem:[%s86 + $0x10] sm:$0xff]
  %v90 = vld [vmem:[%s86 + $0x18] sm:$0xff]
  %s91 = scalar_lea.vmem %s1, 3
  %v92 = vld [vmem:[%s91] sm:$0x1]
  %v94 = vlaneseq
  %v95 = vshrl.u32 %v94, 7
  %v96 = vsub.s32 0, %v95
  %v97 = vrot.slane %v92, %v96
  %v99 = vmul.f32 %v87, %v97
  %v100 = vmul.f32 %v88, %v97
  %v101 = vmul.f32 %v89, %v97
  %v102 = vmul.f32 %v90, %v97
  %v103 = vadd.f32 %v82, %v99
  %v104 = vadd.f32 %v83, %v100
  %v105 = vadd.f32 %v84, %v101
  %v106 = vadd.f32 %v85, %v102
  %s107 = scalar_lea.vmem %s0, 128
  %v108 = vld [vmem:[%s107] sm:$0xff]
  %v109 = vld [vmem:[%s107 + $0x8] sm:$0xff]
  %v110 = vld [vmem:[%s107 + $0x10] sm:$0xff]
  %v111 = vld [vmem:[%s107 + $0x18] sm:$0xff]
  %s112 = scalar_lea.vmem %s1, 4
  %v113 = vld [vmem:[%s112] sm:$0x1]
  %v115 = vlaneseq
  %v116 = vshrl.u32 %v115, 7
  %v117 = vsub.s32 0, %v116
  %v118 = vrot.slane %v113, %v117
  %v120 = vmul.f32 %v108, %v118
  %v121 = vmul.f32 %v109, %v118
  %v122 = vmul.f32 %v110, %v118
  %v123 = vmul.f32 %v111, %v118
  %v124 = vadd.f32 %v103, %v120
  %v125 = vadd.f32 %v104, %v121
  %v126 = vadd.f32 %v105, %v122
  %v127 = vadd.f32 %v106, %v123
  %s128 = scalar_lea.vmem %s0, 160
  %v129 = vld [vmem:[%s128] sm:$0xff]
  %v130 = vld [vmem:[%s128 + $0x8] sm:$0xff]
  %v131 = vld [vmem:[%s128 + $0x10] sm:$0xff]
  %v132 = vld [vmem:[%s128 + $0x18] sm:$0xff]
  %s133 = scalar_lea.vmem %s1, 5
  %v134 = vld [vmem:[%s133] sm:$0x1]
  %v136 = vlaneseq
  %v137 = vshrl.u32 %v136, 7
  %v138 = vsub.s32 0, %v137
  %v139 = vrot.slane %v134, %v138
  %v141 = vmul.f32 %v129, %v139
  %v142 = vmul.f32 %v130, %v139
  %v143 = vmul.f32 %v131, %v139
  %v144 = vmul.f32 %v132, %v139
  %v145 = vadd.f32 %v124, %v141
  %v146 = vadd.f32 %v125, %v142
  %v147 = vadd.f32 %v126, %v143
  %v148 = vadd.f32 %v127, %v144
  %s149 = scalar_lea.vmem %s0, 192
  %v150 = vld [vmem:[%s149] sm:$0xff]
  %v151 = vld [vmem:[%s149 + $0x8] sm:$0xff]
  %v152 = vld [vmem:[%s149 + $0x10] sm:$0xff]
  %v153 = vld [vmem:[%s149 + $0x18] sm:$0xff]
  %s154 = scalar_lea.vmem %s1, 6
  %v155 = vld [vmem:[%s154] sm:$0x1]
  %v157 = vlaneseq
  %v158 = vshrl.u32 %v157, 7
  %v159 = vsub.s32 0, %v158
  %v160 = vrot.slane %v155, %v159
  %v162 = vmul.f32 %v150, %v160
  %v163 = vmul.f32 %v151, %v160
  %v164 = vmul.f32 %v152, %v160
  %v165 = vmul.f32 %v153, %v160
  %v166 = vadd.f32 %v145, %v162
  %v167 = vadd.f32 %v146, %v163
  %v168 = vadd.f32 %v147, %v164
  %v169 = vadd.f32 %v148, %v165
  %s170 = scalar_lea.vmem %s0, 224
  %v171 = vld [vmem:[%s170] sm:$0xff]
  %v172 = vld [vmem:[%s170 + $0x8] sm:$0xff]
  %v173 = vld [vmem:[%s170 + $0x10] sm:$0xff]
  %v174 = vld [vmem:[%s170 + $0x18] sm:$0xff]
  %s175 = scalar_lea.vmem %s1, 7
  %v176 = vld [vmem:[%s175] sm:$0x1]
  %v178 = vlaneseq
  %v179 = vshrl.u32 %v178, 7
  %v180 = vsub.s32 0, %v179
  %v181 = vrot.slane %v176, %v180
  %v183 = vmul.f32 %v171, %v181
  %v184 = vmul.f32 %v172, %v181
  %v185 = vmul.f32 %v173, %v181
  %v186 = vmul.f32 %v174, %v181
  %v187 = vadd.f32 %v166, %v183
  %v188 = vadd.f32 %v167, %v184
  %v189 = vadd.f32 %v168, %v185
  %v190 = vadd.f32 %v169, %v186
  %s191 = scalar_lea.vmem %s0, 256
  %v192 = vld [vmem:[%s191] sm:$0xff]
  %v193 = vld [vmem:[%s191 + $0x8] sm:$0xff]
  %v194 = vld [vmem:[%s191 + $0x10] sm:$0xff]
  %v195 = vld [vmem:[%s191 + $0x18] sm:$0xff]
  %s196 = scalar_lea.vmem %s1, 8
  %v197 = vld [vmem:[%s196] sm:$0x1]
  %v199 = vlaneseq
  %v200 = vshrl.u32 %v199, 7
  %v201 = vsub.s32 0, %v200
  %v202 = vrot.slane %v197, %v201
  %v204 = vmul.f32 %v192, %v202
  %v205 = vmul.f32 %v193, %v202
  %v206 = vmul.f32 %v194, %v202
  %v207 = vmul.f32 %v195, %v202
  %v208 = vadd.f32 %v187, %v204
  %v209 = vadd.f32 %v188, %v205
  %v210 = vadd.f32 %v189, %v206
  %v211 = vadd.f32 %v190, %v207
  %v212 = vld [vmem:[%s2] sm:$0x1]
  %v214 = vlaneseq
  %v215 = vshrl.u32 %v214, 7
  %v216 = vsub.s32 0, %v215
  %v217 = vrot.slane %v212, %v216
  %v219 = vadd.f32 %v208, %v217
  %v220 = vadd.f32 %v209, %v217
  %v221 = vadd.f32 %v210, %v217
  %v222 = vadd.f32 %v211, %v217
  %v223 = vld [vmem:[%s3] sm:$0xff]
  %v224 = vld [vmem:[%s3 + $0x8] sm:$0xff]
  %v225 = vld [vmem:[%s3 + $0x10] sm:$0xff]
  %v226 = vld [vmem:[%s3 + $0x18] sm:$0xff]
  %v227 = vld [vmem:[%s3 + $0x20] sm:$0xff]
  %v228 = vld [vmem:[%s3 + $0x28] sm:$0xff]
  %v229 = vld [vmem:[%s3 + $0x30] sm:$0xff]
  %v230 = vld [vmem:[%s3 + $0x38] sm:$0xff]
  %v231 = vld [vmem:[%s3 + $0x40] sm:$0xff]
  %v232 = vld [vmem:[%s3 + $0x48] sm:$0xff]
  %v233 = vld [vmem:[%s3 + $0x50] sm:$0xff]
  %v234 = vld [vmem:[%s3 + $0x58] sm:$0xff]
  %v235 = vld [vmem:[%s3 + $0x60] sm:$0xff]
  %v236 = vld [vmem:[%s3 + $0x68] sm:$0xff]
  %v237 = vld [vmem:[%s3 + $0x70] sm:$0xff]
  %v238 = vld [vmem:[%s3 + $0x78] sm:$0xff]
  %v239 = vld [vmem:[%s3 + $0x80] sm:$0xff]
  %v240 = vld [vmem:[%s3 + $0x88] sm:$0xff]
  %v241 = vld [vmem:[%s3 + $0x90] sm:$0xff]
  %v242 = vld [vmem:[%s3 + $0x98] sm:$0xff]
  %v243 = vld [vmem:[%s3 + $0xa0] sm:$0xff]
  %v244 = vld [vmem:[%s3 + $0xa8] sm:$0xff]
  %v245 = vld [vmem:[%s3 + $0xb0] sm:$0xff]
  %v246 = vld [vmem:[%s3 + $0xb8] sm:$0xff]
  %v247 = vld [vmem:[%s3 + $0xc0] sm:$0xff]
  %v248 = vld [vmem:[%s3 + $0xc8] sm:$0xff]
  %v249 = vld [vmem:[%s3 + $0xd0] sm:$0xff]
  %v250 = vld [vmem:[%s3 + $0xd8] sm:$0xff]
  %v251 = vld [vmem:[%s3 + $0xe0] sm:$0xff]
  %v252 = vld [vmem:[%s3 + $0xe8] sm:$0xff]
  %v253 = vld [vmem:[%s3 + $0xf0] sm:$0xff]
  %v254 = vld [vmem:[%s3 + $0xf8] sm:$0xff]
  %v255 = vld [vmem:[%s4] sm:$0x3]
  %v257 = vlaneseq
  %v258 = vshrl.u32 %v257, 7
  %v259 = vsub.s32 0, %v258
  %v260 = vrot.slane %v255, %v259
  %v261 = vlaneseq
  %v262 = vshrl.u32 %v261, 7
  %v263 = vsub.s32 1, %v262
  %v264 = vrot.slane %v255, %v263
  %267 = vmatprep.subr.mxu0 %v254
  %268 = vmatpush1.msra.mxu0 %v253
  %269 = vmatprep.subr.mxu0 %v252
  %270 = vmatpush1.msra.mxu0 %v251
  %271 = vmatprep.subr.mxu0 %v250
  %272 = vmatpush1.msra.mxu0 %v249
  %273 = vmatprep.subr.mxu0 %v248
  %274 = vmatpush1.msra.mxu0 %v247
  %275 = vmatprep.subr.mxu0 %v246
  %276 = vmatpush1.msra.mxu0 %v245
  %277 = vmatprep.subr.mxu0 %v244
  %278 = vmatpush1.msra.mxu0 %v243
  %279 = vmatprep.subr.mxu0 %v242
  %280 = vmatpush1.msra.mxu0 %v241
  %281 = vmatprep.subr.mxu0 %v240
  %282 = vmatpush1.msra.mxu0 %v239
  %283 = vmatprep.subr.mxu0 %v238
  %284 = vmatpush1.msra.mxu0 %v237
  %285 = vmatprep.subr.mxu0 %v236
  %286 = vmatpush1.msra.mxu0 %v235
  %287 = vmatprep.subr.mxu0 %v234
  %288 = vmatpush1.msra.mxu0 %v233
  %289 = vmatprep.subr.mxu0 %v232
  %290 = vmatpush1.msra.mxu0 %v231
  %291 = vmatprep.subr.mxu0 %v230
  %292 = vmatpush1.msra.mxu0 %v229
  %293 = vmatprep.subr.mxu0 %v228
  %294 = vmatpush1.msra.mxu0 %v227
  %295 = vmatprep.subr.mxu0 %v226
  %296 = vmatpush1.msra.mxu0 %v225
  %297 = vmatprep.subr.mxu0 %v224
  %298 = vmatpush1.msra.mxu0 %v223
  %299 = vmatprep.subr.mxu0 0.0
  %300 = vmatpush2.msra.mxu0 0.0
  %301 = vmatprep.subr.mxu0 0.0
  %302 = vmatpush2.msra.mxu0 0.0
  %303 = vmatprep.subr.mxu0 0.0
  %304 = vmatpush2.msra.mxu0 0.0
  %305 = vmatprep.subr.mxu0 0.0
  %306 = vmatpush2.msra.mxu0 0.0
  %307 = vmatprep.subr.mxu0 0.0
  %308 = vmatpush2.msra.mxu0 0.0
  %309 = vmatprep.subr.mxu0 0.0
  %310 = vmatpush2.msra.mxu0 0.0
  %311 = vmatprep.subr.mxu0 0.0
  %312 = vmatpush2.msra.mxu0 0.0
  %313 = vmatprep.subr.mxu0 0.0
  %314 = vmatpush2.msra.mxu0 0.0
  %315 = vmatprep.subr.mxu0 0.0
  %316 = vmatpush2.msra.mxu0 0.0
  %317 = vmatprep.subr.mxu0 0.0
  %318 = vmatpush2.msra.mxu0 0.0
  %319 = vmatprep.subr.mxu0 0.0
  %320 = vmatpush2.msra.mxu0 0.0
  %321 = vmatprep.subr.mxu0 0.0
  %322 = vmatpush2.msra.mxu0 0.0
  %323 = vmatprep.subr.mxu0 0.0
  %324 = vmatpush2.msra.mxu0 0.0
  %325 = vmatprep.subr.mxu0 0.0
  %326 = vmatpush2.msra.mxu0 0.0
  %327 = vmatprep.subr.mxu0 0.0
  %328 = vmatpush2.msra.mxu0 0.0
  %329 = vmatprep.subr.mxu0 0.0
  %330 = vmatpush2.msra.mxu0 0.0
  %331 = vmatprep.mubr.f32.mxu0 0.0
  %332 = vmatmul.mubr.f32.gmra.mxu0 %v219
  %v333 = vpop.f32.mrf.mxu0
  %v334 = vadd.f32 %v260, %v333
  %v335 = vpop.f32.mrf.mxu0
  %v336 = vadd.f32 %v264, %v335
  %337 = vmatprep.mubr.f32.mxu0 0.0
  %338 = vmatmul.mubr.f32.gmra.mxu0 %v220
  %v339 = vpop.f32.mrf.mxu0
  %v340 = vadd.f32 %v260, %v339
  %v341 = vpop.f32.mrf.mxu0
  %v342 = vadd.f32 %v264, %v341
  %343 = vmatprep.mubr.f32.mxu0 0.0
  %344 = vmatmul.mubr.f32.gmra.mxu0 %v221
  %v345 = vpop.f32.mrf.mxu0
  %v346 = vadd.f32 %v260, %v345
  %v347 = vpop.f32.mrf.mxu0
  %v348 = vadd.f32 %v264, %v347
  %349 = vmatprep.mubr.f32.mxu0 0.0
  %350 = vmatmul.mubr.f32.gmra.mxu0 %v222
  %v351 = vpop.f32.mrf.mxu0
  %v352 = vadd.f32 %v260, %v351
  %v353 = vpop.f32.mrf.mxu0
  %v354 = vadd.f32 %v264, %v353
  %355 = vdwg.mxu0
  %v356 = vmul.f32 %v334, 0.5
  %v357 = vmul.f32 %v336, 0.5
  %v358 = vmul.f32 %v340, 0.5
  %v359 = vmul.f32 %v342, 0.5
  %v360 = vmul.f32 %v346, 0.5
  %v361 = vmul.f32 %v348, 0.5
  %v362 = vmul.f32 %v352, 0.5
  %v363 = vmul.f32 %v354, 0.5
  %v364 = vmul.f32 %v334, 0.70710677
  %v365 = vmul.f32 %v336, 0.70710677
  %v366 = vmul.f32 %v340, 0.70710677
  %v367 = vmul.f32 %v342, 0.70710677
  %v368 = vmul.f32 %v346, 0.70710677
  %v369 = vmul.f32 %v348, 0.70710677
  %v370 = vmul.f32 %v352, 0.70710677
  %v371 = vmul.f32 %v354, 0.70710677
  %v372 = vand.u32 2147483647, %v364
  %v373 = vand.u32 2147483647, %v365
  %v374 = vand.u32 2147483647, %v366
  %v375 = vand.u32 2147483647, %v367
  %v376 = vand.u32 2147483647, %v368
  %v377 = vand.u32 2147483647, %v369
  %v378 = vand.u32 2147483647, %v370
  %v379 = vand.u32 2147483647, %v371
  %v380 = vmul.f32 %v372, 0.3275911
  %v381 = vmul.f32 %v373, 0.3275911
  %v382 = vmul.f32 %v374, 0.3275911
  %v383 = vmul.f32 %v375, 0.3275911
  %v384 = vmul.f32 %v376, 0.3275911
  %v385 = vmul.f32 %v377, 0.3275911
  %v386 = vmul.f32 %v378, 0.3275911
  %v387 = vmul.f32 %v379, 0.3275911
  %v388 = vadd.f32 %v380, 1.0
  %v389 = vadd.f32 %v381, 1.0
  %v390 = vadd.f32 %v382, 1.0
  %v391 = vadd.f32 %v383, 1.0
  %v392 = vadd.f32 %v384, 1.0
  %v393 = vadd.f32 %v385, 1.0
  %v394 = vadd.f32 %v386, 1.0
  %v395 = vadd.f32 %v387, 1.0
  %v396 = vrcp.pop %v388
  %v397 = vmul.f32 1.0, %v396
  %v398 = vrcp.pop %v389
  %v399 = vmul.f32 1.0, %v398
  %v400 = vrcp.pop %v390
  %v401 = vmul.f32 1.0, %v400
  %v402 = vrcp.pop %v391
  %v403 = vmul.f32 1.0, %v402
  %v404 = vrcp.pop %v392
  %v405 = vmul.f32 1.0, %v404
  %v406 = vrcp.pop %v393
  %v407 = vmul.f32 1.0, %v406
  %v408 = vrcp.pop %v394
  %v409 = vmul.f32 1.0, %v408
  %v410 = vrcp.pop %v395
  %v411 = vmul.f32 1.0, %v410
  %v412 = vmul.f32 %v397, 1.0614054
  %v413 = vmul.f32 %v399, 1.0614054
  %v414 = vmul.f32 %v401, 1.0614054
  %v415 = vmul.f32 %v403, 1.0614054
  %v416 = vmul.f32 %v405, 1.0614054
  %v417 = vmul.f32 %v407, 1.0614054
  %v418 = vmul.f32 %v409, 1.0614054
  %v419 = vmul.f32 %v411, 1.0614054
  %v420 = vsub.f32 %v412, 1.4531521
  %v421 = vsub.f32 %v413, 1.4531521
  %v422 = vsub.f32 %v414, 1.4531521
  %v423 = vsub.f32 %v415, 1.4531521
  %v424 = vsub.f32 %v416, 1.4531521
  %v425 = vsub.f32 %v417, 1.4531521
  %v426 = vsub.f32 %v418, 1.4531521
  %v427 = vsub.f32 %v419, 1.4531521
  %v428 = vmul.f32 %v420, %v397
  %v429 = vmul.f32 %v421, %v399
  %v430 = vmul.f32 %v422, %v401
  %v431 = vmul.f32 %v423, %v403
  %v432 = vmul.f32 %v424, %v405
  %v433 = vmul.f32 %v425, %v407
  %v434 = vmul.f32 %v426, %v409
  %v435 = vmul.f32 %v427, %v411
  %v436 = vadd.f32 %v428, 1.4214138
  %v437 = vadd.f32 %v429, 1.4214138
  %v438 = vadd.f32 %v430, 1.4214138
  %v439 = vadd.f32 %v431, 1.4214138
  %v440 = vadd.f32 %v432, 1.4214138
  %v441 = vadd.f32 %v433, 1.4214138
  %v442 = vadd.f32 %v434, 1.4214138
  %v443 = vadd.f32 %v435, 1.4214138
  %v444 = vmul.f32 %v436, %v397
  %v445 = vmul.f32 %v437, %v399
  %v446 = vmul.f32 %v438, %v401
  %v447 = vmul.f32 %v439, %v403
  %v448 = vmul.f32 %v440, %v405
  %v449 = vmul.f32 %v441, %v407
  %v450 = vmul.f32 %v442, %v409
  %v451 = vmul.f32 %v443, %v411
  %v452 = vsub.f32 %v444, 0.28449672
  %v453 = vsub.f32 %v445, 0.28449672
  %v454 = vsub.f32 %v446, 0.28449672
  %v455 = vsub.f32 %v447, 0.28449672
  %v456 = vsub.f32 %v448, 0.28449672
  %v457 = vsub.f32 %v449, 0.28449672
  %v458 = vsub.f32 %v450, 0.28449672
  %v459 = vsub.f32 %v451, 0.28449672
  %v460 = vmul.f32 %v452, %v397
  %v461 = vmul.f32 %v453, %v399
  %v462 = vmul.f32 %v454, %v401
  %v463 = vmul.f32 %v455, %v403
  %v464 = vmul.f32 %v456, %v405
  %v465 = vmul.f32 %v457, %v407
  %v466 = vmul.f32 %v458, %v409
  %v467 = vmul.f32 %v459, %v411
  %v468 = vadd.f32 %v460, 0.2548296
  %v469 = vadd.f32 %v461, 0.2548296
  %v470 = vadd.f32 %v462, 0.2548296
  %v471 = vadd.f32 %v463, 0.2548296
  %v472 = vadd.f32 %v464, 0.2548296
  %v473 = vadd.f32 %v465, 0.2548296
  %v474 = vadd.f32 %v466, 0.2548296
  %v475 = vadd.f32 %v467, 0.2548296
  %v476 = vmul.f32 %v468, %v397
  %v477 = vmul.f32 %v469, %v399
  %v478 = vmul.f32 %v470, %v401
  %v479 = vmul.f32 %v471, %v403
  %v480 = vmul.f32 %v472, %v405
  %v481 = vmul.f32 %v473, %v407
  %v482 = vmul.f32 %v474, %v409
  %v483 = vmul.f32 %v475, %v411
  %v484 = vsub.f32 0.0, %v364
  %v485 = vsub.f32 0.0, %v365
  %v486 = vsub.f32 0.0, %v366
  %v487 = vsub.f32 0.0, %v367
  %v488 = vsub.f32 0.0, %v368
  %v489 = vsub.f32 0.0, %v369
  %v490 = vsub.f32 0.0, %v370
  %v491 = vsub.f32 0.0, %v371
  %v492 = vmul.f32 %v484, %v364
  %v493 = vmul.f32 %v485, %v365
  %v494 = vmul.f32 %v486, %v366
  %v495 = vmul.f32 %v487, %v367
  %v496 = vmul.f32 %v488, %v368
  %v497 = vmul.f32 %v489, %v369
  %v498 = vmul.f32 %v490, %v370
  %v499 = vmul.f32 %v491, %v371
  %v500 = vmul.f32 %v492, 1.442695
  %v501 = vpow.pop %v500
  %v502 = vmul.f32 %v493, 1.442695
  %v503 = vpow.pop %v502
  %v504 = vmul.f32 %v494, 1.442695
  %v505 = vpow.pop %v504
  %v506 = vmul.f32 %v495, 1.442695
  %v507 = vpow.pop %v506
  %v508 = vmul.f32 %v496, 1.442695
  %v509 = vpow.pop %v508
  %v510 = vmul.f32 %v497, 1.442695
  %v511 = vpow.pop %v510
  %v512 = vmul.f32 %v498, 1.442695
  %v513 = vpow.pop %v512
  %v514 = vmul.f32 %v499, 1.442695
  %v515 = vpow.pop %v514
  %v516 = vmul.f32 %v476, %v501
  %v517 = vmul.f32 %v477, %v503
  %v518 = vmul.f32 %v478, %v505
  %v519 = vmul.f32 %v479, %v507
  %v520 = vmul.f32 %v480, %v509
  %v521 = vmul.f32 %v481, %v511
  %v522 = vmul.f32 %v482, %v513
  %v523 = vmul.f32 %v483, %v515
  %v524 = vsub.f32 1.0, %v516
  %v525 = vsub.f32 1.0, %v517
  %v526 = vsub.f32 1.0, %v518
  %v527 = vsub.f32 1.0, %v519
  %v528 = vsub.f32 1.0, %v520
  %v529 = vsub.f32 1.0, %v521
  %v530 = vsub.f32 1.0, %v522
  %v531 = vsub.f32 1.0, %v523
  %vm532 = vcmp.ge.f32.partialorder %v364, 0.0
  %vm533 = vcmp.ge.f32.partialorder %v365, 0.0
  %vm534 = vcmp.ge.f32.partialorder %v366, 0.0
  %vm535 = vcmp.ge.f32.partialorder %v367, 0.0
  %vm536 = vcmp.ge.f32.partialorder %v368, 0.0
  %vm537 = vcmp.ge.f32.partialorder %v369, 0.0
  %vm538 = vcmp.ge.f32.partialorder %v370, 0.0
  %vm539 = vcmp.ge.f32.partialorder %v371, 0.0
  %v540 = vsub.f32 0.0, %v524
  %v541 = vsub.f32 0.0, %v525
  %v542 = vsub.f32 0.0, %v526
  %v543 = vsub.f32 0.0, %v527
  %v544 = vsub.f32 0.0, %v528
  %v545 = vsub.f32 0.0, %v529
  %v546 = vsub.f32 0.0, %v530
  %v547 = vsub.f32 0.0, %v531
  %v548 = vsel %vm532, %v524, %v540
  %v549 = vsel %vm533, %v525, %v541
  %v550 = vsel %vm534, %v526, %v542
  %v551 = vsel %vm535, %v527, %v543
  %v552 = vsel %vm536, %v528, %v544
  %v553 = vsel %vm537, %v529, %v545
  %v554 = vsel %vm538, %v530, %v546
  %v555 = vsel %vm539, %v531, %v547
  %v556 = vadd.f32 %v548, 1.0
  %v557 = vadd.f32 %v549, 1.0
  %v558 = vadd.f32 %v550, 1.0
  %v559 = vadd.f32 %v551, 1.0
  %v560 = vadd.f32 %v552, 1.0
  %v561 = vadd.f32 %v553, 1.0
  %v562 = vadd.f32 %v554, 1.0
  %v563 = vadd.f32 %v555, 1.0
  %v564 = vmul.f32 %v356, %v556
  %v565 = vmul.f32 %v357, %v557
  %v566 = vmul.f32 %v358, %v558
  %v567 = vmul.f32 %v359, %v559
  %v568 = vmul.f32 %v360, %v560
  %v569 = vmul.f32 %v361, %v561
  %v570 = vmul.f32 %v362, %v562
  %v571 = vmul.f32 %v363, %v563
  %v572 = vld [vmem:[%s5] sm:$0xff]
  %v573 = vld [vmem:[%s5 + $0x8] sm:$0xff]
  %v574 = vld [vmem:[%s5 + $0x10] sm:$0xff]
  %v575 = vld [vmem:[%s5 + $0x18] sm:$0xff]
  %v576 = vld [vmem:[%s5 + $0x20] sm:$0xff]
  %v577 = vld [vmem:[%s5 + $0x28] sm:$0xff]
  %v578 = vld [vmem:[%s5 + $0x30] sm:$0xff]
  %v579 = vld [vmem:[%s5 + $0x38] sm:$0xff]
  %v580 = vld [vmem:[%s5 + $0x40] sm:$0xff]
  %v581 = vld [vmem:[%s5 + $0x48] sm:$0xff]
  %v582 = vld [vmem:[%s5 + $0x50] sm:$0xff]
  %v583 = vld [vmem:[%s5 + $0x58] sm:$0xff]
  %v584 = vld [vmem:[%s5 + $0x60] sm:$0xff]
  %v585 = vld [vmem:[%s5 + $0x68] sm:$0xff]
  %v586 = vld [vmem:[%s5 + $0x70] sm:$0xff]
  %v587 = vld [vmem:[%s5 + $0x78] sm:$0xff]
  %v588 = vld [vmem:[%s5 + $0x80] sm:$0xff]
  %v589 = vld [vmem:[%s5 + $0x88] sm:$0xff]
  %v590 = vld [vmem:[%s5 + $0x90] sm:$0xff]
  %v591 = vld [vmem:[%s5 + $0x98] sm:$0xff]
  %v592 = vld [vmem:[%s5 + $0xa0] sm:$0xff]
  %v593 = vld [vmem:[%s5 + $0xa8] sm:$0xff]
  %v594 = vld [vmem:[%s5 + $0xb0] sm:$0xff]
  %v595 = vld [vmem:[%s5 + $0xb8] sm:$0xff]
  %v596 = vld [vmem:[%s5 + $0xc0] sm:$0xff]
  %v597 = vld [vmem:[%s5 + $0xc8] sm:$0xff]
  %v598 = vld [vmem:[%s5 + $0xd0] sm:$0xff]
  %v599 = vld [vmem:[%s5 + $0xd8] sm:$0xff]
  %v600 = vld [vmem:[%s5 + $0xe0] sm:$0xff]
  %v601 = vld [vmem:[%s5 + $0xe8] sm:$0xff]
  %v602 = vld [vmem:[%s5 + $0xf0] sm:$0xff]
  %v603 = vld [vmem:[%s5 + $0xf8] sm:$0xff]
  %v604 = vld [vmem:[%s6] sm:$0x1]
  %v606 = vlaneseq
  %v607 = vshrl.u32 %v606, 7
  %v608 = vsub.s32 0, %v607
  %v609 = vrot.slane %v604, %v608
  %611 = vmatprep.subr.mxu0 0.0
  %612 = vmatpush1.msra.mxu0 %v587
  %613 = vmatprep.subr.mxu0 0.0
  %614 = vmatpush1.msra.mxu0 %v586
  %615 = vmatprep.subr.mxu0 0.0
  %616 = vmatpush1.msra.mxu0 %v585
  %617 = vmatprep.subr.mxu0 0.0
  %618 = vmatpush1.msra.mxu0 %v584
  %619 = vmatprep.subr.mxu0 0.0
  %620 = vmatpush1.msra.mxu0 %v583
  %621 = vmatprep.subr.mxu0 0.0
  %622 = vmatpush1.msra.mxu0 %v582
  %623 = vmatprep.subr.mxu0 0.0
  %624 = vmatpush1.msra.mxu0 %v581
  %625 = vmatprep.subr.mxu0 0.0
  %626 = vmatpush1.msra.mxu0 %v580
  %627 = vmatprep.subr.mxu0 0.0
  %628 = vmatpush1.msra.mxu0 %v579
  %629 = vmatprep.subr.mxu0 0.0
  %630 = vmatpush1.msra.mxu0 %v578
  %631 = vmatprep.subr.mxu0 0.0
  %632 = vmatpush1.msra.mxu0 %v577
  %633 = vmatprep.subr.mxu0 0.0
  %634 = vmatpush1.msra.mxu0 %v576
  %635 = vmatprep.subr.mxu0 0.0
  %636 = vmatpush1.msra.mxu0 %v575
  %637 = vmatprep.subr.mxu0 0.0
  %638 = vmatpush1.msra.mxu0 %v574
  %639 = vmatprep.subr.mxu0 0.0
  %640 = vmatpush1.msra.mxu0 %v573
  %641 = vmatprep.subr.mxu0 0.0
  %642 = vmatpush1.msra.mxu0 %v572
  %643 = vmatprep.subr.mxu0 0.0
  %644 = vmatpush2.msra.mxu0 %v603
  %645 = vmatprep.subr.mxu0 0.0
  %646 = vmatpush2.msra.mxu0 %v602
  %647 = vmatprep.subr.mxu0 0.0
  %648 = vmatpush2.msra.mxu0 %v601
  %649 = vmatprep.subr.mxu0 0.0
  %650 = vmatpush2.msra.mxu0 %v600
  %651 = vmatprep.subr.mxu0 0.0
  %652 = vmatpush2.msra.mxu0 %v599
  %653 = vmatprep.subr.mxu0 0.0
  %654 = vmatpush2.msra.mxu0 %v598
  %655 = vmatprep.subr.mxu0 0.0
  %656 = vmatpush2.msra.mxu0 %v597
  %657 = vmatprep.subr.mxu0 0.0
  %658 = vmatpush2.msra.mxu0 %v596
  %659 = vmatprep.subr.mxu0 0.0
  %660 = vmatpush2.msra.mxu0 %v595
  %661 = vmatprep.subr.mxu0 0.0
  %662 = vmatpush2.msra.mxu0 %v594
  %663 = vmatprep.subr.mxu0 0.0
  %664 = vmatpush2.msra.mxu0 %v593
  %665 = vmatprep.subr.mxu0 0.0
  %666 = vmatpush2.msra.mxu0 %v592
  %667 = vmatprep.subr.mxu0 0.0
  %668 = vmatpush2.msra.mxu0 %v591
  %669 = vmatprep.subr.mxu0 0.0
  %670 = vmatpush2.msra.mxu0 %v590
  %671 = vmatprep.subr.mxu0 0.0
  %672 = vmatpush2.msra.mxu0 %v589
  %673 = vmatprep.subr.mxu0 0.0
  %674 = vmatpush2.msra.mxu0 %v588
  %675 = vmatprep.mubr.f32.mxu0 %v565
  %676 = vmatmul.mubr.f32.gmra.mxu0 %v564
  %v677 = vpop.f32.mrf.mxu0
  %v678 = vadd.f32 %v609, %v677
  %v679 = vpop.f32.mrf.mxu0
  %680 = vmatprep.mubr.f32.mxu0 %v567
  %681 = vmatmul.mubr.f32.gmra.mxu0 %v566
  %v682 = vpop.f32.mrf.mxu0
  %v683 = vadd.f32 %v609, %v682
  %v684 = vpop.f32.mrf.mxu0
  %685 = vmatprep.mubr.f32.mxu0 %v569
  %686 = vmatmul.mubr.f32.gmra.mxu0 %v568
  %v687 = vpop.f32.mrf.mxu0
  %v688 = vadd.f32 %v609, %v687
  %v689 = vpop.f32.mrf.mxu0
  %690 = vmatprep.mubr.f32.mxu0 %v571
  %691 = vmatmul.mubr.f32.gmra.mxu0 %v570
  %v692 = vpop.f32.mrf.mxu0
  %v693 = vadd.f32 %v609, %v692
  %v694 = vpop.f32.mrf.mxu0
  %695 = vdwg.mxu0
  %v696 = vld [vmem:[%s7] sm:$0xff]
  %v697 = vld [vmem:[%s7 + $0x8] sm:$0xff]
  %v698 = vld [vmem:[%s7 + $0x10] sm:$0xff]
  %v699 = vld [vmem:[%s7 + $0x18] sm:$0xff]
  %v700 = vadd.f32 %v678, %v696
  %v701 = vadd.f32 %v683, %v697
  %v702 = vadd.f32 %v688, %v698
  %v703 = vadd.f32 %v693, %v699
  %704 = vst [vmem:[%s8] sm:$0xff] %v700
  %705 = vst [vmem:[%s8 + $0x8] sm:$0xff] %v701
  %706 = vst [vmem:[%s8 + $0x10] sm:$0xff] %v702
  %707 = vst [vmem:[%s8 + $0x18] sm:$0xff] %v703
  // Predicated region
  $region34: #{_lambda_.29} parent=0 // pred_check
    _
  $region35: #{_lambda_.29} parent=0 // pred_check_branch
    %709 = sbr.rel (0) target = $region37
  $region36: #{_lambda_.29} parent=0 // pred_region
    _
  $region37: #{_lambda_.29} parent=0 // pred_fallthru
    _
  // Predicated region
  $region38: #{_lambda_.29} parent=0 // pred_check
    _
  $region39: #{_lambda_.29} parent=0 // pred_check_branch
    %711 = sbr.rel (0) target = $region41
  $region40: #{_lambda_.29} parent=0 // pred_region
    _
  $region41: #{_lambda_.29} parent=0 // pred_fallthru
    _

// kernel: _lambda_.31
$region0: #{_lambda_.31}
  #allocation0 [shape = 'u32[]', space=smem, size = 0x4, offset = 0x4, fixed_abs, tag = 'smem constant byte address 0x4 - core index']
  #allocation1 [shape = 'u32[144,128]{1,0:T(1,128)}', space=vmem, size = 0x12000, scoped, tag = 'internal scratch']
  %s0 = inlined_call_operand.vmem [shape: f32[9,128,128], index: 0, kind: input, shape index: {}]
  %s1 = inlined_call_operand.vmem [shape: f32[9,1,128], index: 1, kind: input, shape index: {}]
  %s2 = inlined_call_operand.vmem [shape: f32[1,128], index: 2, kind: input, shape index: {}]
  %s3 = inlined_call_operand.vmem [shape: f32[128,256], index: 3, kind: input, shape index: {}]
  %s4 = inlined_call_operand.vmem [shape: f32[1,256], index: 4, kind: input, shape index: {}]
  %s5 = inlined_call_operand.vmem [shape: f32[256,128], index: 5, kind: input, shape index: {}]
  %s6 = inlined_call_operand.vmem [shape: f32[1,128], index: 6, kind: input, shape index: {}]
  %s7 = inlined_call_operand.vmem [shape: f32[128,128], index: 7, kind: input, shape index: {}]
  %s8 = inlined_call_operand.vmem [shape: f32[128,128], index: 8, kind: output, shape index: {}]
  %s9 = sld [smem:[#allocation0]]
  $region42: #{_lambda_.31} parent=0
    _
  %s11 = ssub.s32 1, %s9
  %s12 = scalar_select 0, %s11, %s9
  // Predicated region
  $region2: #{_lambda_.31} parent=0 // pred_check
    _
  $region3: #{_lambda_.31} parent=0 // pred_check_branch
    %14 = sbr.rel (0) target = $region5
  $region4: #{_lambda_.31} parent=0 // pred_region
    _
  $region5: #{_lambda_.31} parent=0 // pred_fallthru
    _
  // Predicated region
  $region6: #{_lambda_.31} parent=0 // pred_check
    _
  $region7: #{_lambda_.31} parent=0 // pred_check_branch
    %16 = sbr.rel (0) target = $region9
  $region8: #{_lambda_.31} parent=0 // pred_region
    _
  $region9: #{_lambda_.31} parent=0 // pred_fallthru
    _
  // Predicated region
  $region10: #{_lambda_.31} parent=0 // pred_check
    _
  $region11: #{_lambda_.31} parent=0 // pred_check_branch
    %18 = sbr.rel (0) target = $region13
  $region12: #{_lambda_.31} parent=0 // pred_region
    _
  $region13: #{_lambda_.31} parent=0 // pred_fallthru
    _
  // Predicated region
  $region14: #{_lambda_.31} parent=0 // pred_check
    _
  $region15: #{_lambda_.31} parent=0 // pred_check_branch
    %20 = sbr.rel (0) target = $region17
  $region16: #{_lambda_.31} parent=0 // pred_region
    _
  $region17: #{_lambda_.31} parent=0 // pred_fallthru
    _
  // Predicated region
  $region18: #{_lambda_.31} parent=0 // pred_check
    _
  $region19: #{_lambda_.31} parent=0 // pred_check_branch
    %22 = sbr.rel (0) target = $region21
  $region20: #{_lambda_.31} parent=0 // pred_region
    _
  $region21: #{_lambda_.31} parent=0 // pred_fallthru
    _
  // Predicated region
  $region22: #{_lambda_.31} parent=0 // pred_check
    _
  $region23: #{_lambda_.31} parent=0 // pred_check_branch
    %24 = sbr.rel (0) target = $region25
  $region24: #{_lambda_.31} parent=0 // pred_region
    _
  $region25: #{_lambda_.31} parent=0 // pred_fallthru
    _
  // Predicated region
  $region26: #{_lambda_.31} parent=0 // pred_check
    _
  $region27: #{_lambda_.31} parent=0 // pred_check_branch
    %26 = sbr.rel (0) target = $region29
  $region28: #{_lambda_.31} parent=0 // pred_region
    _
  $region29: #{_lambda_.31} parent=0 // pred_fallthru
    _
  // Predicated region
  $region30: #{_lambda_.31} parent=0 // pred_check
    _
  $region31: #{_lambda_.31} parent=0 // pred_check_branch
    %28 = sbr.rel (0) target = $region33
  $region32: #{_lambda_.31} parent=0 // pred_region
    _
  $region33: #{_lambda_.31} parent=0 // pred_fallthru
    _
  %v29 = vld [vmem:[%s0] sm:$0xff]
  %v30 = vld [vmem:[%s0 + $0x8] sm:$0xff]
  %v31 = vld [vmem:[%s0 + $0x10] sm:$0xff]
  %v32 = vld [vmem:[%s0 + $0x18] sm:$0xff]
  %v33 = vld [vmem:[%s0 + $0x20] sm:$0xff]
  %v34 = vld [vmem:[%s0 + $0x28] sm:$0xff]
  %v35 = vld [vmem:[%s0 + $0x30] sm:$0xff]
  %v36 = vld [vmem:[%s0 + $0x38] sm:$0xff]
  %v37 = vld [vmem:[%s0 + $0x40] sm:$0xff]
  %v38 = vld [vmem:[%s0 + $0x48] sm:$0xff]
  %v39 = vld [vmem:[%s0 + $0x50] sm:$0xff]
  %v40 = vld [vmem:[%s0 + $0x58] sm:$0xff]
  %v41 = vld [vmem:[%s0 + $0x60] sm:$0xff]
  %v42 = vld [vmem:[%s0 + $0x68] sm:$0xff]
  %v43 = vld [vmem:[%s0 + $0x70] sm:$0xff]
  %v44 = vld [vmem:[%s0 + $0x78] sm:$0xff]
  %v45 = vld [vmem:[%s1] sm:$0x1]
  %v47 = vlaneseq
  %v48 = vshrl.u32 %v47, 7
  %v49 = vsub.s32 0, %v48
  %v50 = vrot.slane %v45, %v49
  %v52 = vmul.f32 %v29, %v50
  %v53 = vmul.f32 %v30, %v50
  %v54 = vmul.f32 %v31, %v50
  %v55 = vmul.f32 %v32, %v50
  %v56 = vmul.f32 %v33, %v50
  %v57 = vmul.f32 %v34, %v50
  %v58 = vmul.f32 %v35, %v50
  %v59 = vmul.f32 %v36, %v50
  %v60 = vmul.f32 %v37, %v50
  %v61 = vmul.f32 %v38, %v50
  %v62 = vmul.f32 %v39, %v50
  %v63 = vmul.f32 %v40, %v50
  %v64 = vmul.f32 %v41, %v50
  %v65 = vmul.f32 %v42, %v50
  %v66 = vmul.f32 %v43, %v50
  %v67 = vmul.f32 %v44, %v50
  %s68 = scalar_lea.vmem %s0, 128
  %v69 = vld [vmem:[%s68] sm:$0xff]
  %v70 = vld [vmem:[%s68 + $0x8] sm:$0xff]
  %v71 = vld [vmem:[%s68 + $0x10] sm:$0xff]
  %v72 = vld [vmem:[%s68 + $0x18] sm:$0xff]
  %v73 = vld [vmem:[%s68 + $0x20] sm:$0xff]
  %v74 = vld [vmem:[%s68 + $0x28] sm:$0xff]
  %v75 = vld [vmem:[%s68 + $0x30] sm:$0xff]
  %v76 = vld [vmem:[%s68 + $0x38] sm:$0xff]
  %v77 = vld [vmem:[%s68 + $0x40] sm:$0xff]
  %v78 = vld [vmem:[%s68 + $0x48] sm:$0xff]
  %v79 = vld [vmem:[%s68 + $0x50] sm:$0xff]
  %v80 = vld [vmem:[%s68 + $0x58] sm:$0xff]
  %v81 = vld [vmem:[%s68 + $0x60] sm:$0xff]
  %v82 = vld [vmem:[%s68 + $0x68] sm:$0xff]
  %v83 = vld [vmem:[%s68 + $0x70] sm:$0xff]
  %v84 = vld [vmem:[%s68 + $0x78] sm:$0xff]
  %s85 = scalar_lea.vmem %s1, 1
  %v86 = vld [vmem:[%s85] sm:$0x1]
  %v88 = vlaneseq
  %v89 = vshrl.u32 %v88, 7
  %v90 = vsub.s32 0, %v89
  %v91 = vrot.slane %v86, %v90
  %v93 = vmul.f32 %v69, %v91
  %v94 = vmul.f32 %v70, %v91
  %v95 = vmul.f32 %v71, %v91
  %v96 = vmul.f32 %v72, %v91
  %v97 = vmul.f32 %v73, %v91
  %v98 = vmul.f32 %v74, %v91
  %v99 = vmul.f32 %v75, %v91
  %v100 = vmul.f32 %v76, %v91
  %v101 = vmul.f32 %v77, %v91
  %v102 = vmul.f32 %v78, %v91
  %v103 = vmul.f32 %v79, %v91
  %v104 = vmul.f32 %v80, %v91
  %v105 = vmul.f32 %v81, %v91
  %v106 = vmul.f32 %v82, %v91
  %v107 = vmul.f32 %v83, %v91
  %v108 = vmul.f32 %v84, %v91
  %v109 = vadd.f32 %v52, %v93
  %v110 = vadd.f32 %v53, %v94
  %v111 = vadd.f32 %v54, %v95
  %v112 = vadd.f32 %v55, %v96
  %v113 = vadd.f32 %v56, %v97
  %v114 = vadd.f32 %v57, %v98
  %v115 = vadd.f32 %v58, %v99
  %v116 = vadd.f32 %v59, %v100
  %v117 = vadd.f32 %v60, %v101
  %v118 = vadd.f32 %v61, %v102
  %v119 = vadd.f32 %v62, %v103
  %v120 = vadd.f32 %v63, %v104
  %v121 = vadd.f32 %v64, %v105
  %v122 = vadd.f32 %v65, %v106
  %v123 = vadd.f32 %v66, %v107
  %v124 = vadd.f32 %v67, %v108
  %s125 = scalar_lea.vmem %s0, 256
  %v126 = vld [vmem:[%s125] sm:$0xff]
  %v127 = vld [vmem:[%s125 + $0x8] sm:$0xff]
  %v128 = vld [vmem:[%s125 + $0x10] sm:$0xff]
  %v129 = vld [vmem:[%s125 + $0x18] sm:$0xff]
  %v130 = vld [vmem:[%s125 + $0x20] sm:$0xff]
  %v131 = vld [vmem:[%s125 + $0x28] sm:$0xff]
  %v132 = vld [vmem:[%s125 + $0x30] sm:$0xff]
  %v133 = vld [vmem:[%s125 + $0x38] sm:$0xff]
  %v134 = vld [vmem:[%s125 + $0x40] sm:$0xff]
  %v135 = vld [vmem:[%s125 + $0x48] sm:$0xff]
  %v136 = vld [vmem:[%s125 + $0x50] sm:$0xff]
  %v137 = vld [vmem:[%s125 + $0x58] sm:$0xff]
  %v138 = vld [vmem:[%s125 + $0x60] sm:$0xff]
  %v139 = vld [vmem:[%s125 + $0x68] sm:$0xff]
  %v140 = vld [vmem:[%s125 + $0x70] sm:$0xff]
  %v141 = vld [vmem:[%s125 + $0x78] sm:$0xff]
  %s142 = scalar_lea.vmem %s1, 2
  %v143 = vld [vmem:[%s142] sm:$0x1]
  %v145 = vlaneseq
  %v146 = vshrl.u32 %v145, 7
  %v147 = vsub.s32 0, %v146
  %v148 = vrot.slane %v143, %v147
  %v150 = vmul.f32 %v126, %v148
  %v151 = vmul.f32 %v127, %v148
  %v152 = vmul.f32 %v128, %v148
  %v153 = vmul.f32 %v129, %v148
  %v154 = vmul.f32 %v130, %v148
  %v155 = vmul.f32 %v131, %v148
  %v156 = vmul.f32 %v132, %v148
  %v157 = vmul.f32 %v133, %v148
  %v158 = vmul.f32 %v134, %v148
  %v159 = vmul.f32 %v135, %v148
  %v160 = vmul.f32 %v136, %v148
  %v161 = vmul.f32 %v137, %v148
  %v162 = vmul.f32 %v138, %v148
  %v163 = vmul.f32 %v139, %v148
  %v164 = vmul.f32 %v140, %v148
  %v165 = vmul.f32 %v141, %v148
  %v166 = vadd.f32 %v109, %v150
  %v167 = vadd.f32 %v110, %v151
  %v168 = vadd.f32 %v111, %v152
  %v169 = vadd.f32 %v112, %v153
  %v170 = vadd.f32 %v113, %v154
  %v171 = vadd.f32 %v114, %v155
  %v172 = vadd.f32 %v115, %v156
  %v173 = vadd.f32 %v116, %v157
  %v174 = vadd.f32 %v117, %v158
  %v175 = vadd.f32 %v118, %v159
  %v176 = vadd.f32 %v119, %v160
  %v177 = vadd.f32 %v120, %v161
  %v178 = vadd.f32 %v121, %v162
  %v179 = vadd.f32 %v122, %v163
  %v180 = vadd.f32 %v123, %v164
  %v181 = vadd.f32 %v124, %v165
  %s182 = scalar_lea.vmem %s0, 384
  %v183 = vld [vmem:[%s182] sm:$0xff]
  %v184 = vld [vmem:[%s182 + $0x8] sm:$0xff]
  %v185 = vld [vmem:[%s182 + $0x10] sm:$0xff]
  %v186 = vld [vmem:[%s182 + $0x18] sm:$0xff]
  %v187 = vld [vmem:[%s182 + $0x20] sm:$0xff]
  %v188 = vld [vmem:[%s182 + $0x28] sm:$0xff]
  %v189 = vld [vmem:[%s182 + $0x30] sm:$0xff]
  %v190 = vld [vmem:[%s182 + $0x38] sm:$0xff]
  %v191 = vld [vmem:[%s182 + $0x40] sm:$0xff]
  %v192 = vld [vmem:[%s182 + $0x48] sm:$0xff]
  %v193 = vld [vmem:[%s182 + $0x50] sm:$0xff]
  %v194 = vld [vmem:[%s182 + $0x58] sm:$0xff]
  %v195 = vld [vmem:[%s182 + $0x60] sm:$0xff]
  %v196 = vld [vmem:[%s182 + $0x68] sm:$0xff]
  %v197 = vld [vmem:[%s182 + $0x70] sm:$0xff]
  %v198 = vld [vmem:[%s182 + $0x78] sm:$0xff]
  %s199 = scalar_lea.vmem %s1, 3
  %v200 = vld [vmem:[%s199] sm:$0x1]
  %v202 = vlaneseq
  %v203 = vshrl.u32 %v202, 7
  %v204 = vsub.s32 0, %v203
  %v205 = vrot.slane %v200, %v204
  %v207 = vmul.f32 %v183, %v205
  %v208 = vmul.f32 %v184, %v205
  %v209 = vmul.f32 %v185, %v205
  %v210 = vmul.f32 %v186, %v205
  %v211 = vmul.f32 %v187, %v205
  %v212 = vmul.f32 %v188, %v205
  %v213 = vmul.f32 %v189, %v205
  %v214 = vmul.f32 %v190, %v205
  %v215 = vmul.f32 %v191, %v205
  %v216 = vmul.f32 %v192, %v205
  %v217 = vmul.f32 %v193, %v205
  %v218 = vmul.f32 %v194, %v205
  %v219 = vmul.f32 %v195, %v205
  %v220 = vmul.f32 %v196, %v205
  %v221 = vmul.f32 %v197, %v205
  %v222 = vmul.f32 %v198, %v205
  %v223 = vadd.f32 %v166, %v207
  %v224 = vadd.f32 %v167, %v208
  %v225 = vadd.f32 %v168, %v209
  %v226 = vadd.f32 %v169, %v210
  %v227 = vadd.f32 %v170, %v211
  %v228 = vadd.f32 %v171, %v212
  %v229 = vadd.f32 %v172, %v213
  %v230 = vadd.f32 %v173, %v214
  %v231 = vadd.f32 %v174, %v215
  %v232 = vadd.f32 %v175, %v216
  %v233 = vadd.f32 %v176, %v217
  %v234 = vadd.f32 %v177, %v218
  %v235 = vadd.f32 %v178, %v219
  %v236 = vadd.f32 %v179, %v220
  %v237 = vadd.f32 %v180, %v221
  %v238 = vadd.f32 %v181, %v222
  %s239 = scalar_lea.vmem %s0, 512
  %v240 = vld [vmem:[%s239] sm:$0xff]
  %v241 = vld [vmem:[%s239 + $0x8] sm:$0xff]
  %v242 = vld [vmem:[%s239 + $0x10] sm:$0xff]
  %v243 = vld [vmem:[%s239 + $0x18] sm:$0xff]
  %v244 = vld [vmem:[%s239 + $0x20] sm:$0xff]
  %v245 = vld [vmem:[%s239 + $0x28] sm:$0xff]
  %v246 = vld [vmem:[%s239 + $0x30] sm:$0xff]
  %v247 = vld [vmem:[%s239 + $0x38] sm:$0xff]
  %v248 = vld [vmem:[%s239 + $0x40] sm:$0xff]
  %v249 = vld [vmem:[%s239 + $0x48] sm:$0xff]
  %v250 = vld [vmem:[%s239 + $0x50] sm:$0xff]
  %v251 = vld [vmem:[%s239 + $0x58] sm:$0xff]
  %v252 = vld [vmem:[%s239 + $0x60] sm:$0xff]
  %v253 = vld [vmem:[%s239 + $0x68] sm:$0xff]
  %v254 = vld [vmem:[%s239 + $0x70] sm:$0xff]
  %v255 = vld [vmem:[%s239 + $0x78] sm:$0xff]
  %s256 = scalar_lea.vmem %s1, 4
  %v257 = vld [vmem:[%s256] sm:$0x1]
  %v259 = vlaneseq
  %v260 = vshrl.u32 %v259, 7
  %v261 = vsub.s32 0, %v260
  %v262 = vrot.slane %v257, %v261
  %v264 = vmul.f32 %v240, %v262
  %v265 = vmul.f32 %v241, %v262
  %v266 = vmul.f32 %v242, %v262
  %v267 = vmul.f32 %v243, %v262
  %v268 = vmul.f32 %v244, %v262
  %v269 = vmul.f32 %v245, %v262
  %v270 = vmul.f32 %v246, %v262
  %v271 = vmul.f32 %v247, %v262
  %v272 = vmul.f32 %v248, %v262
  %v273 = vmul.f32 %v249, %v262
  %v274 = vmul.f32 %v250, %v262
  %v275 = vmul.f32 %v251, %v262
  %v276 = vmul.f32 %v252, %v262
  %v277 = vmul.f32 %v253, %v262
  %v278 = vmul.f32 %v254, %v262
  %v279 = vmul.f32 %v255, %v262
  %v280 = vadd.f32 %v223, %v264
  %v281 = vadd.f32 %v224, %v265
  %v282 = vadd.f32 %v225, %v266
  %v283 = vadd.f32 %v226, %v267
  %v284 = vadd.f32 %v227, %v268
  %v285 = vadd.f32 %v228, %v269
  %v286 = vadd.f32 %v229, %v270
  %v287 = vadd.f32 %v230, %v271
  %v288 = vadd.f32 %v231, %v272
  %v289 = vadd.f32 %v232, %v273
  %v290 = vadd.f32 %v233, %v274
  %v291 = vadd.f32 %v234, %v275
  %v292 = vadd.f32 %v235, %v276
  %v293 = vadd.f32 %v236, %v277
  %v294 = vadd.f32 %v237, %v278
  %v295 = vadd.f32 %v238, %v279
  %s296 = scalar_lea.vmem %s0, 640
  %v297 = vld [vmem:[%s296] sm:$0xff]
  %v298 = vld [vmem:[%s296 + $0x8] sm:$0xff]
  %v299 = vld [vmem:[%s296 + $0x10] sm:$0xff]
  %v300 = vld [vmem:[%s296 + $0x18] sm:$0xff]
  %v301 = vld [vmem:[%s296 + $0x20] sm:$0xff]
  %v302 = vld [vmem:[%s296 + $0x28] sm:$0xff]
  %v303 = vld [vmem:[%s296 + $0x30] sm:$0xff]
  %v304 = vld [vmem:[%s296 + $0x38] sm:$0xff]
  %v305 = vld [vmem:[%s296 + $0x40] sm:$0xff]
  %v306 = vld [vmem:[%s296 + $0x48] sm:$0xff]
  %v307 = vld [vmem:[%s296 + $0x50] sm:$0xff]
  %v308 = vld [vmem:[%s296 + $0x58] sm:$0xff]
  %v309 = vld [vmem:[%s296 + $0x60] sm:$0xff]
  %v310 = vld [vmem:[%s296 + $0x68] sm:$0xff]
  %v311 = vld [vmem:[%s296 + $0x70] sm:$0xff]
  %v312 = vld [vmem:[%s296 + $0x78] sm:$0xff]
  %s313 = scalar_lea.vmem %s1, 5
  %v314 = vld [vmem:[%s313] sm:$0x1]
  %v316 = vlaneseq
  %v317 = vshrl.u32 %v316, 7
  %v318 = vsub.s32 0, %v317
  %v319 = vrot.slane %v314, %v318
  %v321 = vmul.f32 %v297, %v319
  %v322 = vmul.f32 %v298, %v319
  %v323 = vmul.f32 %v299, %v319
  %v324 = vmul.f32 %v300, %v319
  %v325 = vmul.f32 %v301, %v319
  %v326 = vmul.f32 %v302, %v319
  %v327 = vmul.f32 %v303, %v319
  %v328 = vmul.f32 %v304, %v319
  %v329 = vmul.f32 %v305, %v319
  %v330 = vmul.f32 %v306, %v319
  %v331 = vmul.f32 %v307, %v319
  %v332 = vmul.f32 %v308, %v319
  %v333 = vmul.f32 %v309, %v319
  %v334 = vmul.f32 %v310, %v319
  %v335 = vmul.f32 %v311, %v319
  %v336 = vmul.f32 %v312, %v319
  %v337 = vadd.f32 %v280, %v321
  %v338 = vadd.f32 %v281, %v322
  %v339 = vadd.f32 %v282, %v323
  %v340 = vadd.f32 %v283, %v324
  %v341 = vadd.f32 %v284, %v325
  %v342 = vadd.f32 %v285, %v326
  %v343 = vadd.f32 %v286, %v327
  %v344 = vadd.f32 %v287, %v328
  %v345 = vadd.f32 %v288, %v329
  %v346 = vadd.f32 %v289, %v330
  %v347 = vadd.f32 %v290, %v331
  %v348 = vadd.f32 %v291, %v332
  %v349 = vadd.f32 %v292, %v333
  %v350 = vadd.f32 %v293, %v334
  %v351 = vadd.f32 %v294, %v335
  %v352 = vadd.f32 %v295, %v336
  %s353 = scalar_lea.vmem %s0, 768
  %v354 = vld [vmem:[%s353] sm:$0xff]
  %v355 = vld [vmem:[%s353 + $0x8] sm:$0xff]
  %v356 = vld [vmem:[%s353 + $0x10] sm:$0xff]
  %v357 = vld [vmem:[%s353 + $0x18] sm:$0xff]
  %v358 = vld [vmem:[%s353 + $0x20] sm:$0xff]
  %v359 = vld [vmem:[%s353 + $0x28] sm:$0xff]
  %v360 = vld [vmem:[%s353 + $0x30] sm:$0xff]
  %v361 = vld [vmem:[%s353 + $0x38] sm:$0xff]
  %v362 = vld [vmem:[%s353 + $0x40] sm:$0xff]
  %v363 = vld [vmem:[%s353 + $0x48] sm:$0xff]
  %v364 = vld [vmem:[%s353 + $0x50] sm:$0xff]
  %v365 = vld [vmem:[%s353 + $0x58] sm:$0xff]
  %v366 = vld [vmem:[%s353 + $0x60] sm:$0xff]
  %v367 = vld [vmem:[%s353 + $0x68] sm:$0xff]
  %v368 = vld [vmem:[%s353 + $0x70] sm:$0xff]
  %v369 = vld [vmem:[%s353 + $0x78] sm:$0xff]
  %s370 = scalar_lea.vmem %s1, 6
  %v371 = vld [vmem:[%s370] sm:$0x1]
  %v373 = vlaneseq
  %v374 = vshrl.u32 %v373, 7
  %v375 = vsub.s32 0, %v374
  %v376 = vrot.slane %v371, %v375
  %v378 = vmul.f32 %v354, %v376
  %v379 = vmul.f32 %v355, %v376
  %v380 = vmul.f32 %v356, %v376
  %v381 = vmul.f32 %v357, %v376
  %v382 = vmul.f32 %v358, %v376
  %v383 = vmul.f32 %v359, %v376
  %v384 = vmul.f32 %v360, %v376
  %v385 = vmul.f32 %v361, %v376
  %v386 = vmul.f32 %v362, %v376
  %v387 = vmul.f32 %v363, %v376
  %v388 = vmul.f32 %v364, %v376
  %v389 = vmul.f32 %v365, %v376
  %v390 = vmul.f32 %v366, %v376
  %v391 = vmul.f32 %v367, %v376
  %v392 = vmul.f32 %v368, %v376
  %v393 = vmul.f32 %v369, %v376
  %v394 = vadd.f32 %v337, %v378
  %v395 = vadd.f32 %v338, %v379
  %v396 = vadd.f32 %v339, %v380
  %v397 = vadd.f32 %v340, %v381
  %v398 = vadd.f32 %v341, %v382
  %v399 = vadd.f32 %v342, %v383
  %v400 = vadd.f32 %v343, %v384
  %v401 = vadd.f32 %v344, %v385
  %v402 = vadd.f32 %v345, %v386
  %v403 = vadd.f32 %v346, %v387
  %v404 = vadd.f32 %v347, %v388
  %v405 = vadd.f32 %v348, %v389
  %v406 = vadd.f32 %v349, %v390
  %v407 = vadd.f32 %v350, %v391
  %v408 = vadd.f32 %v351, %v392
  %v409 = vadd.f32 %v352, %v393
  %s410 = scalar_lea.vmem %s0, 896
  %v411 = vld [vmem:[%s410] sm:$0xff]
  %v412 = vld [vmem:[%s410 + $0x8] sm:$0xff]
  %v413 = vld [vmem:[%s410 + $0x10] sm:$0xff]
  %v414 = vld [vmem:[%s410 + $0x18] sm:$0xff]
  %v415 = vld [vmem:[%s410 + $0x20] sm:$0xff]
  %v416 = vld [vmem:[%s410 + $0x28] sm:$0xff]
  %v417 = vld [vmem:[%s410 + $0x30] sm:$0xff]
  %v418 = vld [vmem:[%s410 + $0x38] sm:$0xff]
  %v419 = vld [vmem:[%s410 + $0x40] sm:$0xff]
  %v420 = vld [vmem:[%s410 + $0x48] sm:$0xff]
  %v421 = vld [vmem:[%s410 + $0x50] sm:$0xff]
  %v422 = vld [vmem:[%s410 + $0x58] sm:$0xff]
  %v423 = vld [vmem:[%s410 + $0x60] sm:$0xff]
  %v424 = vld [vmem:[%s410 + $0x68] sm:$0xff]
  %v425 = vld [vmem:[%s410 + $0x70] sm:$0xff]
  %v426 = vld [vmem:[%s410 + $0x78] sm:$0xff]
  %s427 = scalar_lea.vmem %s1, 7
  %v428 = vld [vmem:[%s427] sm:$0x1]
  %v430 = vlaneseq
  %v431 = vshrl.u32 %v430, 7
  %v432 = vsub.s32 0, %v431
  %v433 = vrot.slane %v428, %v432
  %v435 = vmul.f32 %v411, %v433
  %v436 = vmul.f32 %v412, %v433
  %v437 = vmul.f32 %v413, %v433
  %v438 = vmul.f32 %v414, %v433
  %v439 = vmul.f32 %v415, %v433
  %v440 = vmul.f32 %v416, %v433
  %v441 = vmul.f32 %v417, %v433
  %v442 = vmul.f32 %v418, %v433
  %v443 = vmul.f32 %v419, %v433
  %v444 = vmul.f32 %v420, %v433
  %v445 = vmul.f32 %v421, %v433
  %v446 = vmul.f32 %v422, %v433
  %v447 = vmul.f32 %v423, %v433
  %v448 = vmul.f32 %v424, %v433
  %v449 = vmul.f32 %v425, %v433
  %v450 = vmul.f32 %v426, %v433
  %v451 = vadd.f32 %v394, %v435
  %v452 = vadd.f32 %v395, %v436
  %v453 = vadd.f32 %v396, %v437
  %v454 = vadd.f32 %v397, %v438
  %v455 = vadd.f32 %v398, %v439
  %v456 = vadd.f32 %v399, %v440
  %v457 = vadd.f32 %v400, %v441
  %v458 = vadd.f32 %v401, %v442
  %v459 = vadd.f32 %v402, %v443
  %v460 = vadd.f32 %v403, %v444
  %v461 = vadd.f32 %v404, %v445
  %v462 = vadd.f32 %v405, %v446
  %v463 = vadd.f32 %v406, %v447
  %v464 = vadd.f32 %v407, %v448
  %v465 = vadd.f32 %v408, %v449
  %v466 = vadd.f32 %v409, %v450
  %s467 = scalar_lea.vmem %s0, 1024
  %v468 = vld [vmem:[%s467] sm:$0xff]
  %v469 = vld [vmem:[%s467 + $0x8] sm:$0xff]
  %v470 = vld [vmem:[%s467 + $0x10] sm:$0xff]
  %v471 = vld [vmem:[%s467 + $0x18] sm:$0xff]
  %v472 = vld [vmem:[%s467 + $0x20] sm:$0xff]
  %v473 = vld [vmem:[%s467 + $0x28] sm:$0xff]
  %v474 = vld [vmem:[%s467 + $0x30] sm:$0xff]
  %v475 = vld [vmem:[%s467 + $0x38] sm:$0xff]
  %v476 = vld [vmem:[%s467 + $0x40] sm:$0xff]
  %v477 = vld [vmem:[%s467 + $0x48] sm:$0xff]
  %v478 = vld [vmem:[%s467 + $0x50] sm:$0xff]
  %v479 = vld [vmem:[%s467 + $0x58] sm:$0xff]
  %v480 = vld [vmem:[%s467 + $0x60] sm:$0xff]
  %v481 = vld [vmem:[%s467 + $0x68] sm:$0xff]
  %v482 = vld [vmem:[%s467 + $0x70] sm:$0xff]
  %v483 = vld [vmem:[%s467 + $0x78] sm:$0xff]
  %s484 = scalar_lea.vmem %s1, 8
  %v485 = vld [vmem:[%s484] sm:$0x1]
  %v487 = vlaneseq
  %v488 = vshrl.u32 %v487, 7
  %v489 = vsub.s32 0, %v488
  %v490 = vrot.slane %v485, %v489
  %v492 = vmul.f32 %v468, %v490
  %v493 = vmul.f32 %v469, %v490
  %v494 = vmul.f32 %v470, %v490
  %v495 = vmul.f32 %v471, %v490
  %v496 = vmul.f32 %v472, %v490
  %v497 = vmul.f32 %v473, %v490
  %v498 = vmul.f32 %v474, %v490
  %v499 = vmul.f32 %v475, %v490
  %v500 = vmul.f32 %v476, %v490
  %v501 = vmul.f32 %v477, %v490
  %v502 = vmul.f32 %v478, %v490
  %v503 = vmul.f32 %v479, %v490
  %v504 = vmul.f32 %v480, %v490
  %v505 = vmul.f32 %v481, %v490
  %v506 = vmul.f32 %v482, %v490
  %v507 = vmul.f32 %v483, %v490
  %v508 = vadd.f32 %v451, %v492
  %v509 = vadd.f32 %v452, %v493
  %v510 = vadd.f32 %v453, %v494
  %v511 = vadd.f32 %v454, %v495
  %v512 = vadd.f32 %v455, %v496
  %v513 = vadd.f32 %v456, %v497
  %v514 = vadd.f32 %v457, %v498
  %v515 = vadd.f32 %v458, %v499
  %v516 = vadd.f32 %v459, %v500
  %v517 = vadd.f32 %v460, %v501
  %v518 = vadd.f32 %v461, %v502
  %v519 = vadd.f32 %v462, %v503
  %v520 = vadd.f32 %v463, %v504
  %v521 = vadd.f32 %v464, %v505
  %v522 = vadd.f32 %v465, %v506
  %v523 = vadd.f32 %v466, %v507
  %v524 = vld [vmem:[%s2] sm:$0x1]
  %v526 = vlaneseq
  %v527 = vshrl.u32 %v526, 7
  %v528 = vsub.s32 0, %v527
  %v529 = vrot.slane %v524, %v528
  %v531 = vadd.f32 %v508, %v529
  %v532 = vadd.f32 %v509, %v529
  %v533 = vadd.f32 %v510, %v529
  %v534 = vadd.f32 %v511, %v529
  %v535 = vadd.f32 %v512, %v529
  %v536 = vadd.f32 %v513, %v529
  %v537 = vadd.f32 %v514, %v529
  %v538 = vadd.f32 %v515, %v529
  %v539 = vadd.f32 %v516, %v529
  %v540 = vadd.f32 %v517, %v529
  %v541 = vadd.f32 %v518, %v529
  %v542 = vadd.f32 %v519, %v529
  %v543 = vadd.f32 %v520, %v529
  %v544 = vadd.f32 %v521, %v529
  %v545 = vadd.f32 %v522, %v529
  %v546 = vadd.f32 %v523, %v529
  %v547 = vld [vmem:[%s3] sm:$0xff]
  %v548 = vld [vmem:[%s3 + $0x8] sm:$0xff]
  %v549 = vld [vmem:[%s3 + $0x10] sm:$0xff]
  %v550 = vld [vmem:[%s3 + $0x18] sm:$0xff]
  %v551 = vld [vmem:[%s3 + $0x20] sm:$0xff]
  %v552 = vld [vmem:[%s3 + $0x28] sm:$0xff]
  %v553 = vld [vmem:[%s3 + $0x30] sm:$0xff]
  %v554 = vld [vmem:[%s3 + $0x38] sm:$0xff]
  %v555 = vld [vmem:[%s3 + $0x40] sm:$0xff]
  %v556 = vld [vmem:[%s3 + $0x48] sm:$0xff]
  %v557 = vld [vmem:[%s3 + $0x50] sm:$0xff]
  %v558 = vld [vmem:[%s3 + $0x58] sm:$0xff]
  %v559 = vld [vmem:[%s3 + $0x60] sm:$0xff]
  %v560 = vld [vmem:[%s3 + $0x68] sm:$0xff]
  %v561 = vld [vmem:[%s3 + $0x70] sm:$0xff]
  %v562 = vld [vmem:[%s3 + $0x78] sm:$0xff]
  %v563 = vld [vmem:[%s3 + $0x80] sm:$0xff]
  %v564 = vld [vmem:[%s3 + $0x88] sm:$0xff]
  %v565 = vld [vmem:[%s3 + $0x90] sm:$0xff]
  %v566 = vld [vmem:[%s3 + $0x98] sm:$0xff]
  %v567 = vld [vmem:[%s3 + $0xa0] sm:$0xff]
  %v568 = vld [vmem:[%s3 + $0xa8] sm:$0xff]
  %v569 = vld [vmem:[%s3 + $0xb0] sm:$0xff]
  %v570 = vld [vmem:[%s3 + $0xb8] sm:$0xff]
  %v571 = vld [vmem:[%s3 + $0xc0] sm:$0xff]
  %v572 = vld [vmem:[%s3 + $0xc8] sm:$0xff]
  %v573 = vld [vmem:[%s3 + $0xd0] sm:$0xff]
  %v574 = vld [vmem:[%s3 + $0xd8] sm:$0xff]
  %v575 = vld [vmem:[%s3 + $0xe0] sm:$0xff]
  %v576 = vld [vmem:[%s3 + $0xe8] sm:$0xff]
  %v577 = vld [vmem:[%s3 + $0xf0] sm:$0xff]
  %v578 = vld [vmem:[%s3 + $0xf8] sm:$0xff]
  %v579 = vld [vmem:[%s4] sm:$0x3]
  %v581 = vlaneseq
  %v582 = vshrl.u32 %v581, 7
  %v583 = vsub.s32 0, %v582
  %v584 = vrot.slane %v579, %v583
  %v585 = vlaneseq
  %v586 = vshrl.u32 %v585, 7
  %v587 = vsub.s32 1, %v586
  %v588 = vrot.slane %v579, %v587
  %591 = vmatprep.subr.mxu0 %v578
  %592 = vmatpush1.msra.mxu0 %v577
  %593 = vmatprep.subr.mxu0 %v576
  %594 = vmatpush1.msra.mxu0 %v575
  %595 = vmatprep.subr.mxu0 %v574
  %596 = vmatpush1.msra.mxu0 %v573
  %597 = vmatprep.subr.mxu0 %v572
  %598 = vmatpush1.msra.mxu0 %v571
  %599 = vmatprep.subr.mxu0 %v570
  %600 = vmatpush1.msra.mxu0 %v569
  %601 = vmatprep.subr.mxu0 %v568
  %602 = vmatpush1.msra.mxu0 %v567
  %603 = vmatprep.subr.mxu0 %v566
  %604 = vmatpush1.msra.mxu0 %v565
  %605 = vmatprep.subr.mxu0 %v564
  %606 = vmatpush1.msra.mxu0 %v563
  %607 = vmatprep.subr.mxu0 %v562
  %608 = vmatpush1.msra.mxu0 %v561
  %609 = vmatprep.subr.mxu0 %v560
  %610 = vmatpush1.msra.mxu0 %v559
  %611 = vmatprep.subr.mxu0 %v558
  %612 = vmatpush1.msra.mxu0 %v557
  %613 = vmatprep.subr.mxu0 %v556
  %614 = vmatpush1.msra.mxu0 %v555
  %615 = vmatprep.subr.mxu0 %v554
  %616 = vmatpush1.msra.mxu0 %v553
  %617 = vmatprep.subr.mxu0 %v552
  %618 = vmatpush1.msra.mxu0 %v551
  %619 = vmatprep.subr.mxu0 %v550
  %620 = vmatpush1.msra.mxu0 %v549
  %621 = vmatprep.subr.mxu0 %v548
  %622 = vmatpush1.msra.mxu0 %v547
  %623 = vmatprep.subr.mxu0 0.0
  %624 = vmatpush2.msra.mxu0 0.0
  %625 = vmatprep.subr.mxu0 0.0
  %626 = vmatpush2.msra.mxu0 0.0
  %627 = vmatprep.subr.mxu0 0.0
  %628 = vmatpush2.msra.mxu0 0.0
  %629 = vmatprep.subr.mxu0 0.0
  %630 = vmatpush2.msra.mxu0 0.0
  %631 = vmatprep.subr.mxu0 0.0
  %632 = vmatpush2.msra.mxu0 0.0
  %633 = vmatprep.subr.mxu0 0.0
  %634 = vmatpush2.msra.mxu0 0.0
  %635 = vmatprep.subr.mxu0 0.0
  %636 = vmatpush2.msra.mxu0 0.0
  %637 = vmatprep.subr.mxu0 0.0
  %638 = vmatpush2.msra.mxu0 0.0
  %639 = vmatprep.subr.mxu0 0.0
  %640 = vmatpush2.msra.mxu0 0.0
  %641 = vmatprep.subr.mxu0 0.0
  %642 = vmatpush2.msra.mxu0 0.0
  %643 = vmatprep.subr.mxu0 0.0
  %644 = vmatpush2.msra.mxu0 0.0
  %645 = vmatprep.subr.mxu0 0.0
  %646 = vmatpush2.msra.mxu0 0.0
  %647 = vmatprep.subr.mxu0 0.0
  %648 = vmatpush2.msra.mxu0 0.0
  %649 = vmatprep.subr.mxu0 0.0
  %650 = vmatpush2.msra.mxu0 0.0
  %651 = vmatprep.subr.mxu0 0.0
  %652 = vmatpush2.msra.mxu0 0.0
  %653 = vmatprep.subr.mxu0 0.0
  %654 = vmatpush2.msra.mxu0 0.0
  %655 = vmatprep.mubr.f32.mxu0 0.0
  %656 = vmatmul.mubr.f32.gmra.mxu0 %v531
  %v657 = vpop.f32.mrf.mxu0
  %v658 = vadd.f32 %v584, %v657
  %v659 = vpop.f32.mrf.mxu0
  %v660 = vadd.f32 %v588, %v659
  %661 = vmatprep.mubr.f32.mxu0 0.0
  %662 = vmatmul.mubr.f32.gmra.mxu0 %v532
  %v663 = vpop.f32.mrf.mxu0
  %v664 = vadd.f32 %v584, %v663
  %v665 = vpop.f32.mrf.mxu0
  %v666 = vadd.f32 %v588, %v665
  %667 = vmatprep.mubr.f32.mxu0 0.0
  %668 = vmatmul.mubr.f32.gmra.mxu0 %v533
  %v669 = vpop.f32.mrf.mxu0
  %v670 = vadd.f32 %v584, %v669
  %v671 = vpop.f32.mrf.mxu0
  %v672 = vadd.f32 %v588, %v671
  %673 = vmatprep.mubr.f32.mxu0 0.0
  %674 = vmatmul.mubr.f32.gmra.mxu0 %v534
  %v675 = vpop.f32.mrf.mxu0
  %v676 = vadd.f32 %v584, %v675
  %v677 = vpop.f32.mrf.mxu0
  %v678 = vadd.f32 %v588, %v677
  %679 = vmatprep.mubr.f32.mxu0 0.0
  %680 = vmatmul.mubr.f32.gmra.mxu0 %v535
  %v681 = vpop.f32.mrf.mxu0
  %v682 = vadd.f32 %v584, %v681
  %v683 = vpop.f32.mrf.mxu0
  %v684 = vadd.f32 %v588, %v683
  %685 = vmatprep.mubr.f32.mxu0 0.0
  %686 = vmatmul.mubr.f32.gmra.mxu0 %v536
  %v687 = vpop.f32.mrf.mxu0
  %v688 = vadd.f32 %v584, %v687
  %v689 = vpop.f32.mrf.mxu0
  %v690 = vadd.f32 %v588, %v689
  %691 = vmatprep.mubr.f32.mxu0 0.0
  %692 = vmatmul.mubr.f32.gmra.mxu0 %v537
  %v693 = vpop.f32.mrf.mxu0
  %v694 = vadd.f32 %v584, %v693
  %v695 = vpop.f32.mrf.mxu0
  %v696 = vadd.f32 %v588, %v695
  %697 = vmatprep.mubr.f32.mxu0 0.0
  %698 = vmatmul.mubr.f32.gmra.mxu0 %v538
  %v699 = vpop.f32.mrf.mxu0
  %v700 = vadd.f32 %v584, %v699
  %v701 = vpop.f32.mrf.mxu0
  %v702 = vadd.f32 %v588, %v701
  %703 = vmatprep.mubr.f32.mxu0 0.0
  %704 = vmatmul.mubr.f32.gmra.mxu0 %v539
  %v705 = vpop.f32.mrf.mxu0
  %v706 = vadd.f32 %v584, %v705
  %v707 = vpop.f32.mrf.mxu0
  %v708 = vadd.f32 %v588, %v707
  %709 = vmatprep.mubr.f32.mxu0 0.0
  %710 = vmatmul.mubr.f32.gmra.mxu0 %v540
  %v711 = vpop.f32.mrf.mxu0
  %v712 = vadd.f32 %v584, %v711
  %v713 = vpop.f32.mrf.mxu0
  %v714 = vadd.f32 %v588, %v713
  %715 = vmatprep.mubr.f32.mxu0 0.0
  %716 = vmatmul.mubr.f32.gmra.mxu0 %v541
  %v717 = vpop.f32.mrf.mxu0
  %v718 = vadd.f32 %v584, %v717
  %v719 = vpop.f32.mrf.mxu0
  %v720 = vadd.f32 %v588, %v719
  %721 = vmatprep.mubr.f32.mxu0 0.0
  %722 = vmatmul.mubr.f32.gmra.mxu0 %v542
  %v723 = vpop.f32.mrf.mxu0
  %v724 = vadd.f32 %v584, %v723
  %v725 = vpop.f32.mrf.mxu0
  %v726 = vadd.f32 %v588, %v725
  %727 = vmatprep.mubr.f32.mxu0 0.0
  %728 = vmatmul.mubr.f32.gmra.mxu0 %v543
  %v729 = vpop.f32.mrf.mxu0
  %v730 = vadd.f32 %v584, %v729
  %v731 = vpop.f32.mrf.mxu0
  %v732 = vadd.f32 %v588, %v731
  %733 = vmatprep.mubr.f32.mxu0 0.0
  %734 = vmatmul.mubr.f32.gmra.mxu0 %v544
  %v735 = vpop.f32.mrf.mxu0
  %v736 = vadd.f32 %v584, %v735
  %v737 = vpop.f32.mrf.mxu0
  %v738 = vadd.f32 %v588, %v737
  %739 = vmatprep.mubr.f32.mxu0 0.0
  %740 = vmatmul.mubr.f32.gmra.mxu0 %v545
  %v741 = vpop.f32.mrf.mxu0
  %v742 = vadd.f32 %v584, %v741
  %v743 = vpop.f32.mrf.mxu0
  %v744 = vadd.f32 %v588, %v743
  %745 = vmatprep.mubr.f32.mxu0 0.0
  %746 = vmatmul.mubr.f32.gmra.mxu0 %v546
  %v747 = vpop.f32.mrf.mxu0
  %v748 = vadd.f32 %v584, %v747
  %v749 = vpop.f32.mrf.mxu0
  %v750 = vadd.f32 %v588, %v749
  %751 = vdwg.mxu0
  %v752 = vmul.f32 %v658, 0.5
  %v753 = vmul.f32 %v660, 0.5
  %v754 = vmul.f32 %v664, 0.5
  %v755 = vmul.f32 %v666, 0.5
  %v756 = vmul.f32 %v670, 0.5
  %v757 = vmul.f32 %v672, 0.5
  %v758 = vmul.f32 %v676, 0.5
  %v759 = vmul.f32 %v678, 0.5
  %v760 = vmul.f32 %v682, 0.5
  %v761 = vmul.f32 %v684, 0.5
  %v762 = vmul.f32 %v688, 0.5
  %v763 = vmul.f32 %v690, 0.5
  %v764 = vmul.f32 %v694, 0.5
  %v765 = vmul.f32 %v696, 0.5
  %v766 = vmul.f32 %v700, 0.5
  %v767 = vmul.f32 %v702, 0.5
  %v768 = vmul.f32 %v706, 0.5
  %v769 = vmul.f32 %v708, 0.5
  %v770 = vmul.f32 %v712, 0.5
  %v771 = vmul.f32 %v714, 0.5
  %v772 = vmul.f32 %v718, 0.5
  %v773 = vmul.f32 %v720, 0.5
  %v774 = vmul.f32 %v724, 0.5
  %v775 = vmul.f32 %v726, 0.5
  %v776 = vmul.f32 %v730, 0.5
  %v777 = vmul.f32 %v732, 0.5
  %v778 = vmul.f32 %v736, 0.5
  %v779 = vmul.f32 %v738, 0.5
  %v780 = vmul.f32 %v742, 0.5
  %v781 = vmul.f32 %v744, 0.5
  %v782 = vmul.f32 %v748, 0.5
  %v783 = vmul.f32 %v750, 0.5
  %v784 = vmul.f32 %v658, 0.70710677
  %v785 = vmul.f32 %v660, 0.70710677
  %v786 = vmul.f32 %v664, 0.70710677
  %v787 = vmul.f32 %v666, 0.70710677
  %v788 = vmul.f32 %v670, 0.70710677
  %v789 = vmul.f32 %v672, 0.70710677
  %v790 = vmul.f32 %v676, 0.70710677
  %v791 = vmul.f32 %v678, 0.70710677
  %v792 = vmul.f32 %v682, 0.70710677
  %v793 = vmul.f32 %v684, 0.70710677
  %v794 = vmul.f32 %v688, 0.70710677
  %v795 = vmul.f32 %v690, 0.70710677
  %v796 = vmul.f32 %v694, 0.70710677
  %v797 = vmul.f32 %v696, 0.70710677
  %v798 = vmul.f32 %v700, 0.70710677
  %v799 = vmul.f32 %v702, 0.70710677
  %v800 = vmul.f32 %v706, 0.70710677
  %v801 = vmul.f32 %v708, 0.70710677
  %v802 = vmul.f32 %v712, 0.70710677
  %v803 = vmul.f32 %v714, 0.70710677
  %v804 = vmul.f32 %v718, 0.70710677
  %v805 = vmul.f32 %v720, 0.70710677
  %v806 = vmul.f32 %v724, 0.70710677
  %v807 = vmul.f32 %v726, 0.70710677
  %v808 = vmul.f32 %v730, 0.70710677
  %v809 = vmul.f32 %v732, 0.70710677
  %v810 = vmul.f32 %v736, 0.70710677
  %v811 = vmul.f32 %v738, 0.70710677
  %v812 = vmul.f32 %v742, 0.70710677
  %v813 = vmul.f32 %v744, 0.70710677
  %v814 = vmul.f32 %v748, 0.70710677
  %v815 = vmul.f32 %v750, 0.70710677
  %v816 = vand.u32 2147483647, %v784
  %v817 = vand.u32 2147483647, %v785
  %v818 = vand.u32 2147483647, %v786
  %v819 = vand.u32 2147483647, %v787
  %v820 = vand.u32 2147483647, %v788
  %v821 = vand.u32 2147483647, %v789
  %v822 = vand.u32 2147483647, %v790
  %v823 = vand.u32 2147483647, %v791
  %v824 = vand.u32 2147483647, %v792
  %v825 = vand.u32 2147483647, %v793
  %v826 = vand.u32 2147483647, %v794
  %v827 = vand.u32 2147483647, %v795
  %v828 = vand.u32 2147483647, %v796
  %v829 = vand.u32 2147483647, %v797
  %v830 = vand.u32 2147483647, %v798
  %v831 = vand.u32 2147483647, %v799
  %v832 = vand.u32 2147483647, %v800
  %v833 = vand.u32 2147483647, %v801
  %v834 = vand.u32 2147483647, %v802
  %v835 = vand.u32 2147483647, %v803
  %v836 = vand.u32 2147483647, %v804
  %v837 = vand.u32 2147483647, %v805
  %v838 = vand.u32 2147483647, %v806
  %v839 = vand.u32 2147483647, %v807
  %v840 = vand.u32 2147483647, %v808
  %v841 = vand.u32 2147483647, %v809
  %v842 = vand.u32 2147483647, %v810
  %v843 = vand.u32 2147483647, %v811
  %v844 = vand.u32 2147483647, %v812
  %v845 = vand.u32 2147483647, %v813
  %v846 = vand.u32 2147483647, %v814
  %v847 = vand.u32 2147483647, %v815
  %v848 = vmul.f32 %v816, 0.3275911
  %v849 = vmul.f32 %v817, 0.3275911
  %v850 = vmul.f32 %v818, 0.3275911
  %v851 = vmul.f32 %v819, 0.3275911
  %v852 = vmul.f32 %v820, 0.3275911
  %v853 = vmul.f32 %v821, 0.3275911
  %v854 = vmul.f32 %v822, 0.3275911
  %v855 = vmul.f32 %v823, 0.3275911
  %v856 = vmul.f32 %v824, 0.3275911
  %v857 = vmul.f32 %v825, 0.3275911
  %v858 = vmul.f32 %v826, 0.3275911
  %v859 = vmul.f32 %v827, 0.3275911
  %v860 = vmul.f32 %v828, 0.3275911
  %v861 = vmul.f32 %v829, 0.3275911
  %v862 = vmul.f32 %v830, 0.3275911
  %v863 = vmul.f32 %v831, 0.3275911
  %v864 = vmul.f32 %v832, 0.3275911
  %v865 = vmul.f32 %v833, 0.3275911
  %v866 = vmul.f32 %v834, 0.3275911
  %v867 = vmul.f32 %v835, 0.3275911
  %v868 = vmul.f32 %v836, 0.3275911
  %v869 = vmul.f32 %v837, 0.3275911
  %v870 = vmul.f32 %v838, 0.3275911
  %v871 = vmul.f32 %v839, 0.3275911
  %v872 = vmul.f32 %v840, 0.3275911
  %v873 = vmul.f32 %v841, 0.3275911
  %v874 = vmul.f32 %v842, 0.3275911
  %v875 = vmul.f32 %v843, 0.3275911
  %v876 = vmul.f32 %v844, 0.3275911
  %v877 = vmul.f32 %v845, 0.3275911
  %v878 = vmul.f32 %v846, 0.3275911
  %v879 = vmul.f32 %v847, 0.3275911
  %v880 = vadd.f32 %v848, 1.0
  %v881 = vadd.f32 %v849, 1.0
  %v882 = vadd.f32 %v850, 1.0
  %v883 = vadd.f32 %v851, 1.0
  %v884 = vadd.f32 %v852, 1.0
  %v885 = vadd.f32 %v853, 1.0
  %v886 = vadd.f32 %v854, 1.0
  %v887 = vadd.f32 %v855, 1.0
  %v888 = vadd.f32 %v856, 1.0
  %v889 = vadd.f32 %v857, 1.0
  %v890 = vadd.f32 %v858, 1.0
  %v891 = vadd.f32 %v859, 1.0
  %v892 = vadd.f32 %v860, 1.0
  %v893 = vadd.f32 %v861, 1.0
  %v894 = vadd.f32 %v862, 1.0
  %v895 = vadd.f32 %v863, 1.0
  %v896 = vadd.f32 %v864, 1.0
  %v897 = vadd.f32 %v865, 1.0
  %v898 = vadd.f32 %v866, 1.0
  %v899 = vadd.f32 %v867, 1.0
  %v900 = vadd.f32 %v868, 1.0
  %v901 = vadd.f32 %v869, 1.0
  %v902 = vadd.f32 %v870, 1.0
  %v903 = vadd.f32 %v871, 1.0
  %v904 = vadd.f32 %v872, 1.0
  %v905 = vadd.f32 %v873, 1.0
  %v906 = vadd.f32 %v874, 1.0
  %v907 = vadd.f32 %v875, 1.0
  %v908 = vadd.f32 %v876, 1.0
  %v909 = vadd.f32 %v877, 1.0
  %v910 = vadd.f32 %v878, 1.0
  %v911 = vadd.f32 %v879, 1.0
  %v912 = vrcp.pop %v880
  %v913 = vmul.f32 1.0, %v912
  %v914 = vrcp.pop %v881
  %v915 = vmul.f32 1.0, %v914
  %v916 = vrcp.pop %v882
  %v917 = vmul.f32 1.0, %v916
  %v918 = vrcp.pop %v883
  %v919 = vmul.f32 1.0, %v918
  %v920 = vrcp.pop %v884
  %v921 = vmul.f32 1.0, %v920
  %v922 = vrcp.pop %v885
  %v923 = vmul.f32 1.0, %v922
  %v924 = vrcp.pop %v886
  %v925 = vmul.f32 1.0, %v924
  %v926 = vrcp.pop %v887
  %v927 = vmul.f32 1.0, %v926
  %v928 = vrcp.pop %v888
  %v929 = vmul.f32 1.0, %v928
  %v930 = vrcp.pop %v889
  %v931 = vmul.f32 1.0, %v930
  %v932 = vrcp.pop %v890
  %v933 = vmul.f32 1.0, %v932
  %v934 = vrcp.pop %v891
  %v935 = vmul.f32 1.0, %v934
  %v936 = vrcp.pop %v892
  %v937 = vmul.f32 1.0, %v936
  %v938 = vrcp.pop %v893
  %v939 = vmul.f32 1.0, %v938
  %v940 = vrcp.pop %v894
  %v941 = vmul.f32 1.0, %v940
  %v942 = vrcp.pop %v895
  %v943 = vmul.f32 1.0, %v942
  %v944 = vrcp.pop %v896
  %v945 = vmul.f32 1.0, %v944
  %v946 = vrcp.pop %v897
  %v947 = vmul.f32 1.0, %v946
  %v948 = vrcp.pop %v898
  %v949 = vmul.f32 1.0, %v948
  %v950 = vrcp.pop %v899
  %v951 = vmul.f32 1.0, %v950
  %v952 = vrcp.pop %v900
  %v953 = vmul.f32 1.0, %v952
  %v954 = vrcp.pop %v901
  %v955 = vmul.f32 1.0, %v954
  %v956 = vrcp.pop %v902
  %v957 = vmul.f32 1.0, %v956
  %v958 = vrcp.pop %v903
  %v959 = vmul.f32 1.0, %v958
  %v960 = vrcp.pop %v904
  %v961 = vmul.f32 1.0, %v960
  %v962 = vrcp.pop %v905
  %v963 = vmul.f32 1.0, %v962
  %v964 = vrcp.pop %v906
  %v965 = vmul.f32 1.0, %v964
  %v966 = vrcp.pop %v907
  %v967 = vmul.f32 1.0, %v966
  %v968 = vrcp.pop %v908
  %v969 = vmul.f32 1.0, %v968
  %v970 = vrcp.pop %v909
  %v971 = vmul.f32 1.0, %v970
  %v972 = vrcp.pop %v910
  %v973 = vmul.f32 1.0, %v972
  %v974 = vrcp.pop %v911
  %v975 = vmul.f32 1.0, %v974
  %v976 = vmul.f32 %v913, 1.0614054
  %v977 = vmul.f32 %v915, 1.0614054
  %v978 = vmul.f32 %v917, 1.0614054
  %v979 = vmul.f32 %v919, 1.0614054
  %v980 = vmul.f32 %v921, 1.0614054
  %v981 = vmul.f32 %v923, 1.0614054
  %v982 = vmul.f32 %v925, 1.0614054
  %v983 = vmul.f32 %v927, 1.0614054
  %v984 = vmul.f32 %v929, 1.0614054
  %v985 = vmul.f32 %v931, 1.0614054
  %v986 = vmul.f32 %v933, 1.0614054
  %v987 = vmul.f32 %v935, 1.0614054
  %v988 = vmul.f32 %v937, 1.0614054
  %v989 = vmul.f32 %v939, 1.0614054
  %v990 = vmul.f32 %v941, 1.0614054
  %v991 = vmul.f32 %v943, 1.0614054
  %v992 = vmul.f32 %v945, 1.0614054
  %v993 = vmul.f32 %v947, 1.0614054
  %v994 = vmul.f32 %v949, 1.0614054
  %v995 = vmul.f32 %v951, 1.0614054
  %v996 = vmul.f32 %v953, 1.0614054
  %v997 = vmul.f32 %v955, 1.0614054
  %v998 = vmul.f32 %v957, 1.0614054
  %v999 = vmul.f32 %v959, 1.0614054
  %v1000 = vmul.f32 %v961, 1.0614054
  %v1001 = vmul.f32 %v963, 1.0614054
  %v1002 = vmul.f32 %v965, 1.0614054
  %v1003 = vmul.f32 %v967, 1.0614054
  %v1004 = vmul.f32 %v969, 1.0614054
  %v1005 = vmul.f32 %v971, 1.0614054
  %v1006 = vmul.f32 %v973, 1.0614054
  %v1007 = vmul.f32 %v975, 1.0614054
  %v1008 = vsub.f32 %v976, 1.4531521
  %v1009 = vsub.f32 %v977, 1.4531521
  %v1010 = vsub.f32 %v978, 1.4531521
  %v1011 = vsub.f32 %v979, 1.4531521
  %v1012 = vsub.f32 %v980, 1.4531521
  %v1013 = vsub.f32 %v981, 1.4531521
  %v1014 = vsub.f32 %v982, 1.4531521
  %v1015 = vsub.f32 %v983, 1.4531521
  %v1016 = vsub.f32 %v984, 1.4531521
  %v1017 = vsub.f32 %v985, 1.4531521
  %v1018 = vsub.f32 %v986, 1.4531521
  %v1019 = vsub.f32 %v987, 1.4531521
  %v1020 = vsub.f32 %v988, 1.4531521
  %v1021 = vsub.f32 %v989, 1.4531521
  %v1022 = vsub.f32 %v990, 1.4531521
  %v1023 = vsub.f32 %v991, 1.4531521
  %v1024 = vsub.f32 %v992, 1.4531521
  %v1025 = vsub.f32 %v993, 1.4531521
  %v1026 = vsub.f32 %v994, 1.4531521
  %v1027 = vsub.f32 %v995, 1.4531521
  %v1028 = vsub.f32 %v996, 1.4531521
  %v1029 = vsub.f32 %v997, 1.4531521
  %v1030 = vsub.f32 %v998, 1.4531521
  %v1031 = vsub.f32 %v999, 1.4531521
  %v1032 = vsub.f32 %v1000, 1.4531521
  %v1033 = vsub.f32 %v1001, 1.4531521
  %v1034 = vsub.f32 %v1002, 1.4531521
  %v1035 = vsub.f32 %v1003, 1.4531521
  %v1036 = vsub.f32 %v1004, 1.4531521
  %v1037 = vsub.f32 %v1005, 1.4531521
  %v1038 = vsub.f32 %v1006, 1.4531521
  %v1039 = vsub.f32 %v1007, 1.4531521
  %v1040 = vmul.f32 %v1008, %v913
  %v1041 = vmul.f32 %v1009, %v915
  %v1042 = vmul.f32 %v1010, %v917
  %v1043 = vmul.f32 %v1011, %v919
  %v1044 = vmul.f32 %v1012, %v921
  %v1045 = vmul.f32 %v1013, %v923
  %v1046 = vmul.f32 %v1014, %v925
  %v1047 = vmul.f32 %v1015, %v927
  %v1048 = vmul.f32 %v1016, %v929
  %v1049 = vmul.f32 %v1017, %v931
  %v1050 = vmul.f32 %v1018, %v933
  %v1051 = vmul.f32 %v1019, %v935
  %v1052 = vmul.f32 %v1020, %v937
  %v1053 = vmul.f32 %v1021, %v939
  %v1054 = vmul.f32 %v1022, %v941
  %v1055 = vmul.f32 %v1023, %v943
  %v1056 = vmul.f32 %v1024, %v945
  %v1057 = vmul.f32 %v1025, %v947
  %v1058 = vmul.f32 %v1026, %v949
  %v1059 = vmul.f32 %v1027, %v951
  %v1060 = vmul.f32 %v1028, %v953
  %v1061 = vmul.f32 %v1029, %v955
  %v1062 = vmul.f32 %v1030, %v957
  %v1063 = vmul.f32 %v1031, %v959
  %v1064 = vmul.f32 %v1032, %v961
  %v1065 = vmul.f32 %v1033, %v963
  %v1066 = vmul.f32 %v1034, %v965
  %v1067 = vmul.f32 %v1035, %v967
  %v1068 = vmul.f32 %v1036, %v969
  %v1069 = vmul.f32 %v1037, %v971
  %v1070 = vmul.f32 %v1038, %v973
  %v1071 = vmul.f32 %v1039, %v975
  %v1072 = vadd.f32 %v1040, 1.4214138
  %v1073 = vadd.f32 %v1041, 1.4214138
  %v1074 = vadd.f32 %v1042, 1.4214138
  %v1075 = vadd.f32 %v1043, 1.4214138
  %v1076 = vadd.f32 %v1044, 1.4214138
  %v1077 = vadd.f32 %v1045, 1.4214138
  %v1078 = vadd.f32 %v1046, 1.4214138
  %v1079 = vadd.f32 %v1047, 1.4214138
  %v1080 = vadd.f32 %v1048, 1.4214138
  %v1081 = vadd.f32 %v1049, 1.4214138
  %v1082 = vadd.f32 %v1050, 1.4214138
  %v1083 = vadd.f32 %v1051, 1.4214138
  %v1084 = vadd.f32 %v1052, 1.4214138
  %v1085 = vadd.f32 %v1053, 1.4214138
  %v1086 = vadd.f32 %v1054, 1.4214138
  %v1087 = vadd.f32 %v1055, 1.4214138
  %v1088 = vadd.f32 %v1056, 1.4214138
  %v1089 = vadd.f32 %v1057, 1.4214138
  %v1090 = vadd.f32 %v1058, 1.4214138
  %v1091 = vadd.f32 %v1059, 1.4214138
  %v1092 = vadd.f32 %v1060, 1.4214138
  %v1093 = vadd.f32 %v1061, 1.4214138
  %v1094 = vadd.f32 %v1062, 1.4214138
  %v1095 = vadd.f32 %v1063, 1.4214138
  %v1096 = vadd.f32 %v1064, 1.4214138
  %v1097 = vadd.f32 %v1065, 1.4214138
  %v1098 = vadd.f32 %v1066, 1.4214138
  %v1099 = vadd.f32 %v1067, 1.4214138
  %v1100 = vadd.f32 %v1068, 1.4214138
  %v1101 = vadd.f32 %v1069, 1.4214138
  %v1102 = vadd.f32 %v1070, 1.4214138
  %v1103 = vadd.f32 %v1071, 1.4214138
  %v1104 = vmul.f32 %v1072, %v913
  %v1105 = vmul.f32 %v1073, %v915
  %v1106 = vmul.f32 %v1074, %v917
  %v1107 = vmul.f32 %v1075, %v919
  %v1108 = vmul.f32 %v1076, %v921
  %v1109 = vmul.f32 %v1077, %v923
  %v1110 = vmul.f32 %v1078, %v925
  %v1111 = vmul.f32 %v1079, %v927
  %v1112 = vmul.f32 %v1080, %v929
  %v1113 = vmul.f32 %v1081, %v931
  %v1114 = vmul.f32 %v1082, %v933
  %v1115 = vmul.f32 %v1083, %v935
  %v1116 = vmul.f32 %v1084, %v937
  %v1117 = vmul.f32 %v1085, %v939
  %v1118 = vmul.f32 %v1086, %v941
  %v1119 = vmul.f32 %v1087, %v943
  %v1120 = vmul.f32 %v1088, %v945
  %v1121 = vmul.f32 %v1089, %v947
  %v1122 = vmul.f32 %v1090, %v949
  %v1123 = vmul.f32 %v1091, %v951
  %v1124 = vmul.f32 %v1092, %v953
  %v1125 = vmul.f32 %v1093, %v955
  %v1126 = vmul.f32 %v1094, %v957
  %v1127 = vmul.f32 %v1095, %v959
  %v1128 = vmul.f32 %v1096, %v961
  %v1129 = vmul.f32 %v1097, %v963
  %v1130 = vmul.f32 %v1098, %v965
  %v1131 = vmul.f32 %v1099, %v967
  %v1132 = vmul.f32 %v1100, %v969
  %v1133 = vmul.f32 %v1101, %v971
  %v1134 = vmul.f32 %v1102, %v973
  %v1135 = vmul.f32 %v1103, %v975
  %v1136 = vsub.f32 %v1104, 0.28449672
  %v1137 = vsub.f32 %v1105, 0.28449672
  %v1138 = vsub.f32 %v1106, 0.28449672
  %v1139 = vsub.f32 %v1107, 0.28449672
  %v1140 = vsub.f32 %v1108, 0.28449672
  %v1141 = vsub.f32 %v1109, 0.28449672
  %v1142 = vsub.f32 %v1110, 0.28449672
  %v1143 = vsub.f32 %v1111, 0.28449672
  %v1144 = vsub.f32 %v1112, 0.28449672
  %v1145 = vsub.f32 %v1113, 0.28449672
  %v1146 = vsub.f32 %v1114, 0.28449672
  %v1147 = vsub.f32 %v1115, 0.28449672
  %v1148 = vsub.f32 %v1116, 0.28449672
  %v1149 = vsub.f32 %v1117, 0.28449672
  %v1150 = vsub.f32 %v1118, 0.28449672
  %v1151 = vsub.f32 %v1119, 0.28449672
  %v1152 = vsub.f32 %v1120, 0.28449672
  %v1153 = vsub.f32 %v1121, 0.28449672
  %v1154 = vsub.f32 %v1122, 0.28449672
  %v1155 = vsub.f32 %v1123, 0.28449672
  %v1156 = vsub.f32 %v1124, 0.28449672
  %v1157 = vsub.f32 %v1125, 0.28449672
  %v1158 = vsub.f32 %v1126, 0.28449672
  %v1159 = vsub.f32 %v1127, 0.28449672
  %v1160 = vsub.f32 %v1128, 0.28449672
  %v1161 = vsub.f32 %v1129, 0.28449672
  %v1162 = vsub.f32 %v1130, 0.28449672
  %v1163 = vsub.f32 %v1131, 0.28449672
  %v1164 = vsub.f32 %v1132, 0.28449672
  %v1165 = vsub.f32 %v1133, 0.28449672
  %v1166 = vsub.f32 %v1134, 0.28449672
  %v1167 = vsub.f32 %v1135, 0.28449672
  %v1168 = vmul.f32 %v1136, %v913
  %v1169 = vmul.f32 %v1137, %v915
  %v1170 = vmul.f32 %v1138, %v917
  %v1171 = vmul.f32 %v1139, %v919
  %v1172 = vmul.f32 %v1140, %v921
  %v1173 = vmul.f32 %v1141, %v923
  %v1174 = vmul.f32 %v1142, %v925
  %v1175 = vmul.f32 %v1143, %v927
  %v1176 = vmul.f32 %v1144, %v929
  %v1177 = vmul.f32 %v1145, %v931
  %v1178 = vmul.f32 %v1146, %v933
  %v1179 = vmul.f32 %v1147, %v935
  %v1180 = vmul.f32 %v1148, %v937
  %v1181 = vmul.f32 %v1149, %v939
  %v1182 = vmul.f32 %v1150, %v941
  %v1183 = vmul.f32 %v1151, %v943
  %v1184 = vmul.f32 %v1152, %v945
  %v1185 = vmul.f32 %v1153, %v947
  %v1186 = vmul.f32 %v1154, %v949
  %v1187 = vmul.f32 %v1155, %v951
  %v1188 = vmul.f32 %v1156, %v953
  %v1189 = vmul.f32 %v1157, %v955
  %v1190 = vmul.f32 %v1158, %v957
  %v1191 = vmul.f32 %v1159, %v959
  %v1192 = vmul.f32 %v1160, %v961
  %v1193 = vmul.f32 %v1161, %v963
  %v1194 = vmul.f32 %v1162, %v965
  %v1195 = vmul.f32 %v1163, %v967
  %v1196 = vmul.f32 %v1164, %v969
  %v1197 = vmul.f32 %v1165, %v971
  %v1198 = vmul.f32 %v1166, %v973
  %v1199 = vmul.f32 %v1167, %v975
  %v1200 = vadd.f32 %v1168, 0.2548296
  %v1201 = vadd.f32 %v1169, 0.2548296
  %v1202 = vadd.f32 %v1170, 0.2548296
  %v1203 = vadd.f32 %v1171, 0.2548296
  %v1204 = vadd.f32 %v1172, 0.2548296
  %v1205 = vadd.f32 %v1173, 0.2548296
  %v1206 = vadd.f32 %v1174, 0.2548296
  %v1207 = vadd.f32 %v1175, 0.2548296
  %v1208 = vadd.f32 %v1176, 0.2548296
  %v1209 = vadd.f32 %v1177, 0.2548296
  %v1210 = vadd.f32 %v1178, 0.2548296
  %v1211 = vadd.f32 %v1179, 0.2548296
  %v1212 = vadd.f32 %v1180, 0.2548296
  %v1213 = vadd.f32 %v1181, 0.2548296
  %v1214 = vadd.f32 %v1182, 0.2548296
  %v1215 = vadd.f32 %v1183, 0.2548296
  %v1216 = vadd.f32 %v1184, 0.2548296
  %v1217 = vadd.f32 %v1185, 0.2548296
  %v1218 = vadd.f32 %v1186, 0.2548296
  %v1219 = vadd.f32 %v1187, 0.2548296
  %v1220 = vadd.f32 %v1188, 0.2548296
  %v1221 = vadd.f32 %v1189, 0.2548296
  %v1222 = vadd.f32 %v1190, 0.2548296
  %v1223 = vadd.f32 %v1191, 0.2548296
  %v1224 = vadd.f32 %v1192, 0.2548296
  %v1225 = vadd.f32 %v1193, 0.2548296
  %v1226 = vadd.f32 %v1194, 0.2548296
  %v1227 = vadd.f32 %v1195, 0.2548296
  %v1228 = vadd.f32 %v1196, 0.2548296
  %v1229 = vadd.f32 %v1197, 0.2548296
  %v1230 = vadd.f32 %v1198, 0.2548296
  %v1231 = vadd.f32 %v1199, 0.2548296
  %v1232 = vmul.f32 %v1200, %v913
  %v1233 = vmul.f32 %v1201, %v915
  %v1234 = vmul.f32 %v1202, %v917
  %v1235 = vmul.f32 %v1203, %v919
  %v1236 = vmul.f32 %v1204, %v921
  %v1237 = vmul.f32 %v1205, %v923
  %v1238 = vmul.f32 %v1206, %v925
  %v1239 = vmul.f32 %v1207, %v927
  %v1240 = vmul.f32 %v1208, %v929
  %v1241 = vmul.f32 %v1209, %v931
  %v1242 = vmul.f32 %v1210, %v933
  %v1243 = vmul.f32 %v1211, %v935
  %v1244 = vmul.f32 %v1212, %v937
  %v1245 = vmul.f32 %v1213, %v939
  %v1246 = vmul.f32 %v1214, %v941
  %v1247 = vmul.f32 %v1215, %v943
  %v1248 = vmul.f32 %v1216, %v945
  %v1249 = vmul.f32 %v1217, %v947
  %v1250 = vmul.f32 %v1218, %v949
  %v1251 = vmul.f32 %v1219, %v951
  %v1252 = vmul.f32 %v1220, %v953
  %v1253 = vmul.f32 %v1221, %v955
  %v1254 = vmul.f32 %v1222, %v957
  %v1255 = vmul.f32 %v1223, %v959
  %v1256 = vmul.f32 %v1224, %v961
  %v1257 = vmul.f32 %v1225, %v963
  %v1258 = vmul.f32 %v1226, %v965
  %v1259 = vmul.f32 %v1227, %v967
  %v1260 = vmul.f32 %v1228, %v969
  %v1261 = vmul.f32 %v1229, %v971
  %v1262 = vmul.f32 %v1230, %v973
  %v1263 = vmul.f32 %v1231, %v975
  %v1264 = vsub.f32 0.0, %v784
  %v1265 = vsub.f32 0.0, %v785
  %v1266 = vsub.f32 0.0, %v786
  %v1267 = vsub.f32 0.0, %v787
  %v1268 = vsub.f32 0.0, %v788
  %v1269 = vsub.f32 0.0, %v789
  %v1270 = vsub.f32 0.0, %v790
  %v1271 = vsub.f32 0.0, %v791
  %v1272 = vsub.f32 0.0, %v792
  %v1273 = vsub.f32 0.0, %v793
  %v1274 = vsub.f32 0.0, %v794
  %v1275 = vsub.f32 0.0, %v795
  %v1276 = vsub.f32 0.0, %v796
  %v1277 = vsub.f32 0.0, %v797
  %v1278 = vsub.f32 0.0, %v798
  %v1279 = vsub.f32 0.0, %v799
  %v1280 = vsub.f32 0.0, %v800
  %v1281 = vsub.f32 0.0, %v801
  %v1282 = vsub.f32 0.0, %v802
  %v1283 = vsub.f32 0.0, %v803
  %v1284 = vsub.f32 0.0, %v804
  %v1285 = vsub.f32 0.0, %v805
  %v1286 = vsub.f32 0.0, %v806
  %v1287 = vsub.f32 0.0, %v807
  %v1288 = vsub.f32 0.0, %v808
  %v1289 = vsub.f32 0.0, %v809
  %v1290 = vsub.f32 0.0, %v810
  %v1291 = vsub.f32 0.0, %v811
  %v1292 = vsub.f32 0.0, %v812
  %v1293 = vsub.f32 0.0, %v813
  %v1294 = vsub.f32 0.0, %v814
  %v1295 = vsub.f32 0.0, %v815
  %v1296 = vmul.f32 %v1264, %v784
  %v1297 = vmul.f32 %v1265, %v785
  %v1298 = vmul.f32 %v1266, %v786
  %v1299 = vmul.f32 %v1267, %v787
  %v1300 = vmul.f32 %v1268, %v788
  %v1301 = vmul.f32 %v1269, %v789
  %v1302 = vmul.f32 %v1270, %v790
  %v1303 = vmul.f32 %v1271, %v791
  %v1304 = vmul.f32 %v1272, %v792
  %v1305 = vmul.f32 %v1273, %v793
  %v1306 = vmul.f32 %v1274, %v794
  %v1307 = vmul.f32 %v1275, %v795
  %v1308 = vmul.f32 %v1276, %v796
  %v1309 = vmul.f32 %v1277, %v797
  %v1310 = vmul.f32 %v1278, %v798
  %v1311 = vmul.f32 %v1279, %v799
  %v1312 = vmul.f32 %v1280, %v800
  %v1313 = vmul.f32 %v1281, %v801
  %v1314 = vmul.f32 %v1282, %v802
  %v1315 = vmul.f32 %v1283, %v803
  %v1316 = vmul.f32 %v1284, %v804
  %v1317 = vmul.f32 %v1285, %v805
  %v1318 = vmul.f32 %v1286, %v806
  %v1319 = vmul.f32 %v1287, %v807
  %v1320 = vmul.f32 %v1288, %v808
  %v1321 = vmul.f32 %v1289, %v809
  %v1322 = vmul.f32 %v1290, %v810
  %v1323 = vmul.f32 %v1291, %v811
  %v1324 = vmul.f32 %v1292, %v812
  %v1325 = vmul.f32 %v1293, %v813
  %v1326 = vmul.f32 %v1294, %v814
  %v1327 = vmul.f32 %v1295, %v815
  %v1328 = vmul.f32 %v1296, 1.442695
  %v1329 = vpow.pop %v1328
  %v1330 = vmul.f32 %v1297, 1.442695
  %v1331 = vpow.pop %v1330
  %v1332 = vmul.f32 %v1298, 1.442695
  %v1333 = vpow.pop %v1332
  %v1334 = vmul.f32 %v1299, 1.442695
  %v1335 = vpow.pop %v1334
  %v1336 = vmul.f32 %v1300, 1.442695
  %v1337 = vpow.pop %v1336
  %v1338 = vmul.f32 %v1301, 1.442695
  %v1339 = vpow.pop %v1338
  %v1340 = vmul.f32 %v1302, 1.442695
  %v1341 = vpow.pop %v1340
  %v1342 = vmul.f32 %v1303, 1.442695
  %v1343 = vpow.pop %v1342
  %v1344 = vmul.f32 %v1304, 1.442695
  %v1345 = vpow.pop %v1344
  %v1346 = vmul.f32 %v1305, 1.442695
  %v1347 = vpow.pop %v1346
  %v1348 = vmul.f32 %v1306, 1.442695
  %v1349 = vpow.pop %v1348
  %v1350 = vmul.f32 %v1307, 1.442695
  %v1351 = vpow.pop %v1350
  %v1352 = vmul.f32 %v1308, 1.442695
  %v1353 = vpow.pop %v1352
  %v1354 = vmul.f32 %v1309, 1.442695
  %v1355 = vpow.pop %v1354
  %v1356 = vmul.f32 %v1310, 1.442695
  %v1357 = vpow.pop %v1356
  %v1358 = vmul.f32 %v1311, 1.442695
  %v1359 = vpow.pop %v1358
  %v1360 = vmul.f32 %v1312, 1.442695
  %v1361 = vpow.pop %v1360
  %v1362 = vmul.f32 %v1313, 1.442695
  %v1363 = vpow.pop %v1362
  %v1364 = vmul.f32 %v1314, 1.442695
  %v1365 = vpow.pop %v1364
  %v1366 = vmul.f32 %v1315, 1.442695
  %v1367 = vpow.pop %v1366
  %v1368 = vmul.f32 %v1316, 1.442695
  %v1369 = vpow.pop %v1368
  %v1370 = vmul.f32 %v1317, 1.442695
  %v1371 = vpow.pop %v1370
  %v1372 = vmul.f32 %v1318, 1.442695
  %v1373 = vpow.pop %v1372
  %v1374 = vmul.f32 %v1319, 1.442695
  %v1375 = vpow.pop %v1374
  %v1376 = vmul.f32 %v1320, 1.442695
  %v1377 = vpow.pop %v1376
  %v1378 = vmul.f32 %v1321, 1.442695
  %v1379 = vpow.pop %v1378
  %v1380 = vmul.f32 %v1322, 1.442695
  %v1381 = vpow.pop %v1380
  %v1382 = vmul.f32 %v1323, 1.442695
  %v1383 = vpow.pop %v1382
  %v1384 = vmul.f32 %v1324, 1.442695
  %v1385 = vpow.pop %v1384
  %v1386 = vmul.f32 %v1325, 1.442695
  %v1387 = vpow.pop %v1386
  %v1388 = vmul.f32 %v1326, 1.442695
  %v1389 = vpow.pop %v1388
  %v1390 = vmul.f32 %v1327, 1.442695
  %v1391 = vpow.pop %v1390
  %v1392 = vmul.f32 %v1232, %v1329
  %v1393 = vmul.f32 %v1233, %v1331
  %v1394 = vmul.f32 %v1234, %v1333
  %v1395 = vmul.f32 %v1235, %v1335
  %v1396 = vmul.f32 %v1236, %v1337
  %v1397 = vmul.f32 %v1237, %v1339
  %v1398 = vmul.f32 %v1238, %v1341
  %v1399 = vmul.f32 %v1239, %v1343
  %v1400 = vmul.f32 %v1240, %v1345
  %v1401 = vmul.f32 %v1241, %v1347
  %v1402 = vmul.f32 %v1242, %v1349
  %v1403 = vmul.f32 %v1243, %v1351
  %v1404 = vmul.f32 %v1244, %v1353
  %v1405 = vmul.f32 %v1245, %v1355
  %v1406 = vmul.f32 %v1246, %v1357
  %v1407 = vmul.f32 %v1247, %v1359
  %v1408 = vmul.f32 %v1248, %v1361
  %v1409 = vmul.f32 %v1249, %v1363
  %v1410 = vmul.f32 %v1250, %v1365
  %v1411 = vmul.f32 %v1251, %v1367
  %v1412 = vmul.f32 %v1252, %v1369
  %v1413 = vmul.f32 %v1253, %v1371
  %v1414 = vmul.f32 %v1254, %v1373
  %v1415 = vmul.f32 %v1255, %v1375
  %v1416 = vmul.f32 %v1256, %v1377
  %v1417 = vmul.f32 %v1257, %v1379
  %v1418 = vmul.f32 %v1258, %v1381
  %v1419 = vmul.f32 %v1259, %v1383
  %v1420 = vmul.f32 %v1260, %v1385
  %v1421 = vmul.f32 %v1261, %v1387
  %v1422 = vmul.f32 %v1262, %v1389
  %v1423 = vmul.f32 %v1263, %v1391
  %v1424 = vsub.f32 1.0, %v1392
  %v1425 = vsub.f32 1.0, %v1393
  %v1426 = vsub.f32 1.0, %v1394
  %v1427 = vsub.f32 1.0, %v1395
  %v1428 = vsub.f32 1.0, %v1396
  %v1429 = vsub.f32 1.0, %v1397
  %v1430 = vsub.f32 1.0, %v1398
  %v1431 = vsub.f32 1.0, %v1399
  %v1432 = vsub.f32 1.0, %v1400
  %v1433 = vsub.f32 1.0, %v1401
  %v1434 = vsub.f32 1.0, %v1402
  %v1435 = vsub.f32 1.0, %v1403
  %v1436 = vsub.f32 1.0, %v1404
  %v1437 = vsub.f32 1.0, %v1405
  %v1438 = vsub.f32 1.0, %v1406
  %v1439 = vsub.f32 1.0, %v1407
  %v1440 = vsub.f32 1.0, %v1408
  %v1441 = vsub.f32 1.0, %v1409
  %v1442 = vsub.f32 1.0, %v1410
  %v1443 = vsub.f32 1.0, %v1411
  %v1444 = vsub.f32 1.0, %v1412
  %v1445 = vsub.f32 1.0, %v1413
  %v1446 = vsub.f32 1.0, %v1414
  %v1447 = vsub.f32 1.0, %v1415
  %v1448 = vsub.f32 1.0, %v1416
  %v1449 = vsub.f32 1.0, %v1417
  %v1450 = vsub.f32 1.0, %v1418
  %v1451 = vsub.f32 1.0, %v1419
  %v1452 = vsub.f32 1.0, %v1420
  %v1453 = vsub.f32 1.0, %v1421
  %v1454 = vsub.f32 1.0, %v1422
  %v1455 = vsub.f32 1.0, %v1423
  %vm1456 = vcmp.ge.f32.partialorder %v784, 0.0
  %vm1457 = vcmp.ge.f32.partialorder %v785, 0.0
  %vm1458 = vcmp.ge.f32.partialorder %v786, 0.0
  %vm1459 = vcmp.ge.f32.partialorder %v787, 0.0
  %vm1460 = vcmp.ge.f32.partialorder %v788, 0.0
  %vm1461 = vcmp.ge.f32.partialorder %v789, 0.0
  %vm1462 = vcmp.ge.f32.partialorder %v790, 0.0
  %vm1463 = vcmp.ge.f32.partialorder %v791, 0.0
  %vm1464 = vcmp.ge.f32.partialorder %v792, 0.0
  %vm1465 = vcmp.ge.f32.partialorder %v793, 0.0
  %vm1466 = vcmp.ge.f32.partialorder %v794, 0.0
  %vm1467 = vcmp.ge.f32.partialorder %v795, 0.0
  %vm1468 = vcmp.ge.f32.partialorder %v796, 0.0
  %vm1469 = vcmp.ge.f32.partialorder %v797, 0.0
  %vm1470 = vcmp.ge.f32.partialorder %v798, 0.0
  %vm1471 = vcmp.ge.f32.partialorder %v799, 0.0
  %vm1472 = vcmp.ge.f32.partialorder %v800, 0.0
  %vm1473 = vcmp.ge.f32.partialorder %v801, 0.0
  %vm1474 = vcmp.ge.f32.partialorder %v802, 0.0
  %vm1475 = vcmp.ge.f32.partialorder %v803, 0.0
  %vm1476 = vcmp.ge.f32.partialorder %v804, 0.0
  %vm1477 = vcmp.ge.f32.partialorder %v805, 0.0
  %vm1478 = vcmp.ge.f32.partialorder %v806, 0.0
  %vm1479 = vcmp.ge.f32.partialorder %v807, 0.0
  %vm1480 = vcmp.ge.f32.partialorder %v808, 0.0
  %vm1481 = vcmp.ge.f32.partialorder %v809, 0.0
  %vm1482 = vcmp.ge.f32.partialorder %v810, 0.0
  %vm1483 = vcmp.ge.f32.partialorder %v811, 0.0
  %vm1484 = vcmp.ge.f32.partialorder %v812, 0.0
  %vm1485 = vcmp.ge.f32.partialorder %v813, 0.0
  %vm1486 = vcmp.ge.f32.partialorder %v814, 0.0
  %vm1487 = vcmp.ge.f32.partialorder %v815, 0.0
  %v1488 = vsub.f32 0.0, %v1424
  %v1489 = vsub.f32 0.0, %v1425
  %v1490 = vsub.f32 0.0, %v1426
  %v1491 = vsub.f32 0.0, %v1427
  %v1492 = vsub.f32 0.0, %v1428
  %v1493 = vsub.f32 0.0, %v1429
  %v1494 = vsub.f32 0.0, %v1430
  %v1495 = vsub.f32 0.0, %v1431
  %v1496 = vsub.f32 0.0, %v1432
  %v1497 = vsub.f32 0.0, %v1433
  %v1498 = vsub.f32 0.0, %v1434
  %v1499 = vsub.f32 0.0, %v1435
  %v1500 = vsub.f32 0.0, %v1436
  %v1501 = vsub.f32 0.0, %v1437
  %v1502 = vsub.f32 0.0, %v1438
  %v1503 = vsub.f32 0.0, %v1439
  %v1504 = vsub.f32 0.0, %v1440
  %v1505 = vsub.f32 0.0, %v1441
  %v1506 = vsub.f32 0.0, %v1442
  %v1507 = vsub.f32 0.0, %v1443
  %v1508 = vsub.f32 0.0, %v1444
  %v1509 = vsub.f32 0.0, %v1445
  %v1510 = vsub.f32 0.0, %v1446
  %v1511 = vsub.f32 0.0, %v1447
  %v1512 = vsub.f32 0.0, %v1448
  %v1513 = vsub.f32 0.0, %v1449
  %v1514 = vsub.f32 0.0, %v1450
  %v1515 = vsub.f32 0.0, %v1451
  %v1516 = vsub.f32 0.0, %v1452
  %v1517 = vsub.f32 0.0, %v1453
  %v1518 = vsub.f32 0.0, %v1454
  %v1519 = vsub.f32 0.0, %v1455
  %v1520 = vsel %vm1456, %v1424, %v1488
  %v1521 = vsel %vm1457, %v1425, %v1489
  %v1522 = vsel %vm1458, %v1426, %v1490
  %v1523 = vsel %vm1459, %v1427, %v1491
  %v1524 = vsel %vm1460, %v1428, %v1492
  %v1525 = vsel %vm1461, %v1429, %v1493
  %v1526 = vsel %vm1462, %v1430, %v1494
  %v1527 = vsel %vm1463, %v1431, %v1495
  %v1528 = vsel %vm1464, %v1432, %v1496
  %v1529 = vsel %vm1465, %v1433, %v1497
  %v1530 = vsel %vm1466, %v1434, %v1498
  %v1531 = vsel %vm1467, %v1435, %v1499
  %v1532 = vsel %vm1468, %v1436, %v1500
  %v1533 = vsel %vm1469, %v1437, %v1501
  %v1534 = vsel %vm1470, %v1438, %v1502
  %v1535 = vsel %vm1471, %v1439, %v1503
  %v1536 = vsel %vm1472, %v1440, %v1504
  %v1537 = vsel %vm1473, %v1441, %v1505
  %v1538 = vsel %vm1474, %v1442, %v1506
  %v1539 = vsel %vm1475, %v1443, %v1507
  %v1540 = vsel %vm1476, %v1444, %v1508
  %v1541 = vsel %vm1477, %v1445, %v1509
  %v1542 = vsel %vm1478, %v1446, %v1510
  %v1543 = vsel %vm1479, %v1447, %v1511
  %v1544 = vsel %vm1480, %v1448, %v1512
  %v1545 = vsel %vm1481, %v1449, %v1513
  %v1546 = vsel %vm1482, %v1450, %v1514
  %v1547 = vsel %vm1483, %v1451, %v1515
  %v1548 = vsel %vm1484, %v1452, %v1516
  %v1549 = vsel %vm1485, %v1453, %v1517
  %v1550 = vsel %vm1486, %v1454, %v1518
  %v1551 = vsel %vm1487, %v1455, %v1519
  %v1552 = vadd.f32 %v1520, 1.0
  %v1553 = vadd.f32 %v1521, 1.0
  %v1554 = vadd.f32 %v1522, 1.0
  %v1555 = vadd.f32 %v1523, 1.0
  %v1556 = vadd.f32 %v1524, 1.0
  %v1557 = vadd.f32 %v1525, 1.0
  %v1558 = vadd.f32 %v1526, 1.0
  %v1559 = vadd.f32 %v1527, 1.0
  %v1560 = vadd.f32 %v1528, 1.0
  %v1561 = vadd.f32 %v1529, 1.0
  %v1562 = vadd.f32 %v1530, 1.0
  %v1563 = vadd.f32 %v1531, 1.0
  %v1564 = vadd.f32 %v1532, 1.0
  %v1565 = vadd.f32 %v1533, 1.0
  %v1566 = vadd.f32 %v1534, 1.0
  %v1567 = vadd.f32 %v1535, 1.0
  %v1568 = vadd.f32 %v1536, 1.0
  %v1569 = vadd.f32 %v1537, 1.0
  %v1570 = vadd.f32 %v1538, 1.0
  %v1571 = vadd.f32 %v1539, 1.0
  %v1572 = vadd.f32 %v1540, 1.0
  %v1573 = vadd.f32 %v1541, 1.0
  %v1574 = vadd.f32 %v1542, 1.0
  %v1575 = vadd.f32 %v1543, 1.0
  %v1576 = vadd.f32 %v1544, 1.0
  %v1577 = vadd.f32 %v1545, 1.0
  %v1578 = vadd.f32 %v1546, 1.0
  %v1579 = vadd.f32 %v1547, 1.0
  %v1580 = vadd.f32 %v1548, 1.0
  %v1581 = vadd.f32 %v1549, 1.0
  %v1582 = vadd.f32 %v1550, 1.0
  %v1583 = vadd.f32 %v1551, 1.0
  %v1584 = vmul.f32 %v752, %v1552
  %v1585 = vmul.f32 %v753, %v1553
  %v1586 = vmul.f32 %v754, %v1554
  %v1587 = vmul.f32 %v755, %v1555
  %v1588 = vmul.f32 %v756, %v1556
  %v1589 = vmul.f32 %v757, %v1557
  %v1590 = vmul.f32 %v758, %v1558
  %v1591 = vmul.f32 %v759, %v1559
  %v1592 = vmul.f32 %v760, %v1560
  %v1593 = vmul.f32 %v761, %v1561
  %v1594 = vmul.f32 %v762, %v1562
  %v1595 = vmul.f32 %v763, %v1563
  %v1596 = vmul.f32 %v764, %v1564
  %v1597 = vmul.f32 %v765, %v1565
  %v1598 = vmul.f32 %v766, %v1566
  %v1599 = vmul.f32 %v767, %v1567
  %v1600 = vmul.f32 %v768, %v1568
  %v1601 = vmul.f32 %v769, %v1569
  %v1602 = vmul.f32 %v770, %v1570
  %v1603 = vmul.f32 %v771, %v1571
  %v1604 = vmul.f32 %v772, %v1572
  %v1605 = vmul.f32 %v773, %v1573
  %v1606 = vmul.f32 %v774, %v1574
  %v1607 = vmul.f32 %v775, %v1575
  %v1608 = vmul.f32 %v776, %v1576
  %v1609 = vmul.f32 %v777, %v1577
  %v1610 = vmul.f32 %v778, %v1578
  %v1611 = vmul.f32 %v779, %v1579
  %v1612 = vmul.f32 %v780, %v1580
  %v1613 = vmul.f32 %v781, %v1581
  %v1614 = vmul.f32 %v782, %v1582
  %v1615 = vmul.f32 %v783, %v1583
  %v1616 = vld [vmem:[%s5] sm:$0xff]
  %v1617 = vld [vmem:[%s5 + $0x8] sm:$0xff]
  %v1618 = vld [vmem:[%s5 + $0x10] sm:$0xff]
  %v1619 = vld [vmem:[%s5 + $0x18] sm:$0xff]
  %v1620 = vld [vmem:[%s5 + $0x20] sm:$0xff]
  %v1621 = vld [vmem:[%s5 + $0x28] sm:$0xff]
  %v1622 = vld [vmem:[%s5 + $0x30] sm:$0xff]
  %v1623 = vld [vmem:[%s5 + $0x38] sm:$0xff]
  %v1624 = vld [vmem:[%s5 + $0x40] sm:$0xff]
  %v1625 = vld [vmem:[%s5 + $0x48] sm:$0xff]
  %v1626 = vld [vmem:[%s5 + $0x50] sm:$0xff]
  %v1627 = vld [vmem:[%s5 + $0x58] sm:$0xff]
  %v1628 = vld [vmem:[%s5 + $0x60] sm:$0xff]
  %v1629 = vld [vmem:[%s5 + $0x68] sm:$0xff]
  %v1630 = vld [vmem:[%s5 + $0x70] sm:$0xff]
  %v1631 = vld [vmem:[%s5 + $0x78] sm:$0xff]
  %v1632 = vld [vmem:[%s5 + $0x80] sm:$0xff]
  %v1633 = vld [vmem:[%s5 + $0x88] sm:$0xff]
  %v1634 = vld [vmem:[%s5 + $0x90] sm:$0xff]
  %v1635 = vld [vmem:[%s5 + $0x98] sm:$0xff]
  %v1636 = vld [vmem:[%s5 + $0xa0] sm:$0xff]
  %v1637 = vld [vmem:[%s5 + $0xa8] sm:$0xff]
  %v1638 = vld [vmem:[%s5 + $0xb0] sm:$0xff]
  %v1639 = vld [vmem:[%s5 + $0xb8] sm:$0xff]
  %v1640 = vld [vmem:[%s5 + $0xc0] sm:$0xff]
  %v1641 = vld [vmem:[%s5 + $0xc8] sm:$0xff]
  %v1642 = vld [vmem:[%s5 + $0xd0] sm:$0xff]
  %v1643 = vld [vmem:[%s5 + $0xd8] sm:$0xff]
  %v1644 = vld [vmem:[%s5 + $0xe0] sm:$0xff]
  %v1645 = vld [vmem:[%s5 + $0xe8] sm:$0xff]
  %v1646 = vld [vmem:[%s5 + $0xf0] sm:$0xff]
  %v1647 = vld [vmem:[%s5 + $0xf8] sm:$0xff]
  %v1648 = vld [vmem:[%s6] sm:$0x1]
  %v1650 = vlaneseq
  %v1651 = vshrl.u32 %v1650, 7
  %v1652 = vsub.s32 0, %v1651
  %v1653 = vrot.slane %v1648, %v1652
  %1655 = vmatprep.subr.mxu0 0.0
  %1656 = vmatpush1.msra.mxu0 %v1631
  %1657 = vmatprep.subr.mxu0 0.0
  %1658 = vmatpush1.msra.mxu0 %v1630
  %1659 = vmatprep.subr.mxu0 0.0
  %1660 = vmatpush1.msra.mxu0 %v1629
  %1661 = vmatprep.subr.mxu0 0.0
  %1662 = vmatpush1.msra.mxu0 %v1628
  %1663 = vmatprep.subr.mxu0 0.0
  %1664 = vmatpush1.msra.mxu0 %v1627
  %1665 = vmatprep.subr.mxu0 0.0
  %1666 = vmatpush1.msra.mxu0 %v1626
  %1667 = vmatprep.subr.mxu0 0.0
  %1668 = vmatpush1.msra.mxu0 %v1625
  %1669 = vmatprep.subr.mxu0 0.0
  %1670 = vmatpush1.msra.mxu0 %v1624
  %1671 = vmatprep.subr.mxu0 0.0
  %1672 = vmatpush1.msra.mxu0 %v1623
  %1673 = vmatprep.subr.mxu0 0.0
  %1674 = vmatpush1.msra.mxu0 %v1622
  %1675 = vmatprep.subr.mxu0 0.0
  %1676 = vmatpush1.msra.mxu0 %v1621
  %1677 = vmatprep.subr.mxu0 0.0
  %1678 = vmatpush1.msra.mxu0 %v1620
  %1679 = vmatprep.subr.mxu0 0.0
  %1680 = vmatpush1.msra.mxu0 %v1619
  %1681 = vmatprep.subr.mxu0 0.0
  %1682 = vmatpush1.msra.mxu0 %v1618
  %1683 = vmatprep.subr.mxu0 0.0
  %1684 = vmatpush1.msra.mxu0 %v1617
  %1685 = vmatprep.subr.mxu0 0.0
  %1686 = vmatpush1.msra.mxu0 %v1616
  %1687 = vmatprep.subr.mxu0 0.0
  %1688 = vmatpush2.msra.mxu0 %v1647
  %1689 = vmatprep.subr.mxu0 0.0
  %1690 = vmatpush2.msra.mxu0 %v1646
  %1691 = vmatprep.subr.mxu0 0.0
  %1692 = vmatpush2.msra.mxu0 %v1645
  %1693 = vmatprep.subr.mxu0 0.0
  %1694 = vmatpush2.msra.mxu0 %v1644
  %1695 = vmatprep.subr.mxu0 0.0
  %1696 = vmatpush2.msra.mxu0 %v1643
  %1697 = vmatprep.subr.mxu0 0.0
  %1698 = vmatpush2.msra.mxu0 %v1642
  %1699 = vmatprep.subr.mxu0 0.0
  %1700 = vmatpush2.msra.mxu0 %v1641
  %1701 = vmatprep.subr.mxu0 0.0
  %1702 = vmatpush2.msra.mxu0 %v1640
  %1703 = vmatprep.subr.mxu0 0.0
  %1704 = vmatpush2.msra.mxu0 %v1639
  %1705 = vmatprep.subr.mxu0 0.0
  %1706 = vmatpush2.msra.mxu0 %v1638
  %1707 = vmatprep.subr.mxu0 0.0
  %1708 = vmatpush2.msra.mxu0 %v1637
  %1709 = vmatprep.subr.mxu0 0.0
  %1710 = vmatpush2.msra.mxu0 %v1636
  %1711 = vmatprep.subr.mxu0 0.0
  %1712 = vmatpush2.msra.mxu0 %v1635
  %1713 = vmatprep.subr.mxu0 0.0
  %1714 = vmatpush2.msra.mxu0 %v1634
  %1715 = vmatprep.subr.mxu0 0.0
  %1716 = vmatpush2.msra.mxu0 %v1633
  %1717 = vmatprep.subr.mxu0 0.0
  %1718 = vmatpush2.msra.mxu0 %v1632
  %1719 = vmatprep.mubr.f32.mxu0 %v1585
  %1720 = vmatmul.mubr.f32.gmra.mxu0 %v1584
  %v1721 = vpop.f32.mrf.mxu0
  %v1722 = vadd.f32 %v1653, %v1721
  %v1723 = vpop.f32.mrf.mxu0
  %1724 = vmatprep.mubr.f32.mxu0 %v1587
  %1725 = vmatmul.mubr.f32.gmra.mxu0 %v1586
  %v1726 = vpop.f32.mrf.mxu0
  %v1727 = vadd.f32 %v1653, %v1726
  %v1728 = vpop.f32.mrf.mxu0
  %1729 = vmatprep.mubr.f32.mxu0 %v1589
  %1730 = vmatmul.mubr.f32.gmra.mxu0 %v1588
  %v1731 = vpop.f32.mrf.mxu0
  %v1732 = vadd.f32 %v1653, %v1731
  %v1733 = vpop.f32.mrf.mxu0
  %1734 = vmatprep.mubr.f32.mxu0 %v1591
  %1735 = vmatmul.mubr.f32.gmra.mxu0 %v1590
  %v1736 = vpop.f32.mrf.mxu0
  %v1737 = vadd.f32 %v1653, %v1736
  %v1738 = vpop.f32.mrf.mxu0
  %1739 = vmatprep.mubr.f32.mxu0 %v1593
  %1740 = vmatmul.mubr.f32.gmra.mxu0 %v1592
  %v1741 = vpop.f32.mrf.mxu0
  %v1742 = vadd.f32 %v1653, %v1741
  %v1743 = vpop.f32.mrf.mxu0
  %1744 = vmatprep.mubr.f32.mxu0 %v1595
  %1745 = vmatmul.mubr.f32.gmra.mxu0 %v1594
  %v1746 = vpop.f32.mrf.mxu0
  %v1747 = vadd.f32 %v1653, %v1746
  %v1748 = vpop.f32.mrf.mxu0
  %1749 = vmatprep.mubr.f32.mxu0 %v1597
  %1750 = vmatmul.mubr.f32.gmra.mxu0 %v1596
  %v1751 = vpop.f32.mrf.mxu0
  %v1752 = vadd.f32 %v1653, %v1751
  %v1753 = vpop.f32.mrf.mxu0
  %1754 = vmatprep.mubr.f32.mxu0 %v1599
  %1755 = vmatmul.mubr.f32.gmra.mxu0 %v1598
  %v1756 = vpop.f32.mrf.mxu0
  %v1757 = vadd.f32 %v1653, %v1756
  %v1758 = vpop.f32.mrf.mxu0
  %1759 = vmatprep.mubr.f32.mxu0 %v1601
  %1760 = vmatmul.mubr.f32.gmra.mxu0 %v1600
  %v1761 = vpop.f32.mrf.mxu0
  %v1762 = vadd.f32 %v1653, %v1761
  %v1763 = vpop.f32.mrf.mxu0
  %1764 = vmatprep.mubr.f32.mxu0 %v1603
  %1765 = vmatmul.mubr.f32.gmra.mxu0 %v1602
  %v1766 = vpop.f32.mrf.mxu0
  %v1767 = vadd.f32 %v1653, %v1766
  %v1768 = vpop.f32.mrf.mxu0
  %1769 = vmatprep.mubr.f32.mxu0 %v1605
  %1770 = vmatmul.mubr.f32.gmra.mxu0 %v1604
  %v1771 = vpop.f32.mrf.mxu0
  %v1772 = vadd.f32 %v1653, %v1771
  %v1773 = vpop.f32.mrf.mxu0
  %1774 = vmatprep.mubr.f32.mxu0 %v1607
  %1775 = vmatmul.mubr.f32.gmra.mxu0 %v1606
  %v1776 = vpop.f32.mrf.mxu0
  %v1777 = vadd.f32 %v1653, %v1776
  %v1778 = vpop.f32.mrf.mxu0
  %1779 = vmatprep.mubr.f32.mxu0 %v1609
  %1780 = vmatmul.mubr.f32.gmra.mxu0 %v1608
  %v1781 = vpop.f32.mrf.mxu0
  %v1782 = vadd.f32 %v1653, %v1781
  %v1783 = vpop.f32.mrf.mxu0
  %1784 = vmatprep.mubr.f32.mxu0 %v1611
  %1785 = vmatmul.mubr.f32.gmra.mxu0 %v1610
  %v1786 = vpop.f32.mrf.mxu0
  %v1787 = vadd.f32 %v1653, %v1786
  %v1788 = vpop.f32.mrf.mxu0
  %1789 = vmatprep.mubr.f32.mxu0 %v1613
  %1790 = vmatmul.mubr.f32.gmra.mxu0 %v1612
  %v1791 = vpop.f32.mrf.mxu0
  %v1792 = vadd.f32 %v1653, %v1791
  %v1793 = vpop.f32.mrf.mxu0
  %1794 = vmatprep.mubr.f32.mxu0 %v1615
  %1795 = vmatmul.mubr.f32.gmra.mxu0 %v1614
  %v1796 = vpop.f32.mrf.mxu0
  %v1797 = vadd.f32 %v1653, %v1796
  %v1798 = vpop.f32.mrf.mxu0
  %1799 = vdwg.mxu0
  %v1800 = vld [vmem:[%s7] sm:$0xff]
  %v1801 = vld [vmem:[%s7 + $0x8] sm:$0xff]
  %v1802 = vld [vmem:[%s7 + $0x10] sm:$0xff]
  %v1803 = vld [vmem:[%s7 + $0x18] sm:$0xff]
  %v1804 = vld [vmem:[%s7 + $0x20] sm:$0xff]
  %v1805 = vld [vmem:[%s7 + $0x28] sm:$0xff]
  %v1806 = vld [vmem:[%s7 + $0x30] sm:$0xff]
  %v1807 = vld [vmem:[%s7 + $0x38] sm:$0xff]
  %v1808 = vld [vmem:[%s7 + $0x40] sm:$0xff]
  %v1809 = vld [vmem:[%s7 + $0x48] sm:$0xff]
  %v1810 = vld [vmem:[%s7 + $0x50] sm:$0xff]
  %v1811 = vld [vmem:[%s7 + $0x58] sm:$0xff]
  %v1812 = vld [vmem:[%s7 + $0x60] sm:$0xff]
  %v1813 = vld [vmem:[%s7 + $0x68] sm:$0xff]
  %v1814 = vld [vmem:[%s7 + $0x70] sm:$0xff]
  %v1815 = vld [vmem:[%s7 + $0x78] sm:$0xff]
  %v1816 = vadd.f32 %v1722, %v1800
  %v1817 = vadd.f32 %v1727, %v1801
  %v1818 = vadd.f32 %v1732, %v1802
  %v1819 = vadd.f32 %v1737, %v1803
  %v1820 = vadd.f32 %v1742, %v1804
  %v1821 = vadd.f32 %v1747, %v1805
  %v1822 = vadd.f32 %v1752, %v1806
  %v1823 = vadd.f32 %v1757, %v1807
  %v1824 = vadd.f32 %v1762, %v1808
  %v1825 = vadd.f32 %v1767, %v1809
  %v1826 = vadd.f32 %v1772, %v1810
  %v1827 = vadd.f32 %v1777, %v1811
  %v1828 = vadd.f32 %v1782, %v1812
  %v1829 = vadd.f32 %v1787, %v1813
  %v1830 = vadd.f32 %v1792, %v1814
  %v1831 = vadd.f32 %v1797, %v1815
  %1832 = vst [vmem:[%s8] sm:$0xff] %v1816
  %1833 = vst [vmem:[%s8 + $0x8] sm:$0xff] %v1817
  %1834 = vst [vmem:[%s8 + $0x10] sm:$0xff] %v1818
  %1835 = vst [vmem:[%s8 + $0x18] sm:$0xff] %v1819
  %1836 = vst [vmem:[%s8 + $0x20] sm:$0xff] %v1820
  %1837 = vst [vmem:[%s8 + $0x28] sm:$0xff] %v1821
  %1838 = vst [vmem:[%s8 + $0x30] sm:$0xff] %v1822
  %1839 = vst [vmem:[%s8 + $0x38] sm:$0xff] %v1823
  %1840 = vst [vmem:[%s8 + $0x40] sm:$0xff] %v1824
  %1841 = vst [vmem:[%s8 + $0x48] sm:$0xff] %v1825
  %1842 = vst [vmem:[%s8 + $0x50] sm:$0xff] %v1826
  %1843 = vst [vmem:[%s8 + $0x58] sm:$0xff] %v1827
  %1844 = vst [vmem:[%s8 + $0x60] sm:$0xff] %v1828
  %1845 = vst [vmem:[%s8 + $0x68] sm:$0xff] %v1829
  %1846 = vst [vmem:[%s8 + $0x70] sm:$0xff] %v1830
  %1847 = vst [vmem:[%s8 + $0x78] sm:$0xff] %v1831
  // Predicated region
  $region34: #{_lambda_.31} parent=0 // pred_check
    _
  $region35: #{_lambda_.31} parent=0 // pred_check_branch
    %1849 = sbr.rel (0) target = $region37
  $region36: #{_lambda_.31} parent=0 // pred_region
    _
  $region37: #{_lambda_.31} parent=0 // pred_fallthru
    _
  // Predicated region
  $region38: #{_lambda_.31} parent=0 // pred_check
    _
  $region39: #{_lambda_.31} parent=0 // pred_check_branch
    %1851 = sbr.rel (0) target = $region41
  $region40: #{_lambda_.31} parent=0 // pred_region
    _
  $region41: #{_lambda_.31} parent=0 // pred_fallthru
    _

// kernel: _lambda_.33
$region0: #{_lambda_.33}
  #allocation0 [shape = 'u32[]', space=smem, size = 0x4, offset = 0x4, fixed_abs, tag = 'smem constant byte address 0x4 - core index']
  #allocation1 [shape = 'u32[144,128]{1,0:T(1,128)}', space=vmem, size = 0x12000, scoped, tag = 'internal scratch']
  %s0 = inlined_call_operand.vmem [shape: f32[8,128], index: 0, kind: input, shape index: {}]
  %s1 = inlined_call_operand.vmem [shape: f32[128,640], index: 1, kind: input, shape index: {}]
  %s2 = inlined_call_operand.vmem [shape: f32[1,640], index: 2, kind: input, shape index: {}]
  %s3 = inlined_call_operand.vmem [shape: f32[8,640], index: 3, kind: output, shape index: {}]
  %s4 = sld [smem:[#allocation0]]
  $region22: #{_lambda_.33} parent=0
    _
  %s6 = ssub.s32 1, %s4
  %s7 = scalar_select 0, %s6, %s4
  // Predicated region
  $region2: #{_lambda_.33} parent=0 // pred_check
    _
  $region3: #{_lambda_.33} parent=0 // pred_check_branch
    %9 = sbr.rel (0) target = $region5
  $region4: #{_lambda_.33} parent=0 // pred_region
    _
  $region5: #{_lambda_.33} parent=0 // pred_fallthru
    _
  // Predicated region
  $region6: #{_lambda_.33} parent=0 // pred_check
    _
  $region7: #{_lambda_.33} parent=0 // pred_check_branch
    %11 = sbr.rel (0) target = $region9
  $region8: #{_lambda_.33} parent=0 // pred_region
    _
  $region9: #{_lambda_.33} parent=0 // pred_fallthru
    _
  // Predicated region
  $region10: #{_lambda_.33} parent=0 // pred_check
    _
  $region11: #{_lambda_.33} parent=0 // pred_check_branch
    %13 = sbr.rel (0) target = $region13
  $region12: #{_lambda_.33} parent=0 // pred_region
    _
  $region13: #{_lambda_.33} parent=0 // pred_fallthru
    _
  %v14 = vld [vmem:[%s0] sm:$0xff]
  %v15 = vld [vmem:[%s1] sm:$0xff]
  %v16 = vld [vmem:[%s1 + $0x8] sm:$0xff]
  %v17 = vld [vmem:[%s1 + $0x10] sm:$0xff]
  %v18 = vld [vmem:[%s1 + $0x18] sm:$0xff]
  %v19 = vld [vmem:[%s1 + $0x20] sm:$0xff]
  %v20 = vld [vmem:[%s1 + $0x28] sm:$0xff]
  %v21 = vld [vmem:[%s1 + $0x30] sm:$0xff]
  %v22 = vld [vmem:[%s1 + $0x38] sm:$0xff]
  %v23 = vld [vmem:[%s1 + $0x40] sm:$0xff]
  %v24 = vld [vmem:[%s1 + $0x48] sm:$0xff]
  %v25 = vld [vmem:[%s1 + $0x50] sm:$0xff]
  %v26 = vld [vmem:[%s1 + $0x58] sm:$0xff]
  %v27 = vld [vmem:[%s1 + $0x60] sm:$0xff]
  %v28 = vld [vmem:[%s1 + $0x68] sm:$0xff]
  %v29 = vld [vmem:[%s1 + $0x70] sm:$0xff]
  %v30 = vld [vmem:[%s1 + $0x78] sm:$0xff]
  %v31 = vld [vmem:[%s1 + $0x80] sm:$0xff]
  %v32 = vld [vmem:[%s1 + $0x88] sm:$0xff]
  %v33 = vld [vmem:[%s1 + $0x90] sm:$0xff]
  %v34 = vld [vmem:[%s1 + $0x98] sm:$0xff]
  %v35 = vld [vmem:[%s1 + $0xa0] sm:$0xff]
  %v36 = vld [vmem:[%s1 + $0xa8] sm:$0xff]
  %v37 = vld [vmem:[%s1 + $0xb0] sm:$0xff]
  %v38 = vld [vmem:[%s1 + $0xb8] sm:$0xff]
  %v39 = vld [vmem:[%s1 + $0xc0] sm:$0xff]
  %v40 = vld [vmem:[%s1 + $0xc8] sm:$0xff]
  %v41 = vld [vmem:[%s1 + $0xd0] sm:$0xff]
  %v42 = vld [vmem:[%s1 + $0xd8] sm:$0xff]
  %v43 = vld [vmem:[%s1 + $0xe0] sm:$0xff]
  %v44 = vld [vmem:[%s1 + $0xe8] sm:$0xff]
  %v45 = vld [vmem:[%s1 + $0xf0] sm:$0xff]
  %v46 = vld [vmem:[%s1 + $0xf8] sm:$0xff]
  %v47 = vld [vmem:[%s1 + $0x100] sm:$0xff]
  %v48 = vld [vmem:[%s1 + $0x108] sm:$0xff]
  %v49 = vld [vmem:[%s1 + $0x110] sm:$0xff]
  %v50 = vld [vmem:[%s1 + $0x118] sm:$0xff]
  %v51 = vld [vmem:[%s1 + $0x120] sm:$0xff]
  %v52 = vld [vmem:[%s1 + $0x128] sm:$0xff]
  %v53 = vld [vmem:[%s1 + $0x130] sm:$0xff]
  %v54 = vld [vmem:[%s1 + $0x138] sm:$0xff]
  %v55 = vld [vmem:[%s1 + $0x140] sm:$0xff]
  %v56 = vld [vmem:[%s1 + $0x148] sm:$0xff]
  %v57 = vld [vmem:[%s1 + $0x150] sm:$0xff]
  %v58 = vld [vmem:[%s1 + $0x158] sm:$0xff]
  %v59 = vld [vmem:[%s1 + $0x160] sm:$0xff]
  %v60 = vld [vmem:[%s1 + $0x168] sm:$0xff]
  %v61 = vld [vmem:[%s1 + $0x170] sm:$0xff]
  %v62 = vld [vmem:[%s1 + $0x178] sm:$0xff]
  %v63 = vld [vmem:[%s1 + $0x180] sm:$0xff]
  %v64 = vld [vmem:[%s1 + $0x188] sm:$0xff]
  %v65 = vld [vmem:[%s1 + $0x190] sm:$0xff]
  %v66 = vld [vmem:[%s1 + $0x198] sm:$0xff]
  %v67 = vld [vmem:[%s1 + $0x1a0] sm:$0xff]
  %v68 = vld [vmem:[%s1 + $0x1a8] sm:$0xff]
  %v69 = vld [vmem:[%s1 + $0x1b0] sm:$0xff]
  %v70 = vld [vmem:[%s1 + $0x1b8] sm:$0xff]
  %v71 = vld [vmem:[%s1 + $0x1c0] sm:$0xff]
  %v72 = vld [vmem:[%s1 + $0x1c8] sm:$0xff]
  %v73 = vld [vmem:[%s1 + $0x1d0] sm:$0xff]
  %v74 = vld [vmem:[%s1 + $0x1d8] sm:$0xff]
  %v75 = vld [vmem:[%s1 + $0x1e0] sm:$0xff]
  %v76 = vld [vmem:[%s1 + $0x1e8] sm:$0xff]
  %v77 = vld [vmem:[%s1 + $0x1f0] sm:$0xff]
  %v78 = vld [vmem:[%s1 + $0x1f8] sm:$0xff]
  %v79 = vld [vmem:[%s1 + $0x200] sm:$0xff]
  %v80 = vld [vmem:[%s1 + $0x208] sm:$0xff]
  %v81 = vld [vmem:[%s1 + $0x210] sm:$0xff]
  %v82 = vld [vmem:[%s1 + $0x218] sm:$0xff]
  %v83 = vld [vmem:[%s1 + $0x220] sm:$0xff]
  %v84 = vld [vmem:[%s1 + $0x228] sm:$0xff]
  %v85 = vld [vmem:[%s1 + $0x230] sm:$0xff]
  %v86 = vld [vmem:[%s1 + $0x238] sm:$0xff]
  %v87 = vld [vmem:[%s1 + $0x240] sm:$0xff]
  %v88 = vld [vmem:[%s1 + $0x248] sm:$0xff]
  %v89 = vld [vmem:[%s1 + $0x250] sm:$0xff]
  %v90 = vld [vmem:[%s1 + $0x258] sm:$0xff]
  %v91 = vld [vmem:[%s1 + $0x260] sm:$0xff]
  %v92 = vld [vmem:[%s1 + $0x268] sm:$0xff]
  %v93 = vld [vmem:[%s1 + $0x270] sm:$0xff]
  %v94 = vld [vmem:[%s1 + $0x278] sm:$0xff]
  %v95 = vld [vmem:[%s2] sm:$0x1f]
  %v97 = vlaneseq
  %v98 = vshrl.u32 %v97, 7
  %v99 = vsub.s32 0, %v98
  %v100 = vrot.slane %v95, %v99
  %v101 = vlaneseq
  %v102 = vshrl.u32 %v101, 7
  %v103 = vsub.s32 1, %v102
  %v104 = vrot.slane %v95, %v103
  %v105 = vlaneseq
  %v106 = vshrl.u32 %v105, 7
  %v107 = vsub.s32 2, %v106
  %v108 = vrot.slane %v95, %v107
  %v109 = vlaneseq
  %v110 = vshrl.u32 %v109, 7
  %v111 = vsub.s32 3, %v110
  %v112 = vrot.slane %v95, %v111
  %v113 = vlaneseq
  %v114 = vshrl.u32 %v113, 7
  %v115 = vsub.s32 4, %v114
  %v116 = vrot.slane %v95, %v115
  %122 = vmatprep.subr.mxu0 %v91
  %123 = vmatpush1.msra.mxu0 %v90
  %124 = vmatprep.subr.mxu0 %v86
  %125 = vmatpush1.msra.mxu0 %v85
  %126 = vmatprep.subr.mxu0 %v81
  %127 = vmatpush1.msra.mxu0 %v80
  %128 = vmatprep.subr.mxu0 %v76
  %129 = vmatpush1.msra.mxu0 %v75
  %130 = vmatprep.subr.mxu0 %v71
  %131 = vmatpush1.msra.mxu0 %v70
  %132 = vmatprep.subr.mxu0 %v66
  %133 = vmatpush1.msra.mxu0 %v65
  %134 = vmatprep.subr.mxu0 %v61
  %135 = vmatpush1.msra.mxu0 %v60
  %136 = vmatprep.subr.mxu0 %v56
  %137 = vmatpush1.msra.mxu0 %v55
  %138 = vmatprep.subr.mxu0 %v51
  %139 = vmatpush1.msra.mxu0 %v50
  %140 = vmatprep.subr.mxu0 %v46
  %141 = vmatpush1.msra.mxu0 %v45
  %142 = vmatprep.subr.mxu0 %v41
  %143 = vmatpush1.msra.mxu0 %v40
  %144 = vmatprep.subr.mxu0 %v36
  %145 = vmatpush1.msra.mxu0 %v35
  %146 = vmatprep.subr.mxu0 %v31
  %147 = vmatpush1.msra.mxu0 %v30
  %148 = vmatprep.subr.mxu0 %v26
  %149 = vmatpush1.msra.mxu0 %v25
  %150 = vmatprep.subr.mxu0 %v21
  %151 = vmatpush1.msra.mxu0 %v20
  %152 = vmatprep.subr.mxu0 %v16
  %153 = vmatpush1.msra.mxu0 %v15
  %154 = vmatprep.subr.mxu0 0.0
  %155 = vmatpush2.msra.mxu0 0.0
  %156 = vmatprep.subr.mxu0 0.0
  %157 = vmatpush2.msra.mxu0 0.0
  %158 = vmatprep.subr.mxu0 0.0
  %159 = vmatpush2.msra.mxu0 0.0
  %160 = vmatprep.subr.mxu0 0.0
  %161 = vmatpush2.msra.mxu0 0.0
  %162 = vmatprep.subr.mxu0 0.0
  %163 = vmatpush2.msra.mxu0 0.0
  %164 = vmatprep.subr.mxu0 0.0
  %165 = vmatpush2.msra.mxu0 0.0
  %166 = vmatprep.subr.mxu0 0.0
  %167 = vmatpush2.msra.mxu0 0.0
  %168 = vmatprep.subr.mxu0 0.0
  %169 = vmatpush2.msra.mxu0 0.0
  %170 = vmatprep.subr.mxu0 0.0
  %171 = vmatpush2.msra.mxu0 0.0
  %172 = vmatprep.subr.mxu0 0.0
  %173 = vmatpush2.msra.mxu0 0.0
  %174 = vmatprep.subr.mxu0 0.0
  %175 = vmatpush2.msra.mxu0 0.0
  %176 = vmatprep.subr.mxu0 0.0
  %177 = vmatpush2.msra.mxu0 0.0
  %178 = vmatprep.subr.mxu0 0.0
  %179 = vmatpush2.msra.mxu0 0.0
  %180 = vmatprep.subr.mxu0 0.0
  %181 = vmatpush2.msra.mxu0 0.0
  %182 = vmatprep.subr.mxu0 0.0
  %183 = vmatpush2.msra.mxu0 0.0
  %184 = vmatprep.subr.mxu0 0.0
  %185 = vmatpush2.msra.mxu0 0.0
  %186 = vmatprep.mubr.f32.mxu0 0.0
  %187 = vmatmul.mubr.f32.gmra.mxu0 %v14
  %v188 = vpop.f32.mrf.mxu0
  %v189 = vadd.f32 %v100, %v188
  %v190 = vpop.f32.mrf.mxu0
  %v191 = vadd.f32 %v104, %v190
  %192 = vdwg.mxu0
  %193 = vmatprep.subr.mxu0 %v93
  %194 = vmatpush1.msra.mxu0 %v92
  %195 = vmatprep.subr.mxu0 %v88
  %196 = vmatpush1.msra.mxu0 %v87
  %197 = vmatprep.subr.mxu0 %v83
  %198 = vmatpush1.msra.mxu0 %v82
  %199 = vmatprep.subr.mxu0 %v78
  %200 = vmatpush1.msra.mxu0 %v77
  %201 = vmatprep.subr.mxu0 %v73
  %202 = vmatpush1.msra.mxu0 %v72
  %203 = vmatprep.subr.mxu0 %v68
  %204 = vmatpush1.msra.mxu0 %v67
  %205 = vmatprep.subr.mxu0 %v63
  %206 = vmatpush1.msra.mxu0 %v62
  %207 = vmatprep.subr.mxu0 %v58
  %208 = vmatpush1.msra.mxu0 %v57
  %209 = vmatprep.subr.mxu0 %v53
  %210 = vmatpush1.msra.mxu0 %v52
  %211 = vmatprep.subr.mxu0 %v48
  %212 = vmatpush1.msra.mxu0 %v47
  %213 = vmatprep.subr.mxu0 %v43
  %214 = vmatpush1.msra.mxu0 %v42
  %215 = vmatprep.subr.mxu0 %v38
  %216 = vmatpush1.msra.mxu0 %v37
  %217 = vmatprep.subr.mxu0 %v33
  %218 = vmatpush1.msra.mxu0 %v32
  %219 = vmatprep.subr.mxu0 %v28
  %220 = vmatpush1.msra.mxu0 %v27
  %221 = vmatprep.subr.mxu0 %v23
  %222 = vmatpush1.msra.mxu0 %v22
  %223 = vmatprep.subr.mxu0 %v18
  %224 = vmatpush1.msra.mxu0 %v17
  %225 = vmatprep.subr.mxu0 0.0
  %226 = vmatpush2.msra.mxu0 0.0
  %227 = vmatprep.subr.mxu0 0.0
  %228 = vmatpush2.msra.mxu0 0.0
  %229 = vmatprep.subr.mxu0 0.0
  %230 = vmatpush2.msra.mxu0 0.0
  %231 = vmatprep.subr.mxu0 0.0
  %232 = vmatpush2.msra.mxu0 0.0
  %233 = vmatprep.subr.mxu0 0.0
  %234 = vmatpush2.msra.mxu0 0.0
  %235 = vmatprep.subr.mxu0 0.0
  %236 = vmatpush2.msra.mxu0 0.0
  %237 = vmatprep.subr.mxu0 0.0
  %238 = vmatpush2.msra.mxu0 0.0
  %239 = vmatprep.subr.mxu0 0.0
  %240 = vmatpush2.msra.mxu0 0.0
  %241 = vmatprep.subr.mxu0 0.0
  %242 = vmatpush2.msra.mxu0 0.0
  %243 = vmatprep.subr.mxu0 0.0
  %244 = vmatpush2.msra.mxu0 0.0
  %245 = vmatprep.subr.mxu0 0.0
  %246 = vmatpush2.msra.mxu0 0.0
  %247 = vmatprep.subr.mxu0 0.0
  %248 = vmatpush2.msra.mxu0 0.0
  %249 = vmatprep.subr.mxu0 0.0
  %250 = vmatpush2.msra.mxu0 0.0
  %251 = vmatprep.subr.mxu0 0.0
  %252 = vmatpush2.msra.mxu0 0.0
  %253 = vmatprep.subr.mxu0 0.0
  %254 = vmatpush2.msra.mxu0 0.0
  %255 = vmatprep.subr.mxu0 0.0
  %256 = vmatpush2.msra.mxu0 0.0
  %257 = vmatprep.mubr.f32.mxu0 0.0
  %258 = vmatmul.mubr.f32.gmra.mxu0 %v14
  %v259 = vpop.f32.mrf.mxu0
  %v260 = vadd.f32 %v108, %v259
  %v261 = vpop.f32.mrf.mxu0
  %v262 = vadd.f32 %v112, %v261
  %263 = vdwg.mxu0
  %264 = vmatprep.subr.mxu0 0.0
  %265 = vmatpush1.msra.mxu0 %v94
  %266 = vmatprep.subr.mxu0 0.0
  %267 = vmatpush1.msra.mxu0 %v89
  %268 = vmatprep.subr.mxu0 0.0
  %269 = vmatpush1.msra.mxu0 %v84
  %270 = vmatprep.subr.mxu0 0.0
  %271 = vmatpush1.msra.mxu0 %v79
  %272 = vmatprep.subr.mxu0 0.0
  %273 = vmatpush1.msra.mxu0 %v74
  %274 = vmatprep.subr.mxu0 0.0
  %275 = vmatpush1.msra.mxu0 %v69
  %276 = vmatprep.subr.mxu0 0.0
  %277 = vmatpush1.msra.mxu0 %v64
  %278 = vmatprep.subr.mxu0 0.0
  %279 = vmatpush1.msra.mxu0 %v59
  %280 = vmatprep.subr.mxu0 0.0
  %281 = vmatpush1.msra.mxu0 %v54
  %282 = vmatprep.subr.mxu0 0.0
  %283 = vmatpush1.msra.mxu0 %v49
  %284 = vmatprep.subr.mxu0 0.0
  %285 = vmatpush1.msra.mxu0 %v44
  %286 = vmatprep.subr.mxu0 0.0
  %287 = vmatpush1.msra.mxu0 %v39
  %288 = vmatprep.subr.mxu0 0.0
  %289 = vmatpush1.msra.mxu0 %v34
  %290 = vmatprep.subr.mxu0 0.0
  %291 = vmatpush1.msra.mxu0 %v29
  %292 = vmatprep.subr.mxu0 0.0
  %293 = vmatpush1.msra.mxu0 %v24
  %294 = vmatprep.subr.mxu0 0.0
  %295 = vmatpush1.msra.mxu0 %v19
  %296 = vmatprep.subr.mxu0 0.0
  %297 = vmatpush2.msra.mxu0 0.0
  %298 = vmatprep.subr.mxu0 0.0
  %299 = vmatpush2.msra.mxu0 0.0
  %300 = vmatprep.subr.mxu0 0.0
  %301 = vmatpush2.msra.mxu0 0.0
  %302 = vmatprep.subr.mxu0 0.0
  %303 = vmatpush2.msra.mxu0 0.0
  %304 = vmatprep.subr.mxu0 0.0
  %305 = vmatpush2.msra.mxu0 0.0
  %306 = vmatprep.subr.mxu0 0.0
  %307 = vmatpush2.msra.mxu0 0.0
  %308 = vmatprep.subr.mxu0 0.0
  %309 = vmatpush2.msra.mxu0 0.0
  %310 = vmatprep.subr.mxu0 0.0
  %311 = vmatpush2.msra.mxu0 0.0
  %312 = vmatprep.subr.mxu0 0.0
  %313 = vmatpush2.msra.mxu0 0.0
  %314 = vmatprep.subr.mxu0 0.0
  %315 = vmatpush2.msra.mxu0 0.0
  %316 = vmatprep.subr.mxu0 0.0
  %317 = vmatpush2.msra.mxu0 0.0
  %318 = vmatprep.subr.mxu0 0.0
  %319 = vmatpush2.msra.mxu0 0.0
  %320 = vmatprep.subr.mxu0 0.0
  %321 = vmatpush2.msra.mxu0 0.0
  %322 = vmatprep.subr.mxu0 0.0
  %323 = vmatpush2.msra.mxu0 0.0
  %324 = vmatprep.subr.mxu0 0.0
  %325 = vmatpush2.msra.mxu0 0.0
  %326 = vmatprep.subr.mxu0 0.0
  %327 = vmatpush2.msra.mxu0 0.0
  %328 = vmatprep.mubr.f32.mxu0 0.0
  %329 = vmatmul.mubr.f32.gmra.mxu0 %v14
  %v330 = vpop.f32.mrf.mxu0
  %v331 = vadd.f32 %v116, %v330
  %v332 = vpop.f32.mrf.mxu0
  %333 = vdwg.mxu0
  %334 = vst [vmem:[%s3] sm:$0xff] %v189
  %335 = vst [vmem:[%s3 + $0x8] sm:$0xff] %v191
  %336 = vst [vmem:[%s3 + $0x10] sm:$0xff] %v260
  %337 = vst [vmem:[%s3 + $0x18] sm:$0xff] %v262
  %338 = vst [vmem:[%s3 + $0x20] sm:$0xff] %v331
  // Predicated region
  $region14: #{_lambda_.33} parent=0 // pred_check
    _
  $region15: #{_lambda_.33} parent=0 // pred_check_branch
    %340 = sbr.rel (0) target = $region17
  $region16: #{_lambda_.33} parent=0 // pred_region
    _
  $region17: #{_lambda_.33} parent=0 // pred_fallthru
    _
  // Predicated region
  $region18: #{_lambda_.33} parent=0 // pred_check
    _
  $region19: #{_lambda_.33} parent=0 // pred_check_branch
    %342 = sbr.rel (0) target = $region21
  $region20: #{_lambda_.33} parent=0 // pred_region
    _
  $region21: #{_lambda_.33} parent=0 // pred_fallthru
    _

</llo_original>
